<compile_context>
chip_gen: v7x
topology: tpu7x:2x2x1
jax: 0.10.0
libtpu: 0.0.40
codegen_flags: <defaults>
</compile_context>

<pallas_src>
import functools

import jax
import jax.numpy as jnp
from jax.experimental import pallas as pl
from jax.experimental.pallas import tpu as pltpu


# ----------------------------------------------------------------------------
# Pallas kernels
# ----------------------------------------------------------------------------
def conv_relu_bn_kernel(x_ref, w_ref, bss_ref, o_ref, *, q_count, p_block, p_out):
    """Fused Conv2d (im2col matmul) + bias + ReLU + BatchNorm [+ 2x2 MaxPool].

    x_ref:   (1, KC, Q*Pp)   bf16  (Q=1 no pool; Q=4 one slab per pool quadrant)
    w_ref:   (Cout, KC)      bf16
    bss_ref: (Cout, 3)       f32 columns: [bias, bn_scale, bn_shift]
    o_ref:   (1, Cout, P)    bf16  (lane-dense: spatial axis on lanes)
    """
    # Single MXU matmul over all quadrants at once.
    acc = jnp.dot(w_ref[...], x_ref[0],
                  preferred_element_type=jnp.float32)       # (Cout, Q*Pp) f32
    bias = bss_ref[:, 0:1]
    scale = bss_ref[:, 1:2]
    shift = bss_ref[:, 2:3]
    y = jnp.maximum(acc + bias, 0.0) * scale + shift          # bias+ReLU, BN (eval)

    # 2x2 MaxPool: max over quadrants via 128-aligned static lane slices.
    out = y[:, 0:p_block]
    for q in range(1, q_count):                               # static unroll
        out = jnp.maximum(out, y[:, q * p_block:(q + 1) * p_block])

    o_ref[0] = out[:, 0:p_out].astype(o_ref.dtype)


def mlp_kernel(x_ref, w1_ref, b1_ref, w2_ref, b2_ref, o_ref):
    """Linear(4608,64) -> ReLU -> Linear(64,2), fully fused."""
    h = jnp.dot(x_ref[...], w1_ref[...],
                preferred_element_type=jnp.float32) + b1_ref[...]
    h = jnp.maximum(h, 0.0)
    o_ref[...] = (jnp.dot(h.astype(w2_ref.dtype), w2_ref[...],
                          preferred_element_type=jnp.float32)
                  + b2_ref[...]).astype(o_ref.dtype)


# ----------------------------------------------------------------------------
# Wrappers (host-side glue: im2col, padding, parameter folding)
# ----------------------------------------------------------------------------
def _round_up(x, m):
    return (x + m - 1) // m * m


def _im2col_nchw_t(x_bf16, KH, KW, pool):
    """Transposed im2col: (B,Cin,H,W) -> (B, KC, Q*Pp) with KC=(Cin,KH,KW) order."""
    B, Cin, H, W = x_bf16.shape
    Ho, Wo = H - KH + 1, W - KW + 1
    KC = Cin * KH * KW

    if pool:
        Ho2, Wo2 = Ho // 2, Wo // 2
        P = Ho2 * Wo2
        Pp = _round_up(P, 128)
        quads = []
        for dy in (0, 1):
            for dx in (0, 1):
                cols = []
                for ky in range(KH):
                    for kx in range(KW):
                        cols.append(
                            x_bf16[:, :,
                                   dy + ky: dy + ky + 2 * Ho2: 2,
                                   dx + kx: dx + kx + 2 * Wo2: 2
                                   ].reshape(B, Cin, P))
                q = jnp.stack(cols, axis=2).reshape(B, KC, P)
                quads.append(jnp.pad(q, ((0, 0), (0, 0), (0, Pp - P))))
        xcol = jnp.concatenate(quads, axis=-1)                 # (B, KC, 4*Pp)
        return xcol, P, Pp, 4, Ho2, Wo2
    else:
        P = Ho * Wo
        Pp = _round_up(P, 128)
        cols = []
        for ky in range(KH):
            for kx in range(KW):
                cols.append(x_bf16[:, :, ky:ky + Ho, kx:kx + Wo].reshape(B, Cin, P))
        xcol = jnp.stack(cols, axis=2).reshape(B, KC, P)
        xcol = jnp.pad(xcol, ((0, 0), (0, 0), (0, Pp - P)))    # (B, KC, Pp)
        return xcol, P, Pp, 1, Ho, Wo


def conv2d_relu_bn(x_nchw_bf16, w_oihw, b, gamma, beta, mean, var, *,
                   pool=False, eps=1e-5):
    Cout, Cin, KH, KW = w_oihw.shape
    KC = Cin * KH * KW

    xcol, P, Pp, Q, out_h, out_w = _im2col_nchw_t(x_nchw_bf16, KH, KW, pool)
    B = xcol.shape[0]

    wmat = w_oihw.reshape(Cout, KC).astype(jnp.bfloat16)
    scale = gamma / jnp.sqrt(var + eps)
    shift = beta - mean * scale
    bss = jnp.stack([b, scale, shift], axis=1).astype(jnp.float32)   # (Cout, 3)

    kernel = functools.partial(conv_relu_bn_kernel,
                               q_count=Q, p_block=Pp, p_out=P)

    out = pl.pallas_call(
        kernel,
        out_shape=jax.ShapeDtypeStruct((B, Cout, P), jnp.bfloat16),
        grid=(B,),
        in_specs=[
            pl.BlockSpec((1, KC, Q * Pp), lambda i: (i, 0, 0)),
            pl.BlockSpec((Cout, KC), lambda i: (0, 0)),
            pl.BlockSpec((Cout, 3), lambda i: (0, 0)),
        ],
        out_specs=pl.BlockSpec((1, Cout, P), lambda i: (i, 0, 0)),
        compiler_params=pltpu.CompilerParams(
            dimension_semantics=("parallel",)),
    )(xcol, wmat, bss)

    return out.reshape(B, Cout, out_h, out_w)                  # NCHW, bf16


def mlp(x_bf16, w1, b1, w2, b2):
    B = x_bf16.shape[0]
    return pl.pallas_call(
        mlp_kernel,
        out_shape=jax.ShapeDtypeStruct((B, w2.shape[1]), jnp.float32),
    )(x_bf16, w1.astype(jnp.bfloat16), b1.reshape(1, -1).astype(jnp.float32),
      w2.astype(jnp.bfloat16), b2.reshape(1, -1).astype(jnp.float32))


# ----------------------------------------------------------------------------
# Parameters (deterministic, synthetic; torch OIHW layout)
# ----------------------------------------------------------------------------
def _conv_params(key, cout, cin, k):
    k1, k2, k3, k4, k5, k6 = jax.random.split(key, 6)
    fan_in = cin * k * k
    w = jax.random.normal(k1, (cout, cin, k, k), jnp.float32) / jnp.sqrt(fan_in)
    b = 0.01 * jax.random.normal(k2, (cout,), jnp.float32)
    gamma = 1.0 + 0.1 * jax.random.normal(k3, (cout,), jnp.float32)
    beta = 0.1 * jax.random.normal(k4, (cout,), jnp.float32)
    mean = 0.1 * jax.random.normal(k5, (cout,), jnp.float32)
    var = 1.0 + 0.1 * jax.random.uniform(k6, (cout,), jnp.float32)
    return (w, b, gamma, beta, mean, var)


def init_params(key):
    ks = jax.random.split(key, 5)
    params = {
        "conv1": _conv_params(ks[0], 16, 3, 5),
        "conv2": _conv_params(ks[1], 16, 16, 3),
        "conv3": _conv_params(ks[2], 32, 16, 3),
        "conv4": _conv_params(ks[3], 32, 32, 3),
    }
    kf1, kf2, kf3, kf4 = jax.random.split(ks[4], 4)
    nin = 32 * 12 * 12
    # Conv output is already NCHW-flattened (C,H,W) order -> torch flatten
    # order; no row permutation of w1 needed.
    w1 = jax.random.normal(kf1, (nin, 64), jnp.float32) / jnp.sqrt(nin)
    b1 = 0.01 * jax.random.normal(kf2, (64,), jnp.float32)
    w2 = jax.random.normal(kf3, (64, 2), jnp.float32) / jnp.sqrt(64.0)
    b2 = 0.01 * jax.random.normal(kf4, (2,), jnp.float32)
    params["fc"] = (w1, b1, w2, b2)
    return params


# ----------------------------------------------------------------------------
# Full forward (matches Module1.forward)
# ----------------------------------------------------------------------------
@jax.jit
def module1_forward(x_nchw, params):
    x = x_nchw.astype(jnp.bfloat16)                              # NCHW throughout
    x = conv2d_relu_bn(x, *params["conv1"])                      # Conv(3,16,5)+ReLU+BN      62->58
    x = conv2d_relu_bn(x, *params["conv2"], pool=True)           # Conv(16,16,3)+ReLU+BN+Pool 58->56->28
    x = conv2d_relu_bn(x, *params["conv3"])                      # Conv(16,32,3)+ReLU+BN      28->26
    x = conv2d_relu_bn(x, *params["conv4"], pool=True)           # Conv(32,32,3)+ReLU+BN+Pool 26->24->12
    x = x.reshape(x.shape[0], -1)                                # (B, 32*12*12), torch flatten order
    return mlp(x, *params["fc"])                                 # Linear->ReLU->Linear


if __name__ == "__main__":
    key = jax.random.PRNGKey(0)
    kx, kp = jax.random.split(key)
    # Input spatial size 62 is what makes the fc input 32*12*12 work out.
    x = jax.random.normal(kx, (2, 3, 62, 62), jnp.float32)
    params = init_params(kp)

    out = module1_forward(x, params)
    out = jax.block_until_ready(out)
    assert out.shape == (2, 2), out.shape
    assert jnp.all(jnp.isfinite(out))
    print("KERNEL_OK")
</pallas_src>

<mosaic_0001>
module attributes {stable_mosaic.version = 11 : i64} {
  func.func @conv_relu_bn_kernel(%arg0: i32, %arg1: memref<1x75x3456xbf16, #tpu.memory_space<vmem>>, %arg2: memref<16x75xbf16, #tpu.memory_space<vmem>>, %arg3: memref<16x3xf32, #tpu.memory_space<vmem>>, %arg4: memref<1x16x3364xbf16, #tpu.memory_space<vmem>>) attributes {dimension_semantics = [#tpu.dimension_semantics<parallel>], iteration_bounds = array<i64: 2>, scalar_prefetch = 0 : i64, scratch_operands = 0 : i64, tpu.core_type = #tpu.core_type<tc>, window_params = [{transform_indices = @transform_0, window_bounds = array<i64: 1, 75, 3456>}, {pipeline_mode = #tpu.pipeline_mode<synchronous>, transform_indices = @transform_1, window_bounds = array<i64: 16, 75>}, {pipeline_mode = #tpu.pipeline_mode<synchronous>, transform_indices = @transform_2, window_bounds = array<i64: 16, 3>}, {transform_indices = @transform_3, window_bounds = array<i64: 1, 16, 3364>}]} {
    %c0 = arith.constant 0 : index
    %c0_0 = arith.constant 0 : index
    %0 = vector.load %arg2[%c0, %c0_0] : memref<16x75xbf16, #tpu.memory_space<vmem>>, vector<16x75xbf16>
    %c0_1 = arith.constant 0 : index
    %c0_2 = arith.constant 0 : index
    %c0_3 = arith.constant 0 : index
    %1 = vector.load %arg1[%c0_1, %c0_2, %c0_3] : memref<1x75x3456xbf16, #tpu.memory_space<vmem>>, vector<1x75x3456xbf16>
    %2 = vector.shape_cast %1 : vector<1x75x3456xbf16> to vector<75x3456xbf16>
    %cst = arith.constant dense<0.000000e+00> : vector<16x3456xf32>
    %3 = tpu.matmul %0, %2, %cst {dimension_numbers = #tpu.dot_dimension_numbers<[1], [0], [0], [1], [0, 0, 1, 1], [], []>} : vector<16x75xbf16>, vector<75x3456xbf16>, vector<16x3456xf32> -> vector<16x3456xf32>
    %c0_4 = arith.constant 0 : index
    %c0_5 = arith.constant 0 : index
    %4 = vector.load %arg3[%c0_4, %c0_5] : memref<16x3xf32, #tpu.memory_space<vmem>>, vector<16x1xf32>
    %c0_6 = arith.constant 0 : index
    %c1 = arith.constant 1 : index
    %5 = vector.load %arg3[%c0_6, %c1] : memref<16x3xf32, #tpu.memory_space<vmem>>, vector<16x1xf32>
    %c0_7 = arith.constant 0 : index
    %c2 = arith.constant 2 : index
    %6 = vector.load %arg3[%c0_7, %c2] : memref<16x3xf32, #tpu.memory_space<vmem>>, vector<16x1xf32>
    %7 = vector.broadcast %4 : vector<16x1xf32> to vector<16x3456xf32>
    %8 = arith.addf %3, %7 : vector<16x3456xf32>
    %cst_8 = arith.constant 0.000000e+00 : f32
    %9 = vector.broadcast %cst_8 : f32 to vector<16x3456xf32>
    %10 = arith.maximumf %8, %9 : vector<16x3456xf32>
    %11 = vector.broadcast %5 : vector<16x1xf32> to vector<16x3456xf32>
    %12 = arith.mulf %10, %11 : vector<16x3456xf32>
    %13 = vector.broadcast %6 : vector<16x1xf32> to vector<16x3456xf32>
    %14 = arith.addf %12, %13 : vector<16x3456xf32>
    %15 = vector.extract_strided_slice %14 {offsets = [0, 0], sizes = [16, 3364], strides = [1, 1]} : vector<16x3456xf32> to vector<16x3364xf32>
    %16 = arith.truncf %15 : vector<16x3364xf32> to vector<16x3364xbf16>
    %c0_9 = arith.constant 0 : index
    %c0_10 = arith.constant 0 : index
    %c0_11 = arith.constant 0 : index
    %17 = vector.load %arg4[%c0_9, %c0_10, %c0_11] : memref<1x16x3364xbf16, #tpu.memory_space<vmem>>, vector<1x16x3364xbf16>
    %18 = vector.shape_cast %17 : vector<1x16x3364xbf16> to vector<16x3364xbf16>
    %19 = vector.shape_cast %16 : vector<16x3364xbf16> to vector<1x16x3364xbf16>
    tpu.vector_store %arg4[%c0_9, %c0_10, %c0_11], %19 {strides = array<i32>} : memref<1x16x3364xbf16, #tpu.memory_space<vmem>>, vector<1x16x3364xbf16>,
    return
  }
  func.func @transform_0(%arg0: i32) -> (i32, i32, i32) {
    %c0_i32 = arith.constant 0 : i32
    %c0_i32_0 = arith.constant 0 : i32
    %c0_i32_1 = arith.constant 0 : i32
    return %arg0, %c0_i32, %c0_i32_0 : i32, i32, i32
  }
  func.func @transform_1(%arg0: i32) -> (i32, i32) {
    %c0_i32 = arith.constant 0 : i32
    %c0_i32_0 = arith.constant 0 : i32
    %c0_i32_1 = arith.constant 0 : i32
    return %c0_i32, %c0_i32_0 : i32, i32
  }
  func.func @transform_2(%arg0: i32) -> (i32, i32) {
    %c0_i32 = arith.constant 0 : i32
    %c0_i32_0 = arith.constant 0 : i32
    %c0_i32_1 = arith.constant 0 : i32
    return %c0_i32, %c0_i32_0 : i32, i32
  }
  func.func @transform_3(%arg0: i32) -> (i32, i32, i32) {
    %c0_i32 = arith.constant 0 : i32
    %c0_i32_0 = arith.constant 0 : i32
    %c0_i32_1 = arith.constant 0 : i32
    return %arg0, %c0_i32, %c0_i32_0 : i32, i32, i32
  }
}

module attributes {stable_mosaic.version = 11 : i64} {
  func.func @conv_relu_bn_kernel(%arg0: i32, %arg1: memref<1x144x3584xbf16, #tpu.memory_space<vmem>>, %arg2: memref<16x144xbf16, #tpu.memory_space<vmem>>, %arg3: memref<16x3xf32, #tpu.memory_space<vmem>>, %arg4: memref<1x16x784xbf16, #tpu.memory_space<vmem>>) attributes {dimension_semantics = [#tpu.dimension_semantics<parallel>], iteration_bounds = array<i64: 2>, scalar_prefetch = 0 : i64, scratch_operands = 0 : i64, tpu.core_type = #tpu.core_type<tc>, window_params = [{transform_indices = @transform_0, window_bounds = array<i64: 1, 144, 3584>}, {pipeline_mode = #tpu.pipeline_mode<synchronous>, transform_indices = @transform_1, window_bounds = array<i64: 16, 144>}, {pipeline_mode = #tpu.pipeline_mode<synchronous>, transform_indices = @transform_2, window_bounds = array<i64: 16, 3>}, {transform_indices = @transform_3, window_bounds = array<i64: 1, 16, 784>}]} {
    %c0 = arith.constant 0 : index
    %c0_0 = arith.constant 0 : index
    %0 = vector.load %arg2[%c0, %c0_0] : memref<16x144xbf16, #tpu.memory_space<vmem>>, vector<16x144xbf16>
    %c0_1 = arith.constant 0 : index
    %c0_2 = arith.constant 0 : index
    %c0_3 = arith.constant 0 : index
    %1 = vector.load %arg1[%c0_1, %c0_2, %c0_3] : memref<1x144x3584xbf16, #tpu.memory_space<vmem>>, vector<1x144x3584xbf16>
    %2 = vector.shape_cast %1 : vector<1x144x3584xbf16> to vector<144x3584xbf16>
    %cst = arith.constant dense<0.000000e+00> : vector<16x3584xf32>
    %3 = tpu.matmul %0, %2, %cst {dimension_numbers = #tpu.dot_dimension_numbers<[1], [0], [0], [1], [0, 0, 1, 1], [], []>} : vector<16x144xbf16>, vector<144x3584xbf16>, vector<16x3584xf32> -> vector<16x3584xf32>
    %c0_4 = arith.constant 0 : index
    %c0_5 = arith.constant 0 : index
    %4 = vector.load %arg3[%c0_4, %c0_5] : memref<16x3xf32, #tpu.memory_space<vmem>>, vector<16x1xf32>
    %c0_6 = arith.constant 0 : index
    %c1 = arith.constant 1 : index
    %5 = vector.load %arg3[%c0_6, %c1] : memref<16x3xf32, #tpu.memory_space<vmem>>, vector<16x1xf32>
    %c0_7 = arith.constant 0 : index
    %c2 = arith.constant 2 : index
    %6 = vector.load %arg3[%c0_7, %c2] : memref<16x3xf32, #tpu.memory_space<vmem>>, vector<16x1xf32>
    %7 = vector.broadcast %4 : vector<16x1xf32> to vector<16x3584xf32>
    %8 = arith.addf %3, %7 : vector<16x3584xf32>
    %cst_8 = arith.constant 0.000000e+00 : f32
    %9 = vector.broadcast %cst_8 : f32 to vector<16x3584xf32>
    %10 = arith.maximumf %8, %9 : vector<16x3584xf32>
    %11 = vector.broadcast %5 : vector<16x1xf32> to vector<16x3584xf32>
    %12 = arith.mulf %10, %11 : vector<16x3584xf32>
    %13 = vector.broadcast %6 : vector<16x1xf32> to vector<16x3584xf32>
    %14 = arith.addf %12, %13 : vector<16x3584xf32>
    %15 = vector.extract_strided_slice %14 {offsets = [0, 0], sizes = [16, 896], strides = [1, 1]} : vector<16x3584xf32> to vector<16x896xf32>
    %16 = vector.extract_strided_slice %14 {offsets = [0, 896], sizes = [16, 896], strides = [1, 1]} : vector<16x3584xf32> to vector<16x896xf32>
    %17 = arith.maximumf %15, %16 : vector<16x896xf32>
    %18 = vector.extract_strided_slice %14 {offsets = [0, 1792], sizes = [16, 896], strides = [1, 1]} : vector<16x3584xf32> to vector<16x896xf32>
    %19 = arith.maximumf %17, %18 : vector<16x896xf32>
    %20 = vector.extract_strided_slice %14 {offsets = [0, 2688], sizes = [16, 896], strides = [1, 1]} : vector<16x3584xf32> to vector<16x896xf32>
    %21 = arith.maximumf %19, %20 : vector<16x896xf32>
    %22 = vector.extract_strided_slice %21 {offsets = [0, 0], sizes = [16, 784], strides = [1, 1]} : vector<16x896xf32> to vector<16x784xf32>
    %23 = arith.truncf %22 : vector<16x784xf32> to vector<16x784xbf16>
    %c0_9 = arith.constant 0 : index
    %c0_10 = arith.constant 0 : index
    %c0_11 = arith.constant 0 : index
    %24 = vector.load %arg4[%c0_9, %c0_10, %c0_11] : memref<1x16x784xbf16, #tpu.memory_space<vmem>>, vector<1x16x784xbf16>
    %25 = vector.shape_cast %24 : vector<1x16x784xbf16> to vector<16x784xbf16>
    %26 = vector.shape_cast %23 : vector<16x784xbf16> to vector<1x16x784xbf16>
    tpu.vector_store %arg4[%c0_9, %c0_10, %c0_11], %26 {strides = array<i32>} : memref<1x16x784xbf16, #tpu.memory_space<vmem>>, vector<1x16x784xbf16>,
    return
  }
  func.func @transform_0(%arg0: i32) -> (i32, i32, i32) {
    %c0_i32 = arith.constant 0 : i32
    %c0_i32_0 = arith.constant 0 : i32
    %c0_i32_1 = arith.constant 0 : i32
    return %arg0, %c0_i32, %c0_i32_0 : i32, i32, i32
  }
  func.func @transform_1(%arg0: i32) -> (i32, i32) {
    %c0_i32 = arith.constant 0 : i32
    %c0_i32_0 = arith.constant 0 : i32
    %c0_i32_1 = arith.constant 0 : i32
    return %c0_i32, %c0_i32_0 : i32, i32
  }
  func.func @transform_2(%arg0: i32) -> (i32, i32) {
    %c0_i32 = arith.constant 0 : i32
    %c0_i32_0 = arith.constant 0 : i32
    %c0_i32_1 = arith.constant 0 : i32
    return %c0_i32, %c0_i32_0 : i32, i32
  }
  func.func @transform_3(%arg0: i32) -> (i32, i32, i32) {
    %c0_i32 = arith.constant 0 : i32
    %c0_i32_0 = arith.constant 0 : i32
    %c0_i32_1 = arith.constant 0 : i32
    return %arg0, %c0_i32, %c0_i32_0 : i32, i32, i32
  }
}

module attributes {stable_mosaic.version = 11 : i64} {
  func.func @conv_relu_bn_kernel(%arg0: i32, %arg1: memref<1x144x768xbf16, #tpu.memory_space<vmem>>, %arg2: memref<32x144xbf16, #tpu.memory_space<vmem>>, %arg3: memref<32x3xf32, #tpu.memory_space<vmem>>, %arg4: memref<1x32x676xbf16, #tpu.memory_space<vmem>>) attributes {dimension_semantics = [#tpu.dimension_semantics<parallel>], iteration_bounds = array<i64: 2>, scalar_prefetch = 0 : i64, scratch_operands = 0 : i64, tpu.core_type = #tpu.core_type<tc>, window_params = [{transform_indices = @transform_0, window_bounds = array<i64: 1, 144, 768>}, {pipeline_mode = #tpu.pipeline_mode<synchronous>, transform_indices = @transform_1, window_bounds = array<i64: 32, 144>}, {pipeline_mode = #tpu.pipeline_mode<synchronous>, transform_indices = @transform_2, window_bounds = array<i64: 32, 3>}, {transform_indices = @transform_3, window_bounds = array<i64: 1, 32, 676>}]} {
    %c0 = arith.constant 0 : index
    %c0_0 = arith.constant 0 : index
    %0 = vector.load %arg2[%c0, %c0_0] : memref<32x144xbf16, #tpu.memory_space<vmem>>, vector<32x144xbf16>
    %c0_1 = arith.constant 0 : index
    %c0_2 = arith.constant 0 : index
    %c0_3 = arith.constant 0 : index
    %1 = vector.load %arg1[%c0_1, %c0_2, %c0_3] : memref<1x144x768xbf16, #tpu.memory_space<vmem>>, vector<1x144x768xbf16>
    %2 = vector.shape_cast %1 : vector<1x144x768xbf16> to vector<144x768xbf16>
    %cst = arith.constant dense<0.000000e+00> : vector<32x768xf32>
    %3 = tpu.matmul %0, %2, %cst {dimension_numbers = #tpu.dot_dimension_numbers<[1], [0], [0], [1], [0, 0, 1, 1], [], []>} : vector<32x144xbf16>, vector<144x768xbf16>, vector<32x768xf32> -> vector<32x768xf32>
    %c0_4 = arith.constant 0 : index
    %c0_5 = arith.constant 0 : index
    %4 = vector.load %arg3[%c0_4, %c0_5] : memref<32x3xf32, #tpu.memory_space<vmem>>, vector<32x1xf32>
    %c0_6 = arith.constant 0 : index
    %c1 = arith.constant 1 : index
    %5 = vector.load %arg3[%c0_6, %c1] : memref<32x3xf32, #tpu.memory_space<vmem>>, vector<32x1xf32>
    %c0_7 = arith.constant 0 : index
    %c2 = arith.constant 2 : index
    %6 = vector.load %arg3[%c0_7, %c2] : memref<32x3xf32, #tpu.memory_space<vmem>>, vector<32x1xf32>
    %7 = vector.broadcast %4 : vector<32x1xf32> to vector<32x768xf32>
    %8 = arith.addf %3, %7 : vector<32x768xf32>
    %cst_8 = arith.constant 0.000000e+00 : f32
    %9 = vector.broadcast %cst_8 : f32 to vector<32x768xf32>
    %10 = arith.maximumf %8, %9 : vector<32x768xf32>
    %11 = vector.broadcast %5 : vector<32x1xf32> to vector<32x768xf32>
    %12 = arith.mulf %10, %11 : vector<32x768xf32>
    %13 = vector.broadcast %6 : vector<32x1xf32> to vector<32x768xf32>
    %14 = arith.addf %12, %13 : vector<32x768xf32>
    %15 = vector.extract_strided_slice %14 {offsets = [0, 0], sizes = [32, 676], strides = [1, 1]} : vector<32x768xf32> to vector<32x676xf32>
    %16 = arith.truncf %15 : vector<32x676xf32> to vector<32x676xbf16>
    %c0_9 = arith.constant 0 : index
    %c0_10 = arith.constant 0 : index
    %c0_11 = arith.constant 0 : index
    %17 = vector.load %arg4[%c0_9, %c0_10, %c0_11] : memref<1x32x676xbf16, #tpu.memory_space<vmem>>, vector<1x32x676xbf16>
    %18 = vector.shape_cast %17 : vector<1x32x676xbf16> to vector<32x676xbf16>
    %19 = vector.shape_cast %16 : vector<32x676xbf16> to vector<1x32x676xbf16>
    tpu.vector_store %arg4[%c0_9, %c0_10, %c0_11], %19 {strides = array<i32>} : memref<1x32x676xbf16, #tpu.memory_space<vmem>>, vector<1x32x676xbf16>,
    return
  }
  func.func @transform_0(%arg0: i32) -> (i32, i32, i32) {
    %c0_i32 = arith.constant 0 : i32
    %c0_i32_0 = arith.constant 0 : i32
    %c0_i32_1 = arith.constant 0 : i32
    return %arg0, %c0_i32, %c0_i32_0 : i32, i32, i32
  }
  func.func @transform_1(%arg0: i32) -> (i32, i32) {
    %c0_i32 = arith.constant 0 : i32
    %c0_i32_0 = arith.constant 0 : i32
    %c0_i32_1 = arith.constant 0 : i32
    return %c0_i32, %c0_i32_0 : i32, i32
  }
  func.func @transform_2(%arg0: i32) -> (i32, i32) {
    %c0_i32 = arith.constant 0 : i32
    %c0_i32_0 = arith.constant 0 : i32
    %c0_i32_1 = arith.constant 0 : i32
    return %c0_i32, %c0_i32_0 : i32, i32
  }
  func.func @transform_3(%arg0: i32) -> (i32, i32, i32) {
    %c0_i32 = arith.constant 0 : i32
    %c0_i32_0 = arith.constant 0 : i32
    %c0_i32_1 = arith.constant 0 : i32
    return %arg0, %c0_i32, %c0_i32_0 : i32, i32, i32
  }
}

module attributes {stable_mosaic.version = 11 : i64} {
  func.func @conv_relu_bn_kernel(%arg0: i32, %arg1: memref<1x288x1024xbf16, #tpu.memory_space<vmem>>, %arg2: memref<32x288xbf16, #tpu.memory_space<vmem>>, %arg3: memref<32x3xf32, #tpu.memory_space<vmem>>, %arg4: memref<1x32x144xbf16, #tpu.memory_space<vmem>>) attributes {dimension_semantics = [#tpu.dimension_semantics<parallel>], iteration_bounds = array<i64: 2>, scalar_prefetch = 0 : i64, scratch_operands = 0 : i64, tpu.core_type = #tpu.core_type<tc>, window_params = [{transform_indices = @transform_0, window_bounds = array<i64: 1, 288, 1024>}, {pipeline_mode = #tpu.pipeline_mode<synchronous>, transform_indices = @transform_1, window_bounds = array<i64: 32, 288>}, {pipeline_mode = #tpu.pipeline_mode<synchronous>, transform_indices = @transform_2, window_bounds = array<i64: 32, 3>}, {transform_indices = @transform_3, window_bounds = array<i64: 1, 32, 144>}]} {
    %c0 = arith.constant 0 : index
    %c0_0 = arith.constant 0 : index
    %0 = vector.load %arg2[%c0, %c0_0] : memref<32x288xbf16, #tpu.memory_space<vmem>>, vector<32x288xbf16>
    %c0_1 = arith.constant 0 : index
    %c0_2 = arith.constant 0 : index
    %c0_3 = arith.constant 0 : index
    %1 = vector.load %arg1[%c0_1, %c0_2, %c0_3] : memref<1x288x1024xbf16, #tpu.memory_space<vmem>>, vector<1x288x1024xbf16>
    %2 = vector.shape_cast %1 : vector<1x288x1024xbf16> to vector<288x1024xbf16>
    %cst = arith.constant dense<0.000000e+00> : vector<32x1024xf32>
    %3 = tpu.matmul %0, %2, %cst {dimension_numbers = #tpu.dot_dimension_numbers<[1], [0], [0], [1], [0, 0, 1, 1], [], []>} : vector<32x288xbf16>, vector<288x1024xbf16>, vector<32x1024xf32> -> vector<32x1024xf32>
    %c0_4 = arith.constant 0 : index
    %c0_5 = arith.constant 0 : index
    %4 = vector.load %arg3[%c0_4, %c0_5] : memref<32x3xf32, #tpu.memory_space<vmem>>, vector<32x1xf32>
    %c0_6 = arith.constant 0 : index
    %c1 = arith.constant 1 : index
    %5 = vector.load %arg3[%c0_6, %c1] : memref<32x3xf32, #tpu.memory_space<vmem>>, vector<32x1xf32>
    %c0_7 = arith.constant 0 : index
    %c2 = arith.constant 2 : index
    %6 = vector.load %arg3[%c0_7, %c2] : memref<32x3xf32, #tpu.memory_space<vmem>>, vector<32x1xf32>
    %7 = vector.broadcast %4 : vector<32x1xf32> to vector<32x1024xf32>
    %8 = arith.addf %3, %7 : vector<32x1024xf32>
    %cst_8 = arith.constant 0.000000e+00 : f32
    %9 = vector.broadcast %cst_8 : f32 to vector<32x1024xf32>
    %10 = arith.maximumf %8, %9 : vector<32x1024xf32>
    %11 = vector.broadcast %5 : vector<32x1xf32> to vector<32x1024xf32>
    %12 = arith.mulf %10, %11 : vector<32x1024xf32>
    %13 = vector.broadcast %6 : vector<32x1xf32> to vector<32x1024xf32>
    %14 = arith.addf %12, %13 : vector<32x1024xf32>
    %15 = vector.extract_strided_slice %14 {offsets = [0, 0], sizes = [32, 256], strides = [1, 1]} : vector<32x1024xf32> to vector<32x256xf32>
    %16 = vector.extract_strided_slice %14 {offsets = [0, 256], sizes = [32, 256], strides = [1, 1]} : vector<32x1024xf32> to vector<32x256xf32>
    %17 = arith.maximumf %15, %16 : vector<32x256xf32>
    %18 = vector.extract_strided_slice %14 {offsets = [0, 512], sizes = [32, 256], strides = [1, 1]} : vector<32x1024xf32> to vector<32x256xf32>
    %19 = arith.maximumf %17, %18 : vector<32x256xf32>
    %20 = vector.extract_strided_slice %14 {offsets = [0, 768], sizes = [32, 256], strides = [1, 1]} : vector<32x1024xf32> to vector<32x256xf32>
    %21 = arith.maximumf %19, %20 : vector<32x256xf32>
    %22 = vector.extract_strided_slice %21 {offsets = [0, 0], sizes = [32, 144], strides = [1, 1]} : vector<32x256xf32> to vector<32x144xf32>
    %23 = arith.truncf %22 : vector<32x144xf32> to vector<32x144xbf16>
    %c0_9 = arith.constant 0 : index
    %c0_10 = arith.constant 0 : index
    %c0_11 = arith.constant 0 : index
    %24 = vector.load %arg4[%c0_9, %c0_10, %c0_11] : memref<1x32x144xbf16, #tpu.memory_space<vmem>>, vector<1x32x144xbf16>
    %25 = vector.shape_cast %24 : vector<1x32x144xbf16> to vector<32x144xbf16>
    %26 = vector.shape_cast %23 : vector<32x144xbf16> to vector<1x32x144xbf16>
    tpu.vector_store %arg4[%c0_9, %c0_10, %c0_11], %26 {strides = array<i32>} : memref<1x32x144xbf16, #tpu.memory_space<vmem>>, vector<1x32x144xbf16>,
    return
  }
  func.func @transform_0(%arg0: i32) -> (i32, i32, i32) {
    %c0_i32 = arith.constant 0 : i32
    %c0_i32_0 = arith.constant 0 : i32
    %c0_i32_1 = arith.constant 0 : i32
    return %arg0, %c0_i32, %c0_i32_0 : i32, i32, i32
  }
  func.func @transform_1(%arg0: i32) -> (i32, i32) {
    %c0_i32 = arith.constant 0 : i32
    %c0_i32_0 = arith.constant 0 : i32
    %c0_i32_1 = arith.constant 0 : i32
    return %c0_i32, %c0_i32_0 : i32, i32
  }
  func.func @transform_2(%arg0: i32) -> (i32, i32) {
    %c0_i32 = arith.constant 0 : i32
    %c0_i32_0 = arith.constant 0 : i32
    %c0_i32_1 = arith.constant 0 : i32
    return %c0_i32, %c0_i32_0 : i32, i32
  }
  func.func @transform_3(%arg0: i32) -> (i32, i32, i32) {
    %c0_i32 = arith.constant 0 : i32
    %c0_i32_0 = arith.constant 0 : i32
    %c0_i32_1 = arith.constant 0 : i32
    return %arg0, %c0_i32, %c0_i32_0 : i32, i32, i32
  }
}

module attributes {stable_mosaic.version = 11 : i64} {
  func.func @mlp_kernel(%arg0: memref<2x4608xbf16, #tpu.memory_space<vmem>>, %arg1: memref<4608x64xbf16, #tpu.memory_space<vmem>>, %arg2: memref<1x64xf32, #tpu.memory_space<vmem>>, %arg3: memref<64x2xbf16, #tpu.memory_space<vmem>>, %arg4: memref<1x2xf32, #tpu.memory_space<vmem>>, %arg5: memref<2x2xf32, #tpu.memory_space<vmem>>) attributes {dimension_semantics = [], scalar_prefetch = 0 : i64, scratch_operands = 0 : i64, tpu.core_type = #tpu.core_type<tc>} {
    %c0 = arith.constant 0 : index
    %c0_0 = arith.constant 0 : index
    %0 = vector.load %arg0[%c0, %c0_0] : memref<2x4608xbf16, #tpu.memory_space<vmem>>, vector<2x4608xbf16>
    %c0_1 = arith.constant 0 : index
    %c0_2 = arith.constant 0 : index
    %1 = vector.load %arg1[%c0_1, %c0_2] : memref<4608x64xbf16, #tpu.memory_space<vmem>>, vector<4608x64xbf16>
    %cst = arith.constant dense<0.000000e+00> : vector<2x64xf32>
    %2 = tpu.matmul %0, %1, %cst {dimension_numbers = #tpu.dot_dimension_numbers<[1], [0], [0], [1], [0, 0, 1, 1], [], []>} : vector<2x4608xbf16>, vector<4608x64xbf16>, vector<2x64xf32> -> vector<2x64xf32>
    %c0_3 = arith.constant 0 : index
    %c0_4 = arith.constant 0 : index
    %3 = vector.load %arg2[%c0_3, %c0_4] : memref<1x64xf32, #tpu.memory_space<vmem>>, vector<1x64xf32>
    %4 = vector.broadcast %3 : vector<1x64xf32> to vector<2x64xf32>
    %5 = arith.addf %2, %4 : vector<2x64xf32>
    %cst_5 = arith.constant 0.000000e+00 : f32
    %6 = vector.broadcast %cst_5 : f32 to vector<2x64xf32>
    %7 = arith.maximumf %5, %6 : vector<2x64xf32>
    %8 = arith.truncf %7 : vector<2x64xf32> to vector<2x64xbf16>
    %c0_6 = arith.constant 0 : index
    %c0_7 = arith.constant 0 : index
    %9 = vector.load %arg3[%c0_6, %c0_7] : memref<64x2xbf16, #tpu.memory_space<vmem>>, vector<64x2xbf16>
    %cst_8 = arith.constant dense<0.000000e+00> : vector<2x2xf32>
    %10 = tpu.matmul %8, %9, %cst_8 {dimension_numbers = #tpu.dot_dimension_numbers<[1], [0], [0], [1], [0, 0, 1, 1], [], []>} : vector<2x64xbf16>, vector<64x2xbf16>, vector<2x2xf32> -> vector<2x2xf32>
    %c0_9 = arith.constant 0 : index
    %c0_10 = arith.constant 0 : index
    %11 = vector.load %arg4[%c0_9, %c0_10] : memref<1x2xf32, #tpu.memory_space<vmem>>, vector<1x2xf32>
    %12 = vector.broadcast %11 : vector<1x2xf32> to vector<2x2xf32>
    %13 = arith.addf %10, %12 : vector<2x2xf32>
    %c0_11 = arith.constant 0 : index
    %c0_12 = arith.constant 0 : index
    %14 = vector.load %arg5[%c0_11, %c0_12] : memref<2x2xf32, #tpu.memory_space<vmem>>, vector<2x2xf32>
    tpu.vector_store %arg5[%c0_11, %c0_12], %13 {strides = array<i32>} : memref<2x2xf32, #tpu.memory_space<vmem>>, vector<2x2xf32>,
    return
  }
}

</mosaic_0001>

<llo_original>
// kernel: module1_forward.5
$region0: #{module1_forward.5}
  #allocation0 [shape = 'u32[]', space=smem, size = 0x4, offset = 0x4, fixed_abs, tag = 'smem constant byte address 0x4 - core index']
  #allocation1 [shape = 'u32[144,128]{1,0:T(1,128)}', space=vmem, size = 0x12000, scoped, tag = 'internal scratch']
  %s0 = inlined_call_operand.vmem [shape: bf16[2,75,3456], index: 0, kind: input, shape index: {}]
  %s1 = inlined_call_operand.vmem [shape: bf16[16,75], index: 1, kind: input, shape index: {}]
  %s2 = inlined_call_operand.vmem [shape: f32[16,3], index: 2, kind: input, shape index: {}]
  %s3 = inlined_call_operand.vmem [shape: bf16[2,16,3364], index: 3, kind: output, shape index: {}]
  %s4 = sld [smem:[#allocation0]]
  $region45: #{module1_forward.5} parent=0
    _
  %s6 = ssub.s32 1, %s4
  %s7 = scalar_select 0, %s6, %s4
  loop: start=0, step=1, limit=4
  $region2: #{module1_forward.5} parent=0 // loop_pre_header
    _
  $region3: #{module1_forward.5} parent=0 // loop_header
    %s9 = sphi 0, %s13
    %p10 = scmp.ge.s32.totalorder %s9, 4
    %s19 = sphi 0, %s21
    %s22 = sphi 0, %s19
    %s23 = sphi 0, %s22
    %s39 = sphi 0, %s23
    %s43 = sphi 0, %s43
    %s45 = sphi 0, %s43
    %s46 = sphi 0, %s45
    %s60 = sphi 0, %s46
    %s64 = sphi 0, %s64
    %s66 = sphi 0, %s64
    %s67 = sphi 0, %s66
    %s81 = sphi 0, %s67
    %s87 = sphi 0, %s89
    %s90 = sphi 0, %s87
    %s91 = sphi 0, %s90
    %s107 = sphi 0, %s91
  $region4: #{module1_forward.5} parent=0 // loop_header_branch
    %12 = sbr.rel (%p10) target = $region8
  $region5: #{module1_forward.5} parent=0 // loop_body
    %s14 = ssub.s32 %s9, 1
    %s15 = ssub.s32 %s9, 2
    %s16 = sadd.s32 %s9, 1
    %s17 = ssub.s32 %s9, %s16
    %p18 = scmp.eq.s32.totalorder %s17, 0
    %s20 = sadd.s32 %s19, 1
    %s21 = scalar_select %p18, %s19, %s20
    %p24 = pneg %p18
    %p25 = scmp.eq.s32.totalorder %s9, 1
    %p26 = por %p24, %p25
    %p27 = scmp.ne.s32.totalorder %s19, %s22
    %p28 = scmp.eq.s32.totalorder %s9, 0
    %p29 = por %p27, %p28
    %p30 = scmp.ne.s32.totalorder %s19, %s22
    %p31 = scmp.eq.s32.totalorder %s14, 1
    %p32 = por %p30, %p31
    %p33 = scmp.ne.s32.totalorder %s22, %s23
    %p34 = scmp.eq.s32.totalorder %s14, 0
    %p35 = por %p33, %p34
    %p36 = scmp.ne.s32.totalorder %s22, %s23
    %p37 = scmp.eq.s32.totalorder %s15, 1
    %p38 = por %p36, %p37
    %p40 = scmp.ne.s32.totalorder %s23, %s39
    %p41 = scmp.eq.s32.totalorder %s15, 0
    %p42 = por %p40, %p41
    %s44 = sadd.s32 %s43, 1
    %p47 = scmp.eq.s32.totalorder %s9, 1
    %p48 = scmp.ne.s32.totalorder %s43, %s45
    %p49 = scmp.eq.s32.totalorder %s9, 0
    %p50 = por %p48, %p49
    %p51 = scmp.ne.s32.totalorder %s43, %s45
    %p52 = scmp.eq.s32.totalorder %s14, 1
    %p53 = por %p51, %p52
    %p54 = scmp.ne.s32.totalorder %s45, %s46
    %p55 = scmp.eq.s32.totalorder %s14, 0
    %p56 = por %p54, %p55
    %p57 = scmp.ne.s32.totalorder %s45, %s46
    %p58 = scmp.eq.s32.totalorder %s15, 1
    %p59 = por %p57, %p58
    %p61 = scmp.ne.s32.totalorder %s46, %s60
    %p62 = scmp.eq.s32.totalorder %s15, 0
    %p63 = por %p61, %p62
    %s65 = sadd.s32 %s64, 1
    %p68 = scmp.eq.s32.totalorder %s9, 1
    %p69 = scmp.ne.s32.totalorder %s64, %s66
    %p70 = scmp.eq.s32.totalorder %s9, 0
    %p71 = por %p69, %p70
    %p72 = scmp.ne.s32.totalorder %s64, %s66
    %p73 = scmp.eq.s32.totalorder %s14, 1
    %p74 = por %p72, %p73
    %p75 = scmp.ne.s32.totalorder %s66, %s67
    %p76 = scmp.eq.s32.totalorder %s14, 0
    %p77 = por %p75, %p76
    %p78 = scmp.ne.s32.totalorder %s66, %s67
    %p79 = scmp.eq.s32.totalorder %s15, 1
    %p80 = por %p78, %p79
    %p82 = scmp.ne.s32.totalorder %s67, %s81
    %p83 = scmp.eq.s32.totalorder %s15, 0
    %p84 = por %p82, %p83
    %s85 = ssub.s32 %s9, %s16
    %p86 = scmp.eq.s32.totalorder %s85, 0
    %s88 = sadd.s32 %s87, 1
    %s89 = scalar_select %p86, %s87, %s88
    %p92 = pneg %p86
    %p93 = scmp.eq.s32.totalorder %s9, 1
    %p94 = por %p92, %p93
    %p95 = scmp.ne.s32.totalorder %s87, %s90
    %p96 = scmp.eq.s32.totalorder %s9, 0
    %p97 = por %p95, %p96
    %p98 = scmp.ne.s32.totalorder %s87, %s90
    %p99 = scmp.eq.s32.totalorder %s14, 1
    %p100 = por %p98, %p99
    %p101 = scmp.ne.s32.totalorder %s90, %s91
    %p102 = scmp.eq.s32.totalorder %s14, 0
    %p103 = por %p101, %p102
    %p104 = scmp.ne.s32.totalorder %s90, %s91
    %p105 = scmp.eq.s32.totalorder %s15, 1
    %p106 = por %p104, %p105
    %p108 = scmp.ne.s32.totalorder %s91, %s107
    %p109 = scmp.eq.s32.totalorder %s15, 0
    %p110 = por %p108, %p109
    %p111 = scmp.le.s32.totalorder 1, %s9
    %p112 = scmp.lt.s32.totalorder %s9, 3
    %p113 = pnand %p111, %p112
    %p114 = pneg %p113
    // Predicated region
    $region9: #{module1_forward.5} parent=5 // pred_check
      _
    $region10: #{module1_forward.5} parent=5 // pred_check_branch
      %116 = sbr.rel (%p113) target = $region12
    $region11: #{module1_forward.5} parent=5 // pred_region
      %s117 = ssub.s32 %s9, 1
      // Predicated region
      $region13: #{module1_forward.5} parent=11 // pred_check
        %p118 = pneg %p56
      $region14: #{module1_forward.5} parent=11 // pred_check_branch
        %120 = sbr.rel (%p118) target = $region16
      $region15: #{module1_forward.5} parent=11 // pred_region
        _
      $region16: #{module1_forward.5} parent=11 // pred_fallthru
        _
      // Predicated region
      $region17: #{module1_forward.5} parent=11 // pred_check
        %p121 = pneg %p77
      $region18: #{module1_forward.5} parent=11 // pred_check_branch
        %123 = sbr.rel (%p121) target = $region20
      $region19: #{module1_forward.5} parent=11 // pred_region
        _
      $region20: #{module1_forward.5} parent=11 // pred_fallthru
        _
    $region12: #{module1_forward.5} parent=5 // pred_fallthru
      _
    %p124 = scmp.lt.s32.totalorder %s9, 2
    // Predicated region
    $region21: #{module1_forward.5} parent=5 // pred_check
      %p125 = pneg %p124
    $region22: #{module1_forward.5} parent=5 // pred_check_branch
      %127 = sbr.rel (%p125) target = $region24
    $region23: #{module1_forward.5} parent=5 // pred_region
      // Predicated region
      $region25: #{module1_forward.5} parent=23 // pred_check
        %p128 = pneg %p29
      $region26: #{module1_forward.5} parent=23 // pred_check_branch
        %130 = sbr.rel (%p128) target = $region28
      $region27: #{module1_forward.5} parent=23 // pred_region
        %p131 = scmp.lt.s32.totalorder %s9, 1
        %s132 = scalar_select %p131, %s9, 1
        %s133 = smul.addr %s132, 270
        %s134 = smul.addr %s133, 4
        %s135 = scalar_lea.vmem %s0, %s134
      $region28: #{module1_forward.5} parent=23 // pred_fallthru
        _
    $region24: #{module1_forward.5} parent=5 // pred_fallthru
      _
    %p136 = scmp.le.s32.totalorder 1, %s9
    %p137 = scmp.lt.s32.totalorder %s9, 3
    %p138 = pnand %p136, %p137
    %p139 = pneg %p138
    // Predicated region
    $region29: #{module1_forward.5} parent=5 // pred_check
      _
    $region30: #{module1_forward.5} parent=5 // pred_check_branch
      %141 = sbr.rel (%p138) target = $region32
    $region31: #{module1_forward.5} parent=5 // pred_region
      %s142 = ssub.s32 %s9, 1
      %p143 = scmp.lt.s32.totalorder %s14, 1
      %s144 = scalar_select %p143, %s14, 1
      %s145 = smul.addr %s144, 270
      %s146 = smul.addr %s145, 4
      %s147 = scalar_lea.vmem %s0, %s146
      %p148 = pneg %p35
      %p149 = pneg %p32
      %p150 = pneg %p56
      %p151 = pneg %p53
      %p152 = pneg %p77
      %p153 = pneg %p74
      %p154 = pneg %p103
      %p155 = pneg %p100
      %p156 = scmp.lt.s32.totalorder %s14, 1
      %s157 = scalar_select %p156, %s14, 1
      %s158 = smul.addr %s157, 54
      %s159 = smul.addr %s158, 4
      %s160 = scalar_lea.vmem %s3, %s159
      %p161 = scmp.lt.s32.totalorder %s14, 1
      %s162 = scalar_select %p161, %s14, 1
      %s163 = smul.addr %s162, 270
      %s164 = smul.addr %s163, 4
      %s165 = scalar_lea.vmem %s0, %s164
      %p166 = scmp.lt.s32.totalorder %s14, 1
      %s167 = scalar_select %p166, %s14, 1
      %s168 = smul.addr %s167, 54
      %s169 = smul.addr %s168, 4
      %s170 = scalar_lea.vmem %s3, %s169
      %v172 = vld [vmem:[%s1] sm:$0xf]
      %v173 = vld [vmem:[%s1 + $0x4] sm:$0xf]
      %v174 = vld [vmem:[%s165] sm:$0xff]
      %v175 = vld [vmem:[%s165 + $0x8] sm:$0xff]
      %v176 = vld [vmem:[%s165 + $0x10] sm:$0xff]
      %v177 = vld [vmem:[%s165 + $0x18] sm:$0xff]
      %v178 = vld [vmem:[%s165 + $0x20] sm:$0xff]
      %v179 = vld [vmem:[%s165 + $0x28] sm:$0xff]
      %v180 = vld [vmem:[%s165 + $0x30] sm:$0xff]
      %v181 = vld [vmem:[%s165 + $0x38] sm:$0xff]
      %v182 = vld [vmem:[%s165 + $0x40] sm:$0xff]
      %v183 = vld [vmem:[%s165 + $0x48] sm:$0xff]
      %v184 = vld [vmem:[%s165 + $0x50] sm:$0xff]
      %v185 = vld [vmem:[%s165 + $0x58] sm:$0xff]
      %v186 = vld [vmem:[%s165 + $0x60] sm:$0xff]
      %v187 = vld [vmem:[%s165 + $0x68] sm:$0xf]
      %v188 = vld [vmem:[%s165 + $0x6c] sm:$0xff]
      %v189 = vld [vmem:[%s165 + $0x74] sm:$0xff]
      %v190 = vld [vmem:[%s165 + $0x7c] sm:$0xff]
      %v191 = vld [vmem:[%s165 + $0x84] sm:$0xff]
      %v192 = vld [vmem:[%s165 + $0x8c] sm:$0xff]
      %v193 = vld [vmem:[%s165 + $0x94] sm:$0xff]
      %v194 = vld [vmem:[%s165 + $0x9c] sm:$0xff]
      %v195 = vld [vmem:[%s165 + $0xa4] sm:$0xff]
      %v196 = vld [vmem:[%s165 + $0xac] sm:$0xff]
      %v197 = vld [vmem:[%s165 + $0xb4] sm:$0xff]
      %v198 = vld [vmem:[%s165 + $0xbc] sm:$0xff]
      %v199 = vld [vmem:[%s165 + $0xc4] sm:$0xff]
      %v200 = vld [vmem:[%s165 + $0xcc] sm:$0xff]
      %v201 = vld [vmem:[%s165 + $0xd4] sm:$0xf]
      %v202 = vld [vmem:[%s165 + $0xd8] sm:$0xff]
      %v203 = vld [vmem:[%s165 + $0xe0] sm:$0xff]
      %v204 = vld [vmem:[%s165 + $0xe8] sm:$0xff]
      %v205 = vld [vmem:[%s165 + $0xf0] sm:$0xff]
      %v206 = vld [vmem:[%s165 + $0xf8] sm:$0xff]
      %v207 = vld [vmem:[%s165 + $0x100] sm:$0xff]
      %v208 = vld [vmem:[%s165 + $0x108] sm:$0xff]
      %v209 = vld [vmem:[%s165 + $0x110] sm:$0xff]
      %v210 = vld [vmem:[%s165 + $0x118] sm:$0xff]
      %v211 = vld [vmem:[%s165 + $0x120] sm:$0xff]
      %v212 = vld [vmem:[%s165 + $0x128] sm:$0xff]
      %v213 = vld [vmem:[%s165 + $0x130] sm:$0xff]
      %v214 = vld [vmem:[%s165 + $0x138] sm:$0xff]
      %v215 = vld [vmem:[%s165 + $0x140] sm:$0xf]
      %v216 = vld [vmem:[%s165 + $0x144] sm:$0xff]
      %v217 = vld [vmem:[%s165 + $0x14c] sm:$0xff]
      %v218 = vld [vmem:[%s165 + $0x154] sm:$0xff]
      %v219 = vld [vmem:[%s165 + $0x15c] sm:$0xff]
      %v220 = vld [vmem:[%s165 + $0x164] sm:$0xff]
      %v221 = vld [vmem:[%s165 + $0x16c] sm:$0xff]
      %v222 = vld [vmem:[%s165 + $0x174] sm:$0xff]
      %v223 = vld [vmem:[%s165 + $0x17c] sm:$0xff]
      %v224 = vld [vmem:[%s165 + $0x184] sm:$0xff]
      %v225 = vld [vmem:[%s165 + $0x18c] sm:$0xff]
      %v226 = vld [vmem:[%s165 + $0x194] sm:$0xff]
      %v227 = vld [vmem:[%s165 + $0x19c] sm:$0xff]
      %v228 = vld [vmem:[%s165 + $0x1a4] sm:$0xff]
      %v229 = vld [vmem:[%s165 + $0x1ac] sm:$0xf]
      %v230 = vld [vmem:[%s165 + $0x1b0] sm:$0xff]
      %v231 = vld [vmem:[%s165 + $0x1b8] sm:$0xff]
      %v232 = vld [vmem:[%s165 + $0x1c0] sm:$0xff]
      %v233 = vld [vmem:[%s165 + $0x1c8] sm:$0xff]
      %v234 = vld [vmem:[%s165 + $0x1d0] sm:$0xff]
      %v235 = vld [vmem:[%s165 + $0x1d8] sm:$0xff]
      %v236 = vld [vmem:[%s165 + $0x1e0] sm:$0xff]
      %v237 = vld [vmem:[%s165 + $0x1e8] sm:$0xff]
      %v238 = vld [vmem:[%s165 + $0x1f0] sm:$0xff]
      %v239 = vld [vmem:[%s165 + $0x1f8] sm:$0xff]
      %v240 = vld [vmem:[%s165 + $0x200] sm:$0xff]
      %v241 = vld [vmem:[%s165 + $0x208] sm:$0xff]
      %v242 = vld [vmem:[%s165 + $0x210] sm:$0xff]
      %v243 = vld [vmem:[%s165 + $0x218] sm:$0xf]
      %v244 = vld [vmem:[%s165 + $0x21c] sm:$0xff]
      %v245 = vld [vmem:[%s165 + $0x224] sm:$0xff]
      %v246 = vld [vmem:[%s165 + $0x22c] sm:$0xff]
      %v247 = vld [vmem:[%s165 + $0x234] sm:$0xff]
      %v248 = vld [vmem:[%s165 + $0x23c] sm:$0xff]
      %v249 = vld [vmem:[%s165 + $0x244] sm:$0xff]
      %v250 = vld [vmem:[%s165 + $0x24c] sm:$0xff]
      %v251 = vld [vmem:[%s165 + $0x254] sm:$0xff]
      %v252 = vld [vmem:[%s165 + $0x25c] sm:$0xff]
      %v253 = vld [vmem:[%s165 + $0x264] sm:$0xff]
      %v254 = vld [vmem:[%s165 + $0x26c] sm:$0xff]
      %v255 = vld [vmem:[%s165 + $0x274] sm:$0xff]
      %v256 = vld [vmem:[%s165 + $0x27c] sm:$0xff]
      %v257 = vld [vmem:[%s165 + $0x284] sm:$0xf]
      %v258 = vld [vmem:[%s165 + $0x288] sm:$0xff]
      %v259 = vld [vmem:[%s165 + $0x290] sm:$0xff]
      %v260 = vld [vmem:[%s165 + $0x298] sm:$0xff]
      %v261 = vld [vmem:[%s165 + $0x2a0] sm:$0xff]
      %v262 = vld [vmem:[%s165 + $0x2a8] sm:$0xff]
      %v263 = vld [vmem:[%s165 + $0x2b0] sm:$0xff]
      %v264 = vld [vmem:[%s165 + $0x2b8] sm:$0xff]
      %v265 = vld [vmem:[%s165 + $0x2c0] sm:$0xff]
      %v266 = vld [vmem:[%s165 + $0x2c8] sm:$0xff]
      %v267 = vld [vmem:[%s165 + $0x2d0] sm:$0xff]
      %v268 = vld [vmem:[%s165 + $0x2d8] sm:$0xff]
      %v269 = vld [vmem:[%s165 + $0x2e0] sm:$0xff]
      %v270 = vld [vmem:[%s165 + $0x2e8] sm:$0xff]
      %v271 = vld [vmem:[%s165 + $0x2f0] sm:$0xf]
      %v272 = vld [vmem:[%s165 + $0x2f4] sm:$0xff]
      %v273 = vld [vmem:[%s165 + $0x2fc] sm:$0xff]
      %v274 = vld [vmem:[%s165 + $0x304] sm:$0xff]
      %v275 = vld [vmem:[%s165 + $0x30c] sm:$0xff]
      %v276 = vld [vmem:[%s165 + $0x314] sm:$0xff]
      %v277 = vld [vmem:[%s165 + $0x31c] sm:$0xff]
      %v278 = vld [vmem:[%s165 + $0x324] sm:$0xff]
      %v279 = vld [vmem:[%s165 + $0x32c] sm:$0xff]
      %v280 = vld [vmem:[%s165 + $0x334] sm:$0xff]
      %v281 = vld [vmem:[%s165 + $0x33c] sm:$0xff]
      %v282 = vld [vmem:[%s165 + $0x344] sm:$0xff]
      %v283 = vld [vmem:[%s165 + $0x34c] sm:$0xff]
      %v284 = vld [vmem:[%s165 + $0x354] sm:$0xff]
      %v285 = vld [vmem:[%s165 + $0x35c] sm:$0xf]
      %v286 = vld [vmem:[%s165 + $0x360] sm:$0xff]
      %v287 = vld [vmem:[%s165 + $0x368] sm:$0xff]
      %v288 = vld [vmem:[%s165 + $0x370] sm:$0xff]
      %v289 = vld [vmem:[%s165 + $0x378] sm:$0xff]
      %v290 = vld [vmem:[%s165 + $0x380] sm:$0xff]
      %v291 = vld [vmem:[%s165 + $0x388] sm:$0xff]
      %v292 = vld [vmem:[%s165 + $0x390] sm:$0xff]
      %v293 = vld [vmem:[%s165 + $0x398] sm:$0xff]
      %v294 = vld [vmem:[%s165 + $0x3a0] sm:$0xff]
      %v295 = vld [vmem:[%s165 + $0x3a8] sm:$0xff]
      %v296 = vld [vmem:[%s165 + $0x3b0] sm:$0xff]
      %v297 = vld [vmem:[%s165 + $0x3b8] sm:$0xff]
      %v298 = vld [vmem:[%s165 + $0x3c0] sm:$0xff]
      %v299 = vld [vmem:[%s165 + $0x3c8] sm:$0xf]
      %v300 = vld [vmem:[%s165 + $0x3cc] sm:$0x33]
      %v301 = vld [vmem:[%s165 + $0x3d4] sm:$0x33]
      %v302 = vld [vmem:[%s165 + $0x3dc] sm:$0x33]
      %v303 = vld [vmem:[%s165 + $0x3e4] sm:$0x33]
      %v304 = vld [vmem:[%s165 + $0x3ec] sm:$0x33]
      %v305 = vld [vmem:[%s165 + $0x3f4] sm:$0x33]
      %v306 = vld [vmem:[%s165 + $0x3fc] sm:$0x33]
      %v307 = vld [vmem:[%s165 + $0x404] sm:$0x33]
      %v308 = vld [vmem:[%s165 + $0x40c] sm:$0x33]
      %v309 = vld [vmem:[%s165 + $0x414] sm:$0x33]
      %v310 = vld [vmem:[%s165 + $0x41c] sm:$0x33]
      %v311 = vld [vmem:[%s165 + $0x424] sm:$0x33]
      %v312 = vld [vmem:[%s165 + $0x42c] sm:$0x33]
      %v313 = vld [vmem:[%s165 + $0x434] sm:$0x3]
      %v314 = vld [vmem:[%s2] sm:$0xff]
      %v315 = vld [vmem:[%s2 + $0x8] sm:$0xff]
      %317 = vset.pattern.permute.xlu0 0
      %318 = vperm.xlu0 %317, %v314
      %v319 = vpop.permute.xlu0 %318
      %322 = vset.pattern.permute.xlu0 0
      %323 = vperm.xlu0 %322, %v315
      %v324 = vpop.permute.xlu0 %323
      %v328 = vunpack.c.l.b16 %v172
      %v329 = vunpack.c.l.b16 %v173
      %v330 = vpack.c.b16 %v329, %v328
      %v471 = vunpack.c.l.b16 %v174
      %v472 = vunpack.c.h.b16 %v174
      %v473 = vunpack.c.l.b16 %v175
      %v474 = vunpack.c.h.b16 %v175
      %v475 = vunpack.c.l.b16 %v176
      %v476 = vunpack.c.h.b16 %v176
      %v477 = vunpack.c.l.b16 %v177
      %v478 = vunpack.c.h.b16 %v177
      %v479 = vunpack.c.l.b16 %v178
      %v480 = vunpack.c.h.b16 %v178
      %v481 = vunpack.c.l.b16 %v179
      %v482 = vunpack.c.h.b16 %v179
      %v483 = vunpack.c.l.b16 %v180
      %v484 = vunpack.c.h.b16 %v180
      %v485 = vunpack.c.l.b16 %v181
      %v486 = vunpack.c.h.b16 %v181
      %v487 = vunpack.c.l.b16 %v182
      %v488 = vunpack.c.h.b16 %v182
      %v489 = vunpack.c.l.b16 %v183
      %v490 = vunpack.c.h.b16 %v183
      %v491 = vunpack.c.l.b16 %v184
      %v492 = vunpack.c.h.b16 %v184
      %v493 = vunpack.c.l.b16 %v185
      %v494 = vunpack.c.h.b16 %v185
      %v495 = vunpack.c.l.b16 %v186
      %v496 = vunpack.c.h.b16 %v186
      %v497 = vunpack.c.l.b16 %v187
      %v498 = vunpack.c.l.b16 %v188
      %v499 = vunpack.c.h.b16 %v188
      %v500 = vunpack.c.l.b16 %v189
      %v501 = vunpack.c.h.b16 %v189
      %v502 = vunpack.c.l.b16 %v190
      %v503 = vunpack.c.h.b16 %v190
      %v504 = vunpack.c.l.b16 %v191
      %v505 = vunpack.c.h.b16 %v191
      %v506 = vunpack.c.l.b16 %v192
      %v507 = vunpack.c.h.b16 %v192
      %v508 = vunpack.c.l.b16 %v193
      %v509 = vunpack.c.h.b16 %v193
      %v510 = vunpack.c.l.b16 %v194
      %v511 = vunpack.c.h.b16 %v194
      %v512 = vunpack.c.l.b16 %v195
      %v513 = vunpack.c.h.b16 %v195
      %v514 = vunpack.c.l.b16 %v196
      %v515 = vunpack.c.h.b16 %v196
      %v516 = vunpack.c.l.b16 %v197
      %v517 = vunpack.c.h.b16 %v197
      %v518 = vunpack.c.l.b16 %v198
      %v519 = vunpack.c.h.b16 %v198
      %v520 = vunpack.c.l.b16 %v199
      %v521 = vunpack.c.h.b16 %v199
      %v522 = vunpack.c.l.b16 %v200
      %v523 = vunpack.c.h.b16 %v200
      %v524 = vunpack.c.l.b16 %v201
      %v525 = vunpack.c.l.b16 %v202
      %v526 = vunpack.c.h.b16 %v202
      %v527 = vunpack.c.l.b16 %v203
      %v528 = vunpack.c.h.b16 %v203
      %v529 = vunpack.c.l.b16 %v204
      %v530 = vunpack.c.h.b16 %v204
      %v531 = vunpack.c.l.b16 %v205
      %v532 = vunpack.c.h.b16 %v205
      %v533 = vunpack.c.l.b16 %v206
      %v534 = vunpack.c.h.b16 %v206
      %v535 = vunpack.c.l.b16 %v207
      %v536 = vunpack.c.h.b16 %v207
      %v537 = vunpack.c.l.b16 %v208
      %v538 = vunpack.c.h.b16 %v208
      %v539 = vunpack.c.l.b16 %v209
      %v540 = vunpack.c.h.b16 %v209
      %v541 = vunpack.c.l.b16 %v210
      %v542 = vunpack.c.h.b16 %v210
      %v543 = vunpack.c.l.b16 %v211
      %v544 = vunpack.c.h.b16 %v211
      %v545 = vunpack.c.l.b16 %v212
      %v546 = vunpack.c.h.b16 %v212
      %v547 = vunpack.c.l.b16 %v213
      %v548 = vunpack.c.h.b16 %v213
      %v549 = vunpack.c.l.b16 %v214
      %v550 = vunpack.c.h.b16 %v214
      %v551 = vunpack.c.l.b16 %v215
      %v552 = vunpack.c.l.b16 %v216
      %v553 = vunpack.c.h.b16 %v216
      %v554 = vunpack.c.l.b16 %v217
      %v555 = vunpack.c.h.b16 %v217
      %v556 = vunpack.c.l.b16 %v218
      %v557 = vunpack.c.h.b16 %v218
      %v558 = vunpack.c.l.b16 %v219
      %v559 = vunpack.c.h.b16 %v219
      %v560 = vunpack.c.l.b16 %v220
      %v561 = vunpack.c.h.b16 %v220
      %v562 = vunpack.c.l.b16 %v221
      %v563 = vunpack.c.h.b16 %v221
      %v564 = vunpack.c.l.b16 %v222
      %v565 = vunpack.c.h.b16 %v222
      %v566 = vunpack.c.l.b16 %v223
      %v567 = vunpack.c.h.b16 %v223
      %v568 = vunpack.c.l.b16 %v224
      %v569 = vunpack.c.h.b16 %v224
      %v570 = vunpack.c.l.b16 %v225
      %v571 = vunpack.c.h.b16 %v225
      %v572 = vunpack.c.l.b16 %v226
      %v573 = vunpack.c.h.b16 %v226
      %v574 = vunpack.c.l.b16 %v227
      %v575 = vunpack.c.h.b16 %v227
      %v576 = vunpack.c.l.b16 %v228
      %v577 = vunpack.c.h.b16 %v228
      %v578 = vunpack.c.l.b16 %v229
      %v579 = vunpack.c.l.b16 %v230
      %v580 = vunpack.c.h.b16 %v230
      %v581 = vunpack.c.l.b16 %v231
      %v582 = vunpack.c.h.b16 %v231
      %v583 = vunpack.c.l.b16 %v232
      %v584 = vunpack.c.h.b16 %v232
      %v585 = vunpack.c.l.b16 %v233
      %v586 = vunpack.c.h.b16 %v233
      %v587 = vunpack.c.l.b16 %v234
      %v588 = vunpack.c.h.b16 %v234
      %v589 = vunpack.c.l.b16 %v235
      %v590 = vunpack.c.h.b16 %v235
      %v591 = vunpack.c.l.b16 %v236
      %v592 = vunpack.c.h.b16 %v236
      %v593 = vunpack.c.l.b16 %v237
      %v594 = vunpack.c.h.b16 %v237
      %v595 = vunpack.c.l.b16 %v238
      %v596 = vunpack.c.h.b16 %v238
      %v597 = vunpack.c.l.b16 %v239
      %v598 = vunpack.c.h.b16 %v239
      %v599 = vunpack.c.l.b16 %v240
      %v600 = vunpack.c.h.b16 %v240
      %v601 = vunpack.c.l.b16 %v241
      %v602 = vunpack.c.h.b16 %v241
      %v603 = vunpack.c.l.b16 %v242
      %v604 = vunpack.c.h.b16 %v242
      %v605 = vunpack.c.l.b16 %v243
      %v606 = vunpack.c.l.b16 %v244
      %v607 = vunpack.c.h.b16 %v244
      %v608 = vunpack.c.l.b16 %v245
      %v609 = vunpack.c.h.b16 %v245
      %v610 = vunpack.c.l.b16 %v246
      %v611 = vunpack.c.h.b16 %v246
      %v612 = vunpack.c.l.b16 %v247
      %v613 = vunpack.c.h.b16 %v247
      %v614 = vunpack.c.l.b16 %v248
      %v615 = vunpack.c.h.b16 %v248
      %v616 = vunpack.c.l.b16 %v249
      %v617 = vunpack.c.h.b16 %v249
      %v618 = vunpack.c.l.b16 %v250
      %v619 = vunpack.c.h.b16 %v250
      %v620 = vunpack.c.l.b16 %v251
      %v621 = vunpack.c.h.b16 %v251
      %v622 = vunpack.c.l.b16 %v252
      %v623 = vunpack.c.h.b16 %v252
      %v624 = vunpack.c.l.b16 %v253
      %v625 = vunpack.c.h.b16 %v253
      %v626 = vunpack.c.l.b16 %v254
      %v627 = vunpack.c.h.b16 %v254
      %v628 = vunpack.c.l.b16 %v255
      %v629 = vunpack.c.h.b16 %v255
      %v630 = vunpack.c.l.b16 %v256
      %v631 = vunpack.c.h.b16 %v256
      %v632 = vunpack.c.l.b16 %v257
      %v633 = vunpack.c.l.b16 %v258
      %v634 = vunpack.c.h.b16 %v258
      %v635 = vunpack.c.l.b16 %v259
      %v636 = vunpack.c.h.b16 %v259
      %v637 = vunpack.c.l.b16 %v260
      %v638 = vunpack.c.h.b16 %v260
      %v639 = vunpack.c.l.b16 %v261
      %v640 = vunpack.c.h.b16 %v261
      %v641 = vunpack.c.l.b16 %v262
      %v642 = vunpack.c.h.b16 %v262
      %v643 = vunpack.c.l.b16 %v263
      %v644 = vunpack.c.h.b16 %v263
      %v645 = vunpack.c.l.b16 %v264
      %v646 = vunpack.c.h.b16 %v264
      %v647 = vunpack.c.l.b16 %v265
      %v648 = vunpack.c.h.b16 %v265
      %v649 = vunpack.c.l.b16 %v266
      %v650 = vunpack.c.h.b16 %v266
      %v651 = vunpack.c.l.b16 %v267
      %v652 = vunpack.c.h.b16 %v267
      %v653 = vunpack.c.l.b16 %v268
      %v654 = vunpack.c.h.b16 %v268
      %v655 = vunpack.c.l.b16 %v269
      %v656 = vunpack.c.h.b16 %v269
      %v657 = vunpack.c.l.b16 %v270
      %v658 = vunpack.c.h.b16 %v270
      %v659 = vunpack.c.l.b16 %v271
      %v660 = vunpack.c.l.b16 %v272
      %v661 = vunpack.c.h.b16 %v272
      %v662 = vunpack.c.l.b16 %v273
      %v663 = vunpack.c.h.b16 %v273
      %v664 = vunpack.c.l.b16 %v274
      %v665 = vunpack.c.h.b16 %v274
      %v666 = vunpack.c.l.b16 %v275
      %v667 = vunpack.c.h.b16 %v275
      %v668 = vunpack.c.l.b16 %v276
      %v669 = vunpack.c.h.b16 %v276
      %v670 = vunpack.c.l.b16 %v277
      %v671 = vunpack.c.h.b16 %v277
      %v672 = vunpack.c.l.b16 %v278
      %v673 = vunpack.c.h.b16 %v278
      %v674 = vunpack.c.l.b16 %v279
      %v675 = vunpack.c.h.b16 %v279
      %v676 = vunpack.c.l.b16 %v280
      %v677 = vunpack.c.h.b16 %v280
      %v678 = vunpack.c.l.b16 %v281
      %v679 = vunpack.c.h.b16 %v281
      %v680 = vunpack.c.l.b16 %v282
      %v681 = vunpack.c.h.b16 %v282
      %v682 = vunpack.c.l.b16 %v283
      %v683 = vunpack.c.h.b16 %v283
      %v684 = vunpack.c.l.b16 %v284
      %v685 = vunpack.c.h.b16 %v284
      %v686 = vunpack.c.l.b16 %v285
      %v687 = vunpack.c.l.b16 %v286
      %v688 = vunpack.c.h.b16 %v286
      %v689 = vunpack.c.l.b16 %v287
      %v690 = vunpack.c.h.b16 %v287
      %v691 = vunpack.c.l.b16 %v288
      %v692 = vunpack.c.h.b16 %v288
      %v693 = vunpack.c.l.b16 %v289
      %v694 = vunpack.c.h.b16 %v289
      %v695 = vunpack.c.l.b16 %v290
      %v696 = vunpack.c.h.b16 %v290
      %v697 = vunpack.c.l.b16 %v291
      %v698 = vunpack.c.h.b16 %v291
      %v699 = vunpack.c.l.b16 %v292
      %v700 = vunpack.c.h.b16 %v292
      %v701 = vunpack.c.l.b16 %v293
      %v702 = vunpack.c.h.b16 %v293
      %v703 = vunpack.c.l.b16 %v294
      %v704 = vunpack.c.h.b16 %v294
      %v705 = vunpack.c.l.b16 %v295
      %v706 = vunpack.c.h.b16 %v295
      %v707 = vunpack.c.l.b16 %v296
      %v708 = vunpack.c.h.b16 %v296
      %v709 = vunpack.c.l.b16 %v297
      %v710 = vunpack.c.h.b16 %v297
      %v711 = vunpack.c.l.b16 %v298
      %v712 = vunpack.c.h.b16 %v298
      %v713 = vunpack.c.l.b16 %v299
      %v714 = vunpack.c.l.b16 %v300
      %v715 = vunpack.c.h.b16 %v300
      %v716 = vunpack.c.l.b16 %v301
      %v717 = vunpack.c.h.b16 %v301
      %v718 = vunpack.c.l.b16 %v302
      %v719 = vunpack.c.h.b16 %v302
      %v720 = vunpack.c.l.b16 %v303
      %v721 = vunpack.c.h.b16 %v303
      %v722 = vunpack.c.l.b16 %v304
      %v723 = vunpack.c.h.b16 %v304
      %v724 = vunpack.c.l.b16 %v305
      %v725 = vunpack.c.h.b16 %v305
      %v726 = vunpack.c.l.b16 %v306
      %v727 = vunpack.c.h.b16 %v306
      %v728 = vunpack.c.l.b16 %v307
      %v729 = vunpack.c.h.b16 %v307
      %v730 = vunpack.c.l.b16 %v308
      %v731 = vunpack.c.h.b16 %v308
      %v732 = vunpack.c.l.b16 %v309
      %v733 = vunpack.c.h.b16 %v309
      %v734 = vunpack.c.l.b16 %v310
      %v735 = vunpack.c.h.b16 %v310
      %v736 = vunpack.c.l.b16 %v311
      %v737 = vunpack.c.h.b16 %v311
      %v738 = vunpack.c.l.b16 %v312
      %v739 = vunpack.c.h.b16 %v312
      %v740 = vunpack.c.l.b16 %v313
      %v741 = vpack.c.b16 %v498, %v471
      %v742 = vpack.c.b16 %v499, %v472
      %v743 = vpack.c.b16 %v500, %v473
      %v744 = vpack.c.b16 %v501, %v474
      %v745 = vpack.c.b16 %v502, %v475
      %v746 = vpack.c.b16 %v503, %v476
      %v747 = vpack.c.b16 %v504, %v477
      %v748 = vpack.c.b16 %v505, %v478
      %v749 = vpack.c.b16 %v506, %v479
      %v750 = vpack.c.b16 %v507, %v480
      %v751 = vpack.c.b16 %v508, %v481
      %v752 = vpack.c.b16 %v509, %v482
      %v753 = vpack.c.b16 %v510, %v483
      %v754 = vpack.c.b16 %v511, %v484
      %v755 = vpack.c.b16 %v512, %v485
      %v756 = vpack.c.b16 %v513, %v486
      %v757 = vpack.c.b16 %v514, %v487
      %v758 = vpack.c.b16 %v515, %v488
      %v759 = vpack.c.b16 %v516, %v489
      %v760 = vpack.c.b16 %v517, %v490
      %v761 = vpack.c.b16 %v518, %v491
      %v762 = vpack.c.b16 %v519, %v492
      %v763 = vpack.c.b16 %v520, %v493
      %v764 = vpack.c.b16 %v521, %v494
      %v765 = vpack.c.b16 %v522, %v495
      %v766 = vpack.c.b16 %v523, %v496
      %v767 = vpack.c.b16 %v524, %v497
      %v768 = vpack.c.b16 %v552, %v525
      %v769 = vpack.c.b16 %v553, %v526
      %v770 = vpack.c.b16 %v554, %v527
      %v771 = vpack.c.b16 %v555, %v528
      %v772 = vpack.c.b16 %v556, %v529
      %v773 = vpack.c.b16 %v557, %v530
      %v774 = vpack.c.b16 %v558, %v531
      %v775 = vpack.c.b16 %v559, %v532
      %v776 = vpack.c.b16 %v560, %v533
      %v777 = vpack.c.b16 %v561, %v534
      %v778 = vpack.c.b16 %v562, %v535
      %v779 = vpack.c.b16 %v563, %v536
      %v780 = vpack.c.b16 %v564, %v537
      %v781 = vpack.c.b16 %v565, %v538
      %v782 = vpack.c.b16 %v566, %v539
      %v783 = vpack.c.b16 %v567, %v540
      %v784 = vpack.c.b16 %v568, %v541
      %v785 = vpack.c.b16 %v569, %v542
      %v786 = vpack.c.b16 %v570, %v543
      %v787 = vpack.c.b16 %v571, %v544
      %v788 = vpack.c.b16 %v572, %v545
      %v789 = vpack.c.b16 %v573, %v546
      %v790 = vpack.c.b16 %v574, %v547
      %v791 = vpack.c.b16 %v575, %v548
      %v792 = vpack.c.b16 %v576, %v549
      %v793 = vpack.c.b16 %v577, %v550
      %v794 = vpack.c.b16 %v578, %v551
      %v795 = vpack.c.b16 %v606, %v579
      %v796 = vpack.c.b16 %v607, %v580
      %v797 = vpack.c.b16 %v608, %v581
      %v798 = vpack.c.b16 %v609, %v582
      %v799 = vpack.c.b16 %v610, %v583
      %v800 = vpack.c.b16 %v611, %v584
      %v801 = vpack.c.b16 %v612, %v585
      %v802 = vpack.c.b16 %v613, %v586
      %v803 = vpack.c.b16 %v614, %v587
      %v804 = vpack.c.b16 %v615, %v588
      %v805 = vpack.c.b16 %v616, %v589
      %v806 = vpack.c.b16 %v617, %v590
      %v807 = vpack.c.b16 %v618, %v591
      %v808 = vpack.c.b16 %v619, %v592
      %v809 = vpack.c.b16 %v620, %v593
      %v810 = vpack.c.b16 %v621, %v594
      %v811 = vpack.c.b16 %v622, %v595
      %v812 = vpack.c.b16 %v623, %v596
      %v813 = vpack.c.b16 %v624, %v597
      %v814 = vpack.c.b16 %v625, %v598
      %v815 = vpack.c.b16 %v626, %v599
      %v816 = vpack.c.b16 %v627, %v600
      %v817 = vpack.c.b16 %v628, %v601
      %v818 = vpack.c.b16 %v629, %v602
      %v819 = vpack.c.b16 %v630, %v603
      %v820 = vpack.c.b16 %v631, %v604
      %v821 = vpack.c.b16 %v632, %v605
      %v822 = vpack.c.b16 %v660, %v633
      %v823 = vpack.c.b16 %v661, %v634
      %v824 = vpack.c.b16 %v662, %v635
      %v825 = vpack.c.b16 %v663, %v636
      %v826 = vpack.c.b16 %v664, %v637
      %v827 = vpack.c.b16 %v665, %v638
      %v828 = vpack.c.b16 %v666, %v639
      %v829 = vpack.c.b16 %v667, %v640
      %v830 = vpack.c.b16 %v668, %v641
      %v831 = vpack.c.b16 %v669, %v642
      %v832 = vpack.c.b16 %v670, %v643
      %v833 = vpack.c.b16 %v671, %v644
      %v834 = vpack.c.b16 %v672, %v645
      %v835 = vpack.c.b16 %v673, %v646
      %v836 = vpack.c.b16 %v674, %v647
      %v837 = vpack.c.b16 %v675, %v648
      %v838 = vpack.c.b16 %v676, %v649
      %v839 = vpack.c.b16 %v677, %v650
      %v840 = vpack.c.b16 %v678, %v651
      %v841 = vpack.c.b16 %v679, %v652
      %v842 = vpack.c.b16 %v680, %v653
      %v843 = vpack.c.b16 %v681, %v654
      %v844 = vpack.c.b16 %v682, %v655
      %v845 = vpack.c.b16 %v683, %v656
      %v846 = vpack.c.b16 %v684, %v657
      %v847 = vpack.c.b16 %v685, %v658
      %v848 = vpack.c.b16 %v686, %v659
      %v849 = vpack.c.b16 %v714, %v687
      %v850 = vpack.c.b16 %v715, %v688
      %v851 = vpack.c.b16 %v716, %v689
      %v852 = vpack.c.b16 %v717, %v690
      %v853 = vpack.c.b16 %v718, %v691
      %v854 = vpack.c.b16 %v719, %v692
      %v855 = vpack.c.b16 %v720, %v693
      %v856 = vpack.c.b16 %v721, %v694
      %v857 = vpack.c.b16 %v722, %v695
      %v858 = vpack.c.b16 %v723, %v696
      %v859 = vpack.c.b16 %v724, %v697
      %v860 = vpack.c.b16 %v725, %v698
      %v861 = vpack.c.b16 %v726, %v699
      %v862 = vpack.c.b16 %v727, %v700
      %v863 = vpack.c.b16 %v728, %v701
      %v864 = vpack.c.b16 %v729, %v702
      %v865 = vpack.c.b16 %v730, %v703
      %v866 = vpack.c.b16 %v731, %v704
      %v867 = vpack.c.b16 %v732, %v705
      %v868 = vpack.c.b16 %v733, %v706
      %v869 = vpack.c.b16 %v734, %v707
      %v870 = vpack.c.b16 %v735, %v708
      %v871 = vpack.c.b16 %v736, %v709
      %v872 = vpack.c.b16 %v737, %v710
      %v873 = vpack.c.b16 %v738, %v711
      %v874 = vpack.c.b16 %v739, %v712
      %v875 = vpack.c.b16 %v740, %v713
      %vm984 = vcmask 613376
      %v986 = vsel %vm984, %v330, 0
      %vm988 = vcmask 1044480
      %vm989 = vcmask 1045504
      %v990 = vsel %vm988, 4294967295, 65535
      %v991 = vsel %vm989, %v990, 0
      %v993 = vand.u32 %v849, %v991
      %v996 = vand.u32 %v850, %v991
      %v999 = vand.u32 %v851, %v991
      %v1002 = vand.u32 %v852, %v991
      %v1005 = vand.u32 %v853, %v991
      %v1008 = vand.u32 %v854, %v991
      %v1011 = vand.u32 %v855, %v991
      %v1014 = vand.u32 %v856, %v991
      %v1017 = vand.u32 %v857, %v991
      %v1020 = vand.u32 %v858, %v991
      %v1023 = vand.u32 %v859, %v991
      %v1026 = vand.u32 %v860, %v991
      %v1029 = vand.u32 %v861, %v991
      %v1032 = vand.u32 %v862, %v991
      %v1035 = vand.u32 %v863, %v991
      %v1038 = vand.u32 %v864, %v991
      %v1041 = vand.u32 %v865, %v991
      %v1044 = vand.u32 %v866, %v991
      %v1047 = vand.u32 %v867, %v991
      %v1050 = vand.u32 %v868, %v991
      %v1053 = vand.u32 %v869, %v991
      %v1056 = vand.u32 %v870, %v991
      %v1059 = vand.u32 %v871, %v991
      %v1062 = vand.u32 %v872, %v991
      %v1065 = vand.u32 %v873, %v991
      %v1068 = vand.u32 %v874, %v991
      %v1071 = vand.u32 %v875, %v991
      %1073 = vmatprep.subr.bf16.mxu0 %v742
      %1074 = vmatpush1.bf16.msra.mxu0 %v741
      %1075 = vmatprep.subr.bf16.mxu0 %v769
      %1076 = vmatpush1.bf16.msra.mxu0 %v768
      %1077 = vmatprep.subr.bf16.mxu0 %v796
      %1078 = vmatpush1.bf16.msra.mxu0 %v795
      %1079 = vmatprep.subr.bf16.mxu0 %v823
      %1080 = vmatpush1.bf16.msra.mxu0 %v822
      %1081 = vmatprep.subr.bf16.mxu0 %v996
      %1082 = vmatpush1.bf16.msra.mxu0 %v993
      %1083 = vmatprep.subr.bf16.mxu0 0
      %1084 = vmatpush1.bf16.msra.mxu0 0
      %1085 = vmatprep.subr.bf16.mxu0 0
      %1086 = vmatpush1.bf16.msra.mxu0 0
      %1087 = vmatprep.subr.bf16.mxu0 0
      %1088 = vmatpush1.bf16.msra.mxu0 0
      %1089 = vmatprep.subr.bf16.mxu0 0
      %1090 = vmatpush1.bf16.msra.mxu0 0
      %1091 = vmatprep.subr.bf16.mxu0 0
      %1092 = vmatpush1.bf16.msra.mxu0 0
      %1093 = vmatprep.subr.bf16.mxu0 0
      %1094 = vmatpush1.bf16.msra.mxu0 0
      %1095 = vmatprep.subr.bf16.mxu0 0
      %1096 = vmatpush1.bf16.msra.mxu0 0
      %1097 = vmatprep.subr.bf16.mxu0 0
      %1098 = vmatpush1.bf16.msra.mxu0 0
      %1099 = vmatprep.subr.bf16.mxu0 0
      %1100 = vmatpush1.bf16.msra.mxu0 0
      %1101 = vmatprep.subr.bf16.mxu0 0
      %1102 = vmatpush1.bf16.msra.mxu0 0
      %1103 = vmatprep.subr.bf16.mxu0 0
      %1104 = vmatpush1.bf16.msra.mxu0 0
      %1105 = vmatprep.mubr.bf16.mxu0 0
      %1106 = vmatmul.mubr.bf16.gmra.mrb[0].mxu0 %v986
      %v1107 = vpop.f32.mrb[0].mxu0
      %v1108 = vadd.f32 %v319, %v1107
      %v1109 = vpop.f32.mrb[0].mxu0
      %v1110 = vadd.f32 %v319, %v1109
      %v1111 = vpop.f32.mrb[0].mxu0
      %v1112 = vadd.f32 %v324, %v1111
      %v1113 = vpop.f32.mrb[0].mxu0
      %v1114 = vadd.f32 %v324, %v1113
      %1115 = vdwg.mxu0
      %1116 = vmatprep.subr.bf16.mxu0 %v744
      %1117 = vmatpush1.bf16.msra.mxu0 %v743
      %1118 = vmatprep.subr.bf16.mxu0 %v771
      %1119 = vmatpush1.bf16.msra.mxu0 %v770
      %1120 = vmatprep.subr.bf16.mxu0 %v798
      %1121 = vmatpush1.bf16.msra.mxu0 %v797
      %1122 = vmatprep.subr.bf16.mxu0 %v825
      %1123 = vmatpush1.bf16.msra.mxu0 %v824
      %1124 = vmatprep.subr.bf16.mxu0 %v1002
      %1125 = vmatpush1.bf16.msra.mxu0 %v999
      %1126 = vmatprep.subr.bf16.mxu0 0
      %1127 = vmatpush1.bf16.msra.mxu0 0
      %1128 = vmatprep.subr.bf16.mxu0 0
      %1129 = vmatpush1.bf16.msra.mxu0 0
      %1130 = vmatprep.subr.bf16.mxu0 0
      %1131 = vmatpush1.bf16.msra.mxu0 0
      %1132 = vmatprep.subr.bf16.mxu0 0
      %1133 = vmatpush1.bf16.msra.mxu0 0
      %1134 = vmatprep.subr.bf16.mxu0 0
      %1135 = vmatpush1.bf16.msra.mxu0 0
      %1136 = vmatprep.subr.bf16.mxu0 0
      %1137 = vmatpush1.bf16.msra.mxu0 0
      %1138 = vmatprep.subr.bf16.mxu0 0
      %1139 = vmatpush1.bf16.msra.mxu0 0
      %1140 = vmatprep.subr.bf16.mxu0 0
      %1141 = vmatpush1.bf16.msra.mxu0 0
      %1142 = vmatprep.subr.bf16.mxu0 0
      %1143 = vmatpush1.bf16.msra.mxu0 0
      %1144 = vmatprep.subr.bf16.mxu0 0
      %1145 = vmatpush1.bf16.msra.mxu0 0
      %1146 = vmatprep.subr.bf16.mxu0 0
      %1147 = vmatpush1.bf16.msra.mxu0 0
      %1148 = vmatprep.mubr.bf16.mxu0 0
      %1149 = vmatmul.mubr.bf16.gmra.mrb[0].mxu0 %v986
      %v1150 = vpop.f32.mrb[0].mxu0
      %v1151 = vadd.f32 %v319, %v1150
      %v1152 = vpop.f32.mrb[0].mxu0
      %v1153 = vadd.f32 %v319, %v1152
      %v1154 = vpop.f32.mrb[0].mxu0
      %v1155 = vadd.f32 %v324, %v1154
      %v1156 = vpop.f32.mrb[0].mxu0
      %v1157 = vadd.f32 %v324, %v1156
      %1158 = vdwg.mxu0
      %1159 = vmatprep.subr.bf16.mxu0 %v746
      %1160 = vmatpush1.bf16.msra.mxu0 %v745
      %1161 = vmatprep.subr.bf16.mxu0 %v773
      %1162 = vmatpush1.bf16.msra.mxu0 %v772
      %1163 = vmatprep.subr.bf16.mxu0 %v800
      %1164 = vmatpush1.bf16.msra.mxu0 %v799
      %1165 = vmatprep.subr.bf16.mxu0 %v827
      %1166 = vmatpush1.bf16.msra.mxu0 %v826
      %1167 = vmatprep.subr.bf16.mxu0 %v1008
      %1168 = vmatpush1.bf16.msra.mxu0 %v1005
      %1169 = vmatprep.subr.bf16.mxu0 0
      %1170 = vmatpush1.bf16.msra.mxu0 0
      %1171 = vmatprep.subr.bf16.mxu0 0
      %1172 = vmatpush1.bf16.msra.mxu0 0
      %1173 = vmatprep.subr.bf16.mxu0 0
      %1174 = vmatpush1.bf16.msra.mxu0 0
      %1175 = vmatprep.subr.bf16.mxu0 0
      %1176 = vmatpush1.bf16.msra.mxu0 0
      %1177 = vmatprep.subr.bf16.mxu0 0
      %1178 = vmatpush1.bf16.msra.mxu0 0
      %1179 = vmatprep.subr.bf16.mxu0 0
      %1180 = vmatpush1.bf16.msra.mxu0 0
      %1181 = vmatprep.subr.bf16.mxu0 0
      %1182 = vmatpush1.bf16.msra.mxu0 0
      %1183 = vmatprep.subr.bf16.mxu0 0
      %1184 = vmatpush1.bf16.msra.mxu0 0
      %1185 = vmatprep.subr.bf16.mxu0 0
      %1186 = vmatpush1.bf16.msra.mxu0 0
      %1187 = vmatprep.subr.bf16.mxu0 0
      %1188 = vmatpush1.bf16.msra.mxu0 0
      %1189 = vmatprep.subr.bf16.mxu0 0
      %1190 = vmatpush1.bf16.msra.mxu0 0
      %1191 = vmatprep.mubr.bf16.mxu0 0
      %1192 = vmatmul.mubr.bf16.gmra.mrb[0].mxu0 %v986
      %v1193 = vpop.f32.mrb[0].mxu0
      %v1194 = vadd.f32 %v319, %v1193
      %v1195 = vpop.f32.mrb[0].mxu0
      %v1196 = vadd.f32 %v319, %v1195
      %v1197 = vpop.f32.mrb[0].mxu0
      %v1198 = vadd.f32 %v324, %v1197
      %v1199 = vpop.f32.mrb[0].mxu0
      %v1200 = vadd.f32 %v324, %v1199
      %1201 = vdwg.mxu0
      %1202 = vmatprep.subr.bf16.mxu0 %v748
      %1203 = vmatpush1.bf16.msra.mxu0 %v747
      %1204 = vmatprep.subr.bf16.mxu0 %v775
      %1205 = vmatpush1.bf16.msra.mxu0 %v774
      %1206 = vmatprep.subr.bf16.mxu0 %v802
      %1207 = vmatpush1.bf16.msra.mxu0 %v801
      %1208 = vmatprep.subr.bf16.mxu0 %v829
      %1209 = vmatpush1.bf16.msra.mxu0 %v828
      %1210 = vmatprep.subr.bf16.mxu0 %v1014
      %1211 = vmatpush1.bf16.msra.mxu0 %v1011
      %1212 = vmatprep.subr.bf16.mxu0 0
      %1213 = vmatpush1.bf16.msra.mxu0 0
      %1214 = vmatprep.subr.bf16.mxu0 0
      %1215 = vmatpush1.bf16.msra.mxu0 0
      %1216 = vmatprep.subr.bf16.mxu0 0
      %1217 = vmatpush1.bf16.msra.mxu0 0
      %1218 = vmatprep.subr.bf16.mxu0 0
      %1219 = vmatpush1.bf16.msra.mxu0 0
      %1220 = vmatprep.subr.bf16.mxu0 0
      %1221 = vmatpush1.bf16.msra.mxu0 0
      %1222 = vmatprep.subr.bf16.mxu0 0
      %1223 = vmatpush1.bf16.msra.mxu0 0
      %1224 = vmatprep.subr.bf16.mxu0 0
      %1225 = vmatpush1.bf16.msra.mxu0 0
      %1226 = vmatprep.subr.bf16.mxu0 0
      %1227 = vmatpush1.bf16.msra.mxu0 0
      %1228 = vmatprep.subr.bf16.mxu0 0
      %1229 = vmatpush1.bf16.msra.mxu0 0
      %1230 = vmatprep.subr.bf16.mxu0 0
      %1231 = vmatpush1.bf16.msra.mxu0 0
      %1232 = vmatprep.subr.bf16.mxu0 0
      %1233 = vmatpush1.bf16.msra.mxu0 0
      %1234 = vmatprep.mubr.bf16.mxu0 0
      %1235 = vmatmul.mubr.bf16.gmra.mrb[0].mxu0 %v986
      %v1236 = vpop.f32.mrb[0].mxu0
      %v1237 = vadd.f32 %v319, %v1236
      %v1238 = vpop.f32.mrb[0].mxu0
      %v1239 = vadd.f32 %v319, %v1238
      %v1240 = vpop.f32.mrb[0].mxu0
      %v1241 = vadd.f32 %v324, %v1240
      %v1242 = vpop.f32.mrb[0].mxu0
      %v1243 = vadd.f32 %v324, %v1242
      %1244 = vdwg.mxu0
      %1245 = vmatprep.subr.bf16.mxu0 %v750
      %1246 = vmatpush1.bf16.msra.mxu0 %v749
      %1247 = vmatprep.subr.bf16.mxu0 %v777
      %1248 = vmatpush1.bf16.msra.mxu0 %v776
      %1249 = vmatprep.subr.bf16.mxu0 %v804
      %1250 = vmatpush1.bf16.msra.mxu0 %v803
      %1251 = vmatprep.subr.bf16.mxu0 %v831
      %1252 = vmatpush1.bf16.msra.mxu0 %v830
      %1253 = vmatprep.subr.bf16.mxu0 %v1020
      %1254 = vmatpush1.bf16.msra.mxu0 %v1017
      %1255 = vmatprep.subr.bf16.mxu0 0
      %1256 = vmatpush1.bf16.msra.mxu0 0
      %1257 = vmatprep.subr.bf16.mxu0 0
      %1258 = vmatpush1.bf16.msra.mxu0 0
      %1259 = vmatprep.subr.bf16.mxu0 0
      %1260 = vmatpush1.bf16.msra.mxu0 0
      %1261 = vmatprep.subr.bf16.mxu0 0
      %1262 = vmatpush1.bf16.msra.mxu0 0
      %1263 = vmatprep.subr.bf16.mxu0 0
      %1264 = vmatpush1.bf16.msra.mxu0 0
      %1265 = vmatprep.subr.bf16.mxu0 0
      %1266 = vmatpush1.bf16.msra.mxu0 0
      %1267 = vmatprep.subr.bf16.mxu0 0
      %1268 = vmatpush1.bf16.msra.mxu0 0
      %1269 = vmatprep.subr.bf16.mxu0 0
      %1270 = vmatpush1.bf16.msra.mxu0 0
      %1271 = vmatprep.subr.bf16.mxu0 0
      %1272 = vmatpush1.bf16.msra.mxu0 0
      %1273 = vmatprep.subr.bf16.mxu0 0
      %1274 = vmatpush1.bf16.msra.mxu0 0
      %1275 = vmatprep.subr.bf16.mxu0 0
      %1276 = vmatpush1.bf16.msra.mxu0 0
      %1277 = vmatprep.mubr.bf16.mxu0 0
      %1278 = vmatmul.mubr.bf16.gmra.mrb[0].mxu0 %v986
      %v1279 = vpop.f32.mrb[0].mxu0
      %v1280 = vadd.f32 %v319, %v1279
      %v1281 = vpop.f32.mrb[0].mxu0
      %v1282 = vadd.f32 %v319, %v1281
      %v1283 = vpop.f32.mrb[0].mxu0
      %v1284 = vadd.f32 %v324, %v1283
      %v1285 = vpop.f32.mrb[0].mxu0
      %v1286 = vadd.f32 %v324, %v1285
      %1287 = vdwg.mxu0
      %1288 = vmatprep.subr.bf16.mxu0 %v752
      %1289 = vmatpush1.bf16.msra.mxu0 %v751
      %1290 = vmatprep.subr.bf16.mxu0 %v779
      %1291 = vmatpush1.bf16.msra.mxu0 %v778
      %1292 = vmatprep.subr.bf16.mxu0 %v806
      %1293 = vmatpush1.bf16.msra.mxu0 %v805
      %1294 = vmatprep.subr.bf16.mxu0 %v833
      %1295 = vmatpush1.bf16.msra.mxu0 %v832
      %1296 = vmatprep.subr.bf16.mxu0 %v1026
      %1297 = vmatpush1.bf16.msra.mxu0 %v1023
      %1298 = vmatprep.subr.bf16.mxu0 0
      %1299 = vmatpush1.bf16.msra.mxu0 0
      %1300 = vmatprep.subr.bf16.mxu0 0
      %1301 = vmatpush1.bf16.msra.mxu0 0
      %1302 = vmatprep.subr.bf16.mxu0 0
      %1303 = vmatpush1.bf16.msra.mxu0 0
      %1304 = vmatprep.subr.bf16.mxu0 0
      %1305 = vmatpush1.bf16.msra.mxu0 0
      %1306 = vmatprep.subr.bf16.mxu0 0
      %1307 = vmatpush1.bf16.msra.mxu0 0
      %1308 = vmatprep.subr.bf16.mxu0 0
      %1309 = vmatpush1.bf16.msra.mxu0 0
      %1310 = vmatprep.subr.bf16.mxu0 0
      %1311 = vmatpush1.bf16.msra.mxu0 0
      %1312 = vmatprep.subr.bf16.mxu0 0
      %1313 = vmatpush1.bf16.msra.mxu0 0
      %1314 = vmatprep.subr.bf16.mxu0 0
      %1315 = vmatpush1.bf16.msra.mxu0 0
      %1316 = vmatprep.subr.bf16.mxu0 0
      %1317 = vmatpush1.bf16.msra.mxu0 0
      %1318 = vmatprep.subr.bf16.mxu0 0
      %1319 = vmatpush1.bf16.msra.mxu0 0
      %1320 = vmatprep.mubr.bf16.mxu0 0
      %1321 = vmatmul.mubr.bf16.gmra.mrb[0].mxu0 %v986
      %v1322 = vpop.f32.mrb[0].mxu0
      %v1323 = vadd.f32 %v319, %v1322
      %v1324 = vpop.f32.mrb[0].mxu0
      %v1325 = vadd.f32 %v319, %v1324
      %v1326 = vpop.f32.mrb[0].mxu0
      %v1327 = vadd.f32 %v324, %v1326
      %v1328 = vpop.f32.mrb[0].mxu0
      %v1329 = vadd.f32 %v324, %v1328
      %1330 = vdwg.mxu0
      %1331 = vmatprep.subr.bf16.mxu0 %v754
      %1332 = vmatpush1.bf16.msra.mxu0 %v753
      %1333 = vmatprep.subr.bf16.mxu0 %v781
      %1334 = vmatpush1.bf16.msra.mxu0 %v780
      %1335 = vmatprep.subr.bf16.mxu0 %v808
      %1336 = vmatpush1.bf16.msra.mxu0 %v807
      %1337 = vmatprep.subr.bf16.mxu0 %v835
      %1338 = vmatpush1.bf16.msra.mxu0 %v834
      %1339 = vmatprep.subr.bf16.mxu0 %v1032
      %1340 = vmatpush1.bf16.msra.mxu0 %v1029
      %1341 = vmatprep.subr.bf16.mxu0 0
      %1342 = vmatpush1.bf16.msra.mxu0 0
      %1343 = vmatprep.subr.bf16.mxu0 0
      %1344 = vmatpush1.bf16.msra.mxu0 0
      %1345 = vmatprep.subr.bf16.mxu0 0
      %1346 = vmatpush1.bf16.msra.mxu0 0
      %1347 = vmatprep.subr.bf16.mxu0 0
      %1348 = vmatpush1.bf16.msra.mxu0 0
      %1349 = vmatprep.subr.bf16.mxu0 0
      %1350 = vmatpush1.bf16.msra.mxu0 0
      %1351 = vmatprep.subr.bf16.mxu0 0
      %1352 = vmatpush1.bf16.msra.mxu0 0
      %1353 = vmatprep.subr.bf16.mxu0 0
      %1354 = vmatpush1.bf16.msra.mxu0 0
      %1355 = vmatprep.subr.bf16.mxu0 0
      %1356 = vmatpush1.bf16.msra.mxu0 0
      %1357 = vmatprep.subr.bf16.mxu0 0
      %1358 = vmatpush1.bf16.msra.mxu0 0
      %1359 = vmatprep.subr.bf16.mxu0 0
      %1360 = vmatpush1.bf16.msra.mxu0 0
      %1361 = vmatprep.subr.bf16.mxu0 0
      %1362 = vmatpush1.bf16.msra.mxu0 0
      %1363 = vmatprep.mubr.bf16.mxu0 0
      %1364 = vmatmul.mubr.bf16.gmra.mrb[0].mxu0 %v986
      %v1365 = vpop.f32.mrb[0].mxu0
      %v1366 = vadd.f32 %v319, %v1365
      %v1367 = vpop.f32.mrb[0].mxu0
      %v1368 = vadd.f32 %v319, %v1367
      %v1369 = vpop.f32.mrb[0].mxu0
      %v1370 = vadd.f32 %v324, %v1369
      %v1371 = vpop.f32.mrb[0].mxu0
      %v1372 = vadd.f32 %v324, %v1371
      %1373 = vdwg.mxu0
      %1374 = vmatprep.subr.bf16.mxu0 %v756
      %1375 = vmatpush1.bf16.msra.mxu0 %v755
      %1376 = vmatprep.subr.bf16.mxu0 %v783
      %1377 = vmatpush1.bf16.msra.mxu0 %v782
      %1378 = vmatprep.subr.bf16.mxu0 %v810
      %1379 = vmatpush1.bf16.msra.mxu0 %v809
      %1380 = vmatprep.subr.bf16.mxu0 %v837
      %1381 = vmatpush1.bf16.msra.mxu0 %v836
      %1382 = vmatprep.subr.bf16.mxu0 %v1038
      %1383 = vmatpush1.bf16.msra.mxu0 %v1035
      %1384 = vmatprep.subr.bf16.mxu0 0
      %1385 = vmatpush1.bf16.msra.mxu0 0
      %1386 = vmatprep.subr.bf16.mxu0 0
      %1387 = vmatpush1.bf16.msra.mxu0 0
      %1388 = vmatprep.subr.bf16.mxu0 0
      %1389 = vmatpush1.bf16.msra.mxu0 0
      %1390 = vmatprep.subr.bf16.mxu0 0
      %1391 = vmatpush1.bf16.msra.mxu0 0
      %1392 = vmatprep.subr.bf16.mxu0 0
      %1393 = vmatpush1.bf16.msra.mxu0 0
      %1394 = vmatprep.subr.bf16.mxu0 0
      %1395 = vmatpush1.bf16.msra.mxu0 0
      %1396 = vmatprep.subr.bf16.mxu0 0
      %1397 = vmatpush1.bf16.msra.mxu0 0
      %1398 = vmatprep.subr.bf16.mxu0 0
      %1399 = vmatpush1.bf16.msra.mxu0 0
      %1400 = vmatprep.subr.bf16.mxu0 0
      %1401 = vmatpush1.bf16.msra.mxu0 0
      %1402 = vmatprep.subr.bf16.mxu0 0
      %1403 = vmatpush1.bf16.msra.mxu0 0
      %1404 = vmatprep.subr.bf16.mxu0 0
      %1405 = vmatpush1.bf16.msra.mxu0 0
      %1406 = vmatprep.mubr.bf16.mxu0 0
      %1407 = vmatmul.mubr.bf16.gmra.mrb[0].mxu0 %v986
      %v1408 = vpop.f32.mrb[0].mxu0
      %v1409 = vadd.f32 %v319, %v1408
      %v1410 = vpop.f32.mrb[0].mxu0
      %v1411 = vadd.f32 %v319, %v1410
      %v1412 = vpop.f32.mrb[0].mxu0
      %v1413 = vadd.f32 %v324, %v1412
      %v1414 = vpop.f32.mrb[0].mxu0
      %v1415 = vadd.f32 %v324, %v1414
      %1416 = vdwg.mxu0
      %1417 = vmatprep.subr.bf16.mxu0 %v758
      %1418 = vmatpush1.bf16.msra.mxu0 %v757
      %1419 = vmatprep.subr.bf16.mxu0 %v785
      %1420 = vmatpush1.bf16.msra.mxu0 %v784
      %1421 = vmatprep.subr.bf16.mxu0 %v812
      %1422 = vmatpush1.bf16.msra.mxu0 %v811
      %1423 = vmatprep.subr.bf16.mxu0 %v839
      %1424 = vmatpush1.bf16.msra.mxu0 %v838
      %1425 = vmatprep.subr.bf16.mxu0 %v1044
      %1426 = vmatpush1.bf16.msra.mxu0 %v1041
      %1427 = vmatprep.subr.bf16.mxu0 0
      %1428 = vmatpush1.bf16.msra.mxu0 0
      %1429 = vmatprep.subr.bf16.mxu0 0
      %1430 = vmatpush1.bf16.msra.mxu0 0
      %1431 = vmatprep.subr.bf16.mxu0 0
      %1432 = vmatpush1.bf16.msra.mxu0 0
      %1433 = vmatprep.subr.bf16.mxu0 0
      %1434 = vmatpush1.bf16.msra.mxu0 0
      %1435 = vmatprep.subr.bf16.mxu0 0
      %1436 = vmatpush1.bf16.msra.mxu0 0
      %1437 = vmatprep.subr.bf16.mxu0 0
      %1438 = vmatpush1.bf16.msra.mxu0 0
      %1439 = vmatprep.subr.bf16.mxu0 0
      %1440 = vmatpush1.bf16.msra.mxu0 0
      %1441 = vmatprep.subr.bf16.mxu0 0
      %1442 = vmatpush1.bf16.msra.mxu0 0
      %1443 = vmatprep.subr.bf16.mxu0 0
      %1444 = vmatpush1.bf16.msra.mxu0 0
      %1445 = vmatprep.subr.bf16.mxu0 0
      %1446 = vmatpush1.bf16.msra.mxu0 0
      %1447 = vmatprep.subr.bf16.mxu0 0
      %1448 = vmatpush1.bf16.msra.mxu0 0
      %1449 = vmatprep.mubr.bf16.mxu0 0
      %1450 = vmatmul.mubr.bf16.gmra.mrb[0].mxu0 %v986
      %v1451 = vpop.f32.mrb[0].mxu0
      %v1452 = vadd.f32 %v319, %v1451
      %v1453 = vpop.f32.mrb[0].mxu0
      %v1454 = vadd.f32 %v319, %v1453
      %v1455 = vpop.f32.mrb[0].mxu0
      %v1456 = vadd.f32 %v324, %v1455
      %v1457 = vpop.f32.mrb[0].mxu0
      %v1458 = vadd.f32 %v324, %v1457
      %1459 = vdwg.mxu0
      %1460 = vmatprep.subr.bf16.mxu0 %v760
      %1461 = vmatpush1.bf16.msra.mxu0 %v759
      %1462 = vmatprep.subr.bf16.mxu0 %v787
      %1463 = vmatpush1.bf16.msra.mxu0 %v786
      %1464 = vmatprep.subr.bf16.mxu0 %v814
      %1465 = vmatpush1.bf16.msra.mxu0 %v813
      %1466 = vmatprep.subr.bf16.mxu0 %v841
      %1467 = vmatpush1.bf16.msra.mxu0 %v840
      %1468 = vmatprep.subr.bf16.mxu0 %v1050
      %1469 = vmatpush1.bf16.msra.mxu0 %v1047
      %1470 = vmatprep.subr.bf16.mxu0 0
      %1471 = vmatpush1.bf16.msra.mxu0 0
      %1472 = vmatprep.subr.bf16.mxu0 0
      %1473 = vmatpush1.bf16.msra.mxu0 0
      %1474 = vmatprep.subr.bf16.mxu0 0
      %1475 = vmatpush1.bf16.msra.mxu0 0
      %1476 = vmatprep.subr.bf16.mxu0 0
      %1477 = vmatpush1.bf16.msra.mxu0 0
      %1478 = vmatprep.subr.bf16.mxu0 0
      %1479 = vmatpush1.bf16.msra.mxu0 0
      %1480 = vmatprep.subr.bf16.mxu0 0
      %1481 = vmatpush1.bf16.msra.mxu0 0
      %1482 = vmatprep.subr.bf16.mxu0 0
      %1483 = vmatpush1.bf16.msra.mxu0 0
      %1484 = vmatprep.subr.bf16.mxu0 0
      %1485 = vmatpush1.bf16.msra.mxu0 0
      %1486 = vmatprep.subr.bf16.mxu0 0
      %1487 = vmatpush1.bf16.msra.mxu0 0
      %1488 = vmatprep.subr.bf16.mxu0 0
      %1489 = vmatpush1.bf16.msra.mxu0 0
      %1490 = vmatprep.subr.bf16.mxu0 0
      %1491 = vmatpush1.bf16.msra.mxu0 0
      %1492 = vmatprep.mubr.bf16.mxu0 0
      %1493 = vmatmul.mubr.bf16.gmra.mrb[0].mxu0 %v986
      %v1494 = vpop.f32.mrb[0].mxu0
      %v1495 = vadd.f32 %v319, %v1494
      %v1496 = vpop.f32.mrb[0].mxu0
      %v1497 = vadd.f32 %v319, %v1496
      %v1498 = vpop.f32.mrb[0].mxu0
      %v1499 = vadd.f32 %v324, %v1498
      %v1500 = vpop.f32.mrb[0].mxu0
      %v1501 = vadd.f32 %v324, %v1500
      %1502 = vdwg.mxu0
      %1503 = vmatprep.subr.bf16.mxu0 %v762
      %1504 = vmatpush1.bf16.msra.mxu0 %v761
      %1505 = vmatprep.subr.bf16.mxu0 %v789
      %1506 = vmatpush1.bf16.msra.mxu0 %v788
      %1507 = vmatprep.subr.bf16.mxu0 %v816
      %1508 = vmatpush1.bf16.msra.mxu0 %v815
      %1509 = vmatprep.subr.bf16.mxu0 %v843
      %1510 = vmatpush1.bf16.msra.mxu0 %v842
      %1511 = vmatprep.subr.bf16.mxu0 %v1056
      %1512 = vmatpush1.bf16.msra.mxu0 %v1053
      %1513 = vmatprep.subr.bf16.mxu0 0
      %1514 = vmatpush1.bf16.msra.mxu0 0
      %1515 = vmatprep.subr.bf16.mxu0 0
      %1516 = vmatpush1.bf16.msra.mxu0 0
      %1517 = vmatprep.subr.bf16.mxu0 0
      %1518 = vmatpush1.bf16.msra.mxu0 0
      %1519 = vmatprep.subr.bf16.mxu0 0
      %1520 = vmatpush1.bf16.msra.mxu0 0
      %1521 = vmatprep.subr.bf16.mxu0 0
      %1522 = vmatpush1.bf16.msra.mxu0 0
      %1523 = vmatprep.subr.bf16.mxu0 0
      %1524 = vmatpush1.bf16.msra.mxu0 0
      %1525 = vmatprep.subr.bf16.mxu0 0
      %1526 = vmatpush1.bf16.msra.mxu0 0
      %1527 = vmatprep.subr.bf16.mxu0 0
      %1528 = vmatpush1.bf16.msra.mxu0 0
      %1529 = vmatprep.subr.bf16.mxu0 0
      %1530 = vmatpush1.bf16.msra.mxu0 0
      %1531 = vmatprep.subr.bf16.mxu0 0
      %1532 = vmatpush1.bf16.msra.mxu0 0
      %1533 = vmatprep.subr.bf16.mxu0 0
      %1534 = vmatpush1.bf16.msra.mxu0 0
      %1535 = vmatprep.mubr.bf16.mxu0 0
      %1536 = vmatmul.mubr.bf16.gmra.mrb[0].mxu0 %v986
      %v1537 = vpop.f32.mrb[0].mxu0
      %v1538 = vadd.f32 %v319, %v1537
      %v1539 = vpop.f32.mrb[0].mxu0
      %v1540 = vadd.f32 %v319, %v1539
      %v1541 = vpop.f32.mrb[0].mxu0
      %v1542 = vadd.f32 %v324, %v1541
      %v1543 = vpop.f32.mrb[0].mxu0
      %v1544 = vadd.f32 %v324, %v1543
      %1545 = vdwg.mxu0
      %1546 = vmatprep.subr.bf16.mxu0 %v764
      %1547 = vmatpush1.bf16.msra.mxu0 %v763
      %1548 = vmatprep.subr.bf16.mxu0 %v791
      %1549 = vmatpush1.bf16.msra.mxu0 %v790
      %1550 = vmatprep.subr.bf16.mxu0 %v818
      %1551 = vmatpush1.bf16.msra.mxu0 %v817
      %1552 = vmatprep.subr.bf16.mxu0 %v845
      %1553 = vmatpush1.bf16.msra.mxu0 %v844
      %1554 = vmatprep.subr.bf16.mxu0 %v1062
      %1555 = vmatpush1.bf16.msra.mxu0 %v1059
      %1556 = vmatprep.subr.bf16.mxu0 0
      %1557 = vmatpush1.bf16.msra.mxu0 0
      %1558 = vmatprep.subr.bf16.mxu0 0
      %1559 = vmatpush1.bf16.msra.mxu0 0
      %1560 = vmatprep.subr.bf16.mxu0 0
      %1561 = vmatpush1.bf16.msra.mxu0 0
      %1562 = vmatprep.subr.bf16.mxu0 0
      %1563 = vmatpush1.bf16.msra.mxu0 0
      %1564 = vmatprep.subr.bf16.mxu0 0
      %1565 = vmatpush1.bf16.msra.mxu0 0
      %1566 = vmatprep.subr.bf16.mxu0 0
      %1567 = vmatpush1.bf16.msra.mxu0 0
      %1568 = vmatprep.subr.bf16.mxu0 0
      %1569 = vmatpush1.bf16.msra.mxu0 0
      %1570 = vmatprep.subr.bf16.mxu0 0
      %1571 = vmatpush1.bf16.msra.mxu0 0
      %1572 = vmatprep.subr.bf16.mxu0 0
      %1573 = vmatpush1.bf16.msra.mxu0 0
      %1574 = vmatprep.subr.bf16.mxu0 0
      %1575 = vmatpush1.bf16.msra.mxu0 0
      %1576 = vmatprep.subr.bf16.mxu0 0
      %1577 = vmatpush1.bf16.msra.mxu0 0
      %1578 = vmatprep.mubr.bf16.mxu0 0
      %1579 = vmatmul.mubr.bf16.gmra.mrb[0].mxu0 %v986
      %v1580 = vpop.f32.mrb[0].mxu0
      %v1581 = vadd.f32 %v319, %v1580
      %v1582 = vpop.f32.mrb[0].mxu0
      %v1583 = vadd.f32 %v319, %v1582
      %v1584 = vpop.f32.mrb[0].mxu0
      %v1585 = vadd.f32 %v324, %v1584
      %v1586 = vpop.f32.mrb[0].mxu0
      %v1587 = vadd.f32 %v324, %v1586
      %1588 = vdwg.mxu0
      %1589 = vmatprep.subr.bf16.mxu0 %v766
      %1590 = vmatpush1.bf16.msra.mxu0 %v765
      %1591 = vmatprep.subr.bf16.mxu0 %v793
      %1592 = vmatpush1.bf16.msra.mxu0 %v792
      %1593 = vmatprep.subr.bf16.mxu0 %v820
      %1594 = vmatpush1.bf16.msra.mxu0 %v819
      %1595 = vmatprep.subr.bf16.mxu0 %v847
      %1596 = vmatpush1.bf16.msra.mxu0 %v846
      %1597 = vmatprep.subr.bf16.mxu0 %v1068
      %1598 = vmatpush1.bf16.msra.mxu0 %v1065
      %1599 = vmatprep.subr.bf16.mxu0 0
      %1600 = vmatpush1.bf16.msra.mxu0 0
      %1601 = vmatprep.subr.bf16.mxu0 0
      %1602 = vmatpush1.bf16.msra.mxu0 0
      %1603 = vmatprep.subr.bf16.mxu0 0
      %1604 = vmatpush1.bf16.msra.mxu0 0
      %1605 = vmatprep.subr.bf16.mxu0 0
      %1606 = vmatpush1.bf16.msra.mxu0 0
      %1607 = vmatprep.subr.bf16.mxu0 0
      %1608 = vmatpush1.bf16.msra.mxu0 0
      %1609 = vmatprep.subr.bf16.mxu0 0
      %1610 = vmatpush1.bf16.msra.mxu0 0
      %1611 = vmatprep.subr.bf16.mxu0 0
      %1612 = vmatpush1.bf16.msra.mxu0 0
      %1613 = vmatprep.subr.bf16.mxu0 0
      %1614 = vmatpush1.bf16.msra.mxu0 0
      %1615 = vmatprep.subr.bf16.mxu0 0
      %1616 = vmatpush1.bf16.msra.mxu0 0
      %1617 = vmatprep.subr.bf16.mxu0 0
      %1618 = vmatpush1.bf16.msra.mxu0 0
      %1619 = vmatprep.subr.bf16.mxu0 0
      %1620 = vmatpush1.bf16.msra.mxu0 0
      %1621 = vmatprep.mubr.bf16.mxu0 0
      %1622 = vmatmul.mubr.bf16.gmra.mrb[0].mxu0 %v986
      %v1623 = vpop.f32.mrb[0].mxu0
      %v1624 = vadd.f32 %v319, %v1623
      %v1625 = vpop.f32.mrb[0].mxu0
      %v1626 = vadd.f32 %v319, %v1625
      %v1627 = vpop.f32.mrb[0].mxu0
      %v1628 = vadd.f32 %v324, %v1627
      %v1629 = vpop.f32.mrb[0].mxu0
      %v1630 = vadd.f32 %v324, %v1629
      %1631 = vdwg.mxu0
      %1632 = vmatprep.subr.bf16.mxu0 0
      %1633 = vmatpush1.bf16.msra.mxu0 %v767
      %1634 = vmatprep.subr.bf16.mxu0 0
      %1635 = vmatpush1.bf16.msra.mxu0 %v794
      %1636 = vmatprep.subr.bf16.mxu0 0
      %1637 = vmatpush1.bf16.msra.mxu0 %v821
      %1638 = vmatprep.subr.bf16.mxu0 0
      %1639 = vmatpush1.bf16.msra.mxu0 %v848
      %1640 = vmatprep.subr.bf16.mxu0 0
      %1641 = vmatpush1.bf16.msra.mxu0 %v1071
      %1642 = vmatprep.subr.bf16.mxu0 0
      %1643 = vmatpush1.bf16.msra.mxu0 0
      %1644 = vmatprep.subr.bf16.mxu0 0
      %1645 = vmatpush1.bf16.msra.mxu0 0
      %1646 = vmatprep.subr.bf16.mxu0 0
      %1647 = vmatpush1.bf16.msra.mxu0 0
      %1648 = vmatprep.subr.bf16.mxu0 0
      %1649 = vmatpush1.bf16.msra.mxu0 0
      %1650 = vmatprep.subr.bf16.mxu0 0
      %1651 = vmatpush1.bf16.msra.mxu0 0
      %1652 = vmatprep.subr.bf16.mxu0 0
      %1653 = vmatpush1.bf16.msra.mxu0 0
      %1654 = vmatprep.subr.bf16.mxu0 0
      %1655 = vmatpush1.bf16.msra.mxu0 0
      %1656 = vmatprep.subr.bf16.mxu0 0
      %1657 = vmatpush1.bf16.msra.mxu0 0
      %1658 = vmatprep.subr.bf16.mxu0 0
      %1659 = vmatpush1.bf16.msra.mxu0 0
      %1660 = vmatprep.subr.bf16.mxu0 0
      %1661 = vmatpush1.bf16.msra.mxu0 0
      %1662 = vmatprep.subr.bf16.mxu0 0
      %1663 = vmatpush1.bf16.msra.mxu0 0
      %1664 = vmatprep.mubr.bf16.mxu0 0
      %1665 = vmatmul.mubr.bf16.gmra.mrb[0].mxu0 %v986
      %v1666 = vpop.f32.mrb[0].mxu0
      %v1667 = vadd.f32 %v319, %v1666
      %v1668 = vpop.f32.mrb[0].mxu0
      %v1669 = vpop.f32.mrb[0].mxu0
      %v1670 = vadd.f32 %v324, %v1669
      %v1671 = vpop.f32.mrb[0].mxu0
      %1672 = vdwg.mxu0
      %v1673 = vmax.f32 %v1108, 0.0
      %v1674 = vmax.f32 %v1110, 0.0
      %v1675 = vmax.f32 %v1151, 0.0
      %v1676 = vmax.f32 %v1153, 0.0
      %v1677 = vmax.f32 %v1194, 0.0
      %v1678 = vmax.f32 %v1196, 0.0
      %v1679 = vmax.f32 %v1237, 0.0
      %v1680 = vmax.f32 %v1239, 0.0
      %v1681 = vmax.f32 %v1280, 0.0
      %v1682 = vmax.f32 %v1282, 0.0
      %v1683 = vmax.f32 %v1323, 0.0
      %v1684 = vmax.f32 %v1325, 0.0
      %v1685 = vmax.f32 %v1366, 0.0
      %v1686 = vmax.f32 %v1368, 0.0
      %v1687 = vmax.f32 %v1409, 0.0
      %v1688 = vmax.f32 %v1411, 0.0
      %v1689 = vmax.f32 %v1452, 0.0
      %v1690 = vmax.f32 %v1454, 0.0
      %v1691 = vmax.f32 %v1495, 0.0
      %v1692 = vmax.f32 %v1497, 0.0
      %v1693 = vmax.f32 %v1538, 0.0
      %v1694 = vmax.f32 %v1540, 0.0
      %v1695 = vmax.f32 %v1581, 0.0
      %v1696 = vmax.f32 %v1583, 0.0
      %v1697 = vmax.f32 %v1624, 0.0
      %v1698 = vmax.f32 %v1626, 0.0
      %v1699 = vmax.f32 %v1667, 0.0
      %v1700 = vmax.f32 %v1112, 0.0
      %v1701 = vmax.f32 %v1114, 0.0
      %v1702 = vmax.f32 %v1155, 0.0
      %v1703 = vmax.f32 %v1157, 0.0
      %v1704 = vmax.f32 %v1198, 0.0
      %v1705 = vmax.f32 %v1200, 0.0
      %v1706 = vmax.f32 %v1241, 0.0
      %v1707 = vmax.f32 %v1243, 0.0
      %v1708 = vmax.f32 %v1284, 0.0
      %v1709 = vmax.f32 %v1286, 0.0
      %v1710 = vmax.f32 %v1327, 0.0
      %v1711 = vmax.f32 %v1329, 0.0
      %v1712 = vmax.f32 %v1370, 0.0
      %v1713 = vmax.f32 %v1372, 0.0
      %v1714 = vmax.f32 %v1413, 0.0
      %v1715 = vmax.f32 %v1415, 0.0
      %v1716 = vmax.f32 %v1456, 0.0
      %v1717 = vmax.f32 %v1458, 0.0
      %v1718 = vmax.f32 %v1499, 0.0
      %v1719 = vmax.f32 %v1501, 0.0
      %v1720 = vmax.f32 %v1542, 0.0
      %v1721 = vmax.f32 %v1544, 0.0
      %v1722 = vmax.f32 %v1585, 0.0
      %v1723 = vmax.f32 %v1587, 0.0
      %v1724 = vmax.f32 %v1628, 0.0
      %v1725 = vmax.f32 %v1630, 0.0
      %v1726 = vmax.f32 %v1670, 0.0
      %1727 = vset.pattern.permute.xlu0 1
      %1728 = vperm.xlu0 %1727, %v314
      %v1729 = vpop.permute.xlu0 %1728
      %1731 = vset.pattern.permute.xlu0 1
      %1732 = vperm.xlu0 %1731, %v315
      %v1733 = vpop.permute.xlu0 %1732
      %v1735 = vmul.f32 %v1673, %v1729
      %v1736 = vmul.f32 %v1674, %v1729
      %v1737 = vmul.f32 %v1675, %v1729
      %v1738 = vmul.f32 %v1676, %v1729
      %v1739 = vmul.f32 %v1677, %v1729
      %v1740 = vmul.f32 %v1678, %v1729
      %v1741 = vmul.f32 %v1679, %v1729
      %v1742 = vmul.f32 %v1680, %v1729
      %v1743 = vmul.f32 %v1681, %v1729
      %v1744 = vmul.f32 %v1682, %v1729
      %v1745 = vmul.f32 %v1683, %v1729
      %v1746 = vmul.f32 %v1684, %v1729
      %v1747 = vmul.f32 %v1685, %v1729
      %v1748 = vmul.f32 %v1686, %v1729
      %v1749 = vmul.f32 %v1687, %v1729
      %v1750 = vmul.f32 %v1688, %v1729
      %v1751 = vmul.f32 %v1689, %v1729
      %v1752 = vmul.f32 %v1690, %v1729
      %v1753 = vmul.f32 %v1691, %v1729
      %v1754 = vmul.f32 %v1692, %v1729
      %v1755 = vmul.f32 %v1693, %v1729
      %v1756 = vmul.f32 %v1694, %v1729
      %v1757 = vmul.f32 %v1695, %v1729
      %v1758 = vmul.f32 %v1696, %v1729
      %v1759 = vmul.f32 %v1697, %v1729
      %v1760 = vmul.f32 %v1698, %v1729
      %v1761 = vmul.f32 %v1699, %v1729
      %v1762 = vmul.f32 %v1700, %v1733
      %v1763 = vmul.f32 %v1701, %v1733
      %v1764 = vmul.f32 %v1702, %v1733
      %v1765 = vmul.f32 %v1703, %v1733
      %v1766 = vmul.f32 %v1704, %v1733
      %v1767 = vmul.f32 %v1705, %v1733
      %v1768 = vmul.f32 %v1706, %v1733
      %v1769 = vmul.f32 %v1707, %v1733
      %v1770 = vmul.f32 %v1708, %v1733
      %v1771 = vmul.f32 %v1709, %v1733
      %v1772 = vmul.f32 %v1710, %v1733
      %v1773 = vmul.f32 %v1711, %v1733
      %v1774 = vmul.f32 %v1712, %v1733
      %v1775 = vmul.f32 %v1713, %v1733
      %v1776 = vmul.f32 %v1714, %v1733
      %v1777 = vmul.f32 %v1715, %v1733
      %v1778 = vmul.f32 %v1716, %v1733
      %v1779 = vmul.f32 %v1717, %v1733
      %v1780 = vmul.f32 %v1718, %v1733
      %v1781 = vmul.f32 %v1719, %v1733
      %v1782 = vmul.f32 %v1720, %v1733
      %v1783 = vmul.f32 %v1721, %v1733
      %v1784 = vmul.f32 %v1722, %v1733
      %v1785 = vmul.f32 %v1723, %v1733
      %v1786 = vmul.f32 %v1724, %v1733
      %v1787 = vmul.f32 %v1725, %v1733
      %v1788 = vmul.f32 %v1726, %v1733
      %1789 = vset.pattern.permute.xlu0 2
      %1790 = vperm.xlu0 %1789, %v314
      %v1791 = vpop.permute.xlu0 %1790
      %1793 = vset.pattern.permute.xlu0 2
      %1794 = vperm.xlu0 %1793, %v315
      %v1795 = vpop.permute.xlu0 %1794
      %v1797 = vadd.f32 %v1735, %v1791
      %v1798 = vadd.f32 %v1736, %v1791
      %v1799 = vadd.f32 %v1737, %v1791
      %v1800 = vadd.f32 %v1738, %v1791
      %v1801 = vadd.f32 %v1739, %v1791
      %v1802 = vadd.f32 %v1740, %v1791
      %v1803 = vadd.f32 %v1741, %v1791
      %v1804 = vadd.f32 %v1742, %v1791
      %v1805 = vadd.f32 %v1743, %v1791
      %v1806 = vadd.f32 %v1744, %v1791
      %v1807 = vadd.f32 %v1745, %v1791
      %v1808 = vadd.f32 %v1746, %v1791
      %v1809 = vadd.f32 %v1747, %v1791
      %v1810 = vadd.f32 %v1748, %v1791
      %v1811 = vadd.f32 %v1749, %v1791
      %v1812 = vadd.f32 %v1750, %v1791
      %v1813 = vadd.f32 %v1751, %v1791
      %v1814 = vadd.f32 %v1752, %v1791
      %v1815 = vadd.f32 %v1753, %v1791
      %v1816 = vadd.f32 %v1754, %v1791
      %v1817 = vadd.f32 %v1755, %v1791
      %v1818 = vadd.f32 %v1756, %v1791
      %v1819 = vadd.f32 %v1757, %v1791
      %v1820 = vadd.f32 %v1758, %v1791
      %v1821 = vadd.f32 %v1759, %v1791
      %v1822 = vadd.f32 %v1760, %v1791
      %v1823 = vadd.f32 %v1761, %v1791
      %v1824 = vadd.f32 %v1762, %v1795
      %v1825 = vadd.f32 %v1763, %v1795
      %v1826 = vadd.f32 %v1764, %v1795
      %v1827 = vadd.f32 %v1765, %v1795
      %v1828 = vadd.f32 %v1766, %v1795
      %v1829 = vadd.f32 %v1767, %v1795
      %v1830 = vadd.f32 %v1768, %v1795
      %v1831 = vadd.f32 %v1769, %v1795
      %v1832 = vadd.f32 %v1770, %v1795
      %v1833 = vadd.f32 %v1771, %v1795
      %v1834 = vadd.f32 %v1772, %v1795
      %v1835 = vadd.f32 %v1773, %v1795
      %v1836 = vadd.f32 %v1774, %v1795
      %v1837 = vadd.f32 %v1775, %v1795
      %v1838 = vadd.f32 %v1776, %v1795
      %v1839 = vadd.f32 %v1777, %v1795
      %v1840 = vadd.f32 %v1778, %v1795
      %v1841 = vadd.f32 %v1779, %v1795
      %v1842 = vadd.f32 %v1780, %v1795
      %v1843 = vadd.f32 %v1781, %v1795
      %v1844 = vadd.f32 %v1782, %v1795
      %v1845 = vadd.f32 %v1783, %v1795
      %v1846 = vadd.f32 %v1784, %v1795
      %v1847 = vadd.f32 %v1785, %v1795
      %v1848 = vadd.f32 %v1786, %v1795
      %v1849 = vadd.f32 %v1787, %v1795
      %v1850 = vadd.f32 %v1788, %v1795
      %v1851 = vpack.c.bf16 %v1824, %v1797
      %v1852 = vpack.c.bf16 %v1825, %v1798
      %v1853 = vpack.c.bf16 %v1826, %v1799
      %v1854 = vpack.c.bf16 %v1827, %v1800
      %v1855 = vpack.c.bf16 %v1828, %v1801
      %v1856 = vpack.c.bf16 %v1829, %v1802
      %v1857 = vpack.c.bf16 %v1830, %v1803
      %v1858 = vpack.c.bf16 %v1831, %v1804
      %v1859 = vpack.c.bf16 %v1832, %v1805
      %v1860 = vpack.c.bf16 %v1833, %v1806
      %v1861 = vpack.c.bf16 %v1834, %v1807
      %v1862 = vpack.c.bf16 %v1835, %v1808
      %v1863 = vpack.c.bf16 %v1836, %v1809
      %v1864 = vpack.c.bf16 %v1837, %v1810
      %v1865 = vpack.c.bf16 %v1838, %v1811
      %v1866 = vpack.c.bf16 %v1839, %v1812
      %v1867 = vpack.c.bf16 %v1840, %v1813
      %v1868 = vpack.c.bf16 %v1841, %v1814
      %v1869 = vpack.c.bf16 %v1842, %v1815
      %v1870 = vpack.c.bf16 %v1843, %v1816
      %v1871 = vpack.c.bf16 %v1844, %v1817
      %v1872 = vpack.c.bf16 %v1845, %v1818
      %v1873 = vpack.c.bf16 %v1846, %v1819
      %v1874 = vpack.c.bf16 %v1847, %v1820
      %v1875 = vpack.c.bf16 %v1848, %v1821
      %v1876 = vpack.c.bf16 %v1849, %v1822
      %v1877 = vpack.c.bf16 %v1850, %v1823
      %v1905 = vunpack.c.l.b16 %v1851
      %v1906 = vunpack.c.l.b16 %v1852
      %v1907 = vunpack.c.l.b16 %v1853
      %v1908 = vunpack.c.l.b16 %v1854
      %v1909 = vunpack.c.l.b16 %v1855
      %v1910 = vunpack.c.l.b16 %v1856
      %v1911 = vunpack.c.l.b16 %v1857
      %v1912 = vunpack.c.l.b16 %v1858
      %v1913 = vunpack.c.l.b16 %v1859
      %v1914 = vunpack.c.l.b16 %v1860
      %v1915 = vunpack.c.l.b16 %v1861
      %v1916 = vunpack.c.l.b16 %v1862
      %v1917 = vunpack.c.l.b16 %v1863
      %v1918 = vunpack.c.l.b16 %v1864
      %v1919 = vunpack.c.l.b16 %v1865
      %v1920 = vunpack.c.l.b16 %v1866
      %v1921 = vunpack.c.l.b16 %v1867
      %v1922 = vunpack.c.l.b16 %v1868
      %v1923 = vunpack.c.l.b16 %v1869
      %v1924 = vunpack.c.l.b16 %v1870
      %v1925 = vunpack.c.l.b16 %v1871
      %v1926 = vunpack.c.l.b16 %v1872
      %v1927 = vunpack.c.l.b16 %v1873
      %v1928 = vunpack.c.l.b16 %v1874
      %v1929 = vunpack.c.l.b16 %v1875
      %v1930 = vunpack.c.l.b16 %v1876
      %v1931 = vunpack.c.l.b16 %v1877
      %v1932 = vunpack.c.h.b16 %v1851
      %v1933 = vunpack.c.h.b16 %v1852
      %v1934 = vunpack.c.h.b16 %v1853
      %v1935 = vunpack.c.h.b16 %v1854
      %v1936 = vunpack.c.h.b16 %v1855
      %v1937 = vunpack.c.h.b16 %v1856
      %v1938 = vunpack.c.h.b16 %v1857
      %v1939 = vunpack.c.h.b16 %v1858
      %v1940 = vunpack.c.h.b16 %v1859
      %v1941 = vunpack.c.h.b16 %v1860
      %v1942 = vunpack.c.h.b16 %v1861
      %v1943 = vunpack.c.h.b16 %v1862
      %v1944 = vunpack.c.h.b16 %v1863
      %v1945 = vunpack.c.h.b16 %v1864
      %v1946 = vunpack.c.h.b16 %v1865
      %v1947 = vunpack.c.h.b16 %v1866
      %v1948 = vunpack.c.h.b16 %v1867
      %v1949 = vunpack.c.h.b16 %v1868
      %v1950 = vunpack.c.h.b16 %v1869
      %v1951 = vunpack.c.h.b16 %v1870
      %v1952 = vunpack.c.h.b16 %v1871
      %v1953 = vunpack.c.h.b16 %v1872
      %v1954 = vunpack.c.h.b16 %v1873
      %v1955 = vunpack.c.h.b16 %v1874
      %v1956 = vunpack.c.h.b16 %v1875
      %v1957 = vunpack.c.h.b16 %v1876
      %v1958 = vunpack.c.h.b16 %v1877
      %v1959 = vpack.c.b16 %v1906, %v1905
      %v1960 = vpack.c.b16 %v1908, %v1907
      %v1961 = vpack.c.b16 %v1910, %v1909
      %v1962 = vpack.c.b16 %v1912, %v1911
      %v1963 = vpack.c.b16 %v1914, %v1913
      %v1964 = vpack.c.b16 %v1916, %v1915
      %v1965 = vpack.c.b16 %v1918, %v1917
      %v1966 = vpack.c.b16 %v1920, %v1919
      %v1967 = vpack.c.b16 %v1922, %v1921
      %v1968 = vpack.c.b16 %v1924, %v1923
      %v1969 = vpack.c.b16 %v1926, %v1925
      %v1970 = vpack.c.b16 %v1928, %v1927
      %v1971 = vpack.c.b16 %v1930, %v1929
      %v1972 = vpack.c.b16 %v1931, %v1931
      %v1973 = vpack.c.b16 %v1933, %v1932
      %v1974 = vpack.c.b16 %v1935, %v1934
      %v1975 = vpack.c.b16 %v1937, %v1936
      %v1976 = vpack.c.b16 %v1939, %v1938
      %v1977 = vpack.c.b16 %v1941, %v1940
      %v1978 = vpack.c.b16 %v1943, %v1942
      %v1979 = vpack.c.b16 %v1945, %v1944
      %v1980 = vpack.c.b16 %v1947, %v1946
      %v1981 = vpack.c.b16 %v1949, %v1948
      %v1982 = vpack.c.b16 %v1951, %v1950
      %v1983 = vpack.c.b16 %v1953, %v1952
      %v1984 = vpack.c.b16 %v1955, %v1954
      %v1985 = vpack.c.b16 %v1957, %v1956
      %v1986 = vpack.c.b16 %v1958, %v1958
      %2015 = vst [vmem:[%s170] sm:$0xff] %v1959
      %2016 = vst [vmem:[%s170 + $0x8] sm:$0xff] %v1960
      %2017 = vst [vmem:[%s170 + $0x10] sm:$0xff] %v1961
      %2018 = vst [vmem:[%s170 + $0x18] sm:$0xff] %v1962
      %2019 = vst [vmem:[%s170 + $0x20] sm:$0xff] %v1963
      %2020 = vst [vmem:[%s170 + $0x28] sm:$0xff] %v1964
      %2021 = vst [vmem:[%s170 + $0x30] sm:$0xff] %v1965
      %2022 = vst [vmem:[%s170 + $0x38] sm:$0xff] %v1966
      %2023 = vst [vmem:[%s170 + $0x40] sm:$0xff] %v1967
      %2024 = vst [vmem:[%s170 + $0x48] sm:$0xff] %v1968
      %2025 = vst [vmem:[%s170 + $0x50] sm:$0xff] %v1969
      %2026 = vst [vmem:[%s170 + $0x58] sm:$0xff] %v1970
      %2027 = vst [vmem:[%s170 + $0x60] sm:$0xff] %v1971
      %vm2028 = vcmask 289792
      %2029 = vst.msk [vmem:[%s170 + $0x68] sm:$0xf] %vm2028, %v1972
      %2030 = vst [vmem:[%s170 + $0x6c] sm:$0xff] %v1973
      %2031 = vst [vmem:[%s170 + $0x74] sm:$0xff] %v1974
      %2032 = vst [vmem:[%s170 + $0x7c] sm:$0xff] %v1975
      %2033 = vst [vmem:[%s170 + $0x84] sm:$0xff] %v1976
      %2034 = vst [vmem:[%s170 + $0x8c] sm:$0xff] %v1977
      %2035 = vst [vmem:[%s170 + $0x94] sm:$0xff] %v1978
      %2036 = vst [vmem:[%s170 + $0x9c] sm:$0xff] %v1979
      %2037 = vst [vmem:[%s170 + $0xa4] sm:$0xff] %v1980
      %2038 = vst [vmem:[%s170 + $0xac] sm:$0xff] %v1981
      %2039 = vst [vmem:[%s170 + $0xb4] sm:$0xff] %v1982
      %2040 = vst [vmem:[%s170 + $0xbc] sm:$0xff] %v1983
      %2041 = vst [vmem:[%s170 + $0xc4] sm:$0xff] %v1984
      %2042 = vst [vmem:[%s170 + $0xcc] sm:$0xff] %v1985
      %2043 = vst.msk [vmem:[%s170 + $0xd4] sm:$0xf] %vm2028, %v1986
      %p2044 = scmp.lt.s32.totalorder %s14, 1
      %s2045 = scalar_select %p2044, %s14, 1
      %s2046 = smul.addr %s2045, 54
      %s2047 = smul.addr %s2046, 4
      %s2048 = scalar_lea.vmem %s3, %s2047
      // Predicated region
      $region33: #{module1_forward.5} parent=31 // pred_check
        %p2049 = pneg %p100
      $region34: #{module1_forward.5} parent=31 // pred_check_branch
        %2051 = sbr.rel (%p2049) target = $region36
      $region35: #{module1_forward.5} parent=31 // pred_region
        _
      $region36: #{module1_forward.5} parent=31 // pred_fallthru
        _
    $region32: #{module1_forward.5} parent=5 // pred_fallthru
      _
    %p2052 = scmp.le.s32.totalorder 2, %s9
    // Predicated region
    $region37: #{module1_forward.5} parent=5 // pred_check
      %p2053 = pneg %p2052
    $region38: #{module1_forward.5} parent=5 // pred_check_branch
      %2055 = sbr.rel (%p2053) target = $region40
    $region39: #{module1_forward.5} parent=5 // pred_region
      %s2056 = ssub.s32 %s9, 2
      // Predicated region
      $region41: #{module1_forward.5} parent=39 // pred_check
        %p2057 = pneg %p106
      $region42: #{module1_forward.5} parent=39 // pred_check_branch
        %2059 = sbr.rel (%p2057) target = $region44
      $region43: #{module1_forward.5} parent=39 // pred_region
        %p2060 = scmp.lt.s32.totalorder %s15, 1
        %s2061 = scalar_select %p2060, %s15, 1
        %s2062 = smul.addr %s2061, 54
        %s2063 = smul.addr %s2062, 4
        %s2064 = scalar_lea.vmem %s3, %s2063
      $region44: #{module1_forward.5} parent=39 // pred_fallthru
        _
    $region40: #{module1_forward.5} parent=5 // pred_fallthru
      _
  $region6: #{module1_forward.5} parent=0 // loop_footer
    %s13 = sadd.s32 1, %s9
  $region7: #{module1_forward.5} parent=0 // loop_footer_branch
    %8 = sbr.rel target = $region3
  $region8: #{module1_forward.5} parent=0 // loop_exit
    _

// kernel: module1_forward.6
$region0: #{module1_forward.6}
  #allocation0 [shape = 'u32[]', space=smem, size = 0x4, offset = 0x4, fixed_abs, tag = 'smem constant byte address 0x4 - core index']
  #allocation1 [shape = 'u32[144,128]{1,0:T(1,128)}', space=vmem, size = 0x12000, scoped, tag = 'internal scratch']
  %s0 = inlined_call_operand.vmem [shape: bf16[2,144,3584], index: 0, kind: input, shape index: {}]
  %s1 = inlined_call_operand.vmem [shape: bf16[16,144], index: 1, kind: input, shape index: {}]
  %s2 = inlined_call_operand.vmem [shape: f32[16,3], index: 2, kind: input, shape index: {}]
  %s3 = inlined_call_operand.vmem [shape: bf16[2,16,784], index: 3, kind: output, shape index: {}]
  %s4 = sld [smem:[#allocation0]]
  $region45: #{module1_forward.6} parent=0
    _
  %s6 = ssub.s32 1, %s4
  %s7 = scalar_select 0, %s6, %s4
  loop: start=0, step=1, limit=4
  $region2: #{module1_forward.6} parent=0 // loop_pre_header
    _
  $region3: #{module1_forward.6} parent=0 // loop_header
    %s9 = sphi 0, %s13
    %p10 = scmp.ge.s32.totalorder %s9, 4
    %s19 = sphi 0, %s21
    %s22 = sphi 0, %s19
    %s23 = sphi 0, %s22
    %s39 = sphi 0, %s23
    %s43 = sphi 0, %s43
    %s45 = sphi 0, %s43
    %s46 = sphi 0, %s45
    %s60 = sphi 0, %s46
    %s64 = sphi 0, %s64
    %s66 = sphi 0, %s64
    %s67 = sphi 0, %s66
    %s81 = sphi 0, %s67
    %s87 = sphi 0, %s89
    %s90 = sphi 0, %s87
    %s91 = sphi 0, %s90
    %s107 = sphi 0, %s91
  $region4: #{module1_forward.6} parent=0 // loop_header_branch
    %12 = sbr.rel (%p10) target = $region8
  $region5: #{module1_forward.6} parent=0 // loop_body
    %s14 = ssub.s32 %s9, 1
    %s15 = ssub.s32 %s9, 2
    %s16 = sadd.s32 %s9, 1
    %s17 = ssub.s32 %s9, %s16
    %p18 = scmp.eq.s32.totalorder %s17, 0
    %s20 = sadd.s32 %s19, 1
    %s21 = scalar_select %p18, %s19, %s20
    %p24 = pneg %p18
    %p25 = scmp.eq.s32.totalorder %s9, 1
    %p26 = por %p24, %p25
    %p27 = scmp.ne.s32.totalorder %s19, %s22
    %p28 = scmp.eq.s32.totalorder %s9, 0
    %p29 = por %p27, %p28
    %p30 = scmp.ne.s32.totalorder %s19, %s22
    %p31 = scmp.eq.s32.totalorder %s14, 1
    %p32 = por %p30, %p31
    %p33 = scmp.ne.s32.totalorder %s22, %s23
    %p34 = scmp.eq.s32.totalorder %s14, 0
    %p35 = por %p33, %p34
    %p36 = scmp.ne.s32.totalorder %s22, %s23
    %p37 = scmp.eq.s32.totalorder %s15, 1
    %p38 = por %p36, %p37
    %p40 = scmp.ne.s32.totalorder %s23, %s39
    %p41 = scmp.eq.s32.totalorder %s15, 0
    %p42 = por %p40, %p41
    %s44 = sadd.s32 %s43, 1
    %p47 = scmp.eq.s32.totalorder %s9, 1
    %p48 = scmp.ne.s32.totalorder %s43, %s45
    %p49 = scmp.eq.s32.totalorder %s9, 0
    %p50 = por %p48, %p49
    %p51 = scmp.ne.s32.totalorder %s43, %s45
    %p52 = scmp.eq.s32.totalorder %s14, 1
    %p53 = por %p51, %p52
    %p54 = scmp.ne.s32.totalorder %s45, %s46
    %p55 = scmp.eq.s32.totalorder %s14, 0
    %p56 = por %p54, %p55
    %p57 = scmp.ne.s32.totalorder %s45, %s46
    %p58 = scmp.eq.s32.totalorder %s15, 1
    %p59 = por %p57, %p58
    %p61 = scmp.ne.s32.totalorder %s46, %s60
    %p62 = scmp.eq.s32.totalorder %s15, 0
    %p63 = por %p61, %p62
    %s65 = sadd.s32 %s64, 1
    %p68 = scmp.eq.s32.totalorder %s9, 1
    %p69 = scmp.ne.s32.totalorder %s64, %s66
    %p70 = scmp.eq.s32.totalorder %s9, 0
    %p71 = por %p69, %p70
    %p72 = scmp.ne.s32.totalorder %s64, %s66
    %p73 = scmp.eq.s32.totalorder %s14, 1
    %p74 = por %p72, %p73
    %p75 = scmp.ne.s32.totalorder %s66, %s67
    %p76 = scmp.eq.s32.totalorder %s14, 0
    %p77 = por %p75, %p76
    %p78 = scmp.ne.s32.totalorder %s66, %s67
    %p79 = scmp.eq.s32.totalorder %s15, 1
    %p80 = por %p78, %p79
    %p82 = scmp.ne.s32.totalorder %s67, %s81
    %p83 = scmp.eq.s32.totalorder %s15, 0
    %p84 = por %p82, %p83
    %s85 = ssub.s32 %s9, %s16
    %p86 = scmp.eq.s32.totalorder %s85, 0
    %s88 = sadd.s32 %s87, 1
    %s89 = scalar_select %p86, %s87, %s88
    %p92 = pneg %p86
    %p93 = scmp.eq.s32.totalorder %s9, 1
    %p94 = por %p92, %p93
    %p95 = scmp.ne.s32.totalorder %s87, %s90
    %p96 = scmp.eq.s32.totalorder %s9, 0
    %p97 = por %p95, %p96
    %p98 = scmp.ne.s32.totalorder %s87, %s90
    %p99 = scmp.eq.s32.totalorder %s14, 1
    %p100 = por %p98, %p99
    %p101 = scmp.ne.s32.totalorder %s90, %s91
    %p102 = scmp.eq.s32.totalorder %s14, 0
    %p103 = por %p101, %p102
    %p104 = scmp.ne.s32.totalorder %s90, %s91
    %p105 = scmp.eq.s32.totalorder %s15, 1
    %p106 = por %p104, %p105
    %p108 = scmp.ne.s32.totalorder %s91, %s107
    %p109 = scmp.eq.s32.totalorder %s15, 0
    %p110 = por %p108, %p109
    %p111 = scmp.le.s32.totalorder 1, %s9
    %p112 = scmp.lt.s32.totalorder %s9, 3
    %p113 = pnand %p111, %p112
    %p114 = pneg %p113
    // Predicated region
    $region9: #{module1_forward.6} parent=5 // pred_check
      _
    $region10: #{module1_forward.6} parent=5 // pred_check_branch
      %116 = sbr.rel (%p113) target = $region12
    $region11: #{module1_forward.6} parent=5 // pred_region
      %s117 = ssub.s32 %s9, 1
      // Predicated region
      $region13: #{module1_forward.6} parent=11 // pred_check
        %p118 = pneg %p56
      $region14: #{module1_forward.6} parent=11 // pred_check_branch
        %120 = sbr.rel (%p118) target = $region16
      $region15: #{module1_forward.6} parent=11 // pred_region
        _
      $region16: #{module1_forward.6} parent=11 // pred_fallthru
        _
      // Predicated region
      $region17: #{module1_forward.6} parent=11 // pred_check
        %p121 = pneg %p77
      $region18: #{module1_forward.6} parent=11 // pred_check_branch
        %123 = sbr.rel (%p121) target = $region20
      $region19: #{module1_forward.6} parent=11 // pred_region
        _
      $region20: #{module1_forward.6} parent=11 // pred_fallthru
        _
    $region12: #{module1_forward.6} parent=5 // pred_fallthru
      _
    %p124 = scmp.lt.s32.totalorder %s9, 2
    // Predicated region
    $region21: #{module1_forward.6} parent=5 // pred_check
      %p125 = pneg %p124
    $region22: #{module1_forward.6} parent=5 // pred_check_branch
      %127 = sbr.rel (%p125) target = $region24
    $region23: #{module1_forward.6} parent=5 // pred_region
      // Predicated region
      $region25: #{module1_forward.6} parent=23 // pred_check
        %p128 = pneg %p29
      $region26: #{module1_forward.6} parent=23 // pred_check_branch
        %130 = sbr.rel (%p128) target = $region28
      $region27: #{module1_forward.6} parent=23 // pred_region
        %p131 = scmp.lt.s32.totalorder %s9, 1
        %s132 = scalar_select %p131, %s9, 1
        %s133 = smul.addr %s132, 504
        %s134 = smul.addr %s133, 4
        %s135 = scalar_lea.vmem %s0, %s134
      $region28: #{module1_forward.6} parent=23 // pred_fallthru
        _
    $region24: #{module1_forward.6} parent=5 // pred_fallthru
      _
    %p136 = scmp.le.s32.totalorder 1, %s9
    %p137 = scmp.lt.s32.totalorder %s9, 3
    %p138 = pnand %p136, %p137
    %p139 = pneg %p138
    // Predicated region
    $region29: #{module1_forward.6} parent=5 // pred_check
      _
    $region30: #{module1_forward.6} parent=5 // pred_check_branch
      %141 = sbr.rel (%p138) target = $region32
    $region31: #{module1_forward.6} parent=5 // pred_region
      %s142 = ssub.s32 %s9, 1
      %p143 = scmp.lt.s32.totalorder %s14, 1
      %s144 = scalar_select %p143, %s14, 1
      %s145 = smul.addr %s144, 504
      %s146 = smul.addr %s145, 4
      %s147 = scalar_lea.vmem %s0, %s146
      %p148 = pneg %p35
      %p149 = pneg %p32
      %p150 = pneg %p56
      %p151 = pneg %p53
      %p152 = pneg %p77
      %p153 = pneg %p74
      %p154 = pneg %p103
      %p155 = pneg %p100
      %p156 = scmp.lt.s32.totalorder %s14, 1
      %s157 = scalar_select %p156, %s14, 1
      %s158 = smul.addr %s157, 14
      %s159 = smul.addr %s158, 4
      %s160 = scalar_lea.vmem %s3, %s159
      %p161 = scmp.lt.s32.totalorder %s14, 1
      %s162 = scalar_select %p161, %s14, 1
      %s163 = smul.addr %s162, 504
      %s164 = smul.addr %s163, 4
      %s165 = scalar_lea.vmem %s0, %s164
      %p166 = scmp.lt.s32.totalorder %s14, 1
      %s167 = scalar_select %p166, %s14, 1
      %s168 = smul.addr %s167, 14
      %s169 = smul.addr %s168, 4
      %s170 = scalar_lea.vmem %s3, %s169
      %v172 = vld [vmem:[%s1] sm:$0xff]
      %v173 = vld [vmem:[%s1 + $0x8] sm:$0xff]
      %v174 = vld [vmem:[%s165] sm:$0xff]
      %v175 = vld [vmem:[%s165 + $0x8] sm:$0xff]
      %v176 = vld [vmem:[%s165 + $0x10] sm:$0xff]
      %v177 = vld [vmem:[%s165 + $0x18] sm:$0xff]
      %v178 = vld [vmem:[%s165 + $0x20] sm:$0xff]
      %v179 = vld [vmem:[%s165 + $0x28] sm:$0xff]
      %v180 = vld [vmem:[%s165 + $0x30] sm:$0xff]
      %v181 = vld [vmem:[%s165 + $0x38] sm:$0xff]
      %v182 = vld [vmem:[%s165 + $0x40] sm:$0xff]
      %v183 = vld [vmem:[%s165 + $0x48] sm:$0xff]
      %v184 = vld [vmem:[%s165 + $0x50] sm:$0xff]
      %v185 = vld [vmem:[%s165 + $0x58] sm:$0xff]
      %v186 = vld [vmem:[%s165 + $0x60] sm:$0xff]
      %v187 = vld [vmem:[%s165 + $0x68] sm:$0xff]
      %v188 = vld [vmem:[%s165 + $0x70] sm:$0xff]
      %v189 = vld [vmem:[%s165 + $0x78] sm:$0xff]
      %v190 = vld [vmem:[%s165 + $0x80] sm:$0xff]
      %v191 = vld [vmem:[%s165 + $0x88] sm:$0xff]
      %v192 = vld [vmem:[%s165 + $0x90] sm:$0xff]
      %v193 = vld [vmem:[%s165 + $0x98] sm:$0xff]
      %v194 = vld [vmem:[%s165 + $0xa0] sm:$0xff]
      %v195 = vld [vmem:[%s165 + $0xa8] sm:$0xff]
      %v196 = vld [vmem:[%s165 + $0xb0] sm:$0xff]
      %v197 = vld [vmem:[%s165 + $0xb8] sm:$0xff]
      %v198 = vld [vmem:[%s165 + $0xc0] sm:$0xff]
      %v199 = vld [vmem:[%s165 + $0xc8] sm:$0xff]
      %v200 = vld [vmem:[%s165 + $0xd0] sm:$0xff]
      %v201 = vld [vmem:[%s165 + $0xd8] sm:$0xff]
      %v202 = vld [vmem:[%s165 + $0xe0] sm:$0xff]
      %v203 = vld [vmem:[%s165 + $0xe8] sm:$0xff]
      %v204 = vld [vmem:[%s165 + $0xf0] sm:$0xff]
      %v205 = vld [vmem:[%s165 + $0xf8] sm:$0xff]
      %v206 = vld [vmem:[%s165 + $0x100] sm:$0xff]
      %v207 = vld [vmem:[%s165 + $0x108] sm:$0xff]
      %v208 = vld [vmem:[%s165 + $0x110] sm:$0xff]
      %v209 = vld [vmem:[%s165 + $0x118] sm:$0xff]
      %v210 = vld [vmem:[%s165 + $0x120] sm:$0xff]
      %v211 = vld [vmem:[%s165 + $0x128] sm:$0xff]
      %v212 = vld [vmem:[%s165 + $0x130] sm:$0xff]
      %v213 = vld [vmem:[%s165 + $0x138] sm:$0xff]
      %v214 = vld [vmem:[%s165 + $0x140] sm:$0xff]
      %v215 = vld [vmem:[%s165 + $0x148] sm:$0xff]
      %v216 = vld [vmem:[%s165 + $0x150] sm:$0xff]
      %v217 = vld [vmem:[%s165 + $0x158] sm:$0xff]
      %v218 = vld [vmem:[%s165 + $0x160] sm:$0xff]
      %v219 = vld [vmem:[%s165 + $0x168] sm:$0xff]
      %v220 = vld [vmem:[%s165 + $0x170] sm:$0xff]
      %v221 = vld [vmem:[%s165 + $0x178] sm:$0xff]
      %v222 = vld [vmem:[%s165 + $0x180] sm:$0xff]
      %v223 = vld [vmem:[%s165 + $0x188] sm:$0xff]
      %v224 = vld [vmem:[%s165 + $0x190] sm:$0xff]
      %v225 = vld [vmem:[%s165 + $0x198] sm:$0xff]
      %v226 = vld [vmem:[%s165 + $0x1a0] sm:$0xff]
      %v227 = vld [vmem:[%s165 + $0x1a8] sm:$0xff]
      %v228 = vld [vmem:[%s165 + $0x1b0] sm:$0xff]
      %v229 = vld [vmem:[%s165 + $0x1b8] sm:$0xff]
      %v230 = vld [vmem:[%s165 + $0x1c0] sm:$0xff]
      %v231 = vld [vmem:[%s165 + $0x1c8] sm:$0xff]
      %v232 = vld [vmem:[%s165 + $0x1d0] sm:$0xff]
      %v233 = vld [vmem:[%s165 + $0x1d8] sm:$0xff]
      %v234 = vld [vmem:[%s165 + $0x1e0] sm:$0xff]
      %v235 = vld [vmem:[%s165 + $0x1e8] sm:$0xff]
      %v236 = vld [vmem:[%s165 + $0x1f0] sm:$0xff]
      %v237 = vld [vmem:[%s165 + $0x1f8] sm:$0xff]
      %v238 = vld [vmem:[%s165 + $0x200] sm:$0xff]
      %v239 = vld [vmem:[%s165 + $0x208] sm:$0xff]
      %v240 = vld [vmem:[%s165 + $0x210] sm:$0xff]
      %v241 = vld [vmem:[%s165 + $0x218] sm:$0xff]
      %v242 = vld [vmem:[%s165 + $0x220] sm:$0xff]
      %v243 = vld [vmem:[%s165 + $0x228] sm:$0xff]
      %v244 = vld [vmem:[%s165 + $0x230] sm:$0xff]
      %v245 = vld [vmem:[%s165 + $0x238] sm:$0xff]
      %v246 = vld [vmem:[%s165 + $0x240] sm:$0xff]
      %v247 = vld [vmem:[%s165 + $0x248] sm:$0xff]
      %v248 = vld [vmem:[%s165 + $0x250] sm:$0xff]
      %v249 = vld [vmem:[%s165 + $0x258] sm:$0xff]
      %v250 = vld [vmem:[%s165 + $0x260] sm:$0xff]
      %v251 = vld [vmem:[%s165 + $0x268] sm:$0xff]
      %v252 = vld [vmem:[%s165 + $0x270] sm:$0xff]
      %v253 = vld [vmem:[%s165 + $0x278] sm:$0xff]
      %v254 = vld [vmem:[%s165 + $0x280] sm:$0xff]
      %v255 = vld [vmem:[%s165 + $0x288] sm:$0xff]
      %v256 = vld [vmem:[%s165 + $0x290] sm:$0xff]
      %v257 = vld [vmem:[%s165 + $0x298] sm:$0xff]
      %v258 = vld [vmem:[%s165 + $0x2a0] sm:$0xff]
      %v259 = vld [vmem:[%s165 + $0x2a8] sm:$0xff]
      %v260 = vld [vmem:[%s165 + $0x2b0] sm:$0xff]
      %v261 = vld [vmem:[%s165 + $0x2b8] sm:$0xff]
      %v262 = vld [vmem:[%s165 + $0x2c0] sm:$0xff]
      %v263 = vld [vmem:[%s165 + $0x2c8] sm:$0xff]
      %v264 = vld [vmem:[%s165 + $0x2d0] sm:$0xff]
      %v265 = vld [vmem:[%s165 + $0x2d8] sm:$0xff]
      %v266 = vld [vmem:[%s165 + $0x2e0] sm:$0xff]
      %v267 = vld [vmem:[%s165 + $0x2e8] sm:$0xff]
      %v268 = vld [vmem:[%s165 + $0x2f0] sm:$0xff]
      %v269 = vld [vmem:[%s165 + $0x2f8] sm:$0xff]
      %v270 = vld [vmem:[%s165 + $0x300] sm:$0xff]
      %v271 = vld [vmem:[%s165 + $0x308] sm:$0xff]
      %v272 = vld [vmem:[%s165 + $0x310] sm:$0xff]
      %v273 = vld [vmem:[%s165 + $0x318] sm:$0xff]
      %v274 = vld [vmem:[%s165 + $0x320] sm:$0xff]
      %v275 = vld [vmem:[%s165 + $0x328] sm:$0xff]
      %v276 = vld [vmem:[%s165 + $0x330] sm:$0xff]
      %v277 = vld [vmem:[%s165 + $0x338] sm:$0xff]
      %v278 = vld [vmem:[%s165 + $0x340] sm:$0xff]
      %v279 = vld [vmem:[%s165 + $0x348] sm:$0xff]
      %v280 = vld [vmem:[%s165 + $0x350] sm:$0xff]
      %v281 = vld [vmem:[%s165 + $0x358] sm:$0xff]
      %v282 = vld [vmem:[%s165 + $0x360] sm:$0xff]
      %v283 = vld [vmem:[%s165 + $0x368] sm:$0xff]
      %v284 = vld [vmem:[%s165 + $0x370] sm:$0xff]
      %v285 = vld [vmem:[%s165 + $0x378] sm:$0xff]
      %v286 = vld [vmem:[%s165 + $0x380] sm:$0xff]
      %v287 = vld [vmem:[%s165 + $0x388] sm:$0xff]
      %v288 = vld [vmem:[%s165 + $0x390] sm:$0xff]
      %v289 = vld [vmem:[%s165 + $0x398] sm:$0xff]
      %v290 = vld [vmem:[%s165 + $0x3a0] sm:$0xff]
      %v291 = vld [vmem:[%s165 + $0x3a8] sm:$0xff]
      %v292 = vld [vmem:[%s165 + $0x3b0] sm:$0xff]
      %v293 = vld [vmem:[%s165 + $0x3b8] sm:$0xff]
      %v294 = vld [vmem:[%s165 + $0x3c0] sm:$0xff]
      %v295 = vld [vmem:[%s165 + $0x3c8] sm:$0xff]
      %v296 = vld [vmem:[%s165 + $0x3d0] sm:$0xff]
      %v297 = vld [vmem:[%s165 + $0x3d8] sm:$0xff]
      %v298 = vld [vmem:[%s165 + $0x3e0] sm:$0xff]
      %v299 = vld [vmem:[%s165 + $0x3e8] sm:$0xff]
      %v300 = vld [vmem:[%s165 + $0x3f0] sm:$0xff]
      %v301 = vld [vmem:[%s165 + $0x3f8] sm:$0xff]
      %v302 = vld [vmem:[%s165 + $0x400] sm:$0xff]
      %v303 = vld [vmem:[%s165 + $0x408] sm:$0xff]
      %v304 = vld [vmem:[%s165 + $0x410] sm:$0xff]
      %v305 = vld [vmem:[%s165 + $0x418] sm:$0xff]
      %v306 = vld [vmem:[%s165 + $0x420] sm:$0xff]
      %v307 = vld [vmem:[%s165 + $0x428] sm:$0xff]
      %v308 = vld [vmem:[%s165 + $0x430] sm:$0xff]
      %v309 = vld [vmem:[%s165 + $0x438] sm:$0xff]
      %v310 = vld [vmem:[%s165 + $0x440] sm:$0xff]
      %v311 = vld [vmem:[%s165 + $0x448] sm:$0xff]
      %v312 = vld [vmem:[%s165 + $0x450] sm:$0xff]
      %v313 = vld [vmem:[%s165 + $0x458] sm:$0xff]
      %v314 = vld [vmem:[%s165 + $0x460] sm:$0xff]
      %v315 = vld [vmem:[%s165 + $0x468] sm:$0xff]
      %v316 = vld [vmem:[%s165 + $0x470] sm:$0xff]
      %v317 = vld [vmem:[%s165 + $0x478] sm:$0xff]
      %v318 = vld [vmem:[%s165 + $0x480] sm:$0xff]
      %v319 = vld [vmem:[%s165 + $0x488] sm:$0xff]
      %v320 = vld [vmem:[%s165 + $0x490] sm:$0xff]
      %v321 = vld [vmem:[%s165 + $0x498] sm:$0xff]
      %v322 = vld [vmem:[%s165 + $0x4a0] sm:$0xff]
      %v323 = vld [vmem:[%s165 + $0x4a8] sm:$0xff]
      %v324 = vld [vmem:[%s165 + $0x4b0] sm:$0xff]
      %v325 = vld [vmem:[%s165 + $0x4b8] sm:$0xff]
      %v326 = vld [vmem:[%s165 + $0x4c0] sm:$0xff]
      %v327 = vld [vmem:[%s165 + $0x4c8] sm:$0xff]
      %v328 = vld [vmem:[%s165 + $0x4d0] sm:$0xff]
      %v329 = vld [vmem:[%s165 + $0x4d8] sm:$0xff]
      %v330 = vld [vmem:[%s165 + $0x4e0] sm:$0xff]
      %v331 = vld [vmem:[%s165 + $0x4e8] sm:$0xff]
      %v332 = vld [vmem:[%s165 + $0x4f0] sm:$0xff]
      %v333 = vld [vmem:[%s165 + $0x4f8] sm:$0xff]
      %v334 = vld [vmem:[%s165 + $0x500] sm:$0xff]
      %v335 = vld [vmem:[%s165 + $0x508] sm:$0xff]
      %v336 = vld [vmem:[%s165 + $0x510] sm:$0xff]
      %v337 = vld [vmem:[%s165 + $0x518] sm:$0xff]
      %v338 = vld [vmem:[%s165 + $0x520] sm:$0xff]
      %v339 = vld [vmem:[%s165 + $0x528] sm:$0xff]
      %v340 = vld [vmem:[%s165 + $0x530] sm:$0xff]
      %v341 = vld [vmem:[%s165 + $0x538] sm:$0xff]
      %v342 = vld [vmem:[%s165 + $0x540] sm:$0xff]
      %v343 = vld [vmem:[%s165 + $0x548] sm:$0xff]
      %v344 = vld [vmem:[%s165 + $0x550] sm:$0xff]
      %v345 = vld [vmem:[%s165 + $0x558] sm:$0xff]
      %v346 = vld [vmem:[%s165 + $0x560] sm:$0xff]
      %v347 = vld [vmem:[%s165 + $0x568] sm:$0xff]
      %v348 = vld [vmem:[%s165 + $0x570] sm:$0xff]
      %v349 = vld [vmem:[%s165 + $0x578] sm:$0xff]
      %v350 = vld [vmem:[%s165 + $0x580] sm:$0xff]
      %v351 = vld [vmem:[%s165 + $0x588] sm:$0xff]
      %v352 = vld [vmem:[%s165 + $0x590] sm:$0xff]
      %v353 = vld [vmem:[%s165 + $0x598] sm:$0xff]
      %v354 = vld [vmem:[%s165 + $0x5a0] sm:$0xff]
      %v355 = vld [vmem:[%s165 + $0x5a8] sm:$0xff]
      %v356 = vld [vmem:[%s165 + $0x5b0] sm:$0xff]
      %v357 = vld [vmem:[%s165 + $0x5b8] sm:$0xff]
      %v358 = vld [vmem:[%s165 + $0x5c0] sm:$0xff]
      %v359 = vld [vmem:[%s165 + $0x5c8] sm:$0xff]
      %v360 = vld [vmem:[%s165 + $0x5d0] sm:$0xff]
      %v361 = vld [vmem:[%s165 + $0x5d8] sm:$0xff]
      %v362 = vld [vmem:[%s165 + $0x5e0] sm:$0xff]
      %v363 = vld [vmem:[%s165 + $0x5e8] sm:$0xff]
      %v364 = vld [vmem:[%s165 + $0x5f0] sm:$0xff]
      %v365 = vld [vmem:[%s165 + $0x5f8] sm:$0xff]
      %v366 = vld [vmem:[%s165 + $0x600] sm:$0xff]
      %v367 = vld [vmem:[%s165 + $0x608] sm:$0xff]
      %v368 = vld [vmem:[%s165 + $0x610] sm:$0xff]
      %v369 = vld [vmem:[%s165 + $0x618] sm:$0xff]
      %v370 = vld [vmem:[%s165 + $0x620] sm:$0xff]
      %v371 = vld [vmem:[%s165 + $0x628] sm:$0xff]
      %v372 = vld [vmem:[%s165 + $0x630] sm:$0xff]
      %v373 = vld [vmem:[%s165 + $0x638] sm:$0xff]
      %v374 = vld [vmem:[%s165 + $0x640] sm:$0xff]
      %v375 = vld [vmem:[%s165 + $0x648] sm:$0xff]
      %v376 = vld [vmem:[%s165 + $0x650] sm:$0xff]
      %v377 = vld [vmem:[%s165 + $0x658] sm:$0xff]
      %v378 = vld [vmem:[%s165 + $0x660] sm:$0xff]
      %v379 = vld [vmem:[%s165 + $0x668] sm:$0xff]
      %v380 = vld [vmem:[%s165 + $0x670] sm:$0xff]
      %v381 = vld [vmem:[%s165 + $0x678] sm:$0xff]
      %v382 = vld [vmem:[%s165 + $0x680] sm:$0xff]
      %v383 = vld [vmem:[%s165 + $0x688] sm:$0xff]
      %v384 = vld [vmem:[%s165 + $0x690] sm:$0xff]
      %v385 = vld [vmem:[%s165 + $0x698] sm:$0xff]
      %v386 = vld [vmem:[%s165 + $0x6a0] sm:$0xff]
      %v387 = vld [vmem:[%s165 + $0x6a8] sm:$0xff]
      %v388 = vld [vmem:[%s165 + $0x6b0] sm:$0xff]
      %v389 = vld [vmem:[%s165 + $0x6b8] sm:$0xff]
      %v390 = vld [vmem:[%s165 + $0x6c0] sm:$0xff]
      %v391 = vld [vmem:[%s165 + $0x6c8] sm:$0xff]
      %v392 = vld [vmem:[%s165 + $0x6d0] sm:$0xff]
      %v393 = vld [vmem:[%s165 + $0x6d8] sm:$0xff]
      %v394 = vld [vmem:[%s165 + $0x6e0] sm:$0xff]
      %v395 = vld [vmem:[%s165 + $0x6e8] sm:$0xff]
      %v396 = vld [vmem:[%s165 + $0x6f0] sm:$0xff]
      %v397 = vld [vmem:[%s165 + $0x6f8] sm:$0xff]
      %v398 = vld [vmem:[%s165 + $0x700] sm:$0xff]
      %v399 = vld [vmem:[%s165 + $0x708] sm:$0xff]
      %v400 = vld [vmem:[%s165 + $0x710] sm:$0xff]
      %v401 = vld [vmem:[%s165 + $0x718] sm:$0xff]
      %v402 = vld [vmem:[%s165 + $0x720] sm:$0xff]
      %v403 = vld [vmem:[%s165 + $0x728] sm:$0xff]
      %v404 = vld [vmem:[%s165 + $0x730] sm:$0xff]
      %v405 = vld [vmem:[%s165 + $0x738] sm:$0xff]
      %v406 = vld [vmem:[%s165 + $0x740] sm:$0xff]
      %v407 = vld [vmem:[%s165 + $0x748] sm:$0xff]
      %v408 = vld [vmem:[%s165 + $0x750] sm:$0xff]
      %v409 = vld [vmem:[%s165 + $0x758] sm:$0xff]
      %v410 = vld [vmem:[%s165 + $0x760] sm:$0xff]
      %v411 = vld [vmem:[%s165 + $0x768] sm:$0xff]
      %v412 = vld [vmem:[%s165 + $0x770] sm:$0xff]
      %v413 = vld [vmem:[%s165 + $0x778] sm:$0xff]
      %v414 = vld [vmem:[%s165 + $0x780] sm:$0xff]
      %v415 = vld [vmem:[%s165 + $0x788] sm:$0xff]
      %v416 = vld [vmem:[%s165 + $0x790] sm:$0xff]
      %v417 = vld [vmem:[%s165 + $0x798] sm:$0xff]
      %v418 = vld [vmem:[%s165 + $0x7a0] sm:$0xff]
      %v419 = vld [vmem:[%s165 + $0x7a8] sm:$0xff]
      %v420 = vld [vmem:[%s165 + $0x7b0] sm:$0xff]
      %v421 = vld [vmem:[%s165 + $0x7b8] sm:$0xff]
      %v422 = vld [vmem:[%s165 + $0x7c0] sm:$0xff]
      %v423 = vld [vmem:[%s165 + $0x7c8] sm:$0xff]
      %v424 = vld [vmem:[%s165 + $0x7d0] sm:$0xff]
      %v425 = vld [vmem:[%s165 + $0x7d8] sm:$0xff]
      %v426 = vld [vmem:[%s2] sm:$0xff]
      %v427 = vld [vmem:[%s2 + $0x8] sm:$0xff]
      %429 = vset.pattern.permute.xlu0 0
      %430 = vperm.xlu0 %429, %v426
      %v431 = vpop.permute.xlu0 %430
      %434 = vset.pattern.permute.xlu0 0
      %435 = vperm.xlu0 %434, %v427
      %v436 = vpop.permute.xlu0 %435
      %v440 = vunpack.c.l.b16 %v172
      %v441 = vunpack.c.h.b16 %v172
      %v442 = vunpack.c.l.b16 %v173
      %v443 = vunpack.c.h.b16 %v173
      %v444 = vpack.c.b16 %v442, %v440
      %v445 = vpack.c.b16 %v443, %v441
      %v699 = vunpack.c.l.b16 %v174
      %v700 = vunpack.c.h.b16 %v174
      %v701 = vunpack.c.l.b16 %v175
      %v702 = vunpack.c.h.b16 %v175
      %v703 = vunpack.c.l.b16 %v176
      %v704 = vunpack.c.h.b16 %v176
      %v705 = vunpack.c.l.b16 %v177
      %v706 = vunpack.c.h.b16 %v177
      %v707 = vunpack.c.l.b16 %v178
      %v708 = vunpack.c.h.b16 %v178
      %v709 = vunpack.c.l.b16 %v179
      %v710 = vunpack.c.h.b16 %v179
      %v711 = vunpack.c.l.b16 %v180
      %v712 = vunpack.c.h.b16 %v180
      %v713 = vunpack.c.l.b16 %v181
      %v714 = vunpack.c.h.b16 %v181
      %v715 = vunpack.c.l.b16 %v182
      %v716 = vunpack.c.h.b16 %v182
      %v717 = vunpack.c.l.b16 %v183
      %v718 = vunpack.c.h.b16 %v183
      %v719 = vunpack.c.l.b16 %v184
      %v720 = vunpack.c.h.b16 %v184
      %v721 = vunpack.c.l.b16 %v185
      %v722 = vunpack.c.h.b16 %v185
      %v723 = vunpack.c.l.b16 %v186
      %v724 = vunpack.c.h.b16 %v186
      %v725 = vunpack.c.l.b16 %v187
      %v726 = vunpack.c.h.b16 %v187
      %v727 = vunpack.c.l.b16 %v188
      %v728 = vunpack.c.h.b16 %v188
      %v729 = vunpack.c.l.b16 %v189
      %v730 = vunpack.c.h.b16 %v189
      %v731 = vunpack.c.l.b16 %v190
      %v732 = vunpack.c.h.b16 %v190
      %v733 = vunpack.c.l.b16 %v191
      %v734 = vunpack.c.h.b16 %v191
      %v735 = vunpack.c.l.b16 %v192
      %v736 = vunpack.c.h.b16 %v192
      %v737 = vunpack.c.l.b16 %v193
      %v738 = vunpack.c.h.b16 %v193
      %v739 = vunpack.c.l.b16 %v194
      %v740 = vunpack.c.h.b16 %v194
      %v741 = vunpack.c.l.b16 %v195
      %v742 = vunpack.c.h.b16 %v195
      %v743 = vunpack.c.l.b16 %v196
      %v744 = vunpack.c.h.b16 %v196
      %v745 = vunpack.c.l.b16 %v197
      %v746 = vunpack.c.h.b16 %v197
      %v747 = vunpack.c.l.b16 %v198
      %v748 = vunpack.c.h.b16 %v198
      %v749 = vunpack.c.l.b16 %v199
      %v750 = vunpack.c.h.b16 %v199
      %v751 = vunpack.c.l.b16 %v200
      %v752 = vunpack.c.h.b16 %v200
      %v753 = vunpack.c.l.b16 %v201
      %v754 = vunpack.c.h.b16 %v201
      %v755 = vunpack.c.l.b16 %v202
      %v756 = vunpack.c.h.b16 %v202
      %v757 = vunpack.c.l.b16 %v203
      %v758 = vunpack.c.h.b16 %v203
      %v759 = vunpack.c.l.b16 %v204
      %v760 = vunpack.c.h.b16 %v204
      %v761 = vunpack.c.l.b16 %v205
      %v762 = vunpack.c.h.b16 %v205
      %v763 = vunpack.c.l.b16 %v206
      %v764 = vunpack.c.h.b16 %v206
      %v765 = vunpack.c.l.b16 %v207
      %v766 = vunpack.c.h.b16 %v207
      %v767 = vunpack.c.l.b16 %v208
      %v768 = vunpack.c.h.b16 %v208
      %v769 = vunpack.c.l.b16 %v209
      %v770 = vunpack.c.h.b16 %v209
      %v771 = vunpack.c.l.b16 %v210
      %v772 = vunpack.c.h.b16 %v210
      %v773 = vunpack.c.l.b16 %v211
      %v774 = vunpack.c.h.b16 %v211
      %v775 = vunpack.c.l.b16 %v212
      %v776 = vunpack.c.h.b16 %v212
      %v777 = vunpack.c.l.b16 %v213
      %v778 = vunpack.c.h.b16 %v213
      %v779 = vunpack.c.l.b16 %v214
      %v780 = vunpack.c.h.b16 %v214
      %v781 = vunpack.c.l.b16 %v215
      %v782 = vunpack.c.h.b16 %v215
      %v783 = vunpack.c.l.b16 %v216
      %v784 = vunpack.c.h.b16 %v216
      %v785 = vunpack.c.l.b16 %v217
      %v786 = vunpack.c.h.b16 %v217
      %v787 = vunpack.c.l.b16 %v218
      %v788 = vunpack.c.h.b16 %v218
      %v789 = vunpack.c.l.b16 %v219
      %v790 = vunpack.c.h.b16 %v219
      %v791 = vunpack.c.l.b16 %v220
      %v792 = vunpack.c.h.b16 %v220
      %v793 = vunpack.c.l.b16 %v221
      %v794 = vunpack.c.h.b16 %v221
      %v795 = vunpack.c.l.b16 %v222
      %v796 = vunpack.c.h.b16 %v222
      %v797 = vunpack.c.l.b16 %v223
      %v798 = vunpack.c.h.b16 %v223
      %v799 = vunpack.c.l.b16 %v224
      %v800 = vunpack.c.h.b16 %v224
      %v801 = vunpack.c.l.b16 %v225
      %v802 = vunpack.c.h.b16 %v225
      %v803 = vunpack.c.l.b16 %v226
      %v804 = vunpack.c.h.b16 %v226
      %v805 = vunpack.c.l.b16 %v227
      %v806 = vunpack.c.h.b16 %v227
      %v807 = vunpack.c.l.b16 %v228
      %v808 = vunpack.c.h.b16 %v228
      %v809 = vunpack.c.l.b16 %v229
      %v810 = vunpack.c.h.b16 %v229
      %v811 = vunpack.c.l.b16 %v230
      %v812 = vunpack.c.h.b16 %v230
      %v813 = vunpack.c.l.b16 %v231
      %v814 = vunpack.c.h.b16 %v231
      %v815 = vunpack.c.l.b16 %v232
      %v816 = vunpack.c.h.b16 %v232
      %v817 = vunpack.c.l.b16 %v233
      %v818 = vunpack.c.h.b16 %v233
      %v819 = vunpack.c.l.b16 %v234
      %v820 = vunpack.c.h.b16 %v234
      %v821 = vunpack.c.l.b16 %v235
      %v822 = vunpack.c.h.b16 %v235
      %v823 = vunpack.c.l.b16 %v236
      %v824 = vunpack.c.h.b16 %v236
      %v825 = vunpack.c.l.b16 %v237
      %v826 = vunpack.c.h.b16 %v237
      %v827 = vunpack.c.l.b16 %v238
      %v828 = vunpack.c.h.b16 %v238
      %v829 = vunpack.c.l.b16 %v239
      %v830 = vunpack.c.h.b16 %v239
      %v831 = vunpack.c.l.b16 %v240
      %v832 = vunpack.c.h.b16 %v240
      %v833 = vunpack.c.l.b16 %v241
      %v834 = vunpack.c.h.b16 %v241
      %v835 = vunpack.c.l.b16 %v242
      %v836 = vunpack.c.h.b16 %v242
      %v837 = vunpack.c.l.b16 %v243
      %v838 = vunpack.c.h.b16 %v243
      %v839 = vunpack.c.l.b16 %v244
      %v840 = vunpack.c.h.b16 %v244
      %v841 = vunpack.c.l.b16 %v245
      %v842 = vunpack.c.h.b16 %v245
      %v843 = vunpack.c.l.b16 %v246
      %v844 = vunpack.c.h.b16 %v246
      %v845 = vunpack.c.l.b16 %v247
      %v846 = vunpack.c.h.b16 %v247
      %v847 = vunpack.c.l.b16 %v248
      %v848 = vunpack.c.h.b16 %v248
      %v849 = vunpack.c.l.b16 %v249
      %v850 = vunpack.c.h.b16 %v249
      %v851 = vunpack.c.l.b16 %v250
      %v852 = vunpack.c.h.b16 %v250
      %v853 = vunpack.c.l.b16 %v251
      %v854 = vunpack.c.h.b16 %v251
      %v855 = vunpack.c.l.b16 %v252
      %v856 = vunpack.c.h.b16 %v252
      %v857 = vunpack.c.l.b16 %v253
      %v858 = vunpack.c.h.b16 %v253
      %v859 = vunpack.c.l.b16 %v254
      %v860 = vunpack.c.h.b16 %v254
      %v861 = vunpack.c.l.b16 %v255
      %v862 = vunpack.c.h.b16 %v255
      %v863 = vunpack.c.l.b16 %v256
      %v864 = vunpack.c.h.b16 %v256
      %v865 = vunpack.c.l.b16 %v257
      %v866 = vunpack.c.h.b16 %v257
      %v867 = vunpack.c.l.b16 %v258
      %v868 = vunpack.c.h.b16 %v258
      %v869 = vunpack.c.l.b16 %v259
      %v870 = vunpack.c.h.b16 %v259
      %v871 = vunpack.c.l.b16 %v260
      %v872 = vunpack.c.h.b16 %v260
      %v873 = vunpack.c.l.b16 %v261
      %v874 = vunpack.c.h.b16 %v261
      %v875 = vunpack.c.l.b16 %v262
      %v876 = vunpack.c.h.b16 %v262
      %v877 = vunpack.c.l.b16 %v263
      %v878 = vunpack.c.h.b16 %v263
      %v879 = vunpack.c.l.b16 %v264
      %v880 = vunpack.c.h.b16 %v264
      %v881 = vunpack.c.l.b16 %v265
      %v882 = vunpack.c.h.b16 %v265
      %v883 = vunpack.c.l.b16 %v266
      %v884 = vunpack.c.h.b16 %v266
      %v885 = vunpack.c.l.b16 %v267
      %v886 = vunpack.c.h.b16 %v267
      %v887 = vunpack.c.l.b16 %v268
      %v888 = vunpack.c.h.b16 %v268
      %v889 = vunpack.c.l.b16 %v269
      %v890 = vunpack.c.h.b16 %v269
      %v891 = vunpack.c.l.b16 %v270
      %v892 = vunpack.c.h.b16 %v270
      %v893 = vunpack.c.l.b16 %v271
      %v894 = vunpack.c.h.b16 %v271
      %v895 = vunpack.c.l.b16 %v272
      %v896 = vunpack.c.h.b16 %v272
      %v897 = vunpack.c.l.b16 %v273
      %v898 = vunpack.c.h.b16 %v273
      %v899 = vunpack.c.l.b16 %v274
      %v900 = vunpack.c.h.b16 %v274
      %v901 = vunpack.c.l.b16 %v275
      %v902 = vunpack.c.h.b16 %v275
      %v903 = vunpack.c.l.b16 %v276
      %v904 = vunpack.c.h.b16 %v276
      %v905 = vunpack.c.l.b16 %v277
      %v906 = vunpack.c.h.b16 %v277
      %v907 = vunpack.c.l.b16 %v278
      %v908 = vunpack.c.h.b16 %v278
      %v909 = vunpack.c.l.b16 %v279
      %v910 = vunpack.c.h.b16 %v279
      %v911 = vunpack.c.l.b16 %v280
      %v912 = vunpack.c.h.b16 %v280
      %v913 = vunpack.c.l.b16 %v281
      %v914 = vunpack.c.h.b16 %v281
      %v915 = vunpack.c.l.b16 %v282
      %v916 = vunpack.c.h.b16 %v282
      %v917 = vunpack.c.l.b16 %v283
      %v918 = vunpack.c.h.b16 %v283
      %v919 = vunpack.c.l.b16 %v284
      %v920 = vunpack.c.h.b16 %v284
      %v921 = vunpack.c.l.b16 %v285
      %v922 = vunpack.c.h.b16 %v285
      %v923 = vunpack.c.l.b16 %v286
      %v924 = vunpack.c.h.b16 %v286
      %v925 = vunpack.c.l.b16 %v287
      %v926 = vunpack.c.h.b16 %v287
      %v927 = vunpack.c.l.b16 %v288
      %v928 = vunpack.c.h.b16 %v288
      %v929 = vunpack.c.l.b16 %v289
      %v930 = vunpack.c.h.b16 %v289
      %v931 = vunpack.c.l.b16 %v290
      %v932 = vunpack.c.h.b16 %v290
      %v933 = vunpack.c.l.b16 %v291
      %v934 = vunpack.c.h.b16 %v291
      %v935 = vunpack.c.l.b16 %v292
      %v936 = vunpack.c.h.b16 %v292
      %v937 = vunpack.c.l.b16 %v293
      %v938 = vunpack.c.h.b16 %v293
      %v939 = vunpack.c.l.b16 %v294
      %v940 = vunpack.c.h.b16 %v294
      %v941 = vunpack.c.l.b16 %v295
      %v942 = vunpack.c.h.b16 %v295
      %v943 = vunpack.c.l.b16 %v296
      %v944 = vunpack.c.h.b16 %v296
      %v945 = vunpack.c.l.b16 %v297
      %v946 = vunpack.c.h.b16 %v297
      %v947 = vunpack.c.l.b16 %v298
      %v948 = vunpack.c.h.b16 %v298
      %v949 = vunpack.c.l.b16 %v299
      %v950 = vunpack.c.h.b16 %v299
      %v951 = vunpack.c.l.b16 %v300
      %v952 = vunpack.c.h.b16 %v300
      %v953 = vunpack.c.l.b16 %v301
      %v954 = vunpack.c.h.b16 %v301
      %v955 = vunpack.c.l.b16 %v302
      %v956 = vunpack.c.h.b16 %v302
      %v957 = vunpack.c.l.b16 %v303
      %v958 = vunpack.c.h.b16 %v303
      %v959 = vunpack.c.l.b16 %v304
      %v960 = vunpack.c.h.b16 %v304
      %v961 = vunpack.c.l.b16 %v305
      %v962 = vunpack.c.h.b16 %v305
      %v963 = vunpack.c.l.b16 %v306
      %v964 = vunpack.c.h.b16 %v306
      %v965 = vunpack.c.l.b16 %v307
      %v966 = vunpack.c.h.b16 %v307
      %v967 = vunpack.c.l.b16 %v308
      %v968 = vunpack.c.h.b16 %v308
      %v969 = vunpack.c.l.b16 %v309
      %v970 = vunpack.c.h.b16 %v309
      %v971 = vunpack.c.l.b16 %v310
      %v972 = vunpack.c.h.b16 %v310
      %v973 = vunpack.c.l.b16 %v311
      %v974 = vunpack.c.h.b16 %v311
      %v975 = vunpack.c.l.b16 %v312
      %v976 = vunpack.c.h.b16 %v312
      %v977 = vunpack.c.l.b16 %v313
      %v978 = vunpack.c.h.b16 %v313
      %v979 = vunpack.c.l.b16 %v314
      %v980 = vunpack.c.h.b16 %v314
      %v981 = vunpack.c.l.b16 %v315
      %v982 = vunpack.c.h.b16 %v315
      %v983 = vunpack.c.l.b16 %v316
      %v984 = vunpack.c.h.b16 %v316
      %v985 = vunpack.c.l.b16 %v317
      %v986 = vunpack.c.h.b16 %v317
      %v987 = vunpack.c.l.b16 %v318
      %v988 = vunpack.c.h.b16 %v318
      %v989 = vunpack.c.l.b16 %v319
      %v990 = vunpack.c.h.b16 %v319
      %v991 = vunpack.c.l.b16 %v320
      %v992 = vunpack.c.h.b16 %v320
      %v993 = vunpack.c.l.b16 %v321
      %v994 = vunpack.c.h.b16 %v321
      %v995 = vunpack.c.l.b16 %v322
      %v996 = vunpack.c.h.b16 %v322
      %v997 = vunpack.c.l.b16 %v323
      %v998 = vunpack.c.h.b16 %v323
      %v999 = vunpack.c.l.b16 %v324
      %v1000 = vunpack.c.h.b16 %v324
      %v1001 = vunpack.c.l.b16 %v325
      %v1002 = vunpack.c.h.b16 %v325
      %v1003 = vunpack.c.l.b16 %v326
      %v1004 = vunpack.c.h.b16 %v326
      %v1005 = vunpack.c.l.b16 %v327
      %v1006 = vunpack.c.h.b16 %v327
      %v1007 = vunpack.c.l.b16 %v328
      %v1008 = vunpack.c.h.b16 %v328
      %v1009 = vunpack.c.l.b16 %v329
      %v1010 = vunpack.c.h.b16 %v329
      %v1011 = vunpack.c.l.b16 %v330
      %v1012 = vunpack.c.h.b16 %v330
      %v1013 = vunpack.c.l.b16 %v331
      %v1014 = vunpack.c.h.b16 %v331
      %v1015 = vunpack.c.l.b16 %v332
      %v1016 = vunpack.c.h.b16 %v332
      %v1017 = vunpack.c.l.b16 %v333
      %v1018 = vunpack.c.h.b16 %v333
      %v1019 = vunpack.c.l.b16 %v334
      %v1020 = vunpack.c.h.b16 %v334
      %v1021 = vunpack.c.l.b16 %v335
      %v1022 = vunpack.c.h.b16 %v335
      %v1023 = vunpack.c.l.b16 %v336
      %v1024 = vunpack.c.h.b16 %v336
      %v1025 = vunpack.c.l.b16 %v337
      %v1026 = vunpack.c.h.b16 %v337
      %v1027 = vunpack.c.l.b16 %v338
      %v1028 = vunpack.c.h.b16 %v338
      %v1029 = vunpack.c.l.b16 %v339
      %v1030 = vunpack.c.h.b16 %v339
      %v1031 = vunpack.c.l.b16 %v340
      %v1032 = vunpack.c.h.b16 %v340
      %v1033 = vunpack.c.l.b16 %v341
      %v1034 = vunpack.c.h.b16 %v341
      %v1035 = vunpack.c.l.b16 %v342
      %v1036 = vunpack.c.h.b16 %v342
      %v1037 = vunpack.c.l.b16 %v343
      %v1038 = vunpack.c.h.b16 %v343
      %v1039 = vunpack.c.l.b16 %v344
      %v1040 = vunpack.c.h.b16 %v344
      %v1041 = vunpack.c.l.b16 %v345
      %v1042 = vunpack.c.h.b16 %v345
      %v1043 = vunpack.c.l.b16 %v346
      %v1044 = vunpack.c.h.b16 %v346
      %v1045 = vunpack.c.l.b16 %v347
      %v1046 = vunpack.c.h.b16 %v347
      %v1047 = vunpack.c.l.b16 %v348
      %v1048 = vunpack.c.h.b16 %v348
      %v1049 = vunpack.c.l.b16 %v349
      %v1050 = vunpack.c.h.b16 %v349
      %v1051 = vunpack.c.l.b16 %v350
      %v1052 = vunpack.c.h.b16 %v350
      %v1053 = vunpack.c.l.b16 %v351
      %v1054 = vunpack.c.h.b16 %v351
      %v1055 = vunpack.c.l.b16 %v352
      %v1056 = vunpack.c.h.b16 %v352
      %v1057 = vunpack.c.l.b16 %v353
      %v1058 = vunpack.c.h.b16 %v353
      %v1059 = vunpack.c.l.b16 %v354
      %v1060 = vunpack.c.h.b16 %v354
      %v1061 = vunpack.c.l.b16 %v355
      %v1062 = vunpack.c.h.b16 %v355
      %v1063 = vunpack.c.l.b16 %v356
      %v1064 = vunpack.c.h.b16 %v356
      %v1065 = vunpack.c.l.b16 %v357
      %v1066 = vunpack.c.h.b16 %v357
      %v1067 = vunpack.c.l.b16 %v358
      %v1068 = vunpack.c.h.b16 %v358
      %v1069 = vunpack.c.l.b16 %v359
      %v1070 = vunpack.c.h.b16 %v359
      %v1071 = vunpack.c.l.b16 %v360
      %v1072 = vunpack.c.h.b16 %v360
      %v1073 = vunpack.c.l.b16 %v361
      %v1074 = vunpack.c.h.b16 %v361
      %v1075 = vunpack.c.l.b16 %v362
      %v1076 = vunpack.c.h.b16 %v362
      %v1077 = vunpack.c.l.b16 %v363
      %v1078 = vunpack.c.h.b16 %v363
      %v1079 = vunpack.c.l.b16 %v364
      %v1080 = vunpack.c.h.b16 %v364
      %v1081 = vunpack.c.l.b16 %v365
      %v1082 = vunpack.c.h.b16 %v365
      %v1083 = vunpack.c.l.b16 %v366
      %v1084 = vunpack.c.h.b16 %v366
      %v1085 = vunpack.c.l.b16 %v367
      %v1086 = vunpack.c.h.b16 %v367
      %v1087 = vunpack.c.l.b16 %v368
      %v1088 = vunpack.c.h.b16 %v368
      %v1089 = vunpack.c.l.b16 %v369
      %v1090 = vunpack.c.h.b16 %v369
      %v1091 = vunpack.c.l.b16 %v370
      %v1092 = vunpack.c.h.b16 %v370
      %v1093 = vunpack.c.l.b16 %v371
      %v1094 = vunpack.c.h.b16 %v371
      %v1095 = vunpack.c.l.b16 %v372
      %v1096 = vunpack.c.h.b16 %v372
      %v1097 = vunpack.c.l.b16 %v373
      %v1098 = vunpack.c.h.b16 %v373
      %v1099 = vunpack.c.l.b16 %v374
      %v1100 = vunpack.c.h.b16 %v374
      %v1101 = vunpack.c.l.b16 %v375
      %v1102 = vunpack.c.h.b16 %v375
      %v1103 = vunpack.c.l.b16 %v376
      %v1104 = vunpack.c.h.b16 %v376
      %v1105 = vunpack.c.l.b16 %v377
      %v1106 = vunpack.c.h.b16 %v377
      %v1107 = vunpack.c.l.b16 %v378
      %v1108 = vunpack.c.h.b16 %v378
      %v1109 = vunpack.c.l.b16 %v379
      %v1110 = vunpack.c.h.b16 %v379
      %v1111 = vunpack.c.l.b16 %v380
      %v1112 = vunpack.c.h.b16 %v380
      %v1113 = vunpack.c.l.b16 %v381
      %v1114 = vunpack.c.h.b16 %v381
      %v1115 = vunpack.c.l.b16 %v382
      %v1116 = vunpack.c.h.b16 %v382
      %v1117 = vunpack.c.l.b16 %v383
      %v1118 = vunpack.c.h.b16 %v383
      %v1119 = vunpack.c.l.b16 %v384
      %v1120 = vunpack.c.h.b16 %v384
      %v1121 = vunpack.c.l.b16 %v385
      %v1122 = vunpack.c.h.b16 %v385
      %v1123 = vunpack.c.l.b16 %v386
      %v1124 = vunpack.c.h.b16 %v386
      %v1125 = vunpack.c.l.b16 %v387
      %v1126 = vunpack.c.h.b16 %v387
      %v1127 = vunpack.c.l.b16 %v388
      %v1128 = vunpack.c.h.b16 %v388
      %v1129 = vunpack.c.l.b16 %v389
      %v1130 = vunpack.c.h.b16 %v389
      %v1131 = vunpack.c.l.b16 %v390
      %v1132 = vunpack.c.h.b16 %v390
      %v1133 = vunpack.c.l.b16 %v391
      %v1134 = vunpack.c.h.b16 %v391
      %v1135 = vunpack.c.l.b16 %v392
      %v1136 = vunpack.c.h.b16 %v392
      %v1137 = vunpack.c.l.b16 %v393
      %v1138 = vunpack.c.h.b16 %v393
      %v1139 = vunpack.c.l.b16 %v394
      %v1140 = vunpack.c.h.b16 %v394
      %v1141 = vunpack.c.l.b16 %v395
      %v1142 = vunpack.c.h.b16 %v395
      %v1143 = vunpack.c.l.b16 %v396
      %v1144 = vunpack.c.h.b16 %v396
      %v1145 = vunpack.c.l.b16 %v397
      %v1146 = vunpack.c.h.b16 %v397
      %v1147 = vunpack.c.l.b16 %v398
      %v1148 = vunpack.c.h.b16 %v398
      %v1149 = vunpack.c.l.b16 %v399
      %v1150 = vunpack.c.h.b16 %v399
      %v1151 = vunpack.c.l.b16 %v400
      %v1152 = vunpack.c.h.b16 %v400
      %v1153 = vunpack.c.l.b16 %v401
      %v1154 = vunpack.c.h.b16 %v401
      %v1155 = vunpack.c.l.b16 %v402
      %v1156 = vunpack.c.h.b16 %v402
      %v1157 = vunpack.c.l.b16 %v403
      %v1158 = vunpack.c.h.b16 %v403
      %v1159 = vunpack.c.l.b16 %v404
      %v1160 = vunpack.c.h.b16 %v404
      %v1161 = vunpack.c.l.b16 %v405
      %v1162 = vunpack.c.h.b16 %v405
      %v1163 = vunpack.c.l.b16 %v406
      %v1164 = vunpack.c.h.b16 %v406
      %v1165 = vunpack.c.l.b16 %v407
      %v1166 = vunpack.c.h.b16 %v407
      %v1167 = vunpack.c.l.b16 %v408
      %v1168 = vunpack.c.h.b16 %v408
      %v1169 = vunpack.c.l.b16 %v409
      %v1170 = vunpack.c.h.b16 %v409
      %v1171 = vunpack.c.l.b16 %v410
      %v1172 = vunpack.c.h.b16 %v410
      %v1173 = vunpack.c.l.b16 %v411
      %v1174 = vunpack.c.h.b16 %v411
      %v1175 = vunpack.c.l.b16 %v412
      %v1176 = vunpack.c.h.b16 %v412
      %v1177 = vunpack.c.l.b16 %v413
      %v1178 = vunpack.c.h.b16 %v413
      %v1179 = vunpack.c.l.b16 %v414
      %v1180 = vunpack.c.h.b16 %v414
      %v1181 = vunpack.c.l.b16 %v415
      %v1182 = vunpack.c.h.b16 %v415
      %v1183 = vunpack.c.l.b16 %v416
      %v1184 = vunpack.c.h.b16 %v416
      %v1185 = vunpack.c.l.b16 %v417
      %v1186 = vunpack.c.h.b16 %v417
      %v1187 = vunpack.c.l.b16 %v418
      %v1188 = vunpack.c.h.b16 %v418
      %v1189 = vunpack.c.l.b16 %v419
      %v1190 = vunpack.c.h.b16 %v419
      %v1191 = vunpack.c.l.b16 %v420
      %v1192 = vunpack.c.h.b16 %v420
      %v1193 = vunpack.c.l.b16 %v421
      %v1194 = vunpack.c.h.b16 %v421
      %v1195 = vunpack.c.l.b16 %v422
      %v1196 = vunpack.c.h.b16 %v422
      %v1197 = vunpack.c.l.b16 %v423
      %v1198 = vunpack.c.h.b16 %v423
      %v1199 = vunpack.c.l.b16 %v424
      %v1200 = vunpack.c.h.b16 %v424
      %v1201 = vunpack.c.l.b16 %v425
      %v1202 = vunpack.c.h.b16 %v425
      %v1203 = vpack.c.b16 %v727, %v699
      %v1204 = vpack.c.b16 %v728, %v700
      %v1205 = vpack.c.b16 %v729, %v701
      %v1206 = vpack.c.b16 %v730, %v702
      %v1207 = vpack.c.b16 %v731, %v703
      %v1208 = vpack.c.b16 %v732, %v704
      %v1209 = vpack.c.b16 %v733, %v705
      %v1210 = vpack.c.b16 %v734, %v706
      %v1211 = vpack.c.b16 %v735, %v707
      %v1212 = vpack.c.b16 %v736, %v708
      %v1213 = vpack.c.b16 %v737, %v709
      %v1214 = vpack.c.b16 %v738, %v710
      %v1215 = vpack.c.b16 %v739, %v711
      %v1216 = vpack.c.b16 %v740, %v712
      %v1217 = vpack.c.b16 %v741, %v713
      %v1218 = vpack.c.b16 %v742, %v714
      %v1219 = vpack.c.b16 %v743, %v715
      %v1220 = vpack.c.b16 %v744, %v716
      %v1221 = vpack.c.b16 %v745, %v717
      %v1222 = vpack.c.b16 %v746, %v718
      %v1223 = vpack.c.b16 %v747, %v719
      %v1224 = vpack.c.b16 %v748, %v720
      %v1225 = vpack.c.b16 %v749, %v721
      %v1226 = vpack.c.b16 %v750, %v722
      %v1227 = vpack.c.b16 %v751, %v723
      %v1228 = vpack.c.b16 %v752, %v724
      %v1229 = vpack.c.b16 %v753, %v725
      %v1230 = vpack.c.b16 %v754, %v726
      %v1231 = vpack.c.b16 %v783, %v755
      %v1232 = vpack.c.b16 %v784, %v756
      %v1233 = vpack.c.b16 %v785, %v757
      %v1234 = vpack.c.b16 %v786, %v758
      %v1235 = vpack.c.b16 %v787, %v759
      %v1236 = vpack.c.b16 %v788, %v760
      %v1237 = vpack.c.b16 %v789, %v761
      %v1238 = vpack.c.b16 %v790, %v762
      %v1239 = vpack.c.b16 %v791, %v763
      %v1240 = vpack.c.b16 %v792, %v764
      %v1241 = vpack.c.b16 %v793, %v765
      %v1242 = vpack.c.b16 %v794, %v766
      %v1243 = vpack.c.b16 %v795, %v767
      %v1244 = vpack.c.b16 %v796, %v768
      %v1245 = vpack.c.b16 %v797, %v769
      %v1246 = vpack.c.b16 %v798, %v770
      %v1247 = vpack.c.b16 %v799, %v771
      %v1248 = vpack.c.b16 %v800, %v772
      %v1249 = vpack.c.b16 %v801, %v773
      %v1250 = vpack.c.b16 %v802, %v774
      %v1251 = vpack.c.b16 %v803, %v775
      %v1252 = vpack.c.b16 %v804, %v776
      %v1253 = vpack.c.b16 %v805, %v777
      %v1254 = vpack.c.b16 %v806, %v778
      %v1255 = vpack.c.b16 %v807, %v779
      %v1256 = vpack.c.b16 %v808, %v780
      %v1257 = vpack.c.b16 %v809, %v781
      %v1258 = vpack.c.b16 %v810, %v782
      %v1259 = vpack.c.b16 %v839, %v811
      %v1260 = vpack.c.b16 %v840, %v812
      %v1261 = vpack.c.b16 %v841, %v813
      %v1262 = vpack.c.b16 %v842, %v814
      %v1263 = vpack.c.b16 %v843, %v815
      %v1264 = vpack.c.b16 %v844, %v816
      %v1265 = vpack.c.b16 %v845, %v817
      %v1266 = vpack.c.b16 %v846, %v818
      %v1267 = vpack.c.b16 %v847, %v819
      %v1268 = vpack.c.b16 %v848, %v820
      %v1269 = vpack.c.b16 %v849, %v821
      %v1270 = vpack.c.b16 %v850, %v822
      %v1271 = vpack.c.b16 %v851, %v823
      %v1272 = vpack.c.b16 %v852, %v824
      %v1273 = vpack.c.b16 %v853, %v825
      %v1274 = vpack.c.b16 %v854, %v826
      %v1275 = vpack.c.b16 %v855, %v827
      %v1276 = vpack.c.b16 %v856, %v828
      %v1277 = vpack.c.b16 %v857, %v829
      %v1278 = vpack.c.b16 %v858, %v830
      %v1279 = vpack.c.b16 %v859, %v831
      %v1280 = vpack.c.b16 %v860, %v832
      %v1281 = vpack.c.b16 %v861, %v833
      %v1282 = vpack.c.b16 %v862, %v834
      %v1283 = vpack.c.b16 %v863, %v835
      %v1284 = vpack.c.b16 %v864, %v836
      %v1285 = vpack.c.b16 %v865, %v837
      %v1286 = vpack.c.b16 %v866, %v838
      %v1287 = vpack.c.b16 %v895, %v867
      %v1288 = vpack.c.b16 %v896, %v868
      %v1289 = vpack.c.b16 %v897, %v869
      %v1290 = vpack.c.b16 %v898, %v870
      %v1291 = vpack.c.b16 %v899, %v871
      %v1292 = vpack.c.b16 %v900, %v872
      %v1293 = vpack.c.b16 %v901, %v873
      %v1294 = vpack.c.b16 %v902, %v874
      %v1295 = vpack.c.b16 %v903, %v875
      %v1296 = vpack.c.b16 %v904, %v876
      %v1297 = vpack.c.b16 %v905, %v877
      %v1298 = vpack.c.b16 %v906, %v878
      %v1299 = vpack.c.b16 %v907, %v879
      %v1300 = vpack.c.b16 %v908, %v880
      %v1301 = vpack.c.b16 %v909, %v881
      %v1302 = vpack.c.b16 %v910, %v882
      %v1303 = vpack.c.b16 %v911, %v883
      %v1304 = vpack.c.b16 %v912, %v884
      %v1305 = vpack.c.b16 %v913, %v885
      %v1306 = vpack.c.b16 %v914, %v886
      %v1307 = vpack.c.b16 %v915, %v887
      %v1308 = vpack.c.b16 %v916, %v888
      %v1309 = vpack.c.b16 %v917, %v889
      %v1310 = vpack.c.b16 %v918, %v890
      %v1311 = vpack.c.b16 %v919, %v891
      %v1312 = vpack.c.b16 %v920, %v892
      %v1313 = vpack.c.b16 %v921, %v893
      %v1314 = vpack.c.b16 %v922, %v894
      %v1315 = vpack.c.b16 %v951, %v923
      %v1316 = vpack.c.b16 %v952, %v924
      %v1317 = vpack.c.b16 %v953, %v925
      %v1318 = vpack.c.b16 %v954, %v926
      %v1319 = vpack.c.b16 %v955, %v927
      %v1320 = vpack.c.b16 %v956, %v928
      %v1321 = vpack.c.b16 %v957, %v929
      %v1322 = vpack.c.b16 %v958, %v930
      %v1323 = vpack.c.b16 %v959, %v931
      %v1324 = vpack.c.b16 %v960, %v932
      %v1325 = vpack.c.b16 %v961, %v933
      %v1326 = vpack.c.b16 %v962, %v934
      %v1327 = vpack.c.b16 %v963, %v935
      %v1328 = vpack.c.b16 %v964, %v936
      %v1329 = vpack.c.b16 %v965, %v937
      %v1330 = vpack.c.b16 %v966, %v938
      %v1331 = vpack.c.b16 %v967, %v939
      %v1332 = vpack.c.b16 %v968, %v940
      %v1333 = vpack.c.b16 %v969, %v941
      %v1334 = vpack.c.b16 %v970, %v942
      %v1335 = vpack.c.b16 %v971, %v943
      %v1336 = vpack.c.b16 %v972, %v944
      %v1337 = vpack.c.b16 %v973, %v945
      %v1338 = vpack.c.b16 %v974, %v946
      %v1339 = vpack.c.b16 %v975, %v947
      %v1340 = vpack.c.b16 %v976, %v948
      %v1341 = vpack.c.b16 %v977, %v949
      %v1342 = vpack.c.b16 %v978, %v950
      %v1343 = vpack.c.b16 %v1007, %v979
      %v1344 = vpack.c.b16 %v1008, %v980
      %v1345 = vpack.c.b16 %v1009, %v981
      %v1346 = vpack.c.b16 %v1010, %v982
      %v1347 = vpack.c.b16 %v1011, %v983
      %v1348 = vpack.c.b16 %v1012, %v984
      %v1349 = vpack.c.b16 %v1013, %v985
      %v1350 = vpack.c.b16 %v1014, %v986
      %v1351 = vpack.c.b16 %v1015, %v987
      %v1352 = vpack.c.b16 %v1016, %v988
      %v1353 = vpack.c.b16 %v1017, %v989
      %v1354 = vpack.c.b16 %v1018, %v990
      %v1355 = vpack.c.b16 %v1019, %v991
      %v1356 = vpack.c.b16 %v1020, %v992
      %v1357 = vpack.c.b16 %v1021, %v993
      %v1358 = vpack.c.b16 %v1022, %v994
      %v1359 = vpack.c.b16 %v1023, %v995
      %v1360 = vpack.c.b16 %v1024, %v996
      %v1361 = vpack.c.b16 %v1025, %v997
      %v1362 = vpack.c.b16 %v1026, %v998
      %v1363 = vpack.c.b16 %v1027, %v999
      %v1364 = vpack.c.b16 %v1028, %v1000
      %v1365 = vpack.c.b16 %v1029, %v1001
      %v1366 = vpack.c.b16 %v1030, %v1002
      %v1367 = vpack.c.b16 %v1031, %v1003
      %v1368 = vpack.c.b16 %v1032, %v1004
      %v1369 = vpack.c.b16 %v1033, %v1005
      %v1370 = vpack.c.b16 %v1034, %v1006
      %v1371 = vpack.c.b16 %v1063, %v1035
      %v1372 = vpack.c.b16 %v1064, %v1036
      %v1373 = vpack.c.b16 %v1065, %v1037
      %v1374 = vpack.c.b16 %v1066, %v1038
      %v1375 = vpack.c.b16 %v1067, %v1039
      %v1376 = vpack.c.b16 %v1068, %v1040
      %v1377 = vpack.c.b16 %v1069, %v1041
      %v1378 = vpack.c.b16 %v1070, %v1042
      %v1379 = vpack.c.b16 %v1071, %v1043
      %v1380 = vpack.c.b16 %v1072, %v1044
      %v1381 = vpack.c.b16 %v1073, %v1045
      %v1382 = vpack.c.b16 %v1074, %v1046
      %v1383 = vpack.c.b16 %v1075, %v1047
      %v1384 = vpack.c.b16 %v1076, %v1048
      %v1385 = vpack.c.b16 %v1077, %v1049
      %v1386 = vpack.c.b16 %v1078, %v1050
      %v1387 = vpack.c.b16 %v1079, %v1051
      %v1388 = vpack.c.b16 %v1080, %v1052
      %v1389 = vpack.c.b16 %v1081, %v1053
      %v1390 = vpack.c.b16 %v1082, %v1054
      %v1391 = vpack.c.b16 %v1083, %v1055
      %v1392 = vpack.c.b16 %v1084, %v1056
      %v1393 = vpack.c.b16 %v1085, %v1057
      %v1394 = vpack.c.b16 %v1086, %v1058
      %v1395 = vpack.c.b16 %v1087, %v1059
      %v1396 = vpack.c.b16 %v1088, %v1060
      %v1397 = vpack.c.b16 %v1089, %v1061
      %v1398 = vpack.c.b16 %v1090, %v1062
      %v1399 = vpack.c.b16 %v1119, %v1091
      %v1400 = vpack.c.b16 %v1120, %v1092
      %v1401 = vpack.c.b16 %v1121, %v1093
      %v1402 = vpack.c.b16 %v1122, %v1094
      %v1403 = vpack.c.b16 %v1123, %v1095
      %v1404 = vpack.c.b16 %v1124, %v1096
      %v1405 = vpack.c.b16 %v1125, %v1097
      %v1406 = vpack.c.b16 %v1126, %v1098
      %v1407 = vpack.c.b16 %v1127, %v1099
      %v1408 = vpack.c.b16 %v1128, %v1100
      %v1409 = vpack.c.b16 %v1129, %v1101
      %v1410 = vpack.c.b16 %v1130, %v1102
      %v1411 = vpack.c.b16 %v1131, %v1103
      %v1412 = vpack.c.b16 %v1132, %v1104
      %v1413 = vpack.c.b16 %v1133, %v1105
      %v1414 = vpack.c.b16 %v1134, %v1106
      %v1415 = vpack.c.b16 %v1135, %v1107
      %v1416 = vpack.c.b16 %v1136, %v1108
      %v1417 = vpack.c.b16 %v1137, %v1109
      %v1418 = vpack.c.b16 %v1138, %v1110
      %v1419 = vpack.c.b16 %v1139, %v1111
      %v1420 = vpack.c.b16 %v1140, %v1112
      %v1421 = vpack.c.b16 %v1141, %v1113
      %v1422 = vpack.c.b16 %v1142, %v1114
      %v1423 = vpack.c.b16 %v1143, %v1115
      %v1424 = vpack.c.b16 %v1144, %v1116
      %v1425 = vpack.c.b16 %v1145, %v1117
      %v1426 = vpack.c.b16 %v1146, %v1118
      %v1427 = vpack.c.b16 %v1175, %v1147
      %v1428 = vpack.c.b16 %v1176, %v1148
      %v1429 = vpack.c.b16 %v1177, %v1149
      %v1430 = vpack.c.b16 %v1178, %v1150
      %v1431 = vpack.c.b16 %v1179, %v1151
      %v1432 = vpack.c.b16 %v1180, %v1152
      %v1433 = vpack.c.b16 %v1181, %v1153
      %v1434 = vpack.c.b16 %v1182, %v1154
      %v1435 = vpack.c.b16 %v1183, %v1155
      %v1436 = vpack.c.b16 %v1184, %v1156
      %v1437 = vpack.c.b16 %v1185, %v1157
      %v1438 = vpack.c.b16 %v1186, %v1158
      %v1439 = vpack.c.b16 %v1187, %v1159
      %v1440 = vpack.c.b16 %v1188, %v1160
      %v1441 = vpack.c.b16 %v1189, %v1161
      %v1442 = vpack.c.b16 %v1190, %v1162
      %v1443 = vpack.c.b16 %v1191, %v1163
      %v1444 = vpack.c.b16 %v1192, %v1164
      %v1445 = vpack.c.b16 %v1193, %v1165
      %v1446 = vpack.c.b16 %v1194, %v1166
      %v1447 = vpack.c.b16 %v1195, %v1167
      %v1448 = vpack.c.b16 %v1196, %v1168
      %v1449 = vpack.c.b16 %v1197, %v1169
      %v1450 = vpack.c.b16 %v1198, %v1170
      %v1451 = vpack.c.b16 %v1199, %v1171
      %v1452 = vpack.c.b16 %v1200, %v1172
      %v1453 = vpack.c.b16 %v1201, %v1173
      %v1454 = vpack.c.b16 %v1202, %v1174
      %vm1707 = vcmask 130048
      %v1709 = vsel %vm1707, %v445, 0
      %1711 = vmatprep.subr.bf16.mxu0 %v1204
      %1712 = vmatpush1.bf16.msra.mxu0 %v1203
      %1713 = vmatprep.subr.bf16.mxu0 %v1232
      %1714 = vmatpush1.bf16.msra.mxu0 %v1231
      %1715 = vmatprep.subr.bf16.mxu0 %v1260
      %1716 = vmatpush1.bf16.msra.mxu0 %v1259
      %1717 = vmatprep.subr.bf16.mxu0 %v1288
      %1718 = vmatpush1.bf16.msra.mxu0 %v1287
      %1719 = vmatprep.subr.bf16.mxu0 %v1316
      %1720 = vmatpush1.bf16.msra.mxu0 %v1315
      %1721 = vmatprep.subr.bf16.mxu0 %v1344
      %1722 = vmatpush1.bf16.msra.mxu0 %v1343
      %1723 = vmatprep.subr.bf16.mxu0 %v1372
      %1724 = vmatpush1.bf16.msra.mxu0 %v1371
      %1725 = vmatprep.subr.bf16.mxu0 %v1400
      %1726 = vmatpush1.bf16.msra.mxu0 %v1399
      %1727 = vmatprep.subr.bf16.mxu0 %v1428
      %1728 = vmatpush1.bf16.msra.mxu0 %v1427
      %1729 = vmatprep.subr.bf16.mxu0 0
      %1730 = vmatpush1.bf16.msra.mxu0 0
      %1731 = vmatprep.subr.bf16.mxu0 0
      %1732 = vmatpush1.bf16.msra.mxu0 0
      %1733 = vmatprep.subr.bf16.mxu0 0
      %1734 = vmatpush1.bf16.msra.mxu0 0
      %1735 = vmatprep.subr.bf16.mxu0 0
      %1736 = vmatpush1.bf16.msra.mxu0 0
      %1737 = vmatprep.subr.bf16.mxu0 0
      %1738 = vmatpush1.bf16.msra.mxu0 0
      %1739 = vmatprep.subr.bf16.mxu0 0
      %1740 = vmatpush1.bf16.msra.mxu0 0
      %1741 = vmatprep.subr.bf16.mxu0 0
      %1742 = vmatpush1.bf16.msra.mxu0 0
      %1743 = vmatprep.mubr.bf16.mxu0 %v1709
      %1744 = vmatmul.mubr.bf16.gmra.mrb[0].mxu0 %v444
      %v1745 = vpop.f32.mrb[0].mxu0
      %v1746 = vadd.f32 %v431, %v1745
      %v1747 = vpop.f32.mrb[0].mxu0
      %v1748 = vadd.f32 %v431, %v1747
      %v1749 = vpop.f32.mrb[0].mxu0
      %v1750 = vadd.f32 %v436, %v1749
      %v1751 = vpop.f32.mrb[0].mxu0
      %v1752 = vadd.f32 %v436, %v1751
      %1753 = vdwg.mxu0
      %1754 = vmatprep.subr.bf16.mxu0 %v1206
      %1755 = vmatpush1.bf16.msra.mxu0 %v1205
      %1756 = vmatprep.subr.bf16.mxu0 %v1234
      %1757 = vmatpush1.bf16.msra.mxu0 %v1233
      %1758 = vmatprep.subr.bf16.mxu0 %v1262
      %1759 = vmatpush1.bf16.msra.mxu0 %v1261
      %1760 = vmatprep.subr.bf16.mxu0 %v1290
      %1761 = vmatpush1.bf16.msra.mxu0 %v1289
      %1762 = vmatprep.subr.bf16.mxu0 %v1318
      %1763 = vmatpush1.bf16.msra.mxu0 %v1317
      %1764 = vmatprep.subr.bf16.mxu0 %v1346
      %1765 = vmatpush1.bf16.msra.mxu0 %v1345
      %1766 = vmatprep.subr.bf16.mxu0 %v1374
      %1767 = vmatpush1.bf16.msra.mxu0 %v1373
      %1768 = vmatprep.subr.bf16.mxu0 %v1402
      %1769 = vmatpush1.bf16.msra.mxu0 %v1401
      %1770 = vmatprep.subr.bf16.mxu0 %v1430
      %1771 = vmatpush1.bf16.msra.mxu0 %v1429
      %1772 = vmatprep.subr.bf16.mxu0 0
      %1773 = vmatpush1.bf16.msra.mxu0 0
      %1774 = vmatprep.subr.bf16.mxu0 0
      %1775 = vmatpush1.bf16.msra.mxu0 0
      %1776 = vmatprep.subr.bf16.mxu0 0
      %1777 = vmatpush1.bf16.msra.mxu0 0
      %1778 = vmatprep.subr.bf16.mxu0 0
      %1779 = vmatpush1.bf16.msra.mxu0 0
      %1780 = vmatprep.subr.bf16.mxu0 0
      %1781 = vmatpush1.bf16.msra.mxu0 0
      %1782 = vmatprep.subr.bf16.mxu0 0
      %1783 = vmatpush1.bf16.msra.mxu0 0
      %1784 = vmatprep.subr.bf16.mxu0 0
      %1785 = vmatpush1.bf16.msra.mxu0 0
      %1786 = vmatprep.mubr.bf16.mxu0 %v1709
      %1787 = vmatmul.mubr.bf16.gmra.mrb[0].mxu0 %v444
      %v1788 = vpop.f32.mrb[0].mxu0
      %v1789 = vadd.f32 %v431, %v1788
      %v1790 = vpop.f32.mrb[0].mxu0
      %v1791 = vadd.f32 %v431, %v1790
      %v1792 = vpop.f32.mrb[0].mxu0
      %v1793 = vadd.f32 %v436, %v1792
      %v1794 = vpop.f32.mrb[0].mxu0
      %v1795 = vadd.f32 %v436, %v1794
      %1796 = vdwg.mxu0
      %1797 = vmatprep.subr.bf16.mxu0 %v1208
      %1798 = vmatpush1.bf16.msra.mxu0 %v1207
      %1799 = vmatprep.subr.bf16.mxu0 %v1236
      %1800 = vmatpush1.bf16.msra.mxu0 %v1235
      %1801 = vmatprep.subr.bf16.mxu0 %v1264
      %1802 = vmatpush1.bf16.msra.mxu0 %v1263
      %1803 = vmatprep.subr.bf16.mxu0 %v1292
      %1804 = vmatpush1.bf16.msra.mxu0 %v1291
      %1805 = vmatprep.subr.bf16.mxu0 %v1320
      %1806 = vmatpush1.bf16.msra.mxu0 %v1319
      %1807 = vmatprep.subr.bf16.mxu0 %v1348
      %1808 = vmatpush1.bf16.msra.mxu0 %v1347
      %1809 = vmatprep.subr.bf16.mxu0 %v1376
      %1810 = vmatpush1.bf16.msra.mxu0 %v1375
      %1811 = vmatprep.subr.bf16.mxu0 %v1404
      %1812 = vmatpush1.bf16.msra.mxu0 %v1403
      %1813 = vmatprep.subr.bf16.mxu0 %v1432
      %1814 = vmatpush1.bf16.msra.mxu0 %v1431
      %1815 = vmatprep.subr.bf16.mxu0 0
      %1816 = vmatpush1.bf16.msra.mxu0 0
      %1817 = vmatprep.subr.bf16.mxu0 0
      %1818 = vmatpush1.bf16.msra.mxu0 0
      %1819 = vmatprep.subr.bf16.mxu0 0
      %1820 = vmatpush1.bf16.msra.mxu0 0
      %1821 = vmatprep.subr.bf16.mxu0 0
      %1822 = vmatpush1.bf16.msra.mxu0 0
      %1823 = vmatprep.subr.bf16.mxu0 0
      %1824 = vmatpush1.bf16.msra.mxu0 0
      %1825 = vmatprep.subr.bf16.mxu0 0
      %1826 = vmatpush1.bf16.msra.mxu0 0
      %1827 = vmatprep.subr.bf16.mxu0 0
      %1828 = vmatpush1.bf16.msra.mxu0 0
      %1829 = vmatprep.mubr.bf16.mxu0 %v1709
      %1830 = vmatmul.mubr.bf16.gmra.mrb[0].mxu0 %v444
      %v1831 = vpop.f32.mrb[0].mxu0
      %v1832 = vadd.f32 %v431, %v1831
      %v1833 = vpop.f32.mrb[0].mxu0
      %v1834 = vadd.f32 %v431, %v1833
      %v1835 = vpop.f32.mrb[0].mxu0
      %v1836 = vadd.f32 %v436, %v1835
      %v1837 = vpop.f32.mrb[0].mxu0
      %v1838 = vadd.f32 %v436, %v1837
      %1839 = vdwg.mxu0
      %1840 = vmatprep.subr.bf16.mxu0 %v1210
      %1841 = vmatpush1.bf16.msra.mxu0 %v1209
      %1842 = vmatprep.subr.bf16.mxu0 %v1238
      %1843 = vmatpush1.bf16.msra.mxu0 %v1237
      %1844 = vmatprep.subr.bf16.mxu0 %v1266
      %1845 = vmatpush1.bf16.msra.mxu0 %v1265
      %1846 = vmatprep.subr.bf16.mxu0 %v1294
      %1847 = vmatpush1.bf16.msra.mxu0 %v1293
      %1848 = vmatprep.subr.bf16.mxu0 %v1322
      %1849 = vmatpush1.bf16.msra.mxu0 %v1321
      %1850 = vmatprep.subr.bf16.mxu0 %v1350
      %1851 = vmatpush1.bf16.msra.mxu0 %v1349
      %1852 = vmatprep.subr.bf16.mxu0 %v1378
      %1853 = vmatpush1.bf16.msra.mxu0 %v1377
      %1854 = vmatprep.subr.bf16.mxu0 %v1406
      %1855 = vmatpush1.bf16.msra.mxu0 %v1405
      %1856 = vmatprep.subr.bf16.mxu0 %v1434
      %1857 = vmatpush1.bf16.msra.mxu0 %v1433
      %1858 = vmatprep.subr.bf16.mxu0 0
      %1859 = vmatpush1.bf16.msra.mxu0 0
      %1860 = vmatprep.subr.bf16.mxu0 0
      %1861 = vmatpush1.bf16.msra.mxu0 0
      %1862 = vmatprep.subr.bf16.mxu0 0
      %1863 = vmatpush1.bf16.msra.mxu0 0
      %1864 = vmatprep.subr.bf16.mxu0 0
      %1865 = vmatpush1.bf16.msra.mxu0 0
      %1866 = vmatprep.subr.bf16.mxu0 0
      %1867 = vmatpush1.bf16.msra.mxu0 0
      %1868 = vmatprep.subr.bf16.mxu0 0
      %1869 = vmatpush1.bf16.msra.mxu0 0
      %1870 = vmatprep.subr.bf16.mxu0 0
      %1871 = vmatpush1.bf16.msra.mxu0 0
      %1872 = vmatprep.mubr.bf16.mxu0 %v1709
      %1873 = vmatmul.mubr.bf16.gmra.mrb[0].mxu0 %v444
      %v1874 = vpop.f32.mrb[0].mxu0
      %v1875 = vadd.f32 %v431, %v1874
      %v1876 = vpop.f32.mrb[0].mxu0
      %v1877 = vadd.f32 %v431, %v1876
      %v1878 = vpop.f32.mrb[0].mxu0
      %v1879 = vadd.f32 %v436, %v1878
      %v1880 = vpop.f32.mrb[0].mxu0
      %v1881 = vadd.f32 %v436, %v1880
      %1882 = vdwg.mxu0
      %1883 = vmatprep.subr.bf16.mxu0 %v1212
      %1884 = vmatpush1.bf16.msra.mxu0 %v1211
      %1885 = vmatprep.subr.bf16.mxu0 %v1240
      %1886 = vmatpush1.bf16.msra.mxu0 %v1239
      %1887 = vmatprep.subr.bf16.mxu0 %v1268
      %1888 = vmatpush1.bf16.msra.mxu0 %v1267
      %1889 = vmatprep.subr.bf16.mxu0 %v1296
      %1890 = vmatpush1.bf16.msra.mxu0 %v1295
      %1891 = vmatprep.subr.bf16.mxu0 %v1324
      %1892 = vmatpush1.bf16.msra.mxu0 %v1323
      %1893 = vmatprep.subr.bf16.mxu0 %v1352
      %1894 = vmatpush1.bf16.msra.mxu0 %v1351
      %1895 = vmatprep.subr.bf16.mxu0 %v1380
      %1896 = vmatpush1.bf16.msra.mxu0 %v1379
      %1897 = vmatprep.subr.bf16.mxu0 %v1408
      %1898 = vmatpush1.bf16.msra.mxu0 %v1407
      %1899 = vmatprep.subr.bf16.mxu0 %v1436
      %1900 = vmatpush1.bf16.msra.mxu0 %v1435
      %1901 = vmatprep.subr.bf16.mxu0 0
      %1902 = vmatpush1.bf16.msra.mxu0 0
      %1903 = vmatprep.subr.bf16.mxu0 0
      %1904 = vmatpush1.bf16.msra.mxu0 0
      %1905 = vmatprep.subr.bf16.mxu0 0
      %1906 = vmatpush1.bf16.msra.mxu0 0
      %1907 = vmatprep.subr.bf16.mxu0 0
      %1908 = vmatpush1.bf16.msra.mxu0 0
      %1909 = vmatprep.subr.bf16.mxu0 0
      %1910 = vmatpush1.bf16.msra.mxu0 0
      %1911 = vmatprep.subr.bf16.mxu0 0
      %1912 = vmatpush1.bf16.msra.mxu0 0
      %1913 = vmatprep.subr.bf16.mxu0 0
      %1914 = vmatpush1.bf16.msra.mxu0 0
      %1915 = vmatprep.mubr.bf16.mxu0 %v1709
      %1916 = vmatmul.mubr.bf16.gmra.mrb[0].mxu0 %v444
      %v1917 = vpop.f32.mrb[0].mxu0
      %v1918 = vadd.f32 %v431, %v1917
      %v1919 = vpop.f32.mrb[0].mxu0
      %v1920 = vadd.f32 %v431, %v1919
      %v1921 = vpop.f32.mrb[0].mxu0
      %v1922 = vadd.f32 %v436, %v1921
      %v1923 = vpop.f32.mrb[0].mxu0
      %v1924 = vadd.f32 %v436, %v1923
      %1925 = vdwg.mxu0
      %1926 = vmatprep.subr.bf16.mxu0 %v1214
      %1927 = vmatpush1.bf16.msra.mxu0 %v1213
      %1928 = vmatprep.subr.bf16.mxu0 %v1242
      %1929 = vmatpush1.bf16.msra.mxu0 %v1241
      %1930 = vmatprep.subr.bf16.mxu0 %v1270
      %1931 = vmatpush1.bf16.msra.mxu0 %v1269
      %1932 = vmatprep.subr.bf16.mxu0 %v1298
      %1933 = vmatpush1.bf16.msra.mxu0 %v1297
      %1934 = vmatprep.subr.bf16.mxu0 %v1326
      %1935 = vmatpush1.bf16.msra.mxu0 %v1325
      %1936 = vmatprep.subr.bf16.mxu0 %v1354
      %1937 = vmatpush1.bf16.msra.mxu0 %v1353
      %1938 = vmatprep.subr.bf16.mxu0 %v1382
      %1939 = vmatpush1.bf16.msra.mxu0 %v1381
      %1940 = vmatprep.subr.bf16.mxu0 %v1410
      %1941 = vmatpush1.bf16.msra.mxu0 %v1409
      %1942 = vmatprep.subr.bf16.mxu0 %v1438
      %1943 = vmatpush1.bf16.msra.mxu0 %v1437
      %1944 = vmatprep.subr.bf16.mxu0 0
      %1945 = vmatpush1.bf16.msra.mxu0 0
      %1946 = vmatprep.subr.bf16.mxu0 0
      %1947 = vmatpush1.bf16.msra.mxu0 0
      %1948 = vmatprep.subr.bf16.mxu0 0
      %1949 = vmatpush1.bf16.msra.mxu0 0
      %1950 = vmatprep.subr.bf16.mxu0 0
      %1951 = vmatpush1.bf16.msra.mxu0 0
      %1952 = vmatprep.subr.bf16.mxu0 0
      %1953 = vmatpush1.bf16.msra.mxu0 0
      %1954 = vmatprep.subr.bf16.mxu0 0
      %1955 = vmatpush1.bf16.msra.mxu0 0
      %1956 = vmatprep.subr.bf16.mxu0 0
      %1957 = vmatpush1.bf16.msra.mxu0 0
      %1958 = vmatprep.mubr.bf16.mxu0 %v1709
      %1959 = vmatmul.mubr.bf16.gmra.mrb[0].mxu0 %v444
      %v1960 = vpop.f32.mrb[0].mxu0
      %v1961 = vadd.f32 %v431, %v1960
      %v1962 = vpop.f32.mrb[0].mxu0
      %v1963 = vadd.f32 %v431, %v1962
      %v1964 = vpop.f32.mrb[0].mxu0
      %v1965 = vadd.f32 %v436, %v1964
      %v1966 = vpop.f32.mrb[0].mxu0
      %v1967 = vadd.f32 %v436, %v1966
      %1968 = vdwg.mxu0
      %1969 = vmatprep.subr.bf16.mxu0 %v1216
      %1970 = vmatpush1.bf16.msra.mxu0 %v1215
      %1971 = vmatprep.subr.bf16.mxu0 %v1244
      %1972 = vmatpush1.bf16.msra.mxu0 %v1243
      %1973 = vmatprep.subr.bf16.mxu0 %v1272
      %1974 = vmatpush1.bf16.msra.mxu0 %v1271
      %1975 = vmatprep.subr.bf16.mxu0 %v1300
      %1976 = vmatpush1.bf16.msra.mxu0 %v1299
      %1977 = vmatprep.subr.bf16.mxu0 %v1328
      %1978 = vmatpush1.bf16.msra.mxu0 %v1327
      %1979 = vmatprep.subr.bf16.mxu0 %v1356
      %1980 = vmatpush1.bf16.msra.mxu0 %v1355
      %1981 = vmatprep.subr.bf16.mxu0 %v1384
      %1982 = vmatpush1.bf16.msra.mxu0 %v1383
      %1983 = vmatprep.subr.bf16.mxu0 %v1412
      %1984 = vmatpush1.bf16.msra.mxu0 %v1411
      %1985 = vmatprep.subr.bf16.mxu0 %v1440
      %1986 = vmatpush1.bf16.msra.mxu0 %v1439
      %1987 = vmatprep.subr.bf16.mxu0 0
      %1988 = vmatpush1.bf16.msra.mxu0 0
      %1989 = vmatprep.subr.bf16.mxu0 0
      %1990 = vmatpush1.bf16.msra.mxu0 0
      %1991 = vmatprep.subr.bf16.mxu0 0
      %1992 = vmatpush1.bf16.msra.mxu0 0
      %1993 = vmatprep.subr.bf16.mxu0 0
      %1994 = vmatpush1.bf16.msra.mxu0 0
      %1995 = vmatprep.subr.bf16.mxu0 0
      %1996 = vmatpush1.bf16.msra.mxu0 0
      %1997 = vmatprep.subr.bf16.mxu0 0
      %1998 = vmatpush1.bf16.msra.mxu0 0
      %1999 = vmatprep.subr.bf16.mxu0 0
      %2000 = vmatpush1.bf16.msra.mxu0 0
      %2001 = vmatprep.mubr.bf16.mxu0 %v1709
      %2002 = vmatmul.mubr.bf16.gmra.mrb[0].mxu0 %v444
      %v2003 = vpop.f32.mrb[0].mxu0
      %v2004 = vadd.f32 %v431, %v2003
      %v2005 = vpop.f32.mrb[0].mxu0
      %v2006 = vadd.f32 %v431, %v2005
      %v2007 = vpop.f32.mrb[0].mxu0
      %v2008 = vadd.f32 %v436, %v2007
      %v2009 = vpop.f32.mrb[0].mxu0
      %v2010 = vadd.f32 %v436, %v2009
      %2011 = vdwg.mxu0
      %2012 = vmatprep.subr.bf16.mxu0 %v1218
      %2013 = vmatpush1.bf16.msra.mxu0 %v1217
      %2014 = vmatprep.subr.bf16.mxu0 %v1246
      %2015 = vmatpush1.bf16.msra.mxu0 %v1245
      %2016 = vmatprep.subr.bf16.mxu0 %v1274
      %2017 = vmatpush1.bf16.msra.mxu0 %v1273
      %2018 = vmatprep.subr.bf16.mxu0 %v1302
      %2019 = vmatpush1.bf16.msra.mxu0 %v1301
      %2020 = vmatprep.subr.bf16.mxu0 %v1330
      %2021 = vmatpush1.bf16.msra.mxu0 %v1329
      %2022 = vmatprep.subr.bf16.mxu0 %v1358
      %2023 = vmatpush1.bf16.msra.mxu0 %v1357
      %2024 = vmatprep.subr.bf16.mxu0 %v1386
      %2025 = vmatpush1.bf16.msra.mxu0 %v1385
      %2026 = vmatprep.subr.bf16.mxu0 %v1414
      %2027 = vmatpush1.bf16.msra.mxu0 %v1413
      %2028 = vmatprep.subr.bf16.mxu0 %v1442
      %2029 = vmatpush1.bf16.msra.mxu0 %v1441
      %2030 = vmatprep.subr.bf16.mxu0 0
      %2031 = vmatpush1.bf16.msra.mxu0 0
      %2032 = vmatprep.subr.bf16.mxu0 0
      %2033 = vmatpush1.bf16.msra.mxu0 0
      %2034 = vmatprep.subr.bf16.mxu0 0
      %2035 = vmatpush1.bf16.msra.mxu0 0
      %2036 = vmatprep.subr.bf16.mxu0 0
      %2037 = vmatpush1.bf16.msra.mxu0 0
      %2038 = vmatprep.subr.bf16.mxu0 0
      %2039 = vmatpush1.bf16.msra.mxu0 0
      %2040 = vmatprep.subr.bf16.mxu0 0
      %2041 = vmatpush1.bf16.msra.mxu0 0
      %2042 = vmatprep.subr.bf16.mxu0 0
      %2043 = vmatpush1.bf16.msra.mxu0 0
      %2044 = vmatprep.mubr.bf16.mxu0 %v1709
      %2045 = vmatmul.mubr.bf16.gmra.mrb[0].mxu0 %v444
      %v2046 = vpop.f32.mrb[0].mxu0
      %v2047 = vadd.f32 %v431, %v2046
      %v2048 = vpop.f32.mrb[0].mxu0
      %v2049 = vadd.f32 %v431, %v2048
      %v2050 = vpop.f32.mrb[0].mxu0
      %v2051 = vadd.f32 %v436, %v2050
      %v2052 = vpop.f32.mrb[0].mxu0
      %v2053 = vadd.f32 %v436, %v2052
      %2054 = vdwg.mxu0
      %2055 = vmatprep.subr.bf16.mxu0 %v1220
      %2056 = vmatpush1.bf16.msra.mxu0 %v1219
      %2057 = vmatprep.subr.bf16.mxu0 %v1248
      %2058 = vmatpush1.bf16.msra.mxu0 %v1247
      %2059 = vmatprep.subr.bf16.mxu0 %v1276
      %2060 = vmatpush1.bf16.msra.mxu0 %v1275
      %2061 = vmatprep.subr.bf16.mxu0 %v1304
      %2062 = vmatpush1.bf16.msra.mxu0 %v1303
      %2063 = vmatprep.subr.bf16.mxu0 %v1332
      %2064 = vmatpush1.bf16.msra.mxu0 %v1331
      %2065 = vmatprep.subr.bf16.mxu0 %v1360
      %2066 = vmatpush1.bf16.msra.mxu0 %v1359
      %2067 = vmatprep.subr.bf16.mxu0 %v1388
      %2068 = vmatpush1.bf16.msra.mxu0 %v1387
      %2069 = vmatprep.subr.bf16.mxu0 %v1416
      %2070 = vmatpush1.bf16.msra.mxu0 %v1415
      %2071 = vmatprep.subr.bf16.mxu0 %v1444
      %2072 = vmatpush1.bf16.msra.mxu0 %v1443
      %2073 = vmatprep.subr.bf16.mxu0 0
      %2074 = vmatpush1.bf16.msra.mxu0 0
      %2075 = vmatprep.subr.bf16.mxu0 0
      %2076 = vmatpush1.bf16.msra.mxu0 0
      %2077 = vmatprep.subr.bf16.mxu0 0
      %2078 = vmatpush1.bf16.msra.mxu0 0
      %2079 = vmatprep.subr.bf16.mxu0 0
      %2080 = vmatpush1.bf16.msra.mxu0 0
      %2081 = vmatprep.subr.bf16.mxu0 0
      %2082 = vmatpush1.bf16.msra.mxu0 0
      %2083 = vmatprep.subr.bf16.mxu0 0
      %2084 = vmatpush1.bf16.msra.mxu0 0
      %2085 = vmatprep.subr.bf16.mxu0 0
      %2086 = vmatpush1.bf16.msra.mxu0 0
      %2087 = vmatprep.mubr.bf16.mxu0 %v1709
      %2088 = vmatmul.mubr.bf16.gmra.mrb[0].mxu0 %v444
      %v2089 = vpop.f32.mrb[0].mxu0
      %v2090 = vadd.f32 %v431, %v2089
      %v2091 = vpop.f32.mrb[0].mxu0
      %v2092 = vadd.f32 %v431, %v2091
      %v2093 = vpop.f32.mrb[0].mxu0
      %v2094 = vadd.f32 %v436, %v2093
      %v2095 = vpop.f32.mrb[0].mxu0
      %v2096 = vadd.f32 %v436, %v2095
      %2097 = vdwg.mxu0
      %2098 = vmatprep.subr.bf16.mxu0 %v1222
      %2099 = vmatpush1.bf16.msra.mxu0 %v1221
      %2100 = vmatprep.subr.bf16.mxu0 %v1250
      %2101 = vmatpush1.bf16.msra.mxu0 %v1249
      %2102 = vmatprep.subr.bf16.mxu0 %v1278
      %2103 = vmatpush1.bf16.msra.mxu0 %v1277
      %2104 = vmatprep.subr.bf16.mxu0 %v1306
      %2105 = vmatpush1.bf16.msra.mxu0 %v1305
      %2106 = vmatprep.subr.bf16.mxu0 %v1334
      %2107 = vmatpush1.bf16.msra.mxu0 %v1333
      %2108 = vmatprep.subr.bf16.mxu0 %v1362
      %2109 = vmatpush1.bf16.msra.mxu0 %v1361
      %2110 = vmatprep.subr.bf16.mxu0 %v1390
      %2111 = vmatpush1.bf16.msra.mxu0 %v1389
      %2112 = vmatprep.subr.bf16.mxu0 %v1418
      %2113 = vmatpush1.bf16.msra.mxu0 %v1417
      %2114 = vmatprep.subr.bf16.mxu0 %v1446
      %2115 = vmatpush1.bf16.msra.mxu0 %v1445
      %2116 = vmatprep.subr.bf16.mxu0 0
      %2117 = vmatpush1.bf16.msra.mxu0 0
      %2118 = vmatprep.subr.bf16.mxu0 0
      %2119 = vmatpush1.bf16.msra.mxu0 0
      %2120 = vmatprep.subr.bf16.mxu0 0
      %2121 = vmatpush1.bf16.msra.mxu0 0
      %2122 = vmatprep.subr.bf16.mxu0 0
      %2123 = vmatpush1.bf16.msra.mxu0 0
      %2124 = vmatprep.subr.bf16.mxu0 0
      %2125 = vmatpush1.bf16.msra.mxu0 0
      %2126 = vmatprep.subr.bf16.mxu0 0
      %2127 = vmatpush1.bf16.msra.mxu0 0
      %2128 = vmatprep.subr.bf16.mxu0 0
      %2129 = vmatpush1.bf16.msra.mxu0 0
      %2130 = vmatprep.mubr.bf16.mxu0 %v1709
      %2131 = vmatmul.mubr.bf16.gmra.mrb[0].mxu0 %v444
      %v2132 = vpop.f32.mrb[0].mxu0
      %v2133 = vadd.f32 %v431, %v2132
      %v2134 = vpop.f32.mrb[0].mxu0
      %v2135 = vadd.f32 %v431, %v2134
      %v2136 = vpop.f32.mrb[0].mxu0
      %v2137 = vadd.f32 %v436, %v2136
      %v2138 = vpop.f32.mrb[0].mxu0
      %v2139 = vadd.f32 %v436, %v2138
      %2140 = vdwg.mxu0
      %2141 = vmatprep.subr.bf16.mxu0 %v1224
      %2142 = vmatpush1.bf16.msra.mxu0 %v1223
      %2143 = vmatprep.subr.bf16.mxu0 %v1252
      %2144 = vmatpush1.bf16.msra.mxu0 %v1251
      %2145 = vmatprep.subr.bf16.mxu0 %v1280
      %2146 = vmatpush1.bf16.msra.mxu0 %v1279
      %2147 = vmatprep.subr.bf16.mxu0 %v1308
      %2148 = vmatpush1.bf16.msra.mxu0 %v1307
      %2149 = vmatprep.subr.bf16.mxu0 %v1336
      %2150 = vmatpush1.bf16.msra.mxu0 %v1335
      %2151 = vmatprep.subr.bf16.mxu0 %v1364
      %2152 = vmatpush1.bf16.msra.mxu0 %v1363
      %2153 = vmatprep.subr.bf16.mxu0 %v1392
      %2154 = vmatpush1.bf16.msra.mxu0 %v1391
      %2155 = vmatprep.subr.bf16.mxu0 %v1420
      %2156 = vmatpush1.bf16.msra.mxu0 %v1419
      %2157 = vmatprep.subr.bf16.mxu0 %v1448
      %2158 = vmatpush1.bf16.msra.mxu0 %v1447
      %2159 = vmatprep.subr.bf16.mxu0 0
      %2160 = vmatpush1.bf16.msra.mxu0 0
      %2161 = vmatprep.subr.bf16.mxu0 0
      %2162 = vmatpush1.bf16.msra.mxu0 0
      %2163 = vmatprep.subr.bf16.mxu0 0
      %2164 = vmatpush1.bf16.msra.mxu0 0
      %2165 = vmatprep.subr.bf16.mxu0 0
      %2166 = vmatpush1.bf16.msra.mxu0 0
      %2167 = vmatprep.subr.bf16.mxu0 0
      %2168 = vmatpush1.bf16.msra.mxu0 0
      %2169 = vmatprep.subr.bf16.mxu0 0
      %2170 = vmatpush1.bf16.msra.mxu0 0
      %2171 = vmatprep.subr.bf16.mxu0 0
      %2172 = vmatpush1.bf16.msra.mxu0 0
      %2173 = vmatprep.mubr.bf16.mxu0 %v1709
      %2174 = vmatmul.mubr.bf16.gmra.mrb[0].mxu0 %v444
      %v2175 = vpop.f32.mrb[0].mxu0
      %v2176 = vadd.f32 %v431, %v2175
      %v2177 = vpop.f32.mrb[0].mxu0
      %v2178 = vadd.f32 %v431, %v2177
      %v2179 = vpop.f32.mrb[0].mxu0
      %v2180 = vadd.f32 %v436, %v2179
      %v2181 = vpop.f32.mrb[0].mxu0
      %v2182 = vadd.f32 %v436, %v2181
      %2183 = vdwg.mxu0
      %2184 = vmatprep.subr.bf16.mxu0 %v1226
      %2185 = vmatpush1.bf16.msra.mxu0 %v1225
      %2186 = vmatprep.subr.bf16.mxu0 %v1254
      %2187 = vmatpush1.bf16.msra.mxu0 %v1253
      %2188 = vmatprep.subr.bf16.mxu0 %v1282
      %2189 = vmatpush1.bf16.msra.mxu0 %v1281
      %2190 = vmatprep.subr.bf16.mxu0 %v1310
      %2191 = vmatpush1.bf16.msra.mxu0 %v1309
      %2192 = vmatprep.subr.bf16.mxu0 %v1338
      %2193 = vmatpush1.bf16.msra.mxu0 %v1337
      %2194 = vmatprep.subr.bf16.mxu0 %v1366
      %2195 = vmatpush1.bf16.msra.mxu0 %v1365
      %2196 = vmatprep.subr.bf16.mxu0 %v1394
      %2197 = vmatpush1.bf16.msra.mxu0 %v1393
      %2198 = vmatprep.subr.bf16.mxu0 %v1422
      %2199 = vmatpush1.bf16.msra.mxu0 %v1421
      %2200 = vmatprep.subr.bf16.mxu0 %v1450
      %2201 = vmatpush1.bf16.msra.mxu0 %v1449
      %2202 = vmatprep.subr.bf16.mxu0 0
      %2203 = vmatpush1.bf16.msra.mxu0 0
      %2204 = vmatprep.subr.bf16.mxu0 0
      %2205 = vmatpush1.bf16.msra.mxu0 0
      %2206 = vmatprep.subr.bf16.mxu0 0
      %2207 = vmatpush1.bf16.msra.mxu0 0
      %2208 = vmatprep.subr.bf16.mxu0 0
      %2209 = vmatpush1.bf16.msra.mxu0 0
      %2210 = vmatprep.subr.bf16.mxu0 0
      %2211 = vmatpush1.bf16.msra.mxu0 0
      %2212 = vmatprep.subr.bf16.mxu0 0
      %2213 = vmatpush1.bf16.msra.mxu0 0
      %2214 = vmatprep.subr.bf16.mxu0 0
      %2215 = vmatpush1.bf16.msra.mxu0 0
      %2216 = vmatprep.mubr.bf16.mxu0 %v1709
      %2217 = vmatmul.mubr.bf16.gmra.mrb[0].mxu0 %v444
      %v2218 = vpop.f32.mrb[0].mxu0
      %v2219 = vadd.f32 %v431, %v2218
      %v2220 = vpop.f32.mrb[0].mxu0
      %v2221 = vadd.f32 %v431, %v2220
      %v2222 = vpop.f32.mrb[0].mxu0
      %v2223 = vadd.f32 %v436, %v2222
      %v2224 = vpop.f32.mrb[0].mxu0
      %v2225 = vadd.f32 %v436, %v2224
      %2226 = vdwg.mxu0
      %2227 = vmatprep.subr.bf16.mxu0 %v1228
      %2228 = vmatpush1.bf16.msra.mxu0 %v1227
      %2229 = vmatprep.subr.bf16.mxu0 %v1256
      %2230 = vmatpush1.bf16.msra.mxu0 %v1255
      %2231 = vmatprep.subr.bf16.mxu0 %v1284
      %2232 = vmatpush1.bf16.msra.mxu0 %v1283
      %2233 = vmatprep.subr.bf16.mxu0 %v1312
      %2234 = vmatpush1.bf16.msra.mxu0 %v1311
      %2235 = vmatprep.subr.bf16.mxu0 %v1340
      %2236 = vmatpush1.bf16.msra.mxu0 %v1339
      %2237 = vmatprep.subr.bf16.mxu0 %v1368
      %2238 = vmatpush1.bf16.msra.mxu0 %v1367
      %2239 = vmatprep.subr.bf16.mxu0 %v1396
      %2240 = vmatpush1.bf16.msra.mxu0 %v1395
      %2241 = vmatprep.subr.bf16.mxu0 %v1424
      %2242 = vmatpush1.bf16.msra.mxu0 %v1423
      %2243 = vmatprep.subr.bf16.mxu0 %v1452
      %2244 = vmatpush1.bf16.msra.mxu0 %v1451
      %2245 = vmatprep.subr.bf16.mxu0 0
      %2246 = vmatpush1.bf16.msra.mxu0 0
      %2247 = vmatprep.subr.bf16.mxu0 0
      %2248 = vmatpush1.bf16.msra.mxu0 0
      %2249 = vmatprep.subr.bf16.mxu0 0
      %2250 = vmatpush1.bf16.msra.mxu0 0
      %2251 = vmatprep.subr.bf16.mxu0 0
      %2252 = vmatpush1.bf16.msra.mxu0 0
      %2253 = vmatprep.subr.bf16.mxu0 0
      %2254 = vmatpush1.bf16.msra.mxu0 0
      %2255 = vmatprep.subr.bf16.mxu0 0
      %2256 = vmatpush1.bf16.msra.mxu0 0
      %2257 = vmatprep.subr.bf16.mxu0 0
      %2258 = vmatpush1.bf16.msra.mxu0 0
      %2259 = vmatprep.mubr.bf16.mxu0 %v1709
      %2260 = vmatmul.mubr.bf16.gmra.mrb[0].mxu0 %v444
      %v2261 = vpop.f32.mrb[0].mxu0
      %v2262 = vadd.f32 %v431, %v2261
      %v2263 = vpop.f32.mrb[0].mxu0
      %v2264 = vadd.f32 %v431, %v2263
      %v2265 = vpop.f32.mrb[0].mxu0
      %v2266 = vadd.f32 %v436, %v2265
      %v2267 = vpop.f32.mrb[0].mxu0
      %v2268 = vadd.f32 %v436, %v2267
      %2269 = vdwg.mxu0
      %2270 = vmatprep.subr.bf16.mxu0 %v1230
      %2271 = vmatpush1.bf16.msra.mxu0 %v1229
      %2272 = vmatprep.subr.bf16.mxu0 %v1258
      %2273 = vmatpush1.bf16.msra.mxu0 %v1257
      %2274 = vmatprep.subr.bf16.mxu0 %v1286
      %2275 = vmatpush1.bf16.msra.mxu0 %v1285
      %2276 = vmatprep.subr.bf16.mxu0 %v1314
      %2277 = vmatpush1.bf16.msra.mxu0 %v1313
      %2278 = vmatprep.subr.bf16.mxu0 %v1342
      %2279 = vmatpush1.bf16.msra.mxu0 %v1341
      %2280 = vmatprep.subr.bf16.mxu0 %v1370
      %2281 = vmatpush1.bf16.msra.mxu0 %v1369
      %2282 = vmatprep.subr.bf16.mxu0 %v1398
      %2283 = vmatpush1.bf16.msra.mxu0 %v1397
      %2284 = vmatprep.subr.bf16.mxu0 %v1426
      %2285 = vmatpush1.bf16.msra.mxu0 %v1425
      %2286 = vmatprep.subr.bf16.mxu0 %v1454
      %2287 = vmatpush1.bf16.msra.mxu0 %v1453
      %2288 = vmatprep.subr.bf16.mxu0 0
      %2289 = vmatpush1.bf16.msra.mxu0 0
      %2290 = vmatprep.subr.bf16.mxu0 0
      %2291 = vmatpush1.bf16.msra.mxu0 0
      %2292 = vmatprep.subr.bf16.mxu0 0
      %2293 = vmatpush1.bf16.msra.mxu0 0
      %2294 = vmatprep.subr.bf16.mxu0 0
      %2295 = vmatpush1.bf16.msra.mxu0 0
      %2296 = vmatprep.subr.bf16.mxu0 0
      %2297 = vmatpush1.bf16.msra.mxu0 0
      %2298 = vmatprep.subr.bf16.mxu0 0
      %2299 = vmatpush1.bf16.msra.mxu0 0
      %2300 = vmatprep.subr.bf16.mxu0 0
      %2301 = vmatpush1.bf16.msra.mxu0 0
      %2302 = vmatprep.mubr.bf16.mxu0 %v1709
      %2303 = vmatmul.mubr.bf16.gmra.mrb[0].mxu0 %v444
      %v2304 = vpop.f32.mrb[0].mxu0
      %v2305 = vadd.f32 %v431, %v2304
      %v2306 = vpop.f32.mrb[0].mxu0
      %v2307 = vadd.f32 %v431, %v2306
      %v2308 = vpop.f32.mrb[0].mxu0
      %v2309 = vadd.f32 %v436, %v2308
      %v2310 = vpop.f32.mrb[0].mxu0
      %v2311 = vadd.f32 %v436, %v2310
      %2312 = vdwg.mxu0
      %v2313 = vmax.f32 %v1746, 0.0
      %v2314 = vmax.f32 %v1748, 0.0
      %v2315 = vmax.f32 %v1789, 0.0
      %v2316 = vmax.f32 %v1791, 0.0
      %v2317 = vmax.f32 %v1832, 0.0
      %v2318 = vmax.f32 %v1834, 0.0
      %v2319 = vmax.f32 %v1875, 0.0
      %v2320 = vmax.f32 %v1877, 0.0
      %v2321 = vmax.f32 %v1918, 0.0
      %v2322 = vmax.f32 %v1920, 0.0
      %v2323 = vmax.f32 %v1961, 0.0
      %v2324 = vmax.f32 %v1963, 0.0
      %v2325 = vmax.f32 %v2004, 0.0
      %v2326 = vmax.f32 %v2006, 0.0
      %v2327 = vmax.f32 %v2047, 0.0
      %v2328 = vmax.f32 %v2049, 0.0
      %v2329 = vmax.f32 %v2090, 0.0
      %v2330 = vmax.f32 %v2092, 0.0
      %v2331 = vmax.f32 %v2133, 0.0
      %v2332 = vmax.f32 %v2135, 0.0
      %v2333 = vmax.f32 %v2176, 0.0
      %v2334 = vmax.f32 %v2178, 0.0
      %v2335 = vmax.f32 %v2219, 0.0
      %v2336 = vmax.f32 %v2221, 0.0
      %v2337 = vmax.f32 %v2262, 0.0
      %v2338 = vmax.f32 %v2264, 0.0
      %v2339 = vmax.f32 %v2305, 0.0
      %v2340 = vmax.f32 %v2307, 0.0
      %v2341 = vmax.f32 %v1750, 0.0
      %v2342 = vmax.f32 %v1752, 0.0
      %v2343 = vmax.f32 %v1793, 0.0
      %v2344 = vmax.f32 %v1795, 0.0
      %v2345 = vmax.f32 %v1836, 0.0
      %v2346 = vmax.f32 %v1838, 0.0
      %v2347 = vmax.f32 %v1879, 0.0
      %v2348 = vmax.f32 %v1881, 0.0
      %v2349 = vmax.f32 %v1922, 0.0
      %v2350 = vmax.f32 %v1924, 0.0
      %v2351 = vmax.f32 %v1965, 0.0
      %v2352 = vmax.f32 %v1967, 0.0
      %v2353 = vmax.f32 %v2008, 0.0
      %v2354 = vmax.f32 %v2010, 0.0
      %v2355 = vmax.f32 %v2051, 0.0
      %v2356 = vmax.f32 %v2053, 0.0
      %v2357 = vmax.f32 %v2094, 0.0
      %v2358 = vmax.f32 %v2096, 0.0
      %v2359 = vmax.f32 %v2137, 0.0
      %v2360 = vmax.f32 %v2139, 0.0
      %v2361 = vmax.f32 %v2180, 0.0
      %v2362 = vmax.f32 %v2182, 0.0
      %v2363 = vmax.f32 %v2223, 0.0
      %v2364 = vmax.f32 %v2225, 0.0
      %v2365 = vmax.f32 %v2266, 0.0
      %v2366 = vmax.f32 %v2268, 0.0
      %v2367 = vmax.f32 %v2309, 0.0
      %v2368 = vmax.f32 %v2311, 0.0
      %2369 = vset.pattern.permute.xlu0 1
      %2370 = vperm.xlu0 %2369, %v426
      %v2371 = vpop.permute.xlu0 %2370
      %2373 = vset.pattern.permute.xlu0 1
      %2374 = vperm.xlu0 %2373, %v427
      %v2375 = vpop.permute.xlu0 %2374
      %v2377 = vmul.f32 %v2313, %v2371
      %v2378 = vmul.f32 %v2314, %v2371
      %v2379 = vmul.f32 %v2315, %v2371
      %v2380 = vmul.f32 %v2316, %v2371
      %v2381 = vmul.f32 %v2317, %v2371
      %v2382 = vmul.f32 %v2318, %v2371
      %v2383 = vmul.f32 %v2319, %v2371
      %v2384 = vmul.f32 %v2320, %v2371
      %v2385 = vmul.f32 %v2321, %v2371
      %v2386 = vmul.f32 %v2322, %v2371
      %v2387 = vmul.f32 %v2323, %v2371
      %v2388 = vmul.f32 %v2324, %v2371
      %v2389 = vmul.f32 %v2325, %v2371
      %v2390 = vmul.f32 %v2326, %v2371
      %v2391 = vmul.f32 %v2327, %v2371
      %v2392 = vmul.f32 %v2328, %v2371
      %v2393 = vmul.f32 %v2329, %v2371
      %v2394 = vmul.f32 %v2330, %v2371
      %v2395 = vmul.f32 %v2331, %v2371
      %v2396 = vmul.f32 %v2332, %v2371
      %v2397 = vmul.f32 %v2333, %v2371
      %v2398 = vmul.f32 %v2334, %v2371
      %v2399 = vmul.f32 %v2335, %v2371
      %v2400 = vmul.f32 %v2336, %v2371
      %v2401 = vmul.f32 %v2337, %v2371
      %v2402 = vmul.f32 %v2338, %v2371
      %v2403 = vmul.f32 %v2339, %v2371
      %v2404 = vmul.f32 %v2340, %v2371
      %v2405 = vmul.f32 %v2341, %v2375
      %v2406 = vmul.f32 %v2342, %v2375
      %v2407 = vmul.f32 %v2343, %v2375
      %v2408 = vmul.f32 %v2344, %v2375
      %v2409 = vmul.f32 %v2345, %v2375
      %v2410 = vmul.f32 %v2346, %v2375
      %v2411 = vmul.f32 %v2347, %v2375
      %v2412 = vmul.f32 %v2348, %v2375
      %v2413 = vmul.f32 %v2349, %v2375
      %v2414 = vmul.f32 %v2350, %v2375
      %v2415 = vmul.f32 %v2351, %v2375
      %v2416 = vmul.f32 %v2352, %v2375
      %v2417 = vmul.f32 %v2353, %v2375
      %v2418 = vmul.f32 %v2354, %v2375
      %v2419 = vmul.f32 %v2355, %v2375
      %v2420 = vmul.f32 %v2356, %v2375
      %v2421 = vmul.f32 %v2357, %v2375
      %v2422 = vmul.f32 %v2358, %v2375
      %v2423 = vmul.f32 %v2359, %v2375
      %v2424 = vmul.f32 %v2360, %v2375
      %v2425 = vmul.f32 %v2361, %v2375
      %v2426 = vmul.f32 %v2362, %v2375
      %v2427 = vmul.f32 %v2363, %v2375
      %v2428 = vmul.f32 %v2364, %v2375
      %v2429 = vmul.f32 %v2365, %v2375
      %v2430 = vmul.f32 %v2366, %v2375
      %v2431 = vmul.f32 %v2367, %v2375
      %v2432 = vmul.f32 %v2368, %v2375
      %2433 = vset.pattern.permute.xlu0 2
      %2434 = vperm.xlu0 %2433, %v426
      %v2435 = vpop.permute.xlu0 %2434
      %2437 = vset.pattern.permute.xlu0 2
      %2438 = vperm.xlu0 %2437, %v427
      %v2439 = vpop.permute.xlu0 %2438
      %v2441 = vadd.f32 %v2377, %v2435
      %v2442 = vadd.f32 %v2378, %v2435
      %v2443 = vadd.f32 %v2379, %v2435
      %v2444 = vadd.f32 %v2380, %v2435
      %v2445 = vadd.f32 %v2381, %v2435
      %v2446 = vadd.f32 %v2382, %v2435
      %v2447 = vadd.f32 %v2383, %v2435
      %v2448 = vadd.f32 %v2384, %v2435
      %v2449 = vadd.f32 %v2385, %v2435
      %v2450 = vadd.f32 %v2386, %v2435
      %v2451 = vadd.f32 %v2387, %v2435
      %v2452 = vadd.f32 %v2388, %v2435
      %v2453 = vadd.f32 %v2389, %v2435
      %v2454 = vadd.f32 %v2390, %v2435
      %v2455 = vadd.f32 %v2391, %v2435
      %v2456 = vadd.f32 %v2392, %v2435
      %v2457 = vadd.f32 %v2393, %v2435
      %v2458 = vadd.f32 %v2394, %v2435
      %v2459 = vadd.f32 %v2395, %v2435
      %v2460 = vadd.f32 %v2396, %v2435
      %v2461 = vadd.f32 %v2397, %v2435
      %v2462 = vadd.f32 %v2398, %v2435
      %v2463 = vadd.f32 %v2399, %v2435
      %v2464 = vadd.f32 %v2400, %v2435
      %v2465 = vadd.f32 %v2401, %v2435
      %v2466 = vadd.f32 %v2402, %v2435
      %v2467 = vadd.f32 %v2403, %v2435
      %v2468 = vadd.f32 %v2404, %v2435
      %v2469 = vadd.f32 %v2405, %v2439
      %v2470 = vadd.f32 %v2406, %v2439
      %v2471 = vadd.f32 %v2407, %v2439
      %v2472 = vadd.f32 %v2408, %v2439
      %v2473 = vadd.f32 %v2409, %v2439
      %v2474 = vadd.f32 %v2410, %v2439
      %v2475 = vadd.f32 %v2411, %v2439
      %v2476 = vadd.f32 %v2412, %v2439
      %v2477 = vadd.f32 %v2413, %v2439
      %v2478 = vadd.f32 %v2414, %v2439
      %v2479 = vadd.f32 %v2415, %v2439
      %v2480 = vadd.f32 %v2416, %v2439
      %v2481 = vadd.f32 %v2417, %v2439
      %v2482 = vadd.f32 %v2418, %v2439
      %v2483 = vadd.f32 %v2419, %v2439
      %v2484 = vadd.f32 %v2420, %v2439
      %v2485 = vadd.f32 %v2421, %v2439
      %v2486 = vadd.f32 %v2422, %v2439
      %v2487 = vadd.f32 %v2423, %v2439
      %v2488 = vadd.f32 %v2424, %v2439
      %v2489 = vadd.f32 %v2425, %v2439
      %v2490 = vadd.f32 %v2426, %v2439
      %v2491 = vadd.f32 %v2427, %v2439
      %v2492 = vadd.f32 %v2428, %v2439
      %v2493 = vadd.f32 %v2429, %v2439
      %v2494 = vadd.f32 %v2430, %v2439
      %v2495 = vadd.f32 %v2431, %v2439
      %v2496 = vadd.f32 %v2432, %v2439
      %v2497 = vmax.f32 %v2441, %v2448
      %v2498 = vmax.f32 %v2442, %v2449
      %v2499 = vmax.f32 %v2443, %v2450
      %v2500 = vmax.f32 %v2444, %v2451
      %v2501 = vmax.f32 %v2445, %v2452
      %v2502 = vmax.f32 %v2446, %v2453
      %v2503 = vmax.f32 %v2447, %v2454
      %v2504 = vmax.f32 %v2469, %v2476
      %v2505 = vmax.f32 %v2470, %v2477
      %v2506 = vmax.f32 %v2471, %v2478
      %v2507 = vmax.f32 %v2472, %v2479
      %v2508 = vmax.f32 %v2473, %v2480
      %v2509 = vmax.f32 %v2474, %v2481
      %v2510 = vmax.f32 %v2475, %v2482
      %v2511 = vmax.f32 %v2497, %v2455
      %v2512 = vmax.f32 %v2498, %v2456
      %v2513 = vmax.f32 %v2499, %v2457
      %v2514 = vmax.f32 %v2500, %v2458
      %v2515 = vmax.f32 %v2501, %v2459
      %v2516 = vmax.f32 %v2502, %v2460
      %v2517 = vmax.f32 %v2503, %v2461
      %v2518 = vmax.f32 %v2504, %v2483
      %v2519 = vmax.f32 %v2505, %v2484
      %v2520 = vmax.f32 %v2506, %v2485
      %v2521 = vmax.f32 %v2507, %v2486
      %v2522 = vmax.f32 %v2508, %v2487
      %v2523 = vmax.f32 %v2509, %v2488
      %v2524 = vmax.f32 %v2510, %v2489
      %v2525 = vmax.f32 %v2511, %v2462
      %v2526 = vmax.f32 %v2512, %v2463
      %v2527 = vmax.f32 %v2513, %v2464
      %v2528 = vmax.f32 %v2514, %v2465
      %v2529 = vmax.f32 %v2515, %v2466
      %v2530 = vmax.f32 %v2516, %v2467
      %v2531 = vmax.f32 %v2517, %v2468
      %v2532 = vmax.f32 %v2518, %v2490
      %v2533 = vmax.f32 %v2519, %v2491
      %v2534 = vmax.f32 %v2520, %v2492
      %v2535 = vmax.f32 %v2521, %v2493
      %v2536 = vmax.f32 %v2522, %v2494
      %v2537 = vmax.f32 %v2523, %v2495
      %v2538 = vmax.f32 %v2524, %v2496
      %v2539 = vpack.c.bf16 %v2532, %v2525
      %v2540 = vpack.c.bf16 %v2533, %v2526
      %v2541 = vpack.c.bf16 %v2534, %v2527
      %v2542 = vpack.c.bf16 %v2535, %v2528
      %v2543 = vpack.c.bf16 %v2536, %v2529
      %v2544 = vpack.c.bf16 %v2537, %v2530
      %v2545 = vpack.c.bf16 %v2538, %v2531
      %v2553 = vunpack.c.l.b16 %v2539
      %v2554 = vunpack.c.l.b16 %v2540
      %v2555 = vunpack.c.l.b16 %v2541
      %v2556 = vunpack.c.l.b16 %v2542
      %v2557 = vunpack.c.l.b16 %v2543
      %v2558 = vunpack.c.l.b16 %v2544
      %v2559 = vunpack.c.l.b16 %v2545
      %v2560 = vunpack.c.h.b16 %v2539
      %v2561 = vunpack.c.h.b16 %v2540
      %v2562 = vunpack.c.h.b16 %v2541
      %v2563 = vunpack.c.h.b16 %v2542
      %v2564 = vunpack.c.h.b16 %v2543
      %v2565 = vunpack.c.h.b16 %v2544
      %v2566 = vunpack.c.h.b16 %v2545
      %v2567 = vpack.c.b16 %v2554, %v2553
      %v2568 = vpack.c.b16 %v2556, %v2555
      %v2569 = vpack.c.b16 %v2558, %v2557
      %v2570 = vpack.c.b16 %v2559, %v2559
      %v2571 = vpack.c.b16 %v2561, %v2560
      %v2572 = vpack.c.b16 %v2563, %v2562
      %v2573 = vpack.c.b16 %v2565, %v2564
      %v2574 = vpack.c.b16 %v2566, %v2566
      %2583 = vst [vmem:[%s170] sm:$0xff] %v2567
      %2584 = vst [vmem:[%s170 + $0x8] sm:$0xff] %v2568
      %2585 = vst [vmem:[%s170 + $0x10] sm:$0xff] %v2569
      %vm2586 = vcmask 125952
      %2587 = vst.msk [vmem:[%s170 + $0x18] sm:$0xf] %vm2586, %v2570
      %2588 = vst [vmem:[%s170 + $0x1c] sm:$0xff] %v2571
      %2589 = vst [vmem:[%s170 + $0x24] sm:$0xff] %v2572
      %2590 = vst [vmem:[%s170 + $0x2c] sm:$0xff] %v2573
      %2591 = vst.msk [vmem:[%s170 + $0x34] sm:$0xf] %vm2586, %v2574
      %p2592 = scmp.lt.s32.totalorder %s14, 1
      %s2593 = scalar_select %p2592, %s14, 1
      %s2594 = smul.addr %s2593, 14
      %s2595 = smul.addr %s2594, 4
      %s2596 = scalar_lea.vmem %s3, %s2595
      // Predicated region
      $region33: #{module1_forward.6} parent=31 // pred_check
        %p2597 = pneg %p100
      $region34: #{module1_forward.6} parent=31 // pred_check_branch
        %2599 = sbr.rel (%p2597) target = $region36
      $region35: #{module1_forward.6} parent=31 // pred_region
        _
      $region36: #{module1_forward.6} parent=31 // pred_fallthru
        _
    $region32: #{module1_forward.6} parent=5 // pred_fallthru
      _
    %p2600 = scmp.le.s32.totalorder 2, %s9
    // Predicated region
    $region37: #{module1_forward.6} parent=5 // pred_check
      %p2601 = pneg %p2600
    $region38: #{module1_forward.6} parent=5 // pred_check_branch
      %2603 = sbr.rel (%p2601) target = $region40
    $region39: #{module1_forward.6} parent=5 // pred_region
      %s2604 = ssub.s32 %s9, 2
      // Predicated region
      $region41: #{module1_forward.6} parent=39 // pred_check
        %p2605 = pneg %p106
      $region42: #{module1_forward.6} parent=39 // pred_check_branch
        %2607 = sbr.rel (%p2605) target = $region44
      $region43: #{module1_forward.6} parent=39 // pred_region
        %p2608 = scmp.lt.s32.totalorder %s15, 1
        %s2609 = scalar_select %p2608, %s15, 1
        %s2610 = smul.addr %s2609, 14
        %s2611 = smul.addr %s2610, 4
        %s2612 = scalar_lea.vmem %s3, %s2611
      $region44: #{module1_forward.6} parent=39 // pred_fallthru
        _
    $region40: #{module1_forward.6} parent=5 // pred_fallthru
      _
  $region6: #{module1_forward.6} parent=0 // loop_footer
    %s13 = sadd.s32 1, %s9
  $region7: #{module1_forward.6} parent=0 // loop_footer_branch
    %8 = sbr.rel target = $region3
  $region8: #{module1_forward.6} parent=0 // loop_exit
    _

// kernel: module1_forward.7
$region0: #{module1_forward.7}
  #allocation0 [shape = 'u32[]', space=smem, size = 0x4, offset = 0x4, fixed_abs, tag = 'smem constant byte address 0x4 - core index']
  #allocation1 [shape = 'u32[144,128]{1,0:T(1,128)}', space=vmem, size = 0x12000, scoped, tag = 'internal scratch']
  %s0 = inlined_call_operand.vmem [shape: bf16[2,144,768], index: 0, kind: input, shape index: {}]
  %s1 = inlined_call_operand.vmem [shape: bf16[32,144], index: 1, kind: input, shape index: {}]
  %s2 = inlined_call_operand.vmem [shape: f32[32,3], index: 2, kind: input, shape index: {}]
  %s3 = inlined_call_operand.vmem [shape: bf16[2,32,676], index: 3, kind: output, shape index: {}]
  %s4 = sld [smem:[#allocation0]]
  $region45: #{module1_forward.7} parent=0
    _
  %s6 = ssub.s32 1, %s4
  %s7 = scalar_select 0, %s6, %s4
  loop: start=0, step=1, limit=4
  $region2: #{module1_forward.7} parent=0 // loop_pre_header
    _
  $region3: #{module1_forward.7} parent=0 // loop_header
    %s9 = sphi 0, %s13
    %p10 = scmp.ge.s32.totalorder %s9, 4
    %s19 = sphi 0, %s21
    %s22 = sphi 0, %s19
    %s23 = sphi 0, %s22
    %s39 = sphi 0, %s23
    %s43 = sphi 0, %s43
    %s45 = sphi 0, %s43
    %s46 = sphi 0, %s45
    %s60 = sphi 0, %s46
    %s64 = sphi 0, %s64
    %s66 = sphi 0, %s64
    %s67 = sphi 0, %s66
    %s81 = sphi 0, %s67
    %s87 = sphi 0, %s89
    %s90 = sphi 0, %s87
    %s91 = sphi 0, %s90
    %s107 = sphi 0, %s91
  $region4: #{module1_forward.7} parent=0 // loop_header_branch
    %12 = sbr.rel (%p10) target = $region8
  $region5: #{module1_forward.7} parent=0 // loop_body
    %s14 = ssub.s32 %s9, 1
    %s15 = ssub.s32 %s9, 2
    %s16 = sadd.s32 %s9, 1
    %s17 = ssub.s32 %s9, %s16
    %p18 = scmp.eq.s32.totalorder %s17, 0
    %s20 = sadd.s32 %s19, 1
    %s21 = scalar_select %p18, %s19, %s20
    %p24 = pneg %p18
    %p25 = scmp.eq.s32.totalorder %s9, 1
    %p26 = por %p24, %p25
    %p27 = scmp.ne.s32.totalorder %s19, %s22
    %p28 = scmp.eq.s32.totalorder %s9, 0
    %p29 = por %p27, %p28
    %p30 = scmp.ne.s32.totalorder %s19, %s22
    %p31 = scmp.eq.s32.totalorder %s14, 1
    %p32 = por %p30, %p31
    %p33 = scmp.ne.s32.totalorder %s22, %s23
    %p34 = scmp.eq.s32.totalorder %s14, 0
    %p35 = por %p33, %p34
    %p36 = scmp.ne.s32.totalorder %s22, %s23
    %p37 = scmp.eq.s32.totalorder %s15, 1
    %p38 = por %p36, %p37
    %p40 = scmp.ne.s32.totalorder %s23, %s39
    %p41 = scmp.eq.s32.totalorder %s15, 0
    %p42 = por %p40, %p41
    %s44 = sadd.s32 %s43, 1
    %p47 = scmp.eq.s32.totalorder %s9, 1
    %p48 = scmp.ne.s32.totalorder %s43, %s45
    %p49 = scmp.eq.s32.totalorder %s9, 0
    %p50 = por %p48, %p49
    %p51 = scmp.ne.s32.totalorder %s43, %s45
    %p52 = scmp.eq.s32.totalorder %s14, 1
    %p53 = por %p51, %p52
    %p54 = scmp.ne.s32.totalorder %s45, %s46
    %p55 = scmp.eq.s32.totalorder %s14, 0
    %p56 = por %p54, %p55
    %p57 = scmp.ne.s32.totalorder %s45, %s46
    %p58 = scmp.eq.s32.totalorder %s15, 1
    %p59 = por %p57, %p58
    %p61 = scmp.ne.s32.totalorder %s46, %s60
    %p62 = scmp.eq.s32.totalorder %s15, 0
    %p63 = por %p61, %p62
    %s65 = sadd.s32 %s64, 1
    %p68 = scmp.eq.s32.totalorder %s9, 1
    %p69 = scmp.ne.s32.totalorder %s64, %s66
    %p70 = scmp.eq.s32.totalorder %s9, 0
    %p71 = por %p69, %p70
    %p72 = scmp.ne.s32.totalorder %s64, %s66
    %p73 = scmp.eq.s32.totalorder %s14, 1
    %p74 = por %p72, %p73
    %p75 = scmp.ne.s32.totalorder %s66, %s67
    %p76 = scmp.eq.s32.totalorder %s14, 0
    %p77 = por %p75, %p76
    %p78 = scmp.ne.s32.totalorder %s66, %s67
    %p79 = scmp.eq.s32.totalorder %s15, 1
    %p80 = por %p78, %p79
    %p82 = scmp.ne.s32.totalorder %s67, %s81
    %p83 = scmp.eq.s32.totalorder %s15, 0
    %p84 = por %p82, %p83
    %s85 = ssub.s32 %s9, %s16
    %p86 = scmp.eq.s32.totalorder %s85, 0
    %s88 = sadd.s32 %s87, 1
    %s89 = scalar_select %p86, %s87, %s88
    %p92 = pneg %p86
    %p93 = scmp.eq.s32.totalorder %s9, 1
    %p94 = por %p92, %p93
    %p95 = scmp.ne.s32.totalorder %s87, %s90
    %p96 = scmp.eq.s32.totalorder %s9, 0
    %p97 = por %p95, %p96
    %p98 = scmp.ne.s32.totalorder %s87, %s90
    %p99 = scmp.eq.s32.totalorder %s14, 1
    %p100 = por %p98, %p99
    %p101 = scmp.ne.s32.totalorder %s90, %s91
    %p102 = scmp.eq.s32.totalorder %s14, 0
    %p103 = por %p101, %p102
    %p104 = scmp.ne.s32.totalorder %s90, %s91
    %p105 = scmp.eq.s32.totalorder %s15, 1
    %p106 = por %p104, %p105
    %p108 = scmp.ne.s32.totalorder %s91, %s107
    %p109 = scmp.eq.s32.totalorder %s15, 0
    %p110 = por %p108, %p109
    %p111 = scmp.le.s32.totalorder 1, %s9
    %p112 = scmp.lt.s32.totalorder %s9, 3
    %p113 = pnand %p111, %p112
    %p114 = pneg %p113
    // Predicated region
    $region9: #{module1_forward.7} parent=5 // pred_check
      _
    $region10: #{module1_forward.7} parent=5 // pred_check_branch
      %116 = sbr.rel (%p113) target = $region12
    $region11: #{module1_forward.7} parent=5 // pred_region
      %s117 = ssub.s32 %s9, 1
      // Predicated region
      $region13: #{module1_forward.7} parent=11 // pred_check
        %p118 = pneg %p56
      $region14: #{module1_forward.7} parent=11 // pred_check_branch
        %120 = sbr.rel (%p118) target = $region16
      $region15: #{module1_forward.7} parent=11 // pred_region
        _
      $region16: #{module1_forward.7} parent=11 // pred_fallthru
        _
      // Predicated region
      $region17: #{module1_forward.7} parent=11 // pred_check
        %p121 = pneg %p77
      $region18: #{module1_forward.7} parent=11 // pred_check_branch
        %123 = sbr.rel (%p121) target = $region20
      $region19: #{module1_forward.7} parent=11 // pred_region
        _
      $region20: #{module1_forward.7} parent=11 // pred_fallthru
        _
    $region12: #{module1_forward.7} parent=5 // pred_fallthru
      _
    %p124 = scmp.lt.s32.totalorder %s9, 2
    // Predicated region
    $region21: #{module1_forward.7} parent=5 // pred_check
      %p125 = pneg %p124
    $region22: #{module1_forward.7} parent=5 // pred_check_branch
      %127 = sbr.rel (%p125) target = $region24
    $region23: #{module1_forward.7} parent=5 // pred_region
      // Predicated region
      $region25: #{module1_forward.7} parent=23 // pred_check
        %p128 = pneg %p29
      $region26: #{module1_forward.7} parent=23 // pred_check_branch
        %130 = sbr.rel (%p128) target = $region28
      $region27: #{module1_forward.7} parent=23 // pred_region
        %p131 = scmp.lt.s32.totalorder %s9, 1
        %s132 = scalar_select %p131, %s9, 1
        %s133 = smul.addr %s132, 108
        %s134 = smul.addr %s133, 4
        %s135 = scalar_lea.vmem %s0, %s134
      $region28: #{module1_forward.7} parent=23 // pred_fallthru
        _
    $region24: #{module1_forward.7} parent=5 // pred_fallthru
      _
    %p136 = scmp.le.s32.totalorder 1, %s9
    %p137 = scmp.lt.s32.totalorder %s9, 3
    %p138 = pnand %p136, %p137
    %p139 = pneg %p138
    // Predicated region
    $region29: #{module1_forward.7} parent=5 // pred_check
      _
    $region30: #{module1_forward.7} parent=5 // pred_check_branch
      %141 = sbr.rel (%p138) target = $region32
    $region31: #{module1_forward.7} parent=5 // pred_region
      %s142 = ssub.s32 %s9, 1
      %p143 = scmp.lt.s32.totalorder %s14, 1
      %s144 = scalar_select %p143, %s14, 1
      %s145 = smul.addr %s144, 108
      %s146 = smul.addr %s145, 4
      %s147 = scalar_lea.vmem %s0, %s146
      %p148 = pneg %p35
      %p149 = pneg %p32
      %p150 = pneg %p56
      %p151 = pneg %p53
      %p152 = pneg %p77
      %p153 = pneg %p74
      %p154 = pneg %p103
      %p155 = pneg %p100
      %p156 = scmp.lt.s32.totalorder %s14, 1
      %s157 = scalar_select %p156, %s14, 1
      %s158 = smul.addr %s157, 24
      %s159 = smul.addr %s158, 4
      %s160 = scalar_lea.vmem %s3, %s159
      %p161 = scmp.lt.s32.totalorder %s14, 1
      %s162 = scalar_select %p161, %s14, 1
      %s163 = smul.addr %s162, 108
      %s164 = smul.addr %s163, 4
      %s165 = scalar_lea.vmem %s0, %s164
      %p166 = scmp.lt.s32.totalorder %s14, 1
      %s167 = scalar_select %p166, %s14, 1
      %s168 = smul.addr %s167, 24
      %s169 = smul.addr %s168, 4
      %s170 = scalar_lea.vmem %s3, %s169
      %v172 = vld [vmem:[%s1] sm:$0xff]
      %v173 = vld [vmem:[%s1 + $0x8] sm:$0xff]
      %v174 = vld [vmem:[%s1 + $0x10] sm:$0xff]
      %v175 = vld [vmem:[%s1 + $0x18] sm:$0xff]
      %v176 = vld [vmem:[%s165] sm:$0xff]
      %v177 = vld [vmem:[%s165 + $0x8] sm:$0xff]
      %v178 = vld [vmem:[%s165 + $0x10] sm:$0xff]
      %v179 = vld [vmem:[%s165 + $0x18] sm:$0xff]
      %v180 = vld [vmem:[%s165 + $0x20] sm:$0xff]
      %v181 = vld [vmem:[%s165 + $0x28] sm:$0xff]
      %v182 = vld [vmem:[%s165 + $0x30] sm:$0xff]
      %v183 = vld [vmem:[%s165 + $0x38] sm:$0xff]
      %v184 = vld [vmem:[%s165 + $0x40] sm:$0xff]
      %v185 = vld [vmem:[%s165 + $0x48] sm:$0xff]
      %v186 = vld [vmem:[%s165 + $0x50] sm:$0xff]
      %v187 = vld [vmem:[%s165 + $0x58] sm:$0xff]
      %v188 = vld [vmem:[%s165 + $0x60] sm:$0xff]
      %v189 = vld [vmem:[%s165 + $0x68] sm:$0xff]
      %v190 = vld [vmem:[%s165 + $0x70] sm:$0xff]
      %v191 = vld [vmem:[%s165 + $0x78] sm:$0xff]
      %v192 = vld [vmem:[%s165 + $0x80] sm:$0xff]
      %v193 = vld [vmem:[%s165 + $0x88] sm:$0xff]
      %v194 = vld [vmem:[%s165 + $0x90] sm:$0xff]
      %v195 = vld [vmem:[%s165 + $0x98] sm:$0xff]
      %v196 = vld [vmem:[%s165 + $0xa0] sm:$0xff]
      %v197 = vld [vmem:[%s165 + $0xa8] sm:$0xff]
      %v198 = vld [vmem:[%s165 + $0xb0] sm:$0xff]
      %v199 = vld [vmem:[%s165 + $0xb8] sm:$0xff]
      %v200 = vld [vmem:[%s165 + $0xc0] sm:$0xff]
      %v201 = vld [vmem:[%s165 + $0xc8] sm:$0xff]
      %v202 = vld [vmem:[%s165 + $0xd0] sm:$0xff]
      %v203 = vld [vmem:[%s165 + $0xd8] sm:$0xff]
      %v204 = vld [vmem:[%s165 + $0xe0] sm:$0xff]
      %v205 = vld [vmem:[%s165 + $0xe8] sm:$0xff]
      %v206 = vld [vmem:[%s165 + $0xf0] sm:$0xff]
      %v207 = vld [vmem:[%s165 + $0xf8] sm:$0xff]
      %v208 = vld [vmem:[%s165 + $0x100] sm:$0xff]
      %v209 = vld [vmem:[%s165 + $0x108] sm:$0xff]
      %v210 = vld [vmem:[%s165 + $0x110] sm:$0xff]
      %v211 = vld [vmem:[%s165 + $0x118] sm:$0xff]
      %v212 = vld [vmem:[%s165 + $0x120] sm:$0xff]
      %v213 = vld [vmem:[%s165 + $0x128] sm:$0xff]
      %v214 = vld [vmem:[%s165 + $0x130] sm:$0xff]
      %v215 = vld [vmem:[%s165 + $0x138] sm:$0xff]
      %v216 = vld [vmem:[%s165 + $0x140] sm:$0xff]
      %v217 = vld [vmem:[%s165 + $0x148] sm:$0xff]
      %v218 = vld [vmem:[%s165 + $0x150] sm:$0xff]
      %v219 = vld [vmem:[%s165 + $0x158] sm:$0xff]
      %v220 = vld [vmem:[%s165 + $0x160] sm:$0xff]
      %v221 = vld [vmem:[%s165 + $0x168] sm:$0xff]
      %v222 = vld [vmem:[%s165 + $0x170] sm:$0xff]
      %v223 = vld [vmem:[%s165 + $0x178] sm:$0xff]
      %v224 = vld [vmem:[%s165 + $0x180] sm:$0xff]
      %v225 = vld [vmem:[%s165 + $0x188] sm:$0xff]
      %v226 = vld [vmem:[%s165 + $0x190] sm:$0xff]
      %v227 = vld [vmem:[%s165 + $0x198] sm:$0xff]
      %v228 = vld [vmem:[%s165 + $0x1a0] sm:$0xff]
      %v229 = vld [vmem:[%s165 + $0x1a8] sm:$0xff]
      %v230 = vld [vmem:[%s2] sm:$0xff]
      %v231 = vld [vmem:[%s2 + $0x8] sm:$0xff]
      %v232 = vld [vmem:[%s2 + $0x10] sm:$0xff]
      %v233 = vld [vmem:[%s2 + $0x18] sm:$0xff]
      %235 = vset.pattern.permute.xlu0 0
      %236 = vperm.xlu0 %235, %v230
      %v237 = vpop.permute.xlu0 %236
      %240 = vset.pattern.permute.xlu0 0
      %241 = vperm.xlu0 %240, %v231
      %v242 = vpop.permute.xlu0 %241
      %245 = vset.pattern.permute.xlu0 0
      %246 = vperm.xlu0 %245, %v232
      %v247 = vpop.permute.xlu0 %246
      %250 = vset.pattern.permute.xlu0 0
      %251 = vperm.xlu0 %250, %v233
      %v252 = vpop.permute.xlu0 %251
      %v258 = vunpack.c.l.b16 %v172
      %v259 = vunpack.c.h.b16 %v172
      %v260 = vunpack.c.l.b16 %v173
      %v261 = vunpack.c.h.b16 %v173
      %v262 = vunpack.c.l.b16 %v174
      %v263 = vunpack.c.h.b16 %v174
      %v264 = vunpack.c.l.b16 %v175
      %v265 = vunpack.c.h.b16 %v175
      %v266 = vpack.c.b16 %v260, %v258
      %v267 = vpack.c.b16 %v261, %v259
      %v268 = vpack.c.b16 %v264, %v262
      %v269 = vpack.c.b16 %v265, %v263
      %v326 = vunpack.c.l.b16 %v176
      %v327 = vunpack.c.h.b16 %v176
      %v328 = vunpack.c.l.b16 %v177
      %v329 = vunpack.c.h.b16 %v177
      %v330 = vunpack.c.l.b16 %v178
      %v331 = vunpack.c.h.b16 %v178
      %v332 = vunpack.c.l.b16 %v179
      %v333 = vunpack.c.h.b16 %v179
      %v334 = vunpack.c.l.b16 %v180
      %v335 = vunpack.c.h.b16 %v180
      %v336 = vunpack.c.l.b16 %v181
      %v337 = vunpack.c.h.b16 %v181
      %v338 = vunpack.c.l.b16 %v182
      %v339 = vunpack.c.h.b16 %v182
      %v340 = vunpack.c.l.b16 %v183
      %v341 = vunpack.c.h.b16 %v183
      %v342 = vunpack.c.l.b16 %v184
      %v343 = vunpack.c.h.b16 %v184
      %v344 = vunpack.c.l.b16 %v185
      %v345 = vunpack.c.h.b16 %v185
      %v346 = vunpack.c.l.b16 %v186
      %v347 = vunpack.c.h.b16 %v186
      %v348 = vunpack.c.l.b16 %v187
      %v349 = vunpack.c.h.b16 %v187
      %v350 = vunpack.c.l.b16 %v188
      %v351 = vunpack.c.h.b16 %v188
      %v352 = vunpack.c.l.b16 %v189
      %v353 = vunpack.c.h.b16 %v189
      %v354 = vunpack.c.l.b16 %v190
      %v355 = vunpack.c.h.b16 %v190
      %v356 = vunpack.c.l.b16 %v191
      %v357 = vunpack.c.h.b16 %v191
      %v358 = vunpack.c.l.b16 %v192
      %v359 = vunpack.c.h.b16 %v192
      %v360 = vunpack.c.l.b16 %v193
      %v361 = vunpack.c.h.b16 %v193
      %v362 = vunpack.c.l.b16 %v194
      %v363 = vunpack.c.h.b16 %v194
      %v364 = vunpack.c.l.b16 %v195
      %v365 = vunpack.c.h.b16 %v195
      %v366 = vunpack.c.l.b16 %v196
      %v367 = vunpack.c.h.b16 %v196
      %v368 = vunpack.c.l.b16 %v197
      %v369 = vunpack.c.h.b16 %v197
      %v370 = vunpack.c.l.b16 %v198
      %v371 = vunpack.c.h.b16 %v198
      %v372 = vunpack.c.l.b16 %v199
      %v373 = vunpack.c.h.b16 %v199
      %v374 = vunpack.c.l.b16 %v200
      %v375 = vunpack.c.h.b16 %v200
      %v376 = vunpack.c.l.b16 %v201
      %v377 = vunpack.c.h.b16 %v201
      %v378 = vunpack.c.l.b16 %v202
      %v379 = vunpack.c.h.b16 %v202
      %v380 = vunpack.c.l.b16 %v203
      %v381 = vunpack.c.h.b16 %v203
      %v382 = vunpack.c.l.b16 %v204
      %v383 = vunpack.c.h.b16 %v204
      %v384 = vunpack.c.l.b16 %v205
      %v385 = vunpack.c.h.b16 %v205
      %v386 = vunpack.c.l.b16 %v206
      %v387 = vunpack.c.h.b16 %v206
      %v388 = vunpack.c.l.b16 %v207
      %v389 = vunpack.c.h.b16 %v207
      %v390 = vunpack.c.l.b16 %v208
      %v391 = vunpack.c.h.b16 %v208
      %v392 = vunpack.c.l.b16 %v209
      %v393 = vunpack.c.h.b16 %v209
      %v394 = vunpack.c.l.b16 %v210
      %v395 = vunpack.c.h.b16 %v210
      %v396 = vunpack.c.l.b16 %v211
      %v397 = vunpack.c.h.b16 %v211
      %v398 = vunpack.c.l.b16 %v212
      %v399 = vunpack.c.h.b16 %v212
      %v400 = vunpack.c.l.b16 %v213
      %v401 = vunpack.c.h.b16 %v213
      %v402 = vunpack.c.l.b16 %v214
      %v403 = vunpack.c.h.b16 %v214
      %v404 = vunpack.c.l.b16 %v215
      %v405 = vunpack.c.h.b16 %v215
      %v406 = vunpack.c.l.b16 %v216
      %v407 = vunpack.c.h.b16 %v216
      %v408 = vunpack.c.l.b16 %v217
      %v409 = vunpack.c.h.b16 %v217
      %v410 = vunpack.c.l.b16 %v218
      %v411 = vunpack.c.h.b16 %v218
      %v412 = vunpack.c.l.b16 %v219
      %v413 = vunpack.c.h.b16 %v219
      %v414 = vunpack.c.l.b16 %v220
      %v415 = vunpack.c.h.b16 %v220
      %v416 = vunpack.c.l.b16 %v221
      %v417 = vunpack.c.h.b16 %v221
      %v418 = vunpack.c.l.b16 %v222
      %v419 = vunpack.c.h.b16 %v222
      %v420 = vunpack.c.l.b16 %v223
      %v421 = vunpack.c.h.b16 %v223
      %v422 = vunpack.c.l.b16 %v224
      %v423 = vunpack.c.h.b16 %v224
      %v424 = vunpack.c.l.b16 %v225
      %v425 = vunpack.c.h.b16 %v225
      %v426 = vunpack.c.l.b16 %v226
      %v427 = vunpack.c.h.b16 %v226
      %v428 = vunpack.c.l.b16 %v227
      %v429 = vunpack.c.h.b16 %v227
      %v430 = vunpack.c.l.b16 %v228
      %v431 = vunpack.c.h.b16 %v228
      %v432 = vunpack.c.l.b16 %v229
      %v433 = vunpack.c.h.b16 %v229
      %v434 = vpack.c.b16 %v332, %v326
      %v435 = vpack.c.b16 %v333, %v327
      %v436 = vpack.c.b16 %v334, %v328
      %v437 = vpack.c.b16 %v335, %v329
      %v438 = vpack.c.b16 %v336, %v330
      %v439 = vpack.c.b16 %v337, %v331
      %v440 = vpack.c.b16 %v344, %v338
      %v441 = vpack.c.b16 %v345, %v339
      %v442 = vpack.c.b16 %v346, %v340
      %v443 = vpack.c.b16 %v347, %v341
      %v444 = vpack.c.b16 %v348, %v342
      %v445 = vpack.c.b16 %v349, %v343
      %v446 = vpack.c.b16 %v356, %v350
      %v447 = vpack.c.b16 %v357, %v351
      %v448 = vpack.c.b16 %v358, %v352
      %v449 = vpack.c.b16 %v359, %v353
      %v450 = vpack.c.b16 %v360, %v354
      %v451 = vpack.c.b16 %v361, %v355
      %v452 = vpack.c.b16 %v368, %v362
      %v453 = vpack.c.b16 %v369, %v363
      %v454 = vpack.c.b16 %v370, %v364
      %v455 = vpack.c.b16 %v371, %v365
      %v456 = vpack.c.b16 %v372, %v366
      %v457 = vpack.c.b16 %v373, %v367
      %v458 = vpack.c.b16 %v380, %v374
      %v459 = vpack.c.b16 %v381, %v375
      %v460 = vpack.c.b16 %v382, %v376
      %v461 = vpack.c.b16 %v383, %v377
      %v462 = vpack.c.b16 %v384, %v378
      %v463 = vpack.c.b16 %v385, %v379
      %v464 = vpack.c.b16 %v392, %v386
      %v465 = vpack.c.b16 %v393, %v387
      %v466 = vpack.c.b16 %v394, %v388
      %v467 = vpack.c.b16 %v395, %v389
      %v468 = vpack.c.b16 %v396, %v390
      %v469 = vpack.c.b16 %v397, %v391
      %v470 = vpack.c.b16 %v404, %v398
      %v471 = vpack.c.b16 %v405, %v399
      %v472 = vpack.c.b16 %v406, %v400
      %v473 = vpack.c.b16 %v407, %v401
      %v474 = vpack.c.b16 %v408, %v402
      %v475 = vpack.c.b16 %v409, %v403
      %v476 = vpack.c.b16 %v416, %v410
      %v477 = vpack.c.b16 %v417, %v411
      %v478 = vpack.c.b16 %v418, %v412
      %v479 = vpack.c.b16 %v419, %v413
      %v480 = vpack.c.b16 %v420, %v414
      %v481 = vpack.c.b16 %v421, %v415
      %v482 = vpack.c.b16 %v428, %v422
      %v483 = vpack.c.b16 %v429, %v423
      %v484 = vpack.c.b16 %v430, %v424
      %v485 = vpack.c.b16 %v431, %v425
      %v486 = vpack.c.b16 %v432, %v426
      %v487 = vpack.c.b16 %v433, %v427
      %vm542 = vcmask 130048
      %v544 = vsel %vm542, %v267, 0
      %v547 = vsel %vm542, %v269, 0
      %549 = vmatprep.subr.bf16.mxu0 %v435
      %550 = vmatpush1.bf16.msra.mxu0 %v434
      %551 = vmatprep.subr.bf16.mxu0 %v441
      %552 = vmatpush1.bf16.msra.mxu0 %v440
      %553 = vmatprep.subr.bf16.mxu0 %v447
      %554 = vmatpush1.bf16.msra.mxu0 %v446
      %555 = vmatprep.subr.bf16.mxu0 %v453
      %556 = vmatpush1.bf16.msra.mxu0 %v452
      %557 = vmatprep.subr.bf16.mxu0 %v459
      %558 = vmatpush1.bf16.msra.mxu0 %v458
      %559 = vmatprep.subr.bf16.mxu0 %v465
      %560 = vmatpush1.bf16.msra.mxu0 %v464
      %561 = vmatprep.subr.bf16.mxu0 %v471
      %562 = vmatpush1.bf16.msra.mxu0 %v470
      %563 = vmatprep.subr.bf16.mxu0 %v477
      %564 = vmatpush1.bf16.msra.mxu0 %v476
      %565 = vmatprep.subr.bf16.mxu0 %v483
      %566 = vmatpush1.bf16.msra.mxu0 %v482
      %567 = vmatprep.subr.bf16.mxu0 0
      %568 = vmatpush1.bf16.msra.mxu0 0
      %569 = vmatprep.subr.bf16.mxu0 0
      %570 = vmatpush1.bf16.msra.mxu0 0
      %571 = vmatprep.subr.bf16.mxu0 0
      %572 = vmatpush1.bf16.msra.mxu0 0
      %573 = vmatprep.subr.bf16.mxu0 0
      %574 = vmatpush1.bf16.msra.mxu0 0
      %575 = vmatprep.subr.bf16.mxu0 0
      %576 = vmatpush1.bf16.msra.mxu0 0
      %577 = vmatprep.subr.bf16.mxu0 0
      %578 = vmatpush1.bf16.msra.mxu0 0
      %579 = vmatprep.subr.bf16.mxu0 0
      %580 = vmatpush1.bf16.msra.mxu0 0
      %581 = vmatprep.mubr.bf16.mxu0 %v544
      %582 = vmatmul.mubr.bf16.gmra.mrb[0].mxu0 %v266
      %v583 = vpop.f32.mrb[0].mxu0
      %v584 = vadd.f32 %v237, %v583
      %v585 = vpop.f32.mrb[0].mxu0
      %v586 = vadd.f32 %v237, %v585
      %v587 = vpop.f32.mrb[0].mxu0
      %v588 = vadd.f32 %v242, %v587
      %v589 = vpop.f32.mrb[0].mxu0
      %v590 = vadd.f32 %v242, %v589
      %591 = vmatprep.mubr.bf16.mxu0 %v547
      %592 = vmatmul.mubr.bf16.gmra.mrb[0].mxu0 %v268
      %v593 = vpop.f32.mrb[0].mxu0
      %v594 = vadd.f32 %v247, %v593
      %v595 = vpop.f32.mrb[0].mxu0
      %v596 = vadd.f32 %v247, %v595
      %v597 = vpop.f32.mrb[0].mxu0
      %v598 = vadd.f32 %v252, %v597
      %v599 = vpop.f32.mrb[0].mxu0
      %v600 = vadd.f32 %v252, %v599
      %601 = vdwg.mxu0
      %602 = vmatprep.subr.bf16.mxu0 %v437
      %603 = vmatpush1.bf16.msra.mxu0 %v436
      %604 = vmatprep.subr.bf16.mxu0 %v443
      %605 = vmatpush1.bf16.msra.mxu0 %v442
      %606 = vmatprep.subr.bf16.mxu0 %v449
      %607 = vmatpush1.bf16.msra.mxu0 %v448
      %608 = vmatprep.subr.bf16.mxu0 %v455
      %609 = vmatpush1.bf16.msra.mxu0 %v454
      %610 = vmatprep.subr.bf16.mxu0 %v461
      %611 = vmatpush1.bf16.msra.mxu0 %v460
      %612 = vmatprep.subr.bf16.mxu0 %v467
      %613 = vmatpush1.bf16.msra.mxu0 %v466
      %614 = vmatprep.subr.bf16.mxu0 %v473
      %615 = vmatpush1.bf16.msra.mxu0 %v472
      %616 = vmatprep.subr.bf16.mxu0 %v479
      %617 = vmatpush1.bf16.msra.mxu0 %v478
      %618 = vmatprep.subr.bf16.mxu0 %v485
      %619 = vmatpush1.bf16.msra.mxu0 %v484
      %620 = vmatprep.subr.bf16.mxu0 0
      %621 = vmatpush1.bf16.msra.mxu0 0
      %622 = vmatprep.subr.bf16.mxu0 0
      %623 = vmatpush1.bf16.msra.mxu0 0
      %624 = vmatprep.subr.bf16.mxu0 0
      %625 = vmatpush1.bf16.msra.mxu0 0
      %626 = vmatprep.subr.bf16.mxu0 0
      %627 = vmatpush1.bf16.msra.mxu0 0
      %628 = vmatprep.subr.bf16.mxu0 0
      %629 = vmatpush1.bf16.msra.mxu0 0
      %630 = vmatprep.subr.bf16.mxu0 0
      %631 = vmatpush1.bf16.msra.mxu0 0
      %632 = vmatprep.subr.bf16.mxu0 0
      %633 = vmatpush1.bf16.msra.mxu0 0
      %634 = vmatprep.mubr.bf16.mxu0 %v544
      %635 = vmatmul.mubr.bf16.gmra.mrb[0].mxu0 %v266
      %v636 = vpop.f32.mrb[0].mxu0
      %v637 = vadd.f32 %v237, %v636
      %v638 = vpop.f32.mrb[0].mxu0
      %v639 = vadd.f32 %v237, %v638
      %v640 = vpop.f32.mrb[0].mxu0
      %v641 = vadd.f32 %v242, %v640
      %v642 = vpop.f32.mrb[0].mxu0
      %v643 = vadd.f32 %v242, %v642
      %644 = vmatprep.mubr.bf16.mxu0 %v547
      %645 = vmatmul.mubr.bf16.gmra.mrb[0].mxu0 %v268
      %v646 = vpop.f32.mrb[0].mxu0
      %v647 = vadd.f32 %v247, %v646
      %v648 = vpop.f32.mrb[0].mxu0
      %v649 = vadd.f32 %v247, %v648
      %v650 = vpop.f32.mrb[0].mxu0
      %v651 = vadd.f32 %v252, %v650
      %v652 = vpop.f32.mrb[0].mxu0
      %v653 = vadd.f32 %v252, %v652
      %654 = vdwg.mxu0
      %655 = vmatprep.subr.bf16.mxu0 %v439
      %656 = vmatpush1.bf16.msra.mxu0 %v438
      %657 = vmatprep.subr.bf16.mxu0 %v445
      %658 = vmatpush1.bf16.msra.mxu0 %v444
      %659 = vmatprep.subr.bf16.mxu0 %v451
      %660 = vmatpush1.bf16.msra.mxu0 %v450
      %661 = vmatprep.subr.bf16.mxu0 %v457
      %662 = vmatpush1.bf16.msra.mxu0 %v456
      %663 = vmatprep.subr.bf16.mxu0 %v463
      %664 = vmatpush1.bf16.msra.mxu0 %v462
      %665 = vmatprep.subr.bf16.mxu0 %v469
      %666 = vmatpush1.bf16.msra.mxu0 %v468
      %667 = vmatprep.subr.bf16.mxu0 %v475
      %668 = vmatpush1.bf16.msra.mxu0 %v474
      %669 = vmatprep.subr.bf16.mxu0 %v481
      %670 = vmatpush1.bf16.msra.mxu0 %v480
      %671 = vmatprep.subr.bf16.mxu0 %v487
      %672 = vmatpush1.bf16.msra.mxu0 %v486
      %673 = vmatprep.subr.bf16.mxu0 0
      %674 = vmatpush1.bf16.msra.mxu0 0
      %675 = vmatprep.subr.bf16.mxu0 0
      %676 = vmatpush1.bf16.msra.mxu0 0
      %677 = vmatprep.subr.bf16.mxu0 0
      %678 = vmatpush1.bf16.msra.mxu0 0
      %679 = vmatprep.subr.bf16.mxu0 0
      %680 = vmatpush1.bf16.msra.mxu0 0
      %681 = vmatprep.subr.bf16.mxu0 0
      %682 = vmatpush1.bf16.msra.mxu0 0
      %683 = vmatprep.subr.bf16.mxu0 0
      %684 = vmatpush1.bf16.msra.mxu0 0
      %685 = vmatprep.subr.bf16.mxu0 0
      %686 = vmatpush1.bf16.msra.mxu0 0
      %687 = vmatprep.mubr.bf16.mxu0 %v544
      %688 = vmatmul.mubr.bf16.gmra.mrb[0].mxu0 %v266
      %v689 = vpop.f32.mrb[0].mxu0
      %v690 = vadd.f32 %v237, %v689
      %v691 = vpop.f32.mrb[0].mxu0
      %v692 = vadd.f32 %v237, %v691
      %v693 = vpop.f32.mrb[0].mxu0
      %v694 = vadd.f32 %v242, %v693
      %v695 = vpop.f32.mrb[0].mxu0
      %v696 = vadd.f32 %v242, %v695
      %697 = vmatprep.mubr.bf16.mxu0 %v547
      %698 = vmatmul.mubr.bf16.gmra.mrb[0].mxu0 %v268
      %v699 = vpop.f32.mrb[0].mxu0
      %v700 = vadd.f32 %v247, %v699
      %v701 = vpop.f32.mrb[0].mxu0
      %v702 = vadd.f32 %v247, %v701
      %v703 = vpop.f32.mrb[0].mxu0
      %v704 = vadd.f32 %v252, %v703
      %v705 = vpop.f32.mrb[0].mxu0
      %v706 = vadd.f32 %v252, %v705
      %707 = vdwg.mxu0
      %v708 = vmax.f32 %v584, 0.0
      %v709 = vmax.f32 %v586, 0.0
      %v710 = vmax.f32 %v637, 0.0
      %v711 = vmax.f32 %v639, 0.0
      %v712 = vmax.f32 %v690, 0.0
      %v713 = vmax.f32 %v692, 0.0
      %v714 = vmax.f32 %v588, 0.0
      %v715 = vmax.f32 %v590, 0.0
      %v716 = vmax.f32 %v641, 0.0
      %v717 = vmax.f32 %v643, 0.0
      %v718 = vmax.f32 %v694, 0.0
      %v719 = vmax.f32 %v696, 0.0
      %v720 = vmax.f32 %v594, 0.0
      %v721 = vmax.f32 %v596, 0.0
      %v722 = vmax.f32 %v647, 0.0
      %v723 = vmax.f32 %v649, 0.0
      %v724 = vmax.f32 %v700, 0.0
      %v725 = vmax.f32 %v702, 0.0
      %v726 = vmax.f32 %v598, 0.0
      %v727 = vmax.f32 %v600, 0.0
      %v728 = vmax.f32 %v651, 0.0
      %v729 = vmax.f32 %v653, 0.0
      %v730 = vmax.f32 %v704, 0.0
      %v731 = vmax.f32 %v706, 0.0
      %732 = vset.pattern.permute.xlu0 1
      %733 = vperm.xlu0 %732, %v230
      %v734 = vpop.permute.xlu0 %733
      %736 = vset.pattern.permute.xlu0 1
      %737 = vperm.xlu0 %736, %v231
      %v738 = vpop.permute.xlu0 %737
      %740 = vset.pattern.permute.xlu0 1
      %741 = vperm.xlu0 %740, %v232
      %v742 = vpop.permute.xlu0 %741
      %744 = vset.pattern.permute.xlu0 1
      %745 = vperm.xlu0 %744, %v233
      %v746 = vpop.permute.xlu0 %745
      %v748 = vmul.f32 %v708, %v734
      %v749 = vmul.f32 %v709, %v734
      %v750 = vmul.f32 %v710, %v734
      %v751 = vmul.f32 %v711, %v734
      %v752 = vmul.f32 %v712, %v734
      %v753 = vmul.f32 %v713, %v734
      %v754 = vmul.f32 %v714, %v738
      %v755 = vmul.f32 %v715, %v738
      %v756 = vmul.f32 %v716, %v738
      %v757 = vmul.f32 %v717, %v738
      %v758 = vmul.f32 %v718, %v738
      %v759 = vmul.f32 %v719, %v738
      %v760 = vmul.f32 %v720, %v742
      %v761 = vmul.f32 %v721, %v742
      %v762 = vmul.f32 %v722, %v742
      %v763 = vmul.f32 %v723, %v742
      %v764 = vmul.f32 %v724, %v742
      %v765 = vmul.f32 %v725, %v742
      %v766 = vmul.f32 %v726, %v746
      %v767 = vmul.f32 %v727, %v746
      %v768 = vmul.f32 %v728, %v746
      %v769 = vmul.f32 %v729, %v746
      %v770 = vmul.f32 %v730, %v746
      %v771 = vmul.f32 %v731, %v746
      %772 = vset.pattern.permute.xlu0 2
      %773 = vperm.xlu0 %772, %v230
      %v774 = vpop.permute.xlu0 %773
      %776 = vset.pattern.permute.xlu0 2
      %777 = vperm.xlu0 %776, %v231
      %v778 = vpop.permute.xlu0 %777
      %780 = vset.pattern.permute.xlu0 2
      %781 = vperm.xlu0 %780, %v232
      %v782 = vpop.permute.xlu0 %781
      %784 = vset.pattern.permute.xlu0 2
      %785 = vperm.xlu0 %784, %v233
      %v786 = vpop.permute.xlu0 %785
      %v788 = vadd.f32 %v748, %v774
      %v789 = vadd.f32 %v749, %v774
      %v790 = vadd.f32 %v750, %v774
      %v791 = vadd.f32 %v751, %v774
      %v792 = vadd.f32 %v752, %v774
      %v793 = vadd.f32 %v753, %v774
      %v794 = vadd.f32 %v754, %v778
      %v795 = vadd.f32 %v755, %v778
      %v796 = vadd.f32 %v756, %v778
      %v797 = vadd.f32 %v757, %v778
      %v798 = vadd.f32 %v758, %v778
      %v799 = vadd.f32 %v759, %v778
      %v800 = vadd.f32 %v760, %v782
      %v801 = vadd.f32 %v761, %v782
      %v802 = vadd.f32 %v762, %v782
      %v803 = vadd.f32 %v763, %v782
      %v804 = vadd.f32 %v764, %v782
      %v805 = vadd.f32 %v765, %v782
      %v806 = vadd.f32 %v766, %v786
      %v807 = vadd.f32 %v767, %v786
      %v808 = vadd.f32 %v768, %v786
      %v809 = vadd.f32 %v769, %v786
      %v810 = vadd.f32 %v770, %v786
      %v811 = vadd.f32 %v771, %v786
      %v812 = vpack.c.bf16 %v794, %v788
      %v813 = vpack.c.bf16 %v795, %v789
      %v814 = vpack.c.bf16 %v796, %v790
      %v815 = vpack.c.bf16 %v797, %v791
      %v816 = vpack.c.bf16 %v798, %v792
      %v817 = vpack.c.bf16 %v799, %v793
      %v818 = vpack.c.bf16 %v806, %v800
      %v819 = vpack.c.bf16 %v807, %v801
      %v820 = vpack.c.bf16 %v808, %v802
      %v821 = vpack.c.bf16 %v809, %v803
      %v822 = vpack.c.bf16 %v810, %v804
      %v823 = vpack.c.bf16 %v811, %v805
      %v836 = vunpack.c.l.b16 %v812
      %v837 = vunpack.c.l.b16 %v813
      %v838 = vunpack.c.l.b16 %v814
      %v839 = vunpack.c.l.b16 %v815
      %v840 = vunpack.c.l.b16 %v816
      %v841 = vunpack.c.l.b16 %v817
      %v842 = vunpack.c.h.b16 %v812
      %v843 = vunpack.c.h.b16 %v813
      %v844 = vunpack.c.h.b16 %v814
      %v845 = vunpack.c.h.b16 %v815
      %v846 = vunpack.c.h.b16 %v816
      %v847 = vunpack.c.h.b16 %v817
      %v848 = vunpack.c.l.b16 %v818
      %v849 = vunpack.c.l.b16 %v819
      %v850 = vunpack.c.l.b16 %v820
      %v851 = vunpack.c.l.b16 %v821
      %v852 = vunpack.c.l.b16 %v822
      %v853 = vunpack.c.l.b16 %v823
      %v854 = vunpack.c.h.b16 %v818
      %v855 = vunpack.c.h.b16 %v819
      %v856 = vunpack.c.h.b16 %v820
      %v857 = vunpack.c.h.b16 %v821
      %v858 = vunpack.c.h.b16 %v822
      %v859 = vunpack.c.h.b16 %v823
      %v860 = vpack.c.b16 %v837, %v836
      %v861 = vpack.c.b16 %v839, %v838
      %v862 = vpack.c.b16 %v841, %v840
      %v863 = vpack.c.b16 %v843, %v842
      %v864 = vpack.c.b16 %v845, %v844
      %v865 = vpack.c.b16 %v847, %v846
      %v866 = vpack.c.b16 %v849, %v848
      %v867 = vpack.c.b16 %v851, %v850
      %v868 = vpack.c.b16 %v853, %v852
      %v869 = vpack.c.b16 %v855, %v854
      %v870 = vpack.c.b16 %v857, %v856
      %v871 = vpack.c.b16 %v859, %v858
      %884 = vst [vmem:[%s170] sm:$0xff] %v860
      %885 = vst [vmem:[%s170 + $0x8] sm:$0xff] %v861
      %vm886 = vcmask 1043456
      %vm887 = vcmask 293892
      %vm888 = vmor %vm887, %vm886
      %889 = vst.msk [vmem:[%s170 + $0x10] sm:$0xff] %vm888, %v862
      %890 = vst [vmem:[%s170 + $0x18] sm:$0xff] %v863
      %891 = vst [vmem:[%s170 + $0x20] sm:$0xff] %v864
      %892 = vst.msk [vmem:[%s170 + $0x28] sm:$0xff] %vm888, %v865
      %893 = vst [vmem:[%s170 + $0x30] sm:$0xff] %v866
      %894 = vst [vmem:[%s170 + $0x38] sm:$0xff] %v867
      %895 = vst.msk [vmem:[%s170 + $0x40] sm:$0xff] %vm888, %v868
      %896 = vst [vmem:[%s170 + $0x48] sm:$0xff] %v869
      %897 = vst [vmem:[%s170 + $0x50] sm:$0xff] %v870
      %898 = vst.msk [vmem:[%s170 + $0x58] sm:$0xff] %vm888, %v871
      %p899 = scmp.lt.s32.totalorder %s14, 1
      %s900 = scalar_select %p899, %s14, 1
      %s901 = smul.addr %s900, 24
      %s902 = smul.addr %s901, 4
      %s903 = scalar_lea.vmem %s3, %s902
      // Predicated region
      $region33: #{module1_forward.7} parent=31 // pred_check
        %p904 = pneg %p100
      $region34: #{module1_forward.7} parent=31 // pred_check_branch
        %906 = sbr.rel (%p904) target = $region36
      $region35: #{module1_forward.7} parent=31 // pred_region
        _
      $region36: #{module1_forward.7} parent=31 // pred_fallthru
        _
    $region32: #{module1_forward.7} parent=5 // pred_fallthru
      _
    %p907 = scmp.le.s32.totalorder 2, %s9
    // Predicated region
    $region37: #{module1_forward.7} parent=5 // pred_check
      %p908 = pneg %p907
    $region38: #{module1_forward.7} parent=5 // pred_check_branch
      %910 = sbr.rel (%p908) target = $region40
    $region39: #{module1_forward.7} parent=5 // pred_region
      %s911 = ssub.s32 %s9, 2
      // Predicated region
      $region41: #{module1_forward.7} parent=39 // pred_check
        %p912 = pneg %p106
      $region42: #{module1_forward.7} parent=39 // pred_check_branch
        %914 = sbr.rel (%p912) target = $region44
      $region43: #{module1_forward.7} parent=39 // pred_region
        %p915 = scmp.lt.s32.totalorder %s15, 1
        %s916 = scalar_select %p915, %s15, 1
        %s917 = smul.addr %s916, 24
        %s918 = smul.addr %s917, 4
        %s919 = scalar_lea.vmem %s3, %s918
      $region44: #{module1_forward.7} parent=39 // pred_fallthru
        _
    $region40: #{module1_forward.7} parent=5 // pred_fallthru
      _
  $region6: #{module1_forward.7} parent=0 // loop_footer
    %s13 = sadd.s32 1, %s9
  $region7: #{module1_forward.7} parent=0 // loop_footer_branch
    %8 = sbr.rel target = $region3
  $region8: #{module1_forward.7} parent=0 // loop_exit
    _

// kernel: module1_forward.8
$region0: #{module1_forward.8}
  #allocation0 [shape = 'u32[]', space=smem, size = 0x4, offset = 0x4, fixed_abs, tag = 'smem constant byte address 0x4 - core index']
  #allocation1 [shape = 'u32[144,128]{1,0:T(1,128)}', space=vmem, size = 0x12000, scoped, tag = 'internal scratch']
  %s0 = inlined_call_operand.vmem [shape: bf16[2,288,1024], index: 0, kind: input, shape index: {}]
  %s1 = inlined_call_operand.vmem [shape: bf16[32,288], index: 1, kind: input, shape index: {}]
  %s2 = inlined_call_operand.vmem [shape: f32[32,3], index: 2, kind: input, shape index: {}]
  %s3 = inlined_call_operand.vmem [shape: bf16[2,32,144], index: 3, kind: output, shape index: {}]
  %s4 = sld [smem:[#allocation0]]
  $region45: #{module1_forward.8} parent=0
    _
  %s6 = ssub.s32 1, %s4
  %s7 = scalar_select 0, %s6, %s4
  loop: start=0, step=1, limit=4
  $region2: #{module1_forward.8} parent=0 // loop_pre_header
    _
  $region3: #{module1_forward.8} parent=0 // loop_header
    %s9 = sphi 0, %s13
    %p10 = scmp.ge.s32.totalorder %s9, 4
    %s19 = sphi 0, %s21
    %s22 = sphi 0, %s19
    %s23 = sphi 0, %s22
    %s39 = sphi 0, %s23
    %s43 = sphi 0, %s43
    %s45 = sphi 0, %s43
    %s46 = sphi 0, %s45
    %s60 = sphi 0, %s46
    %s64 = sphi 0, %s64
    %s66 = sphi 0, %s64
    %s67 = sphi 0, %s66
    %s81 = sphi 0, %s67
    %s87 = sphi 0, %s89
    %s90 = sphi 0, %s87
    %s91 = sphi 0, %s90
    %s107 = sphi 0, %s91
  $region4: #{module1_forward.8} parent=0 // loop_header_branch
    %12 = sbr.rel (%p10) target = $region8
  $region5: #{module1_forward.8} parent=0 // loop_body
    %s14 = ssub.s32 %s9, 1
    %s15 = ssub.s32 %s9, 2
    %s16 = sadd.s32 %s9, 1
    %s17 = ssub.s32 %s9, %s16
    %p18 = scmp.eq.s32.totalorder %s17, 0
    %s20 = sadd.s32 %s19, 1
    %s21 = scalar_select %p18, %s19, %s20
    %p24 = pneg %p18
    %p25 = scmp.eq.s32.totalorder %s9, 1
    %p26 = por %p24, %p25
    %p27 = scmp.ne.s32.totalorder %s19, %s22
    %p28 = scmp.eq.s32.totalorder %s9, 0
    %p29 = por %p27, %p28
    %p30 = scmp.ne.s32.totalorder %s19, %s22
    %p31 = scmp.eq.s32.totalorder %s14, 1
    %p32 = por %p30, %p31
    %p33 = scmp.ne.s32.totalorder %s22, %s23
    %p34 = scmp.eq.s32.totalorder %s14, 0
    %p35 = por %p33, %p34
    %p36 = scmp.ne.s32.totalorder %s22, %s23
    %p37 = scmp.eq.s32.totalorder %s15, 1
    %p38 = por %p36, %p37
    %p40 = scmp.ne.s32.totalorder %s23, %s39
    %p41 = scmp.eq.s32.totalorder %s15, 0
    %p42 = por %p40, %p41
    %s44 = sadd.s32 %s43, 1
    %p47 = scmp.eq.s32.totalorder %s9, 1
    %p48 = scmp.ne.s32.totalorder %s43, %s45
    %p49 = scmp.eq.s32.totalorder %s9, 0
    %p50 = por %p48, %p49
    %p51 = scmp.ne.s32.totalorder %s43, %s45
    %p52 = scmp.eq.s32.totalorder %s14, 1
    %p53 = por %p51, %p52
    %p54 = scmp.ne.s32.totalorder %s45, %s46
    %p55 = scmp.eq.s32.totalorder %s14, 0
    %p56 = por %p54, %p55
    %p57 = scmp.ne.s32.totalorder %s45, %s46
    %p58 = scmp.eq.s32.totalorder %s15, 1
    %p59 = por %p57, %p58
    %p61 = scmp.ne.s32.totalorder %s46, %s60
    %p62 = scmp.eq.s32.totalorder %s15, 0
    %p63 = por %p61, %p62
    %s65 = sadd.s32 %s64, 1
    %p68 = scmp.eq.s32.totalorder %s9, 1
    %p69 = scmp.ne.s32.totalorder %s64, %s66
    %p70 = scmp.eq.s32.totalorder %s9, 0
    %p71 = por %p69, %p70
    %p72 = scmp.ne.s32.totalorder %s64, %s66
    %p73 = scmp.eq.s32.totalorder %s14, 1
    %p74 = por %p72, %p73
    %p75 = scmp.ne.s32.totalorder %s66, %s67
    %p76 = scmp.eq.s32.totalorder %s14, 0
    %p77 = por %p75, %p76
    %p78 = scmp.ne.s32.totalorder %s66, %s67
    %p79 = scmp.eq.s32.totalorder %s15, 1
    %p80 = por %p78, %p79
    %p82 = scmp.ne.s32.totalorder %s67, %s81
    %p83 = scmp.eq.s32.totalorder %s15, 0
    %p84 = por %p82, %p83
    %s85 = ssub.s32 %s9, %s16
    %p86 = scmp.eq.s32.totalorder %s85, 0
    %s88 = sadd.s32 %s87, 1
    %s89 = scalar_select %p86, %s87, %s88
    %p92 = pneg %p86
    %p93 = scmp.eq.s32.totalorder %s9, 1
    %p94 = por %p92, %p93
    %p95 = scmp.ne.s32.totalorder %s87, %s90
    %p96 = scmp.eq.s32.totalorder %s9, 0
    %p97 = por %p95, %p96
    %p98 = scmp.ne.s32.totalorder %s87, %s90
    %p99 = scmp.eq.s32.totalorder %s14, 1
    %p100 = por %p98, %p99
    %p101 = scmp.ne.s32.totalorder %s90, %s91
    %p102 = scmp.eq.s32.totalorder %s14, 0
    %p103 = por %p101, %p102
    %p104 = scmp.ne.s32.totalorder %s90, %s91
    %p105 = scmp.eq.s32.totalorder %s15, 1
    %p106 = por %p104, %p105
    %p108 = scmp.ne.s32.totalorder %s91, %s107
    %p109 = scmp.eq.s32.totalorder %s15, 0
    %p110 = por %p108, %p109
    %p111 = scmp.le.s32.totalorder 1, %s9
    %p112 = scmp.lt.s32.totalorder %s9, 3
    %p113 = pnand %p111, %p112
    %p114 = pneg %p113
    // Predicated region
    $region9: #{module1_forward.8} parent=5 // pred_check
      _
    $region10: #{module1_forward.8} parent=5 // pred_check_branch
      %116 = sbr.rel (%p113) target = $region12
    $region11: #{module1_forward.8} parent=5 // pred_region
      %s117 = ssub.s32 %s9, 1
      // Predicated region
      $region13: #{module1_forward.8} parent=11 // pred_check
        %p118 = pneg %p56
      $region14: #{module1_forward.8} parent=11 // pred_check_branch
        %120 = sbr.rel (%p118) target = $region16
      $region15: #{module1_forward.8} parent=11 // pred_region
        _
      $region16: #{module1_forward.8} parent=11 // pred_fallthru
        _
      // Predicated region
      $region17: #{module1_forward.8} parent=11 // pred_check
        %p121 = pneg %p77
      $region18: #{module1_forward.8} parent=11 // pred_check_branch
        %123 = sbr.rel (%p121) target = $region20
      $region19: #{module1_forward.8} parent=11 // pred_region
        _
      $region20: #{module1_forward.8} parent=11 // pred_fallthru
        _
    $region12: #{module1_forward.8} parent=5 // pred_fallthru
      _
    %p124 = scmp.lt.s32.totalorder %s9, 2
    // Predicated region
    $region21: #{module1_forward.8} parent=5 // pred_check
      %p125 = pneg %p124
    $region22: #{module1_forward.8} parent=5 // pred_check_branch
      %127 = sbr.rel (%p125) target = $region24
    $region23: #{module1_forward.8} parent=5 // pred_region
      // Predicated region
      $region25: #{module1_forward.8} parent=23 // pred_check
        %p128 = pneg %p29
      $region26: #{module1_forward.8} parent=23 // pred_check_branch
        %130 = sbr.rel (%p128) target = $region28
      $region27: #{module1_forward.8} parent=23 // pred_region
        %p131 = scmp.lt.s32.totalorder %s9, 1
        %s132 = scalar_select %p131, %s9, 1
        %s133 = smul.addr %s132, 288
        %s134 = smul.addr %s133, 4
        %s135 = scalar_lea.vmem %s0, %s134
      $region28: #{module1_forward.8} parent=23 // pred_fallthru
        _
    $region24: #{module1_forward.8} parent=5 // pred_fallthru
      _
    %p136 = scmp.le.s32.totalorder 1, %s9
    %p137 = scmp.lt.s32.totalorder %s9, 3
    %p138 = pnand %p136, %p137
    %p139 = pneg %p138
    // Predicated region
    $region29: #{module1_forward.8} parent=5 // pred_check
      _
    $region30: #{module1_forward.8} parent=5 // pred_check_branch
      %141 = sbr.rel (%p138) target = $region32
    $region31: #{module1_forward.8} parent=5 // pred_region
      %s142 = ssub.s32 %s9, 1
      %p143 = scmp.lt.s32.totalorder %s14, 1
      %s144 = scalar_select %p143, %s14, 1
      %s145 = smul.addr %s144, 288
      %s146 = smul.addr %s145, 4
      %s147 = scalar_lea.vmem %s0, %s146
      %p148 = pneg %p35
      %p149 = pneg %p32
      %p150 = pneg %p56
      %p151 = pneg %p53
      %p152 = pneg %p77
      %p153 = pneg %p74
      %p154 = pneg %p103
      %p155 = pneg %p100
      %p156 = scmp.lt.s32.totalorder %s14, 1
      %s157 = scalar_select %p156, %s14, 1
      %s158 = smul.addr %s157, 8
      %s159 = smul.addr %s158, 4
      %s160 = scalar_lea.vmem %s3, %s159
      %p161 = scmp.lt.s32.totalorder %s14, 1
      %s162 = scalar_select %p161, %s14, 1
      %s163 = smul.addr %s162, 288
      %s164 = smul.addr %s163, 4
      %s165 = scalar_lea.vmem %s0, %s164
      %p166 = scmp.lt.s32.totalorder %s14, 1
      %s167 = scalar_select %p166, %s14, 1
      %s168 = smul.addr %s167, 8
      %s169 = smul.addr %s168, 4
      %s170 = scalar_lea.vmem %s3, %s169
      %v172 = vld [vmem:[%s1] sm:$0xff]
      %v173 = vld [vmem:[%s1 + $0x8] sm:$0xf]
      %v174 = vld [vmem:[%s1 + $0xc] sm:$0xff]
      %v175 = vld [vmem:[%s1 + $0x14] sm:$0xf]
      %v176 = vld [vmem:[%s1 + $0x18] sm:$0xff]
      %v177 = vld [vmem:[%s1 + $0x20] sm:$0xf]
      %v178 = vld [vmem:[%s1 + $0x24] sm:$0xff]
      %v179 = vld [vmem:[%s1 + $0x2c] sm:$0xf]
      %v180 = vld [vmem:[%s165] sm:$0xff]
      %v181 = vld [vmem:[%s165 + $0x8] sm:$0xff]
      %v182 = vld [vmem:[%s165 + $0x10] sm:$0xff]
      %v183 = vld [vmem:[%s165 + $0x18] sm:$0xff]
      %v184 = vld [vmem:[%s165 + $0x20] sm:$0xff]
      %v185 = vld [vmem:[%s165 + $0x28] sm:$0xff]
      %v186 = vld [vmem:[%s165 + $0x30] sm:$0xff]
      %v187 = vld [vmem:[%s165 + $0x38] sm:$0xff]
      %v188 = vld [vmem:[%s165 + $0x40] sm:$0xff]
      %v189 = vld [vmem:[%s165 + $0x48] sm:$0xff]
      %v190 = vld [vmem:[%s165 + $0x50] sm:$0xff]
      %v191 = vld [vmem:[%s165 + $0x58] sm:$0xff]
      %v192 = vld [vmem:[%s165 + $0x60] sm:$0xff]
      %v193 = vld [vmem:[%s165 + $0x68] sm:$0xff]
      %v194 = vld [vmem:[%s165 + $0x70] sm:$0xff]
      %v195 = vld [vmem:[%s165 + $0x78] sm:$0xff]
      %v196 = vld [vmem:[%s165 + $0x80] sm:$0xff]
      %v197 = vld [vmem:[%s165 + $0x88] sm:$0xff]
      %v198 = vld [vmem:[%s165 + $0x90] sm:$0xff]
      %v199 = vld [vmem:[%s165 + $0x98] sm:$0xff]
      %v200 = vld [vmem:[%s165 + $0xa0] sm:$0xff]
      %v201 = vld [vmem:[%s165 + $0xa8] sm:$0xff]
      %v202 = vld [vmem:[%s165 + $0xb0] sm:$0xff]
      %v203 = vld [vmem:[%s165 + $0xb8] sm:$0xff]
      %v204 = vld [vmem:[%s165 + $0xc0] sm:$0xff]
      %v205 = vld [vmem:[%s165 + $0xc8] sm:$0xff]
      %v206 = vld [vmem:[%s165 + $0xd0] sm:$0xff]
      %v207 = vld [vmem:[%s165 + $0xd8] sm:$0xff]
      %v208 = vld [vmem:[%s165 + $0xe0] sm:$0xff]
      %v209 = vld [vmem:[%s165 + $0xe8] sm:$0xff]
      %v210 = vld [vmem:[%s165 + $0xf0] sm:$0xff]
      %v211 = vld [vmem:[%s165 + $0xf8] sm:$0xff]
      %v212 = vld [vmem:[%s165 + $0x100] sm:$0xff]
      %v213 = vld [vmem:[%s165 + $0x108] sm:$0xff]
      %v214 = vld [vmem:[%s165 + $0x110] sm:$0xff]
      %v215 = vld [vmem:[%s165 + $0x118] sm:$0xff]
      %v216 = vld [vmem:[%s165 + $0x120] sm:$0xff]
      %v217 = vld [vmem:[%s165 + $0x128] sm:$0xff]
      %v218 = vld [vmem:[%s165 + $0x130] sm:$0xff]
      %v219 = vld [vmem:[%s165 + $0x138] sm:$0xff]
      %v220 = vld [vmem:[%s165 + $0x140] sm:$0xff]
      %v221 = vld [vmem:[%s165 + $0x148] sm:$0xff]
      %v222 = vld [vmem:[%s165 + $0x150] sm:$0xff]
      %v223 = vld [vmem:[%s165 + $0x158] sm:$0xff]
      %v224 = vld [vmem:[%s165 + $0x160] sm:$0xff]
      %v225 = vld [vmem:[%s165 + $0x168] sm:$0xff]
      %v226 = vld [vmem:[%s165 + $0x170] sm:$0xff]
      %v227 = vld [vmem:[%s165 + $0x178] sm:$0xff]
      %v228 = vld [vmem:[%s165 + $0x180] sm:$0xff]
      %v229 = vld [vmem:[%s165 + $0x188] sm:$0xff]
      %v230 = vld [vmem:[%s165 + $0x190] sm:$0xff]
      %v231 = vld [vmem:[%s165 + $0x198] sm:$0xff]
      %v232 = vld [vmem:[%s165 + $0x1a0] sm:$0xff]
      %v233 = vld [vmem:[%s165 + $0x1a8] sm:$0xff]
      %v234 = vld [vmem:[%s165 + $0x1b0] sm:$0xff]
      %v235 = vld [vmem:[%s165 + $0x1b8] sm:$0xff]
      %v236 = vld [vmem:[%s165 + $0x1c0] sm:$0xff]
      %v237 = vld [vmem:[%s165 + $0x1c8] sm:$0xff]
      %v238 = vld [vmem:[%s165 + $0x1d0] sm:$0xff]
      %v239 = vld [vmem:[%s165 + $0x1d8] sm:$0xff]
      %v240 = vld [vmem:[%s165 + $0x1e0] sm:$0xff]
      %v241 = vld [vmem:[%s165 + $0x1e8] sm:$0xff]
      %v242 = vld [vmem:[%s165 + $0x1f0] sm:$0xff]
      %v243 = vld [vmem:[%s165 + $0x1f8] sm:$0xff]
      %v244 = vld [vmem:[%s165 + $0x200] sm:$0xff]
      %v245 = vld [vmem:[%s165 + $0x208] sm:$0xff]
      %v246 = vld [vmem:[%s165 + $0x210] sm:$0xff]
      %v247 = vld [vmem:[%s165 + $0x218] sm:$0xff]
      %v248 = vld [vmem:[%s165 + $0x220] sm:$0xff]
      %v249 = vld [vmem:[%s165 + $0x228] sm:$0xff]
      %v250 = vld [vmem:[%s165 + $0x230] sm:$0xff]
      %v251 = vld [vmem:[%s165 + $0x238] sm:$0xff]
      %v252 = vld [vmem:[%s165 + $0x240] sm:$0xff]
      %v253 = vld [vmem:[%s165 + $0x248] sm:$0xff]
      %v254 = vld [vmem:[%s165 + $0x250] sm:$0xff]
      %v255 = vld [vmem:[%s165 + $0x258] sm:$0xff]
      %v256 = vld [vmem:[%s165 + $0x260] sm:$0xff]
      %v257 = vld [vmem:[%s165 + $0x268] sm:$0xff]
      %v258 = vld [vmem:[%s165 + $0x270] sm:$0xff]
      %v259 = vld [vmem:[%s165 + $0x278] sm:$0xff]
      %v260 = vld [vmem:[%s165 + $0x280] sm:$0xff]
      %v261 = vld [vmem:[%s165 + $0x288] sm:$0xff]
      %v262 = vld [vmem:[%s165 + $0x290] sm:$0xff]
      %v263 = vld [vmem:[%s165 + $0x298] sm:$0xff]
      %v264 = vld [vmem:[%s165 + $0x2a0] sm:$0xff]
      %v265 = vld [vmem:[%s165 + $0x2a8] sm:$0xff]
      %v266 = vld [vmem:[%s165 + $0x2b0] sm:$0xff]
      %v267 = vld [vmem:[%s165 + $0x2b8] sm:$0xff]
      %v268 = vld [vmem:[%s165 + $0x2c0] sm:$0xff]
      %v269 = vld [vmem:[%s165 + $0x2c8] sm:$0xff]
      %v270 = vld [vmem:[%s165 + $0x2d0] sm:$0xff]
      %v271 = vld [vmem:[%s165 + $0x2d8] sm:$0xff]
      %v272 = vld [vmem:[%s165 + $0x2e0] sm:$0xff]
      %v273 = vld [vmem:[%s165 + $0x2e8] sm:$0xff]
      %v274 = vld [vmem:[%s165 + $0x2f0] sm:$0xff]
      %v275 = vld [vmem:[%s165 + $0x2f8] sm:$0xff]
      %v276 = vld [vmem:[%s165 + $0x300] sm:$0xff]
      %v277 = vld [vmem:[%s165 + $0x308] sm:$0xff]
      %v278 = vld [vmem:[%s165 + $0x310] sm:$0xff]
      %v279 = vld [vmem:[%s165 + $0x318] sm:$0xff]
      %v280 = vld [vmem:[%s165 + $0x320] sm:$0xff]
      %v281 = vld [vmem:[%s165 + $0x328] sm:$0xff]
      %v282 = vld [vmem:[%s165 + $0x330] sm:$0xff]
      %v283 = vld [vmem:[%s165 + $0x338] sm:$0xff]
      %v284 = vld [vmem:[%s165 + $0x340] sm:$0xff]
      %v285 = vld [vmem:[%s165 + $0x348] sm:$0xff]
      %v286 = vld [vmem:[%s165 + $0x350] sm:$0xff]
      %v287 = vld [vmem:[%s165 + $0x358] sm:$0xff]
      %v288 = vld [vmem:[%s165 + $0x360] sm:$0xff]
      %v289 = vld [vmem:[%s165 + $0x368] sm:$0xff]
      %v290 = vld [vmem:[%s165 + $0x370] sm:$0xff]
      %v291 = vld [vmem:[%s165 + $0x378] sm:$0xff]
      %v292 = vld [vmem:[%s165 + $0x380] sm:$0xff]
      %v293 = vld [vmem:[%s165 + $0x388] sm:$0xff]
      %v294 = vld [vmem:[%s165 + $0x390] sm:$0xff]
      %v295 = vld [vmem:[%s165 + $0x398] sm:$0xff]
      %v296 = vld [vmem:[%s165 + $0x3a0] sm:$0xff]
      %v297 = vld [vmem:[%s165 + $0x3a8] sm:$0xff]
      %v298 = vld [vmem:[%s165 + $0x3b0] sm:$0xff]
      %v299 = vld [vmem:[%s165 + $0x3b8] sm:$0xff]
      %v300 = vld [vmem:[%s165 + $0x3c0] sm:$0xff]
      %v301 = vld [vmem:[%s165 + $0x3c8] sm:$0xff]
      %v302 = vld [vmem:[%s165 + $0x3d0] sm:$0xff]
      %v303 = vld [vmem:[%s165 + $0x3d8] sm:$0xff]
      %v304 = vld [vmem:[%s165 + $0x3e0] sm:$0xff]
      %v305 = vld [vmem:[%s165 + $0x3e8] sm:$0xff]
      %v306 = vld [vmem:[%s165 + $0x3f0] sm:$0xff]
      %v307 = vld [vmem:[%s165 + $0x3f8] sm:$0xff]
      %v308 = vld [vmem:[%s165 + $0x400] sm:$0xff]
      %v309 = vld [vmem:[%s165 + $0x408] sm:$0xff]
      %v310 = vld [vmem:[%s165 + $0x410] sm:$0xff]
      %v311 = vld [vmem:[%s165 + $0x418] sm:$0xff]
      %v312 = vld [vmem:[%s165 + $0x420] sm:$0xff]
      %v313 = vld [vmem:[%s165 + $0x428] sm:$0xff]
      %v314 = vld [vmem:[%s165 + $0x430] sm:$0xff]
      %v315 = vld [vmem:[%s165 + $0x438] sm:$0xff]
      %v316 = vld [vmem:[%s165 + $0x440] sm:$0xff]
      %v317 = vld [vmem:[%s165 + $0x448] sm:$0xff]
      %v318 = vld [vmem:[%s165 + $0x450] sm:$0xff]
      %v319 = vld [vmem:[%s165 + $0x458] sm:$0xff]
      %v320 = vld [vmem:[%s165 + $0x460] sm:$0xff]
      %v321 = vld [vmem:[%s165 + $0x468] sm:$0xff]
      %v322 = vld [vmem:[%s165 + $0x470] sm:$0xff]
      %v323 = vld [vmem:[%s165 + $0x478] sm:$0xff]
      %v324 = vld [vmem:[%s2] sm:$0xff]
      %v325 = vld [vmem:[%s2 + $0x8] sm:$0xff]
      %v326 = vld [vmem:[%s2 + $0x10] sm:$0xff]
      %v327 = vld [vmem:[%s2 + $0x18] sm:$0xff]
      %329 = vset.pattern.permute.xlu0 0
      %330 = vperm.xlu0 %329, %v324
      %v331 = vpop.permute.xlu0 %330
      %334 = vset.pattern.permute.xlu0 0
      %335 = vperm.xlu0 %334, %v325
      %v336 = vpop.permute.xlu0 %335
      %339 = vset.pattern.permute.xlu0 0
      %340 = vperm.xlu0 %339, %v326
      %v341 = vpop.permute.xlu0 %340
      %344 = vset.pattern.permute.xlu0 0
      %345 = vperm.xlu0 %344, %v327
      %v346 = vpop.permute.xlu0 %345
      %v356 = vunpack.c.l.b16 %v172
      %v357 = vunpack.c.h.b16 %v172
      %v358 = vunpack.c.l.b16 %v173
      %v359 = vunpack.c.l.b16 %v174
      %v360 = vunpack.c.h.b16 %v174
      %v361 = vunpack.c.l.b16 %v175
      %v362 = vunpack.c.l.b16 %v176
      %v363 = vunpack.c.h.b16 %v176
      %v364 = vunpack.c.l.b16 %v177
      %v365 = vunpack.c.l.b16 %v178
      %v366 = vunpack.c.h.b16 %v178
      %v367 = vunpack.c.l.b16 %v179
      %v368 = vpack.c.b16 %v359, %v356
      %v369 = vpack.c.b16 %v360, %v357
      %v370 = vpack.c.b16 %v361, %v358
      %v371 = vpack.c.b16 %v365, %v362
      %v372 = vpack.c.b16 %v366, %v363
      %v373 = vpack.c.b16 %v367, %v364
      %v522 = vunpack.c.l.b16 %v180
      %v523 = vunpack.c.h.b16 %v180
      %v524 = vunpack.c.l.b16 %v181
      %v525 = vunpack.c.h.b16 %v181
      %v526 = vunpack.c.l.b16 %v182
      %v527 = vunpack.c.h.b16 %v182
      %v528 = vunpack.c.l.b16 %v183
      %v529 = vunpack.c.h.b16 %v183
      %v530 = vunpack.c.l.b16 %v184
      %v531 = vunpack.c.h.b16 %v184
      %v532 = vunpack.c.l.b16 %v185
      %v533 = vunpack.c.h.b16 %v185
      %v534 = vunpack.c.l.b16 %v186
      %v535 = vunpack.c.h.b16 %v186
      %v536 = vunpack.c.l.b16 %v187
      %v537 = vunpack.c.h.b16 %v187
      %v538 = vunpack.c.l.b16 %v188
      %v539 = vunpack.c.h.b16 %v188
      %v540 = vunpack.c.l.b16 %v189
      %v541 = vunpack.c.h.b16 %v189
      %v542 = vunpack.c.l.b16 %v190
      %v543 = vunpack.c.h.b16 %v190
      %v544 = vunpack.c.l.b16 %v191
      %v545 = vunpack.c.h.b16 %v191
      %v546 = vunpack.c.l.b16 %v192
      %v547 = vunpack.c.h.b16 %v192
      %v548 = vunpack.c.l.b16 %v193
      %v549 = vunpack.c.h.b16 %v193
      %v550 = vunpack.c.l.b16 %v194
      %v551 = vunpack.c.h.b16 %v194
      %v552 = vunpack.c.l.b16 %v195
      %v553 = vunpack.c.h.b16 %v195
      %v554 = vunpack.c.l.b16 %v196
      %v555 = vunpack.c.h.b16 %v196
      %v556 = vunpack.c.l.b16 %v197
      %v557 = vunpack.c.h.b16 %v197
      %v558 = vunpack.c.l.b16 %v198
      %v559 = vunpack.c.h.b16 %v198
      %v560 = vunpack.c.l.b16 %v199
      %v561 = vunpack.c.h.b16 %v199
      %v562 = vunpack.c.l.b16 %v200
      %v563 = vunpack.c.h.b16 %v200
      %v564 = vunpack.c.l.b16 %v201
      %v565 = vunpack.c.h.b16 %v201
      %v566 = vunpack.c.l.b16 %v202
      %v567 = vunpack.c.h.b16 %v202
      %v568 = vunpack.c.l.b16 %v203
      %v569 = vunpack.c.h.b16 %v203
      %v570 = vunpack.c.l.b16 %v204
      %v571 = vunpack.c.h.b16 %v204
      %v572 = vunpack.c.l.b16 %v205
      %v573 = vunpack.c.h.b16 %v205
      %v574 = vunpack.c.l.b16 %v206
      %v575 = vunpack.c.h.b16 %v206
      %v576 = vunpack.c.l.b16 %v207
      %v577 = vunpack.c.h.b16 %v207
      %v578 = vunpack.c.l.b16 %v208
      %v579 = vunpack.c.h.b16 %v208
      %v580 = vunpack.c.l.b16 %v209
      %v581 = vunpack.c.h.b16 %v209
      %v582 = vunpack.c.l.b16 %v210
      %v583 = vunpack.c.h.b16 %v210
      %v584 = vunpack.c.l.b16 %v211
      %v585 = vunpack.c.h.b16 %v211
      %v586 = vunpack.c.l.b16 %v212
      %v587 = vunpack.c.h.b16 %v212
      %v588 = vunpack.c.l.b16 %v213
      %v589 = vunpack.c.h.b16 %v213
      %v590 = vunpack.c.l.b16 %v214
      %v591 = vunpack.c.h.b16 %v214
      %v592 = vunpack.c.l.b16 %v215
      %v593 = vunpack.c.h.b16 %v215
      %v594 = vunpack.c.l.b16 %v216
      %v595 = vunpack.c.h.b16 %v216
      %v596 = vunpack.c.l.b16 %v217
      %v597 = vunpack.c.h.b16 %v217
      %v598 = vunpack.c.l.b16 %v218
      %v599 = vunpack.c.h.b16 %v218
      %v600 = vunpack.c.l.b16 %v219
      %v601 = vunpack.c.h.b16 %v219
      %v602 = vunpack.c.l.b16 %v220
      %v603 = vunpack.c.h.b16 %v220
      %v604 = vunpack.c.l.b16 %v221
      %v605 = vunpack.c.h.b16 %v221
      %v606 = vunpack.c.l.b16 %v222
      %v607 = vunpack.c.h.b16 %v222
      %v608 = vunpack.c.l.b16 %v223
      %v609 = vunpack.c.h.b16 %v223
      %v610 = vunpack.c.l.b16 %v224
      %v611 = vunpack.c.h.b16 %v224
      %v612 = vunpack.c.l.b16 %v225
      %v613 = vunpack.c.h.b16 %v225
      %v614 = vunpack.c.l.b16 %v226
      %v615 = vunpack.c.h.b16 %v226
      %v616 = vunpack.c.l.b16 %v227
      %v617 = vunpack.c.h.b16 %v227
      %v618 = vunpack.c.l.b16 %v228
      %v619 = vunpack.c.h.b16 %v228
      %v620 = vunpack.c.l.b16 %v229
      %v621 = vunpack.c.h.b16 %v229
      %v622 = vunpack.c.l.b16 %v230
      %v623 = vunpack.c.h.b16 %v230
      %v624 = vunpack.c.l.b16 %v231
      %v625 = vunpack.c.h.b16 %v231
      %v626 = vunpack.c.l.b16 %v232
      %v627 = vunpack.c.h.b16 %v232
      %v628 = vunpack.c.l.b16 %v233
      %v629 = vunpack.c.h.b16 %v233
      %v630 = vunpack.c.l.b16 %v234
      %v631 = vunpack.c.h.b16 %v234
      %v632 = vunpack.c.l.b16 %v235
      %v633 = vunpack.c.h.b16 %v235
      %v634 = vunpack.c.l.b16 %v236
      %v635 = vunpack.c.h.b16 %v236
      %v636 = vunpack.c.l.b16 %v237
      %v637 = vunpack.c.h.b16 %v237
      %v638 = vunpack.c.l.b16 %v238
      %v639 = vunpack.c.h.b16 %v238
      %v640 = vunpack.c.l.b16 %v239
      %v641 = vunpack.c.h.b16 %v239
      %v642 = vunpack.c.l.b16 %v240
      %v643 = vunpack.c.h.b16 %v240
      %v644 = vunpack.c.l.b16 %v241
      %v645 = vunpack.c.h.b16 %v241
      %v646 = vunpack.c.l.b16 %v242
      %v647 = vunpack.c.h.b16 %v242
      %v648 = vunpack.c.l.b16 %v243
      %v649 = vunpack.c.h.b16 %v243
      %v650 = vunpack.c.l.b16 %v244
      %v651 = vunpack.c.h.b16 %v244
      %v652 = vunpack.c.l.b16 %v245
      %v653 = vunpack.c.h.b16 %v245
      %v654 = vunpack.c.l.b16 %v246
      %v655 = vunpack.c.h.b16 %v246
      %v656 = vunpack.c.l.b16 %v247
      %v657 = vunpack.c.h.b16 %v247
      %v658 = vunpack.c.l.b16 %v248
      %v659 = vunpack.c.h.b16 %v248
      %v660 = vunpack.c.l.b16 %v249
      %v661 = vunpack.c.h.b16 %v249
      %v662 = vunpack.c.l.b16 %v250
      %v663 = vunpack.c.h.b16 %v250
      %v664 = vunpack.c.l.b16 %v251
      %v665 = vunpack.c.h.b16 %v251
      %v666 = vunpack.c.l.b16 %v252
      %v667 = vunpack.c.h.b16 %v252
      %v668 = vunpack.c.l.b16 %v253
      %v669 = vunpack.c.h.b16 %v253
      %v670 = vunpack.c.l.b16 %v254
      %v671 = vunpack.c.h.b16 %v254
      %v672 = vunpack.c.l.b16 %v255
      %v673 = vunpack.c.h.b16 %v255
      %v674 = vunpack.c.l.b16 %v256
      %v675 = vunpack.c.h.b16 %v256
      %v676 = vunpack.c.l.b16 %v257
      %v677 = vunpack.c.h.b16 %v257
      %v678 = vunpack.c.l.b16 %v258
      %v679 = vunpack.c.h.b16 %v258
      %v680 = vunpack.c.l.b16 %v259
      %v681 = vunpack.c.h.b16 %v259
      %v682 = vunpack.c.l.b16 %v260
      %v683 = vunpack.c.h.b16 %v260
      %v684 = vunpack.c.l.b16 %v261
      %v685 = vunpack.c.h.b16 %v261
      %v686 = vunpack.c.l.b16 %v262
      %v687 = vunpack.c.h.b16 %v262
      %v688 = vunpack.c.l.b16 %v263
      %v689 = vunpack.c.h.b16 %v263
      %v690 = vunpack.c.l.b16 %v264
      %v691 = vunpack.c.h.b16 %v264
      %v692 = vunpack.c.l.b16 %v265
      %v693 = vunpack.c.h.b16 %v265
      %v694 = vunpack.c.l.b16 %v266
      %v695 = vunpack.c.h.b16 %v266
      %v696 = vunpack.c.l.b16 %v267
      %v697 = vunpack.c.h.b16 %v267
      %v698 = vunpack.c.l.b16 %v268
      %v699 = vunpack.c.h.b16 %v268
      %v700 = vunpack.c.l.b16 %v269
      %v701 = vunpack.c.h.b16 %v269
      %v702 = vunpack.c.l.b16 %v270
      %v703 = vunpack.c.h.b16 %v270
      %v704 = vunpack.c.l.b16 %v271
      %v705 = vunpack.c.h.b16 %v271
      %v706 = vunpack.c.l.b16 %v272
      %v707 = vunpack.c.h.b16 %v272
      %v708 = vunpack.c.l.b16 %v273
      %v709 = vunpack.c.h.b16 %v273
      %v710 = vunpack.c.l.b16 %v274
      %v711 = vunpack.c.h.b16 %v274
      %v712 = vunpack.c.l.b16 %v275
      %v713 = vunpack.c.h.b16 %v275
      %v714 = vunpack.c.l.b16 %v276
      %v715 = vunpack.c.h.b16 %v276
      %v716 = vunpack.c.l.b16 %v277
      %v717 = vunpack.c.h.b16 %v277
      %v718 = vunpack.c.l.b16 %v278
      %v719 = vunpack.c.h.b16 %v278
      %v720 = vunpack.c.l.b16 %v279
      %v721 = vunpack.c.h.b16 %v279
      %v722 = vunpack.c.l.b16 %v280
      %v723 = vunpack.c.h.b16 %v280
      %v724 = vunpack.c.l.b16 %v281
      %v725 = vunpack.c.h.b16 %v281
      %v726 = vunpack.c.l.b16 %v282
      %v727 = vunpack.c.h.b16 %v282
      %v728 = vunpack.c.l.b16 %v283
      %v729 = vunpack.c.h.b16 %v283
      %v730 = vunpack.c.l.b16 %v284
      %v731 = vunpack.c.h.b16 %v284
      %v732 = vunpack.c.l.b16 %v285
      %v733 = vunpack.c.h.b16 %v285
      %v734 = vunpack.c.l.b16 %v286
      %v735 = vunpack.c.h.b16 %v286
      %v736 = vunpack.c.l.b16 %v287
      %v737 = vunpack.c.h.b16 %v287
      %v738 = vunpack.c.l.b16 %v288
      %v739 = vunpack.c.h.b16 %v288
      %v740 = vunpack.c.l.b16 %v289
      %v741 = vunpack.c.h.b16 %v289
      %v742 = vunpack.c.l.b16 %v290
      %v743 = vunpack.c.h.b16 %v290
      %v744 = vunpack.c.l.b16 %v291
      %v745 = vunpack.c.h.b16 %v291
      %v746 = vunpack.c.l.b16 %v292
      %v747 = vunpack.c.h.b16 %v292
      %v748 = vunpack.c.l.b16 %v293
      %v749 = vunpack.c.h.b16 %v293
      %v750 = vunpack.c.l.b16 %v294
      %v751 = vunpack.c.h.b16 %v294
      %v752 = vunpack.c.l.b16 %v295
      %v753 = vunpack.c.h.b16 %v295
      %v754 = vunpack.c.l.b16 %v296
      %v755 = vunpack.c.h.b16 %v296
      %v756 = vunpack.c.l.b16 %v297
      %v757 = vunpack.c.h.b16 %v297
      %v758 = vunpack.c.l.b16 %v298
      %v759 = vunpack.c.h.b16 %v298
      %v760 = vunpack.c.l.b16 %v299
      %v761 = vunpack.c.h.b16 %v299
      %v762 = vunpack.c.l.b16 %v300
      %v763 = vunpack.c.h.b16 %v300
      %v764 = vunpack.c.l.b16 %v301
      %v765 = vunpack.c.h.b16 %v301
      %v766 = vunpack.c.l.b16 %v302
      %v767 = vunpack.c.h.b16 %v302
      %v768 = vunpack.c.l.b16 %v303
      %v769 = vunpack.c.h.b16 %v303
      %v770 = vunpack.c.l.b16 %v304
      %v771 = vunpack.c.h.b16 %v304
      %v772 = vunpack.c.l.b16 %v305
      %v773 = vunpack.c.h.b16 %v305
      %v774 = vunpack.c.l.b16 %v306
      %v775 = vunpack.c.h.b16 %v306
      %v776 = vunpack.c.l.b16 %v307
      %v777 = vunpack.c.h.b16 %v307
      %v778 = vunpack.c.l.b16 %v308
      %v779 = vunpack.c.h.b16 %v308
      %v780 = vunpack.c.l.b16 %v309
      %v781 = vunpack.c.h.b16 %v309
      %v782 = vunpack.c.l.b16 %v310
      %v783 = vunpack.c.h.b16 %v310
      %v784 = vunpack.c.l.b16 %v311
      %v785 = vunpack.c.h.b16 %v311
      %v786 = vunpack.c.l.b16 %v312
      %v787 = vunpack.c.h.b16 %v312
      %v788 = vunpack.c.l.b16 %v313
      %v789 = vunpack.c.h.b16 %v313
      %v790 = vunpack.c.l.b16 %v314
      %v791 = vunpack.c.h.b16 %v314
      %v792 = vunpack.c.l.b16 %v315
      %v793 = vunpack.c.h.b16 %v315
      %v794 = vunpack.c.l.b16 %v316
      %v795 = vunpack.c.h.b16 %v316
      %v796 = vunpack.c.l.b16 %v317
      %v797 = vunpack.c.h.b16 %v317
      %v798 = vunpack.c.l.b16 %v318
      %v799 = vunpack.c.h.b16 %v318
      %v800 = vunpack.c.l.b16 %v319
      %v801 = vunpack.c.h.b16 %v319
      %v802 = vunpack.c.l.b16 %v320
      %v803 = vunpack.c.h.b16 %v320
      %v804 = vunpack.c.l.b16 %v321
      %v805 = vunpack.c.h.b16 %v321
      %v806 = vunpack.c.l.b16 %v322
      %v807 = vunpack.c.h.b16 %v322
      %v808 = vunpack.c.l.b16 %v323
      %v809 = vunpack.c.h.b16 %v323
      %v810 = vpack.c.b16 %v530, %v522
      %v811 = vpack.c.b16 %v531, %v523
      %v812 = vpack.c.b16 %v532, %v524
      %v813 = vpack.c.b16 %v533, %v525
      %v814 = vpack.c.b16 %v534, %v526
      %v815 = vpack.c.b16 %v535, %v527
      %v816 = vpack.c.b16 %v536, %v528
      %v817 = vpack.c.b16 %v537, %v529
      %v818 = vpack.c.b16 %v546, %v538
      %v819 = vpack.c.b16 %v547, %v539
      %v820 = vpack.c.b16 %v548, %v540
      %v821 = vpack.c.b16 %v549, %v541
      %v822 = vpack.c.b16 %v550, %v542
      %v823 = vpack.c.b16 %v551, %v543
      %v824 = vpack.c.b16 %v552, %v544
      %v825 = vpack.c.b16 %v553, %v545
      %v826 = vpack.c.b16 %v562, %v554
      %v827 = vpack.c.b16 %v563, %v555
      %v828 = vpack.c.b16 %v564, %v556
      %v829 = vpack.c.b16 %v565, %v557
      %v830 = vpack.c.b16 %v566, %v558
      %v831 = vpack.c.b16 %v567, %v559
      %v832 = vpack.c.b16 %v568, %v560
      %v833 = vpack.c.b16 %v569, %v561
      %v834 = vpack.c.b16 %v578, %v570
      %v835 = vpack.c.b16 %v579, %v571
      %v836 = vpack.c.b16 %v580, %v572
      %v837 = vpack.c.b16 %v581, %v573
      %v838 = vpack.c.b16 %v582, %v574
      %v839 = vpack.c.b16 %v583, %v575
      %v840 = vpack.c.b16 %v584, %v576
      %v841 = vpack.c.b16 %v585, %v577
      %v842 = vpack.c.b16 %v594, %v586
      %v843 = vpack.c.b16 %v595, %v587
      %v844 = vpack.c.b16 %v596, %v588
      %v845 = vpack.c.b16 %v597, %v589
      %v846 = vpack.c.b16 %v598, %v590
      %v847 = vpack.c.b16 %v599, %v591
      %v848 = vpack.c.b16 %v600, %v592
      %v849 = vpack.c.b16 %v601, %v593
      %v850 = vpack.c.b16 %v610, %v602
      %v851 = vpack.c.b16 %v611, %v603
      %v852 = vpack.c.b16 %v612, %v604
      %v853 = vpack.c.b16 %v613, %v605
      %v854 = vpack.c.b16 %v614, %v606
      %v855 = vpack.c.b16 %v615, %v607
      %v856 = vpack.c.b16 %v616, %v608
      %v857 = vpack.c.b16 %v617, %v609
      %v858 = vpack.c.b16 %v626, %v618
      %v859 = vpack.c.b16 %v627, %v619
      %v860 = vpack.c.b16 %v628, %v620
      %v861 = vpack.c.b16 %v629, %v621
      %v862 = vpack.c.b16 %v630, %v622
      %v863 = vpack.c.b16 %v631, %v623
      %v864 = vpack.c.b16 %v632, %v624
      %v865 = vpack.c.b16 %v633, %v625
      %v866 = vpack.c.b16 %v642, %v634
      %v867 = vpack.c.b16 %v643, %v635
      %v868 = vpack.c.b16 %v644, %v636
      %v869 = vpack.c.b16 %v645, %v637
      %v870 = vpack.c.b16 %v646, %v638
      %v871 = vpack.c.b16 %v647, %v639
      %v872 = vpack.c.b16 %v648, %v640
      %v873 = vpack.c.b16 %v649, %v641
      %v874 = vpack.c.b16 %v658, %v650
      %v875 = vpack.c.b16 %v659, %v651
      %v876 = vpack.c.b16 %v660, %v652
      %v877 = vpack.c.b16 %v661, %v653
      %v878 = vpack.c.b16 %v662, %v654
      %v879 = vpack.c.b16 %v663, %v655
      %v880 = vpack.c.b16 %v664, %v656
      %v881 = vpack.c.b16 %v665, %v657
      %v882 = vpack.c.b16 %v674, %v666
      %v883 = vpack.c.b16 %v675, %v667
      %v884 = vpack.c.b16 %v676, %v668
      %v885 = vpack.c.b16 %v677, %v669
      %v886 = vpack.c.b16 %v678, %v670
      %v887 = vpack.c.b16 %v679, %v671
      %v888 = vpack.c.b16 %v680, %v672
      %v889 = vpack.c.b16 %v681, %v673
      %v890 = vpack.c.b16 %v690, %v682
      %v891 = vpack.c.b16 %v691, %v683
      %v892 = vpack.c.b16 %v692, %v684
      %v893 = vpack.c.b16 %v693, %v685
      %v894 = vpack.c.b16 %v694, %v686
      %v895 = vpack.c.b16 %v695, %v687
      %v896 = vpack.c.b16 %v696, %v688
      %v897 = vpack.c.b16 %v697, %v689
      %v898 = vpack.c.b16 %v706, %v698
      %v899 = vpack.c.b16 %v707, %v699
      %v900 = vpack.c.b16 %v708, %v700
      %v901 = vpack.c.b16 %v709, %v701
      %v902 = vpack.c.b16 %v710, %v702
      %v903 = vpack.c.b16 %v711, %v703
      %v904 = vpack.c.b16 %v712, %v704
      %v905 = vpack.c.b16 %v713, %v705
      %v906 = vpack.c.b16 %v722, %v714
      %v907 = vpack.c.b16 %v723, %v715
      %v908 = vpack.c.b16 %v724, %v716
      %v909 = vpack.c.b16 %v725, %v717
      %v910 = vpack.c.b16 %v726, %v718
      %v911 = vpack.c.b16 %v727, %v719
      %v912 = vpack.c.b16 %v728, %v720
      %v913 = vpack.c.b16 %v729, %v721
      %v914 = vpack.c.b16 %v738, %v730
      %v915 = vpack.c.b16 %v739, %v731
      %v916 = vpack.c.b16 %v740, %v732
      %v917 = vpack.c.b16 %v741, %v733
      %v918 = vpack.c.b16 %v742, %v734
      %v919 = vpack.c.b16 %v743, %v735
      %v920 = vpack.c.b16 %v744, %v736
      %v921 = vpack.c.b16 %v745, %v737
      %v922 = vpack.c.b16 %v754, %v746
      %v923 = vpack.c.b16 %v755, %v747
      %v924 = vpack.c.b16 %v756, %v748
      %v925 = vpack.c.b16 %v757, %v749
      %v926 = vpack.c.b16 %v758, %v750
      %v927 = vpack.c.b16 %v759, %v751
      %v928 = vpack.c.b16 %v760, %v752
      %v929 = vpack.c.b16 %v761, %v753
      %v930 = vpack.c.b16 %v770, %v762
      %v931 = vpack.c.b16 %v771, %v763
      %v932 = vpack.c.b16 %v772, %v764
      %v933 = vpack.c.b16 %v773, %v765
      %v934 = vpack.c.b16 %v774, %v766
      %v935 = vpack.c.b16 %v775, %v767
      %v936 = vpack.c.b16 %v776, %v768
      %v937 = vpack.c.b16 %v777, %v769
      %v938 = vpack.c.b16 %v786, %v778
      %v939 = vpack.c.b16 %v787, %v779
      %v940 = vpack.c.b16 %v788, %v780
      %v941 = vpack.c.b16 %v789, %v781
      %v942 = vpack.c.b16 %v790, %v782
      %v943 = vpack.c.b16 %v791, %v783
      %v944 = vpack.c.b16 %v792, %v784
      %v945 = vpack.c.b16 %v793, %v785
      %v946 = vpack.c.b16 %v802, %v794
      %v947 = vpack.c.b16 %v803, %v795
      %v948 = vpack.c.b16 %v804, %v796
      %v949 = vpack.c.b16 %v805, %v797
      %v950 = vpack.c.b16 %v806, %v798
      %v951 = vpack.c.b16 %v807, %v799
      %v952 = vpack.c.b16 %v808, %v800
      %v953 = vpack.c.b16 %v809, %v801
      %vm1098 = vcmask 261120
      %v1100 = vsel %vm1098, %v370, 0
      %v1103 = vsel %vm1098, %v373, 0
      %1105 = vmatprep.subr.bf16.mxu0 %v811
      %1106 = vmatpush1.bf16.msra.mxu0 %v810
      %1107 = vmatprep.subr.bf16.mxu0 %v819
      %1108 = vmatpush1.bf16.msra.mxu0 %v818
      %1109 = vmatprep.subr.bf16.mxu0 %v827
      %1110 = vmatpush1.bf16.msra.mxu0 %v826
      %1111 = vmatprep.subr.bf16.mxu0 %v835
      %1112 = vmatpush1.bf16.msra.mxu0 %v834
      %1113 = vmatprep.subr.bf16.mxu0 %v843
      %1114 = vmatpush1.bf16.msra.mxu0 %v842
      %1115 = vmatprep.subr.bf16.mxu0 %v851
      %1116 = vmatpush1.bf16.msra.mxu0 %v850
      %1117 = vmatprep.subr.bf16.mxu0 %v859
      %1118 = vmatpush1.bf16.msra.mxu0 %v858
      %1119 = vmatprep.subr.bf16.mxu0 %v867
      %1120 = vmatpush1.bf16.msra.mxu0 %v866
      %1121 = vmatprep.subr.bf16.mxu0 %v875
      %1122 = vmatpush1.bf16.msra.mxu0 %v874
      %1123 = vmatprep.subr.bf16.mxu0 %v883
      %1124 = vmatpush1.bf16.msra.mxu0 %v882
      %1125 = vmatprep.subr.bf16.mxu0 %v891
      %1126 = vmatpush1.bf16.msra.mxu0 %v890
      %1127 = vmatprep.subr.bf16.mxu0 %v899
      %1128 = vmatpush1.bf16.msra.mxu0 %v898
      %1129 = vmatprep.subr.bf16.mxu0 %v907
      %1130 = vmatpush1.bf16.msra.mxu0 %v906
      %1131 = vmatprep.subr.bf16.mxu0 %v915
      %1132 = vmatpush1.bf16.msra.mxu0 %v914
      %1133 = vmatprep.subr.bf16.mxu0 %v923
      %1134 = vmatpush1.bf16.msra.mxu0 %v922
      %1135 = vmatprep.subr.bf16.mxu0 %v931
      %1136 = vmatpush1.bf16.msra.mxu0 %v930
      %1137 = vmatprep.mubr.bf16.mxu0 %v369
      %1138 = vmatmul.mubr.bf16.gmra.mrb[0].mxu0 %v368
      %v1139 = vpop.f32.mrb[0].mxu0
      %v1140 = vadd.f32 %v331, %v1139
      %v1141 = vpop.f32.mrb[0].mxu0
      %v1142 = vadd.f32 %v331, %v1141
      %v1143 = vpop.f32.mrb[0].mxu0
      %v1144 = vadd.f32 %v336, %v1143
      %v1145 = vpop.f32.mrb[0].mxu0
      %v1146 = vadd.f32 %v336, %v1145
      %1147 = vmatprep.mubr.bf16.mxu0 %v372
      %1148 = vmatmul.mubr.bf16.gmra.mrb[0].mxu0 %v371
      %v1149 = vpop.f32.mrb[0].mxu0
      %v1150 = vadd.f32 %v341, %v1149
      %v1151 = vpop.f32.mrb[0].mxu0
      %v1152 = vadd.f32 %v341, %v1151
      %v1153 = vpop.f32.mrb[0].mxu0
      %v1154 = vadd.f32 %v346, %v1153
      %v1155 = vpop.f32.mrb[0].mxu0
      %v1156 = vadd.f32 %v346, %v1155
      %1157 = vdwg.mxu0
      %1158 = vmatprep.subr.bf16.mxu0 %v939
      %1159 = vmatpush1.bf16.msra.mxu0 %v938
      %1160 = vmatprep.subr.bf16.mxu0 %v947
      %1161 = vmatpush1.bf16.msra.mxu0 %v946
      %1162 = vmatprep.subr.bf16.mxu0 0
      %1163 = vmatpush1.bf16.msra.mxu0 0
      %1164 = vmatprep.subr.bf16.mxu0 0
      %1165 = vmatpush1.bf16.msra.mxu0 0
      %1166 = vmatprep.subr.bf16.mxu0 0
      %1167 = vmatpush1.bf16.msra.mxu0 0
      %1168 = vmatprep.subr.bf16.mxu0 0
      %1169 = vmatpush1.bf16.msra.mxu0 0
      %1170 = vmatprep.subr.bf16.mxu0 0
      %1171 = vmatpush1.bf16.msra.mxu0 0
      %1172 = vmatprep.subr.bf16.mxu0 0
      %1173 = vmatpush1.bf16.msra.mxu0 0
      %1174 = vmatprep.subr.bf16.mxu0 0
      %1175 = vmatpush1.bf16.msra.mxu0 0
      %1176 = vmatprep.subr.bf16.mxu0 0
      %1177 = vmatpush1.bf16.msra.mxu0 0
      %1178 = vmatprep.subr.bf16.mxu0 0
      %1179 = vmatpush1.bf16.msra.mxu0 0
      %1180 = vmatprep.subr.bf16.mxu0 0
      %1181 = vmatpush1.bf16.msra.mxu0 0
      %1182 = vmatprep.subr.bf16.mxu0 0
      %1183 = vmatpush1.bf16.msra.mxu0 0
      %1184 = vmatprep.subr.bf16.mxu0 0
      %1185 = vmatpush1.bf16.msra.mxu0 0
      %1186 = vmatprep.subr.bf16.mxu0 0
      %1187 = vmatpush1.bf16.msra.mxu0 0
      %1188 = vmatprep.subr.bf16.mxu0 0
      %1189 = vmatpush1.bf16.msra.mxu0 0
      %1190 = vmatprep.mubr.bf16.mxu0 0
      %1191 = vmatmul.mubr.bf16.gmra.mrb[0].mxu0 %v1100
      %v1192 = vpop.f32.mrb[0].mxu0
      %v1193 = vadd.f32 %v1140, %v1192
      %v1194 = vpop.f32.mrb[0].mxu0
      %v1195 = vadd.f32 %v1142, %v1194
      %v1196 = vpop.f32.mrb[0].mxu0
      %v1197 = vadd.f32 %v1144, %v1196
      %v1198 = vpop.f32.mrb[0].mxu0
      %v1199 = vadd.f32 %v1146, %v1198
      %1200 = vmatprep.mubr.bf16.mxu0 0
      %1201 = vmatmul.mubr.bf16.gmra.mrb[0].mxu0 %v1103
      %v1202 = vpop.f32.mrb[0].mxu0
      %v1203 = vadd.f32 %v1150, %v1202
      %v1204 = vpop.f32.mrb[0].mxu0
      %v1205 = vadd.f32 %v1152, %v1204
      %v1206 = vpop.f32.mrb[0].mxu0
      %v1207 = vadd.f32 %v1154, %v1206
      %v1208 = vpop.f32.mrb[0].mxu0
      %v1209 = vadd.f32 %v1156, %v1208
      %1210 = vdwg.mxu0
      %1211 = vmatprep.subr.bf16.mxu0 %v813
      %1212 = vmatpush1.bf16.msra.mxu0 %v812
      %1213 = vmatprep.subr.bf16.mxu0 %v821
      %1214 = vmatpush1.bf16.msra.mxu0 %v820
      %1215 = vmatprep.subr.bf16.mxu0 %v829
      %1216 = vmatpush1.bf16.msra.mxu0 %v828
      %1217 = vmatprep.subr.bf16.mxu0 %v837
      %1218 = vmatpush1.bf16.msra.mxu0 %v836
      %1219 = vmatprep.subr.bf16.mxu0 %v845
      %1220 = vmatpush1.bf16.msra.mxu0 %v844
      %1221 = vmatprep.subr.bf16.mxu0 %v853
      %1222 = vmatpush1.bf16.msra.mxu0 %v852
      %1223 = vmatprep.subr.bf16.mxu0 %v861
      %1224 = vmatpush1.bf16.msra.mxu0 %v860
      %1225 = vmatprep.subr.bf16.mxu0 %v869
      %1226 = vmatpush1.bf16.msra.mxu0 %v868
      %1227 = vmatprep.subr.bf16.mxu0 %v877
      %1228 = vmatpush1.bf16.msra.mxu0 %v876
      %1229 = vmatprep.subr.bf16.mxu0 %v885
      %1230 = vmatpush1.bf16.msra.mxu0 %v884
      %1231 = vmatprep.subr.bf16.mxu0 %v893
      %1232 = vmatpush1.bf16.msra.mxu0 %v892
      %1233 = vmatprep.subr.bf16.mxu0 %v901
      %1234 = vmatpush1.bf16.msra.mxu0 %v900
      %1235 = vmatprep.subr.bf16.mxu0 %v909
      %1236 = vmatpush1.bf16.msra.mxu0 %v908
      %1237 = vmatprep.subr.bf16.mxu0 %v917
      %1238 = vmatpush1.bf16.msra.mxu0 %v916
      %1239 = vmatprep.subr.bf16.mxu0 %v925
      %1240 = vmatpush1.bf16.msra.mxu0 %v924
      %1241 = vmatprep.subr.bf16.mxu0 %v933
      %1242 = vmatpush1.bf16.msra.mxu0 %v932
      %1243 = vmatprep.mubr.bf16.mxu0 %v369
      %1244 = vmatmul.mubr.bf16.gmra.mrb[0].mxu0 %v368
      %v1245 = vpop.f32.mrb[0].mxu0
      %v1246 = vadd.f32 %v331, %v1245
      %v1247 = vpop.f32.mrb[0].mxu0
      %v1248 = vadd.f32 %v331, %v1247
      %v1249 = vpop.f32.mrb[0].mxu0
      %v1250 = vadd.f32 %v336, %v1249
      %v1251 = vpop.f32.mrb[0].mxu0
      %v1252 = vadd.f32 %v336, %v1251
      %1253 = vmatprep.mubr.bf16.mxu0 %v372
      %1254 = vmatmul.mubr.bf16.gmra.mrb[0].mxu0 %v371
      %v1255 = vpop.f32.mrb[0].mxu0
      %v1256 = vadd.f32 %v341, %v1255
      %v1257 = vpop.f32.mrb[0].mxu0
      %v1258 = vadd.f32 %v341, %v1257
      %v1259 = vpop.f32.mrb[0].mxu0
      %v1260 = vadd.f32 %v346, %v1259
      %v1261 = vpop.f32.mrb[0].mxu0
      %v1262 = vadd.f32 %v346, %v1261
      %1263 = vdwg.mxu0
      %1264 = vmatprep.subr.bf16.mxu0 %v941
      %1265 = vmatpush1.bf16.msra.mxu0 %v940
      %1266 = vmatprep.subr.bf16.mxu0 %v949
      %1267 = vmatpush1.bf16.msra.mxu0 %v948
      %1268 = vmatprep.subr.bf16.mxu0 0
      %1269 = vmatpush1.bf16.msra.mxu0 0
      %1270 = vmatprep.subr.bf16.mxu0 0
      %1271 = vmatpush1.bf16.msra.mxu0 0
      %1272 = vmatprep.subr.bf16.mxu0 0
      %1273 = vmatpush1.bf16.msra.mxu0 0
      %1274 = vmatprep.subr.bf16.mxu0 0
      %1275 = vmatpush1.bf16.msra.mxu0 0
      %1276 = vmatprep.subr.bf16.mxu0 0
      %1277 = vmatpush1.bf16.msra.mxu0 0
      %1278 = vmatprep.subr.bf16.mxu0 0
      %1279 = vmatpush1.bf16.msra.mxu0 0
      %1280 = vmatprep.subr.bf16.mxu0 0
      %1281 = vmatpush1.bf16.msra.mxu0 0
      %1282 = vmatprep.subr.bf16.mxu0 0
      %1283 = vmatpush1.bf16.msra.mxu0 0
      %1284 = vmatprep.subr.bf16.mxu0 0
      %1285 = vmatpush1.bf16.msra.mxu0 0
      %1286 = vmatprep.subr.bf16.mxu0 0
      %1287 = vmatpush1.bf16.msra.mxu0 0
      %1288 = vmatprep.subr.bf16.mxu0 0
      %1289 = vmatpush1.bf16.msra.mxu0 0
      %1290 = vmatprep.subr.bf16.mxu0 0
      %1291 = vmatpush1.bf16.msra.mxu0 0
      %1292 = vmatprep.subr.bf16.mxu0 0
      %1293 = vmatpush1.bf16.msra.mxu0 0
      %1294 = vmatprep.subr.bf16.mxu0 0
      %1295 = vmatpush1.bf16.msra.mxu0 0
      %1296 = vmatprep.mubr.bf16.mxu0 0
      %1297 = vmatmul.mubr.bf16.gmra.mrb[0].mxu0 %v1100
      %v1298 = vpop.f32.mrb[0].mxu0
      %v1299 = vadd.f32 %v1246, %v1298
      %v1300 = vpop.f32.mrb[0].mxu0
      %v1301 = vadd.f32 %v1248, %v1300
      %v1302 = vpop.f32.mrb[0].mxu0
      %v1303 = vadd.f32 %v1250, %v1302
      %v1304 = vpop.f32.mrb[0].mxu0
      %v1305 = vadd.f32 %v1252, %v1304
      %1306 = vmatprep.mubr.bf16.mxu0 0
      %1307 = vmatmul.mubr.bf16.gmra.mrb[0].mxu0 %v1103
      %v1308 = vpop.f32.mrb[0].mxu0
      %v1309 = vadd.f32 %v1256, %v1308
      %v1310 = vpop.f32.mrb[0].mxu0
      %v1311 = vadd.f32 %v1258, %v1310
      %v1312 = vpop.f32.mrb[0].mxu0
      %v1313 = vadd.f32 %v1260, %v1312
      %v1314 = vpop.f32.mrb[0].mxu0
      %v1315 = vadd.f32 %v1262, %v1314
      %1316 = vdwg.mxu0
      %1317 = vmatprep.subr.bf16.mxu0 %v815
      %1318 = vmatpush1.bf16.msra.mxu0 %v814
      %1319 = vmatprep.subr.bf16.mxu0 %v823
      %1320 = vmatpush1.bf16.msra.mxu0 %v822
      %1321 = vmatprep.subr.bf16.mxu0 %v831
      %1322 = vmatpush1.bf16.msra.mxu0 %v830
      %1323 = vmatprep.subr.bf16.mxu0 %v839
      %1324 = vmatpush1.bf16.msra.mxu0 %v838
      %1325 = vmatprep.subr.bf16.mxu0 %v847
      %1326 = vmatpush1.bf16.msra.mxu0 %v846
      %1327 = vmatprep.subr.bf16.mxu0 %v855
      %1328 = vmatpush1.bf16.msra.mxu0 %v854
      %1329 = vmatprep.subr.bf16.mxu0 %v863
      %1330 = vmatpush1.bf16.msra.mxu0 %v862
      %1331 = vmatprep.subr.bf16.mxu0 %v871
      %1332 = vmatpush1.bf16.msra.mxu0 %v870
      %1333 = vmatprep.subr.bf16.mxu0 %v879
      %1334 = vmatpush1.bf16.msra.mxu0 %v878
      %1335 = vmatprep.subr.bf16.mxu0 %v887
      %1336 = vmatpush1.bf16.msra.mxu0 %v886
      %1337 = vmatprep.subr.bf16.mxu0 %v895
      %1338 = vmatpush1.bf16.msra.mxu0 %v894
      %1339 = vmatprep.subr.bf16.mxu0 %v903
      %1340 = vmatpush1.bf16.msra.mxu0 %v902
      %1341 = vmatprep.subr.bf16.mxu0 %v911
      %1342 = vmatpush1.bf16.msra.mxu0 %v910
      %1343 = vmatprep.subr.bf16.mxu0 %v919
      %1344 = vmatpush1.bf16.msra.mxu0 %v918
      %1345 = vmatprep.subr.bf16.mxu0 %v927
      %1346 = vmatpush1.bf16.msra.mxu0 %v926
      %1347 = vmatprep.subr.bf16.mxu0 %v935
      %1348 = vmatpush1.bf16.msra.mxu0 %v934
      %1349 = vmatprep.mubr.bf16.mxu0 %v369
      %1350 = vmatmul.mubr.bf16.gmra.mrb[0].mxu0 %v368
      %v1351 = vpop.f32.mrb[0].mxu0
      %v1352 = vadd.f32 %v331, %v1351
      %v1353 = vpop.f32.mrb[0].mxu0
      %v1354 = vadd.f32 %v331, %v1353
      %v1355 = vpop.f32.mrb[0].mxu0
      %v1356 = vadd.f32 %v336, %v1355
      %v1357 = vpop.f32.mrb[0].mxu0
      %v1358 = vadd.f32 %v336, %v1357
      %1359 = vmatprep.mubr.bf16.mxu0 %v372
      %1360 = vmatmul.mubr.bf16.gmra.mrb[0].mxu0 %v371
      %v1361 = vpop.f32.mrb[0].mxu0
      %v1362 = vadd.f32 %v341, %v1361
      %v1363 = vpop.f32.mrb[0].mxu0
      %v1364 = vadd.f32 %v341, %v1363
      %v1365 = vpop.f32.mrb[0].mxu0
      %v1366 = vadd.f32 %v346, %v1365
      %v1367 = vpop.f32.mrb[0].mxu0
      %v1368 = vadd.f32 %v346, %v1367
      %1369 = vdwg.mxu0
      %1370 = vmatprep.subr.bf16.mxu0 %v943
      %1371 = vmatpush1.bf16.msra.mxu0 %v942
      %1372 = vmatprep.subr.bf16.mxu0 %v951
      %1373 = vmatpush1.bf16.msra.mxu0 %v950
      %1374 = vmatprep.subr.bf16.mxu0 0
      %1375 = vmatpush1.bf16.msra.mxu0 0
      %1376 = vmatprep.subr.bf16.mxu0 0
      %1377 = vmatpush1.bf16.msra.mxu0 0
      %1378 = vmatprep.subr.bf16.mxu0 0
      %1379 = vmatpush1.bf16.msra.mxu0 0
      %1380 = vmatprep.subr.bf16.mxu0 0
      %1381 = vmatpush1.bf16.msra.mxu0 0
      %1382 = vmatprep.subr.bf16.mxu0 0
      %1383 = vmatpush1.bf16.msra.mxu0 0
      %1384 = vmatprep.subr.bf16.mxu0 0
      %1385 = vmatpush1.bf16.msra.mxu0 0
      %1386 = vmatprep.subr.bf16.mxu0 0
      %1387 = vmatpush1.bf16.msra.mxu0 0
      %1388 = vmatprep.subr.bf16.mxu0 0
      %1389 = vmatpush1.bf16.msra.mxu0 0
      %1390 = vmatprep.subr.bf16.mxu0 0
      %1391 = vmatpush1.bf16.msra.mxu0 0
      %1392 = vmatprep.subr.bf16.mxu0 0
      %1393 = vmatpush1.bf16.msra.mxu0 0
      %1394 = vmatprep.subr.bf16.mxu0 0
      %1395 = vmatpush1.bf16.msra.mxu0 0
      %1396 = vmatprep.subr.bf16.mxu0 0
      %1397 = vmatpush1.bf16.msra.mxu0 0
      %1398 = vmatprep.subr.bf16.mxu0 0
      %1399 = vmatpush1.bf16.msra.mxu0 0
      %1400 = vmatprep.subr.bf16.mxu0 0
      %1401 = vmatpush1.bf16.msra.mxu0 0
      %1402 = vmatprep.mubr.bf16.mxu0 0
      %1403 = vmatmul.mubr.bf16.gmra.mrb[0].mxu0 %v1100
      %v1404 = vpop.f32.mrb[0].mxu0
      %v1405 = vadd.f32 %v1352, %v1404
      %v1406 = vpop.f32.mrb[0].mxu0
      %v1407 = vadd.f32 %v1354, %v1406
      %v1408 = vpop.f32.mrb[0].mxu0
      %v1409 = vadd.f32 %v1356, %v1408
      %v1410 = vpop.f32.mrb[0].mxu0
      %v1411 = vadd.f32 %v1358, %v1410
      %1412 = vmatprep.mubr.bf16.mxu0 0
      %1413 = vmatmul.mubr.bf16.gmra.mrb[0].mxu0 %v1103
      %v1414 = vpop.f32.mrb[0].mxu0
      %v1415 = vadd.f32 %v1362, %v1414
      %v1416 = vpop.f32.mrb[0].mxu0
      %v1417 = vadd.f32 %v1364, %v1416
      %v1418 = vpop.f32.mrb[0].mxu0
      %v1419 = vadd.f32 %v1366, %v1418
      %v1420 = vpop.f32.mrb[0].mxu0
      %v1421 = vadd.f32 %v1368, %v1420
      %1422 = vdwg.mxu0
      %1423 = vmatprep.subr.bf16.mxu0 %v817
      %1424 = vmatpush1.bf16.msra.mxu0 %v816
      %1425 = vmatprep.subr.bf16.mxu0 %v825
      %1426 = vmatpush1.bf16.msra.mxu0 %v824
      %1427 = vmatprep.subr.bf16.mxu0 %v833
      %1428 = vmatpush1.bf16.msra.mxu0 %v832
      %1429 = vmatprep.subr.bf16.mxu0 %v841
      %1430 = vmatpush1.bf16.msra.mxu0 %v840
      %1431 = vmatprep.subr.bf16.mxu0 %v849
      %1432 = vmatpush1.bf16.msra.mxu0 %v848
      %1433 = vmatprep.subr.bf16.mxu0 %v857
      %1434 = vmatpush1.bf16.msra.mxu0 %v856
      %1435 = vmatprep.subr.bf16.mxu0 %v865
      %1436 = vmatpush1.bf16.msra.mxu0 %v864
      %1437 = vmatprep.subr.bf16.mxu0 %v873
      %1438 = vmatpush1.bf16.msra.mxu0 %v872
      %1439 = vmatprep.subr.bf16.mxu0 %v881
      %1440 = vmatpush1.bf16.msra.mxu0 %v880
      %1441 = vmatprep.subr.bf16.mxu0 %v889
      %1442 = vmatpush1.bf16.msra.mxu0 %v888
      %1443 = vmatprep.subr.bf16.mxu0 %v897
      %1444 = vmatpush1.bf16.msra.mxu0 %v896
      %1445 = vmatprep.subr.bf16.mxu0 %v905
      %1446 = vmatpush1.bf16.msra.mxu0 %v904
      %1447 = vmatprep.subr.bf16.mxu0 %v913
      %1448 = vmatpush1.bf16.msra.mxu0 %v912
      %1449 = vmatprep.subr.bf16.mxu0 %v921
      %1450 = vmatpush1.bf16.msra.mxu0 %v920
      %1451 = vmatprep.subr.bf16.mxu0 %v929
      %1452 = vmatpush1.bf16.msra.mxu0 %v928
      %1453 = vmatprep.subr.bf16.mxu0 %v937
      %1454 = vmatpush1.bf16.msra.mxu0 %v936
      %1455 = vmatprep.mubr.bf16.mxu0 %v369
      %1456 = vmatmul.mubr.bf16.gmra.mrb[0].mxu0 %v368
      %v1457 = vpop.f32.mrb[0].mxu0
      %v1458 = vadd.f32 %v331, %v1457
      %v1459 = vpop.f32.mrb[0].mxu0
      %v1460 = vadd.f32 %v331, %v1459
      %v1461 = vpop.f32.mrb[0].mxu0
      %v1462 = vadd.f32 %v336, %v1461
      %v1463 = vpop.f32.mrb[0].mxu0
      %v1464 = vadd.f32 %v336, %v1463
      %1465 = vmatprep.mubr.bf16.mxu0 %v372
      %1466 = vmatmul.mubr.bf16.gmra.mrb[0].mxu0 %v371
      %v1467 = vpop.f32.mrb[0].mxu0
      %v1468 = vadd.f32 %v341, %v1467
      %v1469 = vpop.f32.mrb[0].mxu0
      %v1470 = vadd.f32 %v341, %v1469
      %v1471 = vpop.f32.mrb[0].mxu0
      %v1472 = vadd.f32 %v346, %v1471
      %v1473 = vpop.f32.mrb[0].mxu0
      %v1474 = vadd.f32 %v346, %v1473
      %1475 = vdwg.mxu0
      %1476 = vmatprep.subr.bf16.mxu0 %v945
      %1477 = vmatpush1.bf16.msra.mxu0 %v944
      %1478 = vmatprep.subr.bf16.mxu0 %v953
      %1479 = vmatpush1.bf16.msra.mxu0 %v952
      %1480 = vmatprep.subr.bf16.mxu0 0
      %1481 = vmatpush1.bf16.msra.mxu0 0
      %1482 = vmatprep.subr.bf16.mxu0 0
      %1483 = vmatpush1.bf16.msra.mxu0 0
      %1484 = vmatprep.subr.bf16.mxu0 0
      %1485 = vmatpush1.bf16.msra.mxu0 0
      %1486 = vmatprep.subr.bf16.mxu0 0
      %1487 = vmatpush1.bf16.msra.mxu0 0
      %1488 = vmatprep.subr.bf16.mxu0 0
      %1489 = vmatpush1.bf16.msra.mxu0 0
      %1490 = vmatprep.subr.bf16.mxu0 0
      %1491 = vmatpush1.bf16.msra.mxu0 0
      %1492 = vmatprep.subr.bf16.mxu0 0
      %1493 = vmatpush1.bf16.msra.mxu0 0
      %1494 = vmatprep.subr.bf16.mxu0 0
      %1495 = vmatpush1.bf16.msra.mxu0 0
      %1496 = vmatprep.subr.bf16.mxu0 0
      %1497 = vmatpush1.bf16.msra.mxu0 0
      %1498 = vmatprep.subr.bf16.mxu0 0
      %1499 = vmatpush1.bf16.msra.mxu0 0
      %1500 = vmatprep.subr.bf16.mxu0 0
      %1501 = vmatpush1.bf16.msra.mxu0 0
      %1502 = vmatprep.subr.bf16.mxu0 0
      %1503 = vmatpush1.bf16.msra.mxu0 0
      %1504 = vmatprep.subr.bf16.mxu0 0
      %1505 = vmatpush1.bf16.msra.mxu0 0
      %1506 = vmatprep.subr.bf16.mxu0 0
      %1507 = vmatpush1.bf16.msra.mxu0 0
      %1508 = vmatprep.mubr.bf16.mxu0 0
      %1509 = vmatmul.mubr.bf16.gmra.mrb[0].mxu0 %v1100
      %v1510 = vpop.f32.mrb[0].mxu0
      %v1511 = vadd.f32 %v1458, %v1510
      %v1512 = vpop.f32.mrb[0].mxu0
      %v1513 = vadd.f32 %v1460, %v1512
      %v1514 = vpop.f32.mrb[0].mxu0
      %v1515 = vadd.f32 %v1462, %v1514
      %v1516 = vpop.f32.mrb[0].mxu0
      %v1517 = vadd.f32 %v1464, %v1516
      %1518 = vmatprep.mubr.bf16.mxu0 0
      %1519 = vmatmul.mubr.bf16.gmra.mrb[0].mxu0 %v1103
      %v1520 = vpop.f32.mrb[0].mxu0
      %v1521 = vadd.f32 %v1468, %v1520
      %v1522 = vpop.f32.mrb[0].mxu0
      %v1523 = vadd.f32 %v1470, %v1522
      %v1524 = vpop.f32.mrb[0].mxu0
      %v1525 = vadd.f32 %v1472, %v1524
      %v1526 = vpop.f32.mrb[0].mxu0
      %v1527 = vadd.f32 %v1474, %v1526
      %1528 = vdwg.mxu0
      %v1529 = vmax.f32 %v1193, 0.0
      %v1530 = vmax.f32 %v1195, 0.0
      %v1531 = vmax.f32 %v1299, 0.0
      %v1532 = vmax.f32 %v1301, 0.0
      %v1533 = vmax.f32 %v1405, 0.0
      %v1534 = vmax.f32 %v1407, 0.0
      %v1535 = vmax.f32 %v1511, 0.0
      %v1536 = vmax.f32 %v1513, 0.0
      %v1537 = vmax.f32 %v1197, 0.0
      %v1538 = vmax.f32 %v1199, 0.0
      %v1539 = vmax.f32 %v1303, 0.0
      %v1540 = vmax.f32 %v1305, 0.0
      %v1541 = vmax.f32 %v1409, 0.0
      %v1542 = vmax.f32 %v1411, 0.0
      %v1543 = vmax.f32 %v1515, 0.0
      %v1544 = vmax.f32 %v1517, 0.0
      %v1545 = vmax.f32 %v1203, 0.0
      %v1546 = vmax.f32 %v1205, 0.0
      %v1547 = vmax.f32 %v1309, 0.0
      %v1548 = vmax.f32 %v1311, 0.0
      %v1549 = vmax.f32 %v1415, 0.0
      %v1550 = vmax.f32 %v1417, 0.0
      %v1551 = vmax.f32 %v1521, 0.0
      %v1552 = vmax.f32 %v1523, 0.0
      %v1553 = vmax.f32 %v1207, 0.0
      %v1554 = vmax.f32 %v1209, 0.0
      %v1555 = vmax.f32 %v1313, 0.0
      %v1556 = vmax.f32 %v1315, 0.0
      %v1557 = vmax.f32 %v1419, 0.0
      %v1558 = vmax.f32 %v1421, 0.0
      %v1559 = vmax.f32 %v1525, 0.0
      %v1560 = vmax.f32 %v1527, 0.0
      %1561 = vset.pattern.permute.xlu0 1
      %1562 = vperm.xlu0 %1561, %v324
      %v1563 = vpop.permute.xlu0 %1562
      %1565 = vset.pattern.permute.xlu0 1
      %1566 = vperm.xlu0 %1565, %v325
      %v1567 = vpop.permute.xlu0 %1566
      %1569 = vset.pattern.permute.xlu0 1
      %1570 = vperm.xlu0 %1569, %v326
      %v1571 = vpop.permute.xlu0 %1570
      %1573 = vset.pattern.permute.xlu0 1
      %1574 = vperm.xlu0 %1573, %v327
      %v1575 = vpop.permute.xlu0 %1574
      %v1577 = vmul.f32 %v1529, %v1563
      %v1578 = vmul.f32 %v1530, %v1563
      %v1579 = vmul.f32 %v1531, %v1563
      %v1580 = vmul.f32 %v1532, %v1563
      %v1581 = vmul.f32 %v1533, %v1563
      %v1582 = vmul.f32 %v1534, %v1563
      %v1583 = vmul.f32 %v1535, %v1563
      %v1584 = vmul.f32 %v1536, %v1563
      %v1585 = vmul.f32 %v1537, %v1567
      %v1586 = vmul.f32 %v1538, %v1567
      %v1587 = vmul.f32 %v1539, %v1567
      %v1588 = vmul.f32 %v1540, %v1567
      %v1589 = vmul.f32 %v1541, %v1567
      %v1590 = vmul.f32 %v1542, %v1567
      %v1591 = vmul.f32 %v1543, %v1567
      %v1592 = vmul.f32 %v1544, %v1567
      %v1593 = vmul.f32 %v1545, %v1571
      %v1594 = vmul.f32 %v1546, %v1571
      %v1595 = vmul.f32 %v1547, %v1571
      %v1596 = vmul.f32 %v1548, %v1571
      %v1597 = vmul.f32 %v1549, %v1571
      %v1598 = vmul.f32 %v1550, %v1571
      %v1599 = vmul.f32 %v1551, %v1571
      %v1600 = vmul.f32 %v1552, %v1571
      %v1601 = vmul.f32 %v1553, %v1575
      %v1602 = vmul.f32 %v1554, %v1575
      %v1603 = vmul.f32 %v1555, %v1575
      %v1604 = vmul.f32 %v1556, %v1575
      %v1605 = vmul.f32 %v1557, %v1575
      %v1606 = vmul.f32 %v1558, %v1575
      %v1607 = vmul.f32 %v1559, %v1575
      %v1608 = vmul.f32 %v1560, %v1575
      %1609 = vset.pattern.permute.xlu0 2
      %1610 = vperm.xlu0 %1609, %v324
      %v1611 = vpop.permute.xlu0 %1610
      %1613 = vset.pattern.permute.xlu0 2
      %1614 = vperm.xlu0 %1613, %v325
      %v1615 = vpop.permute.xlu0 %1614
      %1617 = vset.pattern.permute.xlu0 2
      %1618 = vperm.xlu0 %1617, %v326
      %v1619 = vpop.permute.xlu0 %1618
      %1621 = vset.pattern.permute.xlu0 2
      %1622 = vperm.xlu0 %1621, %v327
      %v1623 = vpop.permute.xlu0 %1622
      %v1625 = vadd.f32 %v1577, %v1611
      %v1626 = vadd.f32 %v1578, %v1611
      %v1627 = vadd.f32 %v1579, %v1611
      %v1628 = vadd.f32 %v1580, %v1611
      %v1629 = vadd.f32 %v1581, %v1611
      %v1630 = vadd.f32 %v1582, %v1611
      %v1631 = vadd.f32 %v1583, %v1611
      %v1632 = vadd.f32 %v1584, %v1611
      %v1633 = vadd.f32 %v1585, %v1615
      %v1634 = vadd.f32 %v1586, %v1615
      %v1635 = vadd.f32 %v1587, %v1615
      %v1636 = vadd.f32 %v1588, %v1615
      %v1637 = vadd.f32 %v1589, %v1615
      %v1638 = vadd.f32 %v1590, %v1615
      %v1639 = vadd.f32 %v1591, %v1615
      %v1640 = vadd.f32 %v1592, %v1615
      %v1641 = vadd.f32 %v1593, %v1619
      %v1642 = vadd.f32 %v1594, %v1619
      %v1643 = vadd.f32 %v1595, %v1619
      %v1644 = vadd.f32 %v1596, %v1619
      %v1645 = vadd.f32 %v1597, %v1619
      %v1646 = vadd.f32 %v1598, %v1619
      %v1647 = vadd.f32 %v1599, %v1619
      %v1648 = vadd.f32 %v1600, %v1619
      %v1649 = vadd.f32 %v1601, %v1623
      %v1650 = vadd.f32 %v1602, %v1623
      %v1651 = vadd.f32 %v1603, %v1623
      %v1652 = vadd.f32 %v1604, %v1623
      %v1653 = vadd.f32 %v1605, %v1623
      %v1654 = vadd.f32 %v1606, %v1623
      %v1655 = vadd.f32 %v1607, %v1623
      %v1656 = vadd.f32 %v1608, %v1623
      %v1657 = vmax.f32 %v1625, %v1627
      %v1658 = vmax.f32 %v1626, %v1628
      %v1659 = vmax.f32 %v1633, %v1635
      %v1660 = vmax.f32 %v1634, %v1636
      %v1661 = vmax.f32 %v1641, %v1643
      %v1662 = vmax.f32 %v1642, %v1644
      %v1663 = vmax.f32 %v1649, %v1651
      %v1664 = vmax.f32 %v1650, %v1652
      %v1665 = vmax.f32 %v1657, %v1629
      %v1666 = vmax.f32 %v1658, %v1630
      %v1667 = vmax.f32 %v1659, %v1637
      %v1668 = vmax.f32 %v1660, %v1638
      %v1669 = vmax.f32 %v1661, %v1645
      %v1670 = vmax.f32 %v1662, %v1646
      %v1671 = vmax.f32 %v1663, %v1653
      %v1672 = vmax.f32 %v1664, %v1654
      %v1673 = vmax.f32 %v1665, %v1631
      %v1674 = vmax.f32 %v1666, %v1632
      %v1675 = vmax.f32 %v1667, %v1639
      %v1676 = vmax.f32 %v1668, %v1640
      %v1677 = vmax.f32 %v1669, %v1647
      %v1678 = vmax.f32 %v1670, %v1648
      %v1679 = vmax.f32 %v1671, %v1655
      %v1680 = vmax.f32 %v1672, %v1656
      %v1681 = vpack.c.bf16 %v1675, %v1673
      %v1682 = vpack.c.bf16 %v1676, %v1674
      %v1683 = vpack.c.bf16 %v1679, %v1677
      %v1684 = vpack.c.bf16 %v1680, %v1678
      %v1689 = vunpack.c.l.b16 %v1681
      %v1690 = vunpack.c.l.b16 %v1682
      %v1691 = vunpack.c.h.b16 %v1681
      %v1692 = vunpack.c.h.b16 %v1682
      %v1693 = vunpack.c.l.b16 %v1683
      %v1694 = vunpack.c.l.b16 %v1684
      %v1695 = vunpack.c.h.b16 %v1683
      %v1696 = vunpack.c.h.b16 %v1684
      %v1697 = vpack.c.b16 %v1690, %v1689
      %v1698 = vpack.c.b16 %v1692, %v1691
      %v1699 = vpack.c.b16 %v1694, %v1693
      %v1700 = vpack.c.b16 %v1696, %v1695
      %vm1705 = vcmask 1043456
      %vm1706 = vcmask 130052
      %vm1707 = vmor %vm1706, %vm1705
      %1708 = vst.msk [vmem:[%s170] sm:$0xff] %vm1707, %v1697
      %1709 = vst.msk [vmem:[%s170 + $0x8] sm:$0xff] %vm1707, %v1698
      %1710 = vst.msk [vmem:[%s170 + $0x10] sm:$0xff] %vm1707, %v1699
      %1711 = vst.msk [vmem:[%s170 + $0x18] sm:$0xff] %vm1707, %v1700
      %p1712 = scmp.lt.s32.totalorder %s14, 1
      %s1713 = scalar_select %p1712, %s14, 1
      %s1714 = smul.addr %s1713, 8
      %s1715 = smul.addr %s1714, 4
      %s1716 = scalar_lea.vmem %s3, %s1715
      // Predicated region
      $region33: #{module1_forward.8} parent=31 // pred_check
        %p1717 = pneg %p100
      $region34: #{module1_forward.8} parent=31 // pred_check_branch
        %1719 = sbr.rel (%p1717) target = $region36
      $region35: #{module1_forward.8} parent=31 // pred_region
        _
      $region36: #{module1_forward.8} parent=31 // pred_fallthru
        _
    $region32: #{module1_forward.8} parent=5 // pred_fallthru
      _
    %p1720 = scmp.le.s32.totalorder 2, %s9
    // Predicated region
    $region37: #{module1_forward.8} parent=5 // pred_check
      %p1721 = pneg %p1720
    $region38: #{module1_forward.8} parent=5 // pred_check_branch
      %1723 = sbr.rel (%p1721) target = $region40
    $region39: #{module1_forward.8} parent=5 // pred_region
      %s1724 = ssub.s32 %s9, 2
      // Predicated region
      $region41: #{module1_forward.8} parent=39 // pred_check
        %p1725 = pneg %p106
      $region42: #{module1_forward.8} parent=39 // pred_check_branch
        %1727 = sbr.rel (%p1725) target = $region44
      $region43: #{module1_forward.8} parent=39 // pred_region
        %p1728 = scmp.lt.s32.totalorder %s15, 1
        %s1729 = scalar_select %p1728, %s15, 1
        %s1730 = smul.addr %s1729, 8
        %s1731 = smul.addr %s1730, 4
        %s1732 = scalar_lea.vmem %s3, %s1731
      $region44: #{module1_forward.8} parent=39 // pred_fallthru
        _
    $region40: #{module1_forward.8} parent=5 // pred_fallthru
      _
  $region6: #{module1_forward.8} parent=0 // loop_footer
    %s13 = sadd.s32 1, %s9
  $region7: #{module1_forward.8} parent=0 // loop_footer_branch
    %8 = sbr.rel target = $region3
  $region8: #{module1_forward.8} parent=0 // loop_exit
    _

// kernel: module1_forward.9
$region0: #{module1_forward.9}
  #allocation0 [shape = 'u32[]', space=smem, size = 0x4, offset = 0x4, fixed_abs, tag = 'smem constant byte address 0x4 - core index']
  #allocation1 [shape = 'u32[144,128]{1,0:T(1,128)}', space=vmem, size = 0x12000, scoped, tag = 'internal scratch']
  %s0 = inlined_call_operand.vmem [shape: bf16[2,4608], index: 0, kind: input, shape index: {}]
  %s1 = inlined_call_operand.vmem [shape: bf16[4608,64], index: 1, kind: input, shape index: {}]
  %s2 = inlined_call_operand.vmem [shape: f32[1,64], index: 2, kind: input, shape index: {}]
  %s3 = inlined_call_operand.vmem [shape: bf16[64,2], index: 3, kind: input, shape index: {}]
  %s4 = inlined_call_operand.vmem [shape: f32[1,2], index: 4, kind: input, shape index: {}]
  %s5 = inlined_call_operand.hbm [shape: f32[2,2], index: 5, kind: output, shape index: {}]
  %s6 = sld [smem:[#allocation0]]
  $region30: #{module1_forward.9} parent=0
    _
  %s8 = ssub.s32 1, %s6
  %s9 = scalar_select 0, %s8, %s6
  $region1: #{module1_forward.9} parent=0
    #allocation2 [shape = 'u8[1024]{0}', space=vmem, size = 0x400, scoped, tag = 'output window, operand 0, single buffered']
    #allocation3 [shape = 's32[1]{0}', space=sflag, size = 0x4, scoped, tag = 'scoped memory for module1_forward.9']
    %10 = vsyncpa [#allocation3], 0
    // Predicated region
    $region2: #{module1_forward.9} parent=1 // pred_check
      _
    $region3: #{module1_forward.9} parent=1 // pred_check_branch
      %12 = sbr.rel (0) target = $region5
    $region4: #{module1_forward.9} parent=1 // pred_region
      _
    $region5: #{module1_forward.9} parent=1 // pred_fallthru
      _
    // Predicated region
    $region6: #{module1_forward.9} parent=1 // pred_check
      _
    $region7: #{module1_forward.9} parent=1 // pred_check_branch
      %14 = sbr.rel (0) target = $region9
    $region8: #{module1_forward.9} parent=1 // pred_region
      _
    $region9: #{module1_forward.9} parent=1 // pred_fallthru
      _
    // Predicated region
    $region10: #{module1_forward.9} parent=1 // pred_check
      _
    $region11: #{module1_forward.9} parent=1 // pred_check_branch
      %16 = sbr.rel (0) target = $region13
    $region12: #{module1_forward.9} parent=1 // pred_region
      _
    $region13: #{module1_forward.9} parent=1 // pred_fallthru
      _
    // Predicated region
    $region14: #{module1_forward.9} parent=1 // pred_check
      _
    $region15: #{module1_forward.9} parent=1 // pred_check_branch
      %18 = sbr.rel (0) target = $region17
    $region16: #{module1_forward.9} parent=1 // pred_region
      _
    $region17: #{module1_forward.9} parent=1 // pred_fallthru
      _
    // Predicated region
    $region18: #{module1_forward.9} parent=1 // pred_check
      _
    $region19: #{module1_forward.9} parent=1 // pred_check_branch
      %20 = sbr.rel (0) target = $region21
    $region20: #{module1_forward.9} parent=1 // pred_region
      _
    $region21: #{module1_forward.9} parent=1 // pred_fallthru
      _
    %v22 = vld [vmem:[%s0] sm:$0xff]
    %v23 = vld [vmem:[%s0 + $0x8] sm:$0xff]
    %v24 = vld [vmem:[%s0 + $0x10] sm:$0xff]
    %v25 = vld [vmem:[%s0 + $0x18] sm:$0xff]
    %v26 = vld [vmem:[%s0 + $0x20] sm:$0xf]
    %v27 = vld [vmem:[%s1] sm:$0xf]
    %v28 = vld [vmem:[%s1 + $0x4] sm:$0xf]
    %v29 = vld [vmem:[%s1 + $0x8] sm:$0xf]
    %v30 = vld [vmem:[%s1 + $0xc] sm:$0xf]
    %v31 = vld [vmem:[%s1 + $0x10] sm:$0xf]
    %v32 = vld [vmem:[%s1 + $0x14] sm:$0xf]
    %v33 = vld [vmem:[%s1 + $0x18] sm:$0xf]
    %v34 = vld [vmem:[%s1 + $0x1c] sm:$0xf]
    %v35 = vld [vmem:[%s1 + $0x20] sm:$0xf]
    %v36 = vld [vmem:[%s1 + $0x24] sm:$0xf]
    %v37 = vld [vmem:[%s1 + $0x28] sm:$0xf]
    %v38 = vld [vmem:[%s1 + $0x2c] sm:$0xf]
    %v39 = vld [vmem:[%s1 + $0x30] sm:$0xf]
    %v40 = vld [vmem:[%s1 + $0x34] sm:$0xf]
    %v41 = vld [vmem:[%s1 + $0x38] sm:$0xf]
    %v42 = vld [vmem:[%s1 + $0x3c] sm:$0xf]
    %v43 = vld [vmem:[%s1 + $0x40] sm:$0xf]
    %v44 = vld [vmem:[%s1 + $0x44] sm:$0xf]
    %v45 = vld [vmem:[%s1 + $0x48] sm:$0xf]
    %v46 = vld [vmem:[%s1 + $0x4c] sm:$0xf]
    %v47 = vld [vmem:[%s1 + $0x50] sm:$0xf]
    %v48 = vld [vmem:[%s1 + $0x54] sm:$0xf]
    %v49 = vld [vmem:[%s1 + $0x58] sm:$0xf]
    %v50 = vld [vmem:[%s1 + $0x5c] sm:$0xf]
    %v51 = vld [vmem:[%s1 + $0x60] sm:$0xf]
    %v52 = vld [vmem:[%s1 + $0x64] sm:$0xf]
    %v53 = vld [vmem:[%s1 + $0x68] sm:$0xf]
    %v54 = vld [vmem:[%s1 + $0x6c] sm:$0xf]
    %v55 = vld [vmem:[%s1 + $0x70] sm:$0xf]
    %v56 = vld [vmem:[%s1 + $0x74] sm:$0xf]
    %v57 = vld [vmem:[%s1 + $0x78] sm:$0xf]
    %v58 = vld [vmem:[%s1 + $0x7c] sm:$0xf]
    %v59 = vld [vmem:[%s1 + $0x80] sm:$0xf]
    %v60 = vld [vmem:[%s1 + $0x84] sm:$0xf]
    %v61 = vld [vmem:[%s1 + $0x88] sm:$0xf]
    %v62 = vld [vmem:[%s1 + $0x8c] sm:$0xf]
    %v63 = vld [vmem:[%s1 + $0x90] sm:$0xf]
    %v64 = vld [vmem:[%s1 + $0x94] sm:$0xf]
    %v65 = vld [vmem:[%s1 + $0x98] sm:$0xf]
    %v66 = vld [vmem:[%s1 + $0x9c] sm:$0xf]
    %v67 = vld [vmem:[%s1 + $0xa0] sm:$0xf]
    %v68 = vld [vmem:[%s1 + $0xa4] sm:$0xf]
    %v69 = vld [vmem:[%s1 + $0xa8] sm:$0xf]
    %v70 = vld [vmem:[%s1 + $0xac] sm:$0xf]
    %v71 = vld [vmem:[%s1 + $0xb0] sm:$0xf]
    %v72 = vld [vmem:[%s1 + $0xb4] sm:$0xf]
    %v73 = vld [vmem:[%s1 + $0xb8] sm:$0xf]
    %v74 = vld [vmem:[%s1 + $0xbc] sm:$0xf]
    %v75 = vld [vmem:[%s1 + $0xc0] sm:$0xf]
    %v76 = vld [vmem:[%s1 + $0xc4] sm:$0xf]
    %v77 = vld [vmem:[%s1 + $0xc8] sm:$0xf]
    %v78 = vld [vmem:[%s1 + $0xcc] sm:$0xf]
    %v79 = vld [vmem:[%s1 + $0xd0] sm:$0xf]
    %v80 = vld [vmem:[%s1 + $0xd4] sm:$0xf]
    %v81 = vld [vmem:[%s1 + $0xd8] sm:$0xf]
    %v82 = vld [vmem:[%s1 + $0xdc] sm:$0xf]
    %v83 = vld [vmem:[%s1 + $0xe0] sm:$0xf]
    %v84 = vld [vmem:[%s1 + $0xe4] sm:$0xf]
    %v85 = vld [vmem:[%s1 + $0xe8] sm:$0xf]
    %v86 = vld [vmem:[%s1 + $0xec] sm:$0xf]
    %v87 = vld [vmem:[%s1 + $0xf0] sm:$0xf]
    %v88 = vld [vmem:[%s1 + $0xf4] sm:$0xf]
    %v89 = vld [vmem:[%s1 + $0xf8] sm:$0xf]
    %v90 = vld [vmem:[%s1 + $0xfc] sm:$0xf]
    %v91 = vld [vmem:[%s1 + $0x100] sm:$0xf]
    %v92 = vld [vmem:[%s1 + $0x104] sm:$0xf]
    %v93 = vld [vmem:[%s1 + $0x108] sm:$0xf]
    %v94 = vld [vmem:[%s1 + $0x10c] sm:$0xf]
    %v95 = vld [vmem:[%s1 + $0x110] sm:$0xf]
    %v96 = vld [vmem:[%s1 + $0x114] sm:$0xf]
    %v97 = vld [vmem:[%s1 + $0x118] sm:$0xf]
    %v98 = vld [vmem:[%s1 + $0x11c] sm:$0xf]
    %v99 = vld [vmem:[%s1 + $0x120] sm:$0xf]
    %v100 = vld [vmem:[%s1 + $0x124] sm:$0xf]
    %v101 = vld [vmem:[%s1 + $0x128] sm:$0xf]
    %v102 = vld [vmem:[%s1 + $0x12c] sm:$0xf]
    %v103 = vld [vmem:[%s1 + $0x130] sm:$0xf]
    %v104 = vld [vmem:[%s1 + $0x134] sm:$0xf]
    %v105 = vld [vmem:[%s1 + $0x138] sm:$0xf]
    %v106 = vld [vmem:[%s1 + $0x13c] sm:$0xf]
    %v107 = vld [vmem:[%s1 + $0x140] sm:$0xf]
    %v108 = vld [vmem:[%s1 + $0x144] sm:$0xf]
    %v109 = vld [vmem:[%s1 + $0x148] sm:$0xf]
    %v110 = vld [vmem:[%s1 + $0x14c] sm:$0xf]
    %v111 = vld [vmem:[%s1 + $0x150] sm:$0xf]
    %v112 = vld [vmem:[%s1 + $0x154] sm:$0xf]
    %v113 = vld [vmem:[%s1 + $0x158] sm:$0xf]
    %v114 = vld [vmem:[%s1 + $0x15c] sm:$0xf]
    %v115 = vld [vmem:[%s1 + $0x160] sm:$0xf]
    %v116 = vld [vmem:[%s1 + $0x164] sm:$0xf]
    %v117 = vld [vmem:[%s1 + $0x168] sm:$0xf]
    %v118 = vld [vmem:[%s1 + $0x16c] sm:$0xf]
    %v119 = vld [vmem:[%s1 + $0x170] sm:$0xf]
    %v120 = vld [vmem:[%s1 + $0x174] sm:$0xf]
    %v121 = vld [vmem:[%s1 + $0x178] sm:$0xf]
    %v122 = vld [vmem:[%s1 + $0x17c] sm:$0xf]
    %v123 = vld [vmem:[%s1 + $0x180] sm:$0xf]
    %v124 = vld [vmem:[%s1 + $0x184] sm:$0xf]
    %v125 = vld [vmem:[%s1 + $0x188] sm:$0xf]
    %v126 = vld [vmem:[%s1 + $0x18c] sm:$0xf]
    %v127 = vld [vmem:[%s1 + $0x190] sm:$0xf]
    %v128 = vld [vmem:[%s1 + $0x194] sm:$0xf]
    %v129 = vld [vmem:[%s1 + $0x198] sm:$0xf]
    %v130 = vld [vmem:[%s1 + $0x19c] sm:$0xf]
    %v131 = vld [vmem:[%s1 + $0x1a0] sm:$0xf]
    %v132 = vld [vmem:[%s1 + $0x1a4] sm:$0xf]
    %v133 = vld [vmem:[%s1 + $0x1a8] sm:$0xf]
    %v134 = vld [vmem:[%s1 + $0x1ac] sm:$0xf]
    %v135 = vld [vmem:[%s1 + $0x1b0] sm:$0xf]
    %v136 = vld [vmem:[%s1 + $0x1b4] sm:$0xf]
    %v137 = vld [vmem:[%s1 + $0x1b8] sm:$0xf]
    %v138 = vld [vmem:[%s1 + $0x1bc] sm:$0xf]
    %v139 = vld [vmem:[%s1 + $0x1c0] sm:$0xf]
    %v140 = vld [vmem:[%s1 + $0x1c4] sm:$0xf]
    %v141 = vld [vmem:[%s1 + $0x1c8] sm:$0xf]
    %v142 = vld [vmem:[%s1 + $0x1cc] sm:$0xf]
    %v143 = vld [vmem:[%s1 + $0x1d0] sm:$0xf]
    %v144 = vld [vmem:[%s1 + $0x1d4] sm:$0xf]
    %v145 = vld [vmem:[%s1 + $0x1d8] sm:$0xf]
    %v146 = vld [vmem:[%s1 + $0x1dc] sm:$0xf]
    %v147 = vld [vmem:[%s1 + $0x1e0] sm:$0xf]
    %v148 = vld [vmem:[%s1 + $0x1e4] sm:$0xf]
    %v149 = vld [vmem:[%s1 + $0x1e8] sm:$0xf]
    %v150 = vld [vmem:[%s1 + $0x1ec] sm:$0xf]
    %v151 = vld [vmem:[%s1 + $0x1f0] sm:$0xf]
    %v152 = vld [vmem:[%s1 + $0x1f4] sm:$0xf]
    %v153 = vld [vmem:[%s1 + $0x1f8] sm:$0xf]
    %v154 = vld [vmem:[%s1 + $0x1fc] sm:$0xf]
    %v155 = vld [vmem:[%s1 + $0x200] sm:$0xf]
    %v156 = vld [vmem:[%s1 + $0x204] sm:$0xf]
    %v157 = vld [vmem:[%s1 + $0x208] sm:$0xf]
    %v158 = vld [vmem:[%s1 + $0x20c] sm:$0xf]
    %v159 = vld [vmem:[%s1 + $0x210] sm:$0xf]
    %v160 = vld [vmem:[%s1 + $0x214] sm:$0xf]
    %v161 = vld [vmem:[%s1 + $0x218] sm:$0xf]
    %v162 = vld [vmem:[%s1 + $0x21c] sm:$0xf]
    %v163 = vld [vmem:[%s1 + $0x220] sm:$0xf]
    %v164 = vld [vmem:[%s1 + $0x224] sm:$0xf]
    %v165 = vld [vmem:[%s1 + $0x228] sm:$0xf]
    %v166 = vld [vmem:[%s1 + $0x22c] sm:$0xf]
    %v167 = vld [vmem:[%s1 + $0x230] sm:$0xf]
    %v168 = vld [vmem:[%s1 + $0x234] sm:$0xf]
    %v169 = vld [vmem:[%s1 + $0x238] sm:$0xf]
    %v170 = vld [vmem:[%s1 + $0x23c] sm:$0xf]
    %v171 = vld [vmem:[%s1 + $0x240] sm:$0xf]
    %v172 = vld [vmem:[%s1 + $0x244] sm:$0xf]
    %v173 = vld [vmem:[%s1 + $0x248] sm:$0xf]
    %v174 = vld [vmem:[%s1 + $0x24c] sm:$0xf]
    %v175 = vld [vmem:[%s1 + $0x250] sm:$0xf]
    %v176 = vld [vmem:[%s1 + $0x254] sm:$0xf]
    %v177 = vld [vmem:[%s1 + $0x258] sm:$0xf]
    %v178 = vld [vmem:[%s1 + $0x25c] sm:$0xf]
    %v179 = vld [vmem:[%s1 + $0x260] sm:$0xf]
    %v180 = vld [vmem:[%s1 + $0x264] sm:$0xf]
    %v181 = vld [vmem:[%s1 + $0x268] sm:$0xf]
    %v182 = vld [vmem:[%s1 + $0x26c] sm:$0xf]
    %v183 = vld [vmem:[%s1 + $0x270] sm:$0xf]
    %v184 = vld [vmem:[%s1 + $0x274] sm:$0xf]
    %v185 = vld [vmem:[%s1 + $0x278] sm:$0xf]
    %v186 = vld [vmem:[%s1 + $0x27c] sm:$0xf]
    %v187 = vld [vmem:[%s1 + $0x280] sm:$0xf]
    %v188 = vld [vmem:[%s1 + $0x284] sm:$0xf]
    %v189 = vld [vmem:[%s1 + $0x288] sm:$0xf]
    %v190 = vld [vmem:[%s1 + $0x28c] sm:$0xf]
    %v191 = vld [vmem:[%s1 + $0x290] sm:$0xf]
    %v192 = vld [vmem:[%s1 + $0x294] sm:$0xf]
    %v193 = vld [vmem:[%s1 + $0x298] sm:$0xf]
    %v194 = vld [vmem:[%s1 + $0x29c] sm:$0xf]
    %v195 = vld [vmem:[%s1 + $0x2a0] sm:$0xf]
    %v196 = vld [vmem:[%s1 + $0x2a4] sm:$0xf]
    %v197 = vld [vmem:[%s1 + $0x2a8] sm:$0xf]
    %v198 = vld [vmem:[%s1 + $0x2ac] sm:$0xf]
    %v199 = vld [vmem:[%s1 + $0x2b0] sm:$0xf]
    %v200 = vld [vmem:[%s1 + $0x2b4] sm:$0xf]
    %v201 = vld [vmem:[%s1 + $0x2b8] sm:$0xf]
    %v202 = vld [vmem:[%s1 + $0x2bc] sm:$0xf]
    %v203 = vld [vmem:[%s1 + $0x2c0] sm:$0xf]
    %v204 = vld [vmem:[%s1 + $0x2c4] sm:$0xf]
    %v205 = vld [vmem:[%s1 + $0x2c8] sm:$0xf]
    %v206 = vld [vmem:[%s1 + $0x2cc] sm:$0xf]
    %v207 = vld [vmem:[%s1 + $0x2d0] sm:$0xf]
    %v208 = vld [vmem:[%s1 + $0x2d4] sm:$0xf]
    %v209 = vld [vmem:[%s1 + $0x2d8] sm:$0xf]
    %v210 = vld [vmem:[%s1 + $0x2dc] sm:$0xf]
    %v211 = vld [vmem:[%s1 + $0x2e0] sm:$0xf]
    %v212 = vld [vmem:[%s1 + $0x2e4] sm:$0xf]
    %v213 = vld [vmem:[%s1 + $0x2e8] sm:$0xf]
    %v214 = vld [vmem:[%s1 + $0x2ec] sm:$0xf]
    %v215 = vld [vmem:[%s1 + $0x2f0] sm:$0xf]
    %v216 = vld [vmem:[%s1 + $0x2f4] sm:$0xf]
    %v217 = vld [vmem:[%s1 + $0x2f8] sm:$0xf]
    %v218 = vld [vmem:[%s1 + $0x2fc] sm:$0xf]
    %v219 = vld [vmem:[%s1 + $0x300] sm:$0xf]
    %v220 = vld [vmem:[%s1 + $0x304] sm:$0xf]
    %v221 = vld [vmem:[%s1 + $0x308] sm:$0xf]
    %v222 = vld [vmem:[%s1 + $0x30c] sm:$0xf]
    %v223 = vld [vmem:[%s1 + $0x310] sm:$0xf]
    %v224 = vld [vmem:[%s1 + $0x314] sm:$0xf]
    %v225 = vld [vmem:[%s1 + $0x318] sm:$0xf]
    %v226 = vld [vmem:[%s1 + $0x31c] sm:$0xf]
    %v227 = vld [vmem:[%s1 + $0x320] sm:$0xf]
    %v228 = vld [vmem:[%s1 + $0x324] sm:$0xf]
    %v229 = vld [vmem:[%s1 + $0x328] sm:$0xf]
    %v230 = vld [vmem:[%s1 + $0x32c] sm:$0xf]
    %v231 = vld [vmem:[%s1 + $0x330] sm:$0xf]
    %v232 = vld [vmem:[%s1 + $0x334] sm:$0xf]
    %v233 = vld [vmem:[%s1 + $0x338] sm:$0xf]
    %v234 = vld [vmem:[%s1 + $0x33c] sm:$0xf]
    %v235 = vld [vmem:[%s1 + $0x340] sm:$0xf]
    %v236 = vld [vmem:[%s1 + $0x344] sm:$0xf]
    %v237 = vld [vmem:[%s1 + $0x348] sm:$0xf]
    %v238 = vld [vmem:[%s1 + $0x34c] sm:$0xf]
    %v239 = vld [vmem:[%s1 + $0x350] sm:$0xf]
    %v240 = vld [vmem:[%s1 + $0x354] sm:$0xf]
    %v241 = vld [vmem:[%s1 + $0x358] sm:$0xf]
    %v242 = vld [vmem:[%s1 + $0x35c] sm:$0xf]
    %v243 = vld [vmem:[%s1 + $0x360] sm:$0xf]
    %v244 = vld [vmem:[%s1 + $0x364] sm:$0xf]
    %v245 = vld [vmem:[%s1 + $0x368] sm:$0xf]
    %v246 = vld [vmem:[%s1 + $0x36c] sm:$0xf]
    %v247 = vld [vmem:[%s1 + $0x370] sm:$0xf]
    %v248 = vld [vmem:[%s1 + $0x374] sm:$0xf]
    %v249 = vld [vmem:[%s1 + $0x378] sm:$0xf]
    %v250 = vld [vmem:[%s1 + $0x37c] sm:$0xf]
    %v251 = vld [vmem:[%s1 + $0x380] sm:$0xf]
    %v252 = vld [vmem:[%s1 + $0x384] sm:$0xf]
    %v253 = vld [vmem:[%s1 + $0x388] sm:$0xf]
    %v254 = vld [vmem:[%s1 + $0x38c] sm:$0xf]
    %v255 = vld [vmem:[%s1 + $0x390] sm:$0xf]
    %v256 = vld [vmem:[%s1 + $0x394] sm:$0xf]
    %v257 = vld [vmem:[%s1 + $0x398] sm:$0xf]
    %v258 = vld [vmem:[%s1 + $0x39c] sm:$0xf]
    %v259 = vld [vmem:[%s1 + $0x3a0] sm:$0xf]
    %v260 = vld [vmem:[%s1 + $0x3a4] sm:$0xf]
    %v261 = vld [vmem:[%s1 + $0x3a8] sm:$0xf]
    %v262 = vld [vmem:[%s1 + $0x3ac] sm:$0xf]
    %v263 = vld [vmem:[%s1 + $0x3b0] sm:$0xf]
    %v264 = vld [vmem:[%s1 + $0x3b4] sm:$0xf]
    %v265 = vld [vmem:[%s1 + $0x3b8] sm:$0xf]
    %v266 = vld [vmem:[%s1 + $0x3bc] sm:$0xf]
    %v267 = vld [vmem:[%s1 + $0x3c0] sm:$0xf]
    %v268 = vld [vmem:[%s1 + $0x3c4] sm:$0xf]
    %v269 = vld [vmem:[%s1 + $0x3c8] sm:$0xf]
    %v270 = vld [vmem:[%s1 + $0x3cc] sm:$0xf]
    %v271 = vld [vmem:[%s1 + $0x3d0] sm:$0xf]
    %v272 = vld [vmem:[%s1 + $0x3d4] sm:$0xf]
    %v273 = vld [vmem:[%s1 + $0x3d8] sm:$0xf]
    %v274 = vld [vmem:[%s1 + $0x3dc] sm:$0xf]
    %v275 = vld [vmem:[%s1 + $0x3e0] sm:$0xf]
    %v276 = vld [vmem:[%s1 + $0x3e4] sm:$0xf]
    %v277 = vld [vmem:[%s1 + $0x3e8] sm:$0xf]
    %v278 = vld [vmem:[%s1 + $0x3ec] sm:$0xf]
    %v279 = vld [vmem:[%s1 + $0x3f0] sm:$0xf]
    %v280 = vld [vmem:[%s1 + $0x3f4] sm:$0xf]
    %v281 = vld [vmem:[%s1 + $0x3f8] sm:$0xf]
    %v282 = vld [vmem:[%s1 + $0x3fc] sm:$0xf]
    %v283 = vld [vmem:[%s1 + $0x400] sm:$0xf]
    %v284 = vld [vmem:[%s1 + $0x404] sm:$0xf]
    %v285 = vld [vmem:[%s1 + $0x408] sm:$0xf]
    %v286 = vld [vmem:[%s1 + $0x40c] sm:$0xf]
    %v287 = vld [vmem:[%s1 + $0x410] sm:$0xf]
    %v288 = vld [vmem:[%s1 + $0x414] sm:$0xf]
    %v289 = vld [vmem:[%s1 + $0x418] sm:$0xf]
    %v290 = vld [vmem:[%s1 + $0x41c] sm:$0xf]
    %v291 = vld [vmem:[%s1 + $0x420] sm:$0xf]
    %v292 = vld [vmem:[%s1 + $0x424] sm:$0xf]
    %v293 = vld [vmem:[%s1 + $0x428] sm:$0xf]
    %v294 = vld [vmem:[%s1 + $0x42c] sm:$0xf]
    %v295 = vld [vmem:[%s1 + $0x430] sm:$0xf]
    %v296 = vld [vmem:[%s1 + $0x434] sm:$0xf]
    %v297 = vld [vmem:[%s1 + $0x438] sm:$0xf]
    %v298 = vld [vmem:[%s1 + $0x43c] sm:$0xf]
    %v299 = vld [vmem:[%s1 + $0x440] sm:$0xf]
    %v300 = vld [vmem:[%s1 + $0x444] sm:$0xf]
    %v301 = vld [vmem:[%s1 + $0x448] sm:$0xf]
    %v302 = vld [vmem:[%s1 + $0x44c] sm:$0xf]
    %v303 = vld [vmem:[%s1 + $0x450] sm:$0xf]
    %v304 = vld [vmem:[%s1 + $0x454] sm:$0xf]
    %v305 = vld [vmem:[%s1 + $0x458] sm:$0xf]
    %v306 = vld [vmem:[%s1 + $0x45c] sm:$0xf]
    %v307 = vld [vmem:[%s1 + $0x460] sm:$0xf]
    %v308 = vld [vmem:[%s1 + $0x464] sm:$0xf]
    %v309 = vld [vmem:[%s1 + $0x468] sm:$0xf]
    %v310 = vld [vmem:[%s1 + $0x46c] sm:$0xf]
    %v311 = vld [vmem:[%s1 + $0x470] sm:$0xf]
    %v312 = vld [vmem:[%s1 + $0x474] sm:$0xf]
    %v313 = vld [vmem:[%s1 + $0x478] sm:$0xf]
    %v314 = vld [vmem:[%s1 + $0x47c] sm:$0xf]
    %v315 = vld [vmem:[%s1 + $0x480] sm:$0xf]
    %v316 = vld [vmem:[%s1 + $0x484] sm:$0xf]
    %v317 = vld [vmem:[%s1 + $0x488] sm:$0xf]
    %v318 = vld [vmem:[%s1 + $0x48c] sm:$0xf]
    %v319 = vld [vmem:[%s1 + $0x490] sm:$0xf]
    %v320 = vld [vmem:[%s1 + $0x494] sm:$0xf]
    %v321 = vld [vmem:[%s1 + $0x498] sm:$0xf]
    %v322 = vld [vmem:[%s1 + $0x49c] sm:$0xf]
    %v323 = vld [vmem:[%s1 + $0x4a0] sm:$0xf]
    %v324 = vld [vmem:[%s1 + $0x4a4] sm:$0xf]
    %v325 = vld [vmem:[%s1 + $0x4a8] sm:$0xf]
    %v326 = vld [vmem:[%s1 + $0x4ac] sm:$0xf]
    %v327 = vld [vmem:[%s1 + $0x4b0] sm:$0xf]
    %v328 = vld [vmem:[%s1 + $0x4b4] sm:$0xf]
    %v329 = vld [vmem:[%s1 + $0x4b8] sm:$0xf]
    %v330 = vld [vmem:[%s1 + $0x4bc] sm:$0xf]
    %v331 = vld [vmem:[%s1 + $0x4c0] sm:$0xf]
    %v332 = vld [vmem:[%s1 + $0x4c4] sm:$0xf]
    %v333 = vld [vmem:[%s1 + $0x4c8] sm:$0xf]
    %v334 = vld [vmem:[%s1 + $0x4cc] sm:$0xf]
    %v335 = vld [vmem:[%s1 + $0x4d0] sm:$0xf]
    %v336 = vld [vmem:[%s1 + $0x4d4] sm:$0xf]
    %v337 = vld [vmem:[%s1 + $0x4d8] sm:$0xf]
    %v338 = vld [vmem:[%s1 + $0x4dc] sm:$0xf]
    %v339 = vld [vmem:[%s1 + $0x4e0] sm:$0xf]
    %v340 = vld [vmem:[%s1 + $0x4e4] sm:$0xf]
    %v341 = vld [vmem:[%s1 + $0x4e8] sm:$0xf]
    %v342 = vld [vmem:[%s1 + $0x4ec] sm:$0xf]
    %v343 = vld [vmem:[%s1 + $0x4f0] sm:$0xf]
    %v344 = vld [vmem:[%s1 + $0x4f4] sm:$0xf]
    %v345 = vld [vmem:[%s1 + $0x4f8] sm:$0xf]
    %v346 = vld [vmem:[%s1 + $0x4fc] sm:$0xf]
    %v347 = vld [vmem:[%s1 + $0x500] sm:$0xf]
    %v348 = vld [vmem:[%s1 + $0x504] sm:$0xf]
    %v349 = vld [vmem:[%s1 + $0x508] sm:$0xf]
    %v350 = vld [vmem:[%s1 + $0x50c] sm:$0xf]
    %v351 = vld [vmem:[%s1 + $0x510] sm:$0xf]
    %v352 = vld [vmem:[%s1 + $0x514] sm:$0xf]
    %v353 = vld [vmem:[%s1 + $0x518] sm:$0xf]
    %v354 = vld [vmem:[%s1 + $0x51c] sm:$0xf]
    %v355 = vld [vmem:[%s1 + $0x520] sm:$0xf]
    %v356 = vld [vmem:[%s1 + $0x524] sm:$0xf]
    %v357 = vld [vmem:[%s1 + $0x528] sm:$0xf]
    %v358 = vld [vmem:[%s1 + $0x52c] sm:$0xf]
    %v359 = vld [vmem:[%s1 + $0x530] sm:$0xf]
    %v360 = vld [vmem:[%s1 + $0x534] sm:$0xf]
    %v361 = vld [vmem:[%s1 + $0x538] sm:$0xf]
    %v362 = vld [vmem:[%s1 + $0x53c] sm:$0xf]
    %v363 = vld [vmem:[%s1 + $0x540] sm:$0xf]
    %v364 = vld [vmem:[%s1 + $0x544] sm:$0xf]
    %v365 = vld [vmem:[%s1 + $0x548] sm:$0xf]
    %v366 = vld [vmem:[%s1 + $0x54c] sm:$0xf]
    %v367 = vld [vmem:[%s1 + $0x550] sm:$0xf]
    %v368 = vld [vmem:[%s1 + $0x554] sm:$0xf]
    %v369 = vld [vmem:[%s1 + $0x558] sm:$0xf]
    %v370 = vld [vmem:[%s1 + $0x55c] sm:$0xf]
    %v371 = vld [vmem:[%s1 + $0x560] sm:$0xf]
    %v372 = vld [vmem:[%s1 + $0x564] sm:$0xf]
    %v373 = vld [vmem:[%s1 + $0x568] sm:$0xf]
    %v374 = vld [vmem:[%s1 + $0x56c] sm:$0xf]
    %v375 = vld [vmem:[%s1 + $0x570] sm:$0xf]
    %v376 = vld [vmem:[%s1 + $0x574] sm:$0xf]
    %v377 = vld [vmem:[%s1 + $0x578] sm:$0xf]
    %v378 = vld [vmem:[%s1 + $0x57c] sm:$0xf]
    %v379 = vld [vmem:[%s1 + $0x580] sm:$0xf]
    %v380 = vld [vmem:[%s1 + $0x584] sm:$0xf]
    %v381 = vld [vmem:[%s1 + $0x588] sm:$0xf]
    %v382 = vld [vmem:[%s1 + $0x58c] sm:$0xf]
    %v383 = vld [vmem:[%s1 + $0x590] sm:$0xf]
    %v384 = vld [vmem:[%s1 + $0x594] sm:$0xf]
    %v385 = vld [vmem:[%s1 + $0x598] sm:$0xf]
    %v386 = vld [vmem:[%s1 + $0x59c] sm:$0xf]
    %v387 = vld [vmem:[%s1 + $0x5a0] sm:$0xf]
    %v388 = vld [vmem:[%s1 + $0x5a4] sm:$0xf]
    %v389 = vld [vmem:[%s1 + $0x5a8] sm:$0xf]
    %v390 = vld [vmem:[%s1 + $0x5ac] sm:$0xf]
    %v391 = vld [vmem:[%s1 + $0x5b0] sm:$0xf]
    %v392 = vld [vmem:[%s1 + $0x5b4] sm:$0xf]
    %v393 = vld [vmem:[%s1 + $0x5b8] sm:$0xf]
    %v394 = vld [vmem:[%s1 + $0x5bc] sm:$0xf]
    %v395 = vld [vmem:[%s1 + $0x5c0] sm:$0xf]
    %v396 = vld [vmem:[%s1 + $0x5c4] sm:$0xf]
    %v397 = vld [vmem:[%s1 + $0x5c8] sm:$0xf]
    %v398 = vld [vmem:[%s1 + $0x5cc] sm:$0xf]
    %v399 = vld [vmem:[%s1 + $0x5d0] sm:$0xf]
    %v400 = vld [vmem:[%s1 + $0x5d4] sm:$0xf]
    %v401 = vld [vmem:[%s1 + $0x5d8] sm:$0xf]
    %v402 = vld [vmem:[%s1 + $0x5dc] sm:$0xf]
    %v403 = vld [vmem:[%s1 + $0x5e0] sm:$0xf]
    %v404 = vld [vmem:[%s1 + $0x5e4] sm:$0xf]
    %v405 = vld [vmem:[%s1 + $0x5e8] sm:$0xf]
    %v406 = vld [vmem:[%s1 + $0x5ec] sm:$0xf]
    %v407 = vld [vmem:[%s1 + $0x5f0] sm:$0xf]
    %v408 = vld [vmem:[%s1 + $0x5f4] sm:$0xf]
    %v409 = vld [vmem:[%s1 + $0x5f8] sm:$0xf]
    %v410 = vld [vmem:[%s1 + $0x5fc] sm:$0xf]
    %v411 = vld [vmem:[%s1 + $0x600] sm:$0xf]
    %v412 = vld [vmem:[%s1 + $0x604] sm:$0xf]
    %v413 = vld [vmem:[%s1 + $0x608] sm:$0xf]
    %v414 = vld [vmem:[%s1 + $0x60c] sm:$0xf]
    %v415 = vld [vmem:[%s1 + $0x610] sm:$0xf]
    %v416 = vld [vmem:[%s1 + $0x614] sm:$0xf]
    %v417 = vld [vmem:[%s1 + $0x618] sm:$0xf]
    %v418 = vld [vmem:[%s1 + $0x61c] sm:$0xf]
    %v419 = vld [vmem:[%s1 + $0x620] sm:$0xf]
    %v420 = vld [vmem:[%s1 + $0x624] sm:$0xf]
    %v421 = vld [vmem:[%s1 + $0x628] sm:$0xf]
    %v422 = vld [vmem:[%s1 + $0x62c] sm:$0xf]
    %v423 = vld [vmem:[%s1 + $0x630] sm:$0xf]
    %v424 = vld [vmem:[%s1 + $0x634] sm:$0xf]
    %v425 = vld [vmem:[%s1 + $0x638] sm:$0xf]
    %v426 = vld [vmem:[%s1 + $0x63c] sm:$0xf]
    %v427 = vld [vmem:[%s1 + $0x640] sm:$0xf]
    %v428 = vld [vmem:[%s1 + $0x644] sm:$0xf]
    %v429 = vld [vmem:[%s1 + $0x648] sm:$0xf]
    %v430 = vld [vmem:[%s1 + $0x64c] sm:$0xf]
    %v431 = vld [vmem:[%s1 + $0x650] sm:$0xf]
    %v432 = vld [vmem:[%s1 + $0x654] sm:$0xf]
    %v433 = vld [vmem:[%s1 + $0x658] sm:$0xf]
    %v434 = vld [vmem:[%s1 + $0x65c] sm:$0xf]
    %v435 = vld [vmem:[%s1 + $0x660] sm:$0xf]
    %v436 = vld [vmem:[%s1 + $0x664] sm:$0xf]
    %v437 = vld [vmem:[%s1 + $0x668] sm:$0xf]
    %v438 = vld [vmem:[%s1 + $0x66c] sm:$0xf]
    %v439 = vld [vmem:[%s1 + $0x670] sm:$0xf]
    %v440 = vld [vmem:[%s1 + $0x674] sm:$0xf]
    %v441 = vld [vmem:[%s1 + $0x678] sm:$0xf]
    %v442 = vld [vmem:[%s1 + $0x67c] sm:$0xf]
    %v443 = vld [vmem:[%s1 + $0x680] sm:$0xf]
    %v444 = vld [vmem:[%s1 + $0x684] sm:$0xf]
    %v445 = vld [vmem:[%s1 + $0x688] sm:$0xf]
    %v446 = vld [vmem:[%s1 + $0x68c] sm:$0xf]
    %v447 = vld [vmem:[%s1 + $0x690] sm:$0xf]
    %v448 = vld [vmem:[%s1 + $0x694] sm:$0xf]
    %v449 = vld [vmem:[%s1 + $0x698] sm:$0xf]
    %v450 = vld [vmem:[%s1 + $0x69c] sm:$0xf]
    %v451 = vld [vmem:[%s1 + $0x6a0] sm:$0xf]
    %v452 = vld [vmem:[%s1 + $0x6a4] sm:$0xf]
    %v453 = vld [vmem:[%s1 + $0x6a8] sm:$0xf]
    %v454 = vld [vmem:[%s1 + $0x6ac] sm:$0xf]
    %v455 = vld [vmem:[%s1 + $0x6b0] sm:$0xf]
    %v456 = vld [vmem:[%s1 + $0x6b4] sm:$0xf]
    %v457 = vld [vmem:[%s1 + $0x6b8] sm:$0xf]
    %v458 = vld [vmem:[%s1 + $0x6bc] sm:$0xf]
    %v459 = vld [vmem:[%s1 + $0x6c0] sm:$0xf]
    %v460 = vld [vmem:[%s1 + $0x6c4] sm:$0xf]
    %v461 = vld [vmem:[%s1 + $0x6c8] sm:$0xf]
    %v462 = vld [vmem:[%s1 + $0x6cc] sm:$0xf]
    %v463 = vld [vmem:[%s1 + $0x6d0] sm:$0xf]
    %v464 = vld [vmem:[%s1 + $0x6d4] sm:$0xf]
    %v465 = vld [vmem:[%s1 + $0x6d8] sm:$0xf]
    %v466 = vld [vmem:[%s1 + $0x6dc] sm:$0xf]
    %v467 = vld [vmem:[%s1 + $0x6e0] sm:$0xf]
    %v468 = vld [vmem:[%s1 + $0x6e4] sm:$0xf]
    %v469 = vld [vmem:[%s1 + $0x6e8] sm:$0xf]
    %v470 = vld [vmem:[%s1 + $0x6ec] sm:$0xf]
    %v471 = vld [vmem:[%s1 + $0x6f0] sm:$0xf]
    %v472 = vld [vmem:[%s1 + $0x6f4] sm:$0xf]
    %v473 = vld [vmem:[%s1 + $0x6f8] sm:$0xf]
    %v474 = vld [vmem:[%s1 + $0x6fc] sm:$0xf]
    %v475 = vld [vmem:[%s1 + $0x700] sm:$0xf]
    %v476 = vld [vmem:[%s1 + $0x704] sm:$0xf]
    %v477 = vld [vmem:[%s1 + $0x708] sm:$0xf]
    %v478 = vld [vmem:[%s1 + $0x70c] sm:$0xf]
    %v479 = vld [vmem:[%s1 + $0x710] sm:$0xf]
    %v480 = vld [vmem:[%s1 + $0x714] sm:$0xf]
    %v481 = vld [vmem:[%s1 + $0x718] sm:$0xf]
    %v482 = vld [vmem:[%s1 + $0x71c] sm:$0xf]
    %v483 = vld [vmem:[%s1 + $0x720] sm:$0xf]
    %v484 = vld [vmem:[%s1 + $0x724] sm:$0xf]
    %v485 = vld [vmem:[%s1 + $0x728] sm:$0xf]
    %v486 = vld [vmem:[%s1 + $0x72c] sm:$0xf]
    %v487 = vld [vmem:[%s1 + $0x730] sm:$0xf]
    %v488 = vld [vmem:[%s1 + $0x734] sm:$0xf]
    %v489 = vld [vmem:[%s1 + $0x738] sm:$0xf]
    %v490 = vld [vmem:[%s1 + $0x73c] sm:$0xf]
    %v491 = vld [vmem:[%s1 + $0x740] sm:$0xf]
    %v492 = vld [vmem:[%s1 + $0x744] sm:$0xf]
    %v493 = vld [vmem:[%s1 + $0x748] sm:$0xf]
    %v494 = vld [vmem:[%s1 + $0x74c] sm:$0xf]
    %v495 = vld [vmem:[%s1 + $0x750] sm:$0xf]
    %v496 = vld [vmem:[%s1 + $0x754] sm:$0xf]
    %v497 = vld [vmem:[%s1 + $0x758] sm:$0xf]
    %v498 = vld [vmem:[%s1 + $0x75c] sm:$0xf]
    %v499 = vld [vmem:[%s1 + $0x760] sm:$0xf]
    %v500 = vld [vmem:[%s1 + $0x764] sm:$0xf]
    %v501 = vld [vmem:[%s1 + $0x768] sm:$0xf]
    %v502 = vld [vmem:[%s1 + $0x76c] sm:$0xf]
    %v503 = vld [vmem:[%s1 + $0x770] sm:$0xf]
    %v504 = vld [vmem:[%s1 + $0x774] sm:$0xf]
    %v505 = vld [vmem:[%s1 + $0x778] sm:$0xf]
    %v506 = vld [vmem:[%s1 + $0x77c] sm:$0xf]
    %v507 = vld [vmem:[%s1 + $0x780] sm:$0xf]
    %v508 = vld [vmem:[%s1 + $0x784] sm:$0xf]
    %v509 = vld [vmem:[%s1 + $0x788] sm:$0xf]
    %v510 = vld [vmem:[%s1 + $0x78c] sm:$0xf]
    %v511 = vld [vmem:[%s1 + $0x790] sm:$0xf]
    %v512 = vld [vmem:[%s1 + $0x794] sm:$0xf]
    %v513 = vld [vmem:[%s1 + $0x798] sm:$0xf]
    %v514 = vld [vmem:[%s1 + $0x79c] sm:$0xf]
    %v515 = vld [vmem:[%s1 + $0x7a0] sm:$0xf]
    %v516 = vld [vmem:[%s1 + $0x7a4] sm:$0xf]
    %v517 = vld [vmem:[%s1 + $0x7a8] sm:$0xf]
    %v518 = vld [vmem:[%s1 + $0x7ac] sm:$0xf]
    %v519 = vld [vmem:[%s1 + $0x7b0] sm:$0xf]
    %v520 = vld [vmem:[%s1 + $0x7b4] sm:$0xf]
    %v521 = vld [vmem:[%s1 + $0x7b8] sm:$0xf]
    %v522 = vld [vmem:[%s1 + $0x7bc] sm:$0xf]
    %v523 = vld [vmem:[%s1 + $0x7c0] sm:$0xf]
    %v524 = vld [vmem:[%s1 + $0x7c4] sm:$0xf]
    %v525 = vld [vmem:[%s1 + $0x7c8] sm:$0xf]
    %v526 = vld [vmem:[%s1 + $0x7cc] sm:$0xf]
    %v527 = vld [vmem:[%s1 + $0x7d0] sm:$0xf]
    %v528 = vld [vmem:[%s1 + $0x7d4] sm:$0xf]
    %v529 = vld [vmem:[%s1 + $0x7d8] sm:$0xf]
    %v530 = vld [vmem:[%s1 + $0x7dc] sm:$0xf]
    %v531 = vld [vmem:[%s1 + $0x7e0] sm:$0xf]
    %v532 = vld [vmem:[%s1 + $0x7e4] sm:$0xf]
    %v533 = vld [vmem:[%s1 + $0x7e8] sm:$0xf]
    %v534 = vld [vmem:[%s1 + $0x7ec] sm:$0xf]
    %v535 = vld [vmem:[%s1 + $0x7f0] sm:$0xf]
    %v536 = vld [vmem:[%s1 + $0x7f4] sm:$0xf]
    %v537 = vld [vmem:[%s1 + $0x7f8] sm:$0xf]
    %v538 = vld [vmem:[%s1 + $0x7fc] sm:$0xf]
    %v539 = vld [vmem:[%s1 + $0x800] sm:$0xf]
    %v540 = vld [vmem:[%s1 + $0x804] sm:$0xf]
    %v541 = vld [vmem:[%s1 + $0x808] sm:$0xf]
    %v542 = vld [vmem:[%s1 + $0x80c] sm:$0xf]
    %v543 = vld [vmem:[%s1 + $0x810] sm:$0xf]
    %v544 = vld [vmem:[%s1 + $0x814] sm:$0xf]
    %v545 = vld [vmem:[%s1 + $0x818] sm:$0xf]
    %v546 = vld [vmem:[%s1 + $0x81c] sm:$0xf]
    %v547 = vld [vmem:[%s1 + $0x820] sm:$0xf]
    %v548 = vld [vmem:[%s1 + $0x824] sm:$0xf]
    %v549 = vld [vmem:[%s1 + $0x828] sm:$0xf]
    %v550 = vld [vmem:[%s1 + $0x82c] sm:$0xf]
    %v551 = vld [vmem:[%s1 + $0x830] sm:$0xf]
    %v552 = vld [vmem:[%s1 + $0x834] sm:$0xf]
    %v553 = vld [vmem:[%s1 + $0x838] sm:$0xf]
    %v554 = vld [vmem:[%s1 + $0x83c] sm:$0xf]
    %v555 = vld [vmem:[%s1 + $0x840] sm:$0xf]
    %v556 = vld [vmem:[%s1 + $0x844] sm:$0xf]
    %v557 = vld [vmem:[%s1 + $0x848] sm:$0xf]
    %v558 = vld [vmem:[%s1 + $0x84c] sm:$0xf]
    %v559 = vld [vmem:[%s1 + $0x850] sm:$0xf]
    %v560 = vld [vmem:[%s1 + $0x854] sm:$0xf]
    %v561 = vld [vmem:[%s1 + $0x858] sm:$0xf]
    %v562 = vld [vmem:[%s1 + $0x85c] sm:$0xf]
    %v563 = vld [vmem:[%s1 + $0x860] sm:$0xf]
    %v564 = vld [vmem:[%s1 + $0x864] sm:$0xf]
    %v565 = vld [vmem:[%s1 + $0x868] sm:$0xf]
    %v566 = vld [vmem:[%s1 + $0x86c] sm:$0xf]
    %v567 = vld [vmem:[%s1 + $0x870] sm:$0xf]
    %v568 = vld [vmem:[%s1 + $0x874] sm:$0xf]
    %v569 = vld [vmem:[%s1 + $0x878] sm:$0xf]
    %v570 = vld [vmem:[%s1 + $0x87c] sm:$0xf]
    %v571 = vld [vmem:[%s1 + $0x880] sm:$0xf]
    %v572 = vld [vmem:[%s1 + $0x884] sm:$0xf]
    %v573 = vld [vmem:[%s1 + $0x888] sm:$0xf]
    %v574 = vld [vmem:[%s1 + $0x88c] sm:$0xf]
    %v575 = vld [vmem:[%s1 + $0x890] sm:$0xf]
    %v576 = vld [vmem:[%s1 + $0x894] sm:$0xf]
    %v577 = vld [vmem:[%s1 + $0x898] sm:$0xf]
    %v578 = vld [vmem:[%s1 + $0x89c] sm:$0xf]
    %v579 = vld [vmem:[%s1 + $0x8a0] sm:$0xf]
    %v580 = vld [vmem:[%s1 + $0x8a4] sm:$0xf]
    %v581 = vld [vmem:[%s1 + $0x8a8] sm:$0xf]
    %v582 = vld [vmem:[%s1 + $0x8ac] sm:$0xf]
    %v583 = vld [vmem:[%s1 + $0x8b0] sm:$0xf]
    %v584 = vld [vmem:[%s1 + $0x8b4] sm:$0xf]
    %v585 = vld [vmem:[%s1 + $0x8b8] sm:$0xf]
    %v586 = vld [vmem:[%s1 + $0x8bc] sm:$0xf]
    %v587 = vld [vmem:[%s1 + $0x8c0] sm:$0xf]
    %v588 = vld [vmem:[%s1 + $0x8c4] sm:$0xf]
    %v589 = vld [vmem:[%s1 + $0x8c8] sm:$0xf]
    %v590 = vld [vmem:[%s1 + $0x8cc] sm:$0xf]
    %v591 = vld [vmem:[%s1 + $0x8d0] sm:$0xf]
    %v592 = vld [vmem:[%s1 + $0x8d4] sm:$0xf]
    %v593 = vld [vmem:[%s1 + $0x8d8] sm:$0xf]
    %v594 = vld [vmem:[%s1 + $0x8dc] sm:$0xf]
    %v595 = vld [vmem:[%s1 + $0x8e0] sm:$0xf]
    %v596 = vld [vmem:[%s1 + $0x8e4] sm:$0xf]
    %v597 = vld [vmem:[%s1 + $0x8e8] sm:$0xf]
    %v598 = vld [vmem:[%s1 + $0x8ec] sm:$0xf]
    %v599 = vld [vmem:[%s1 + $0x8f0] sm:$0xf]
    %v600 = vld [vmem:[%s1 + $0x8f4] sm:$0xf]
    %v601 = vld [vmem:[%s1 + $0x8f8] sm:$0xf]
    %v602 = vld [vmem:[%s1 + $0x8fc] sm:$0xf]
    %v603 = vld [vmem:[%s2] sm:$0x1]
    %v605 = vlaneseq
    %v606 = vshrl.u32 %v605, 7
    %v607 = vsub.s32 0, %v606
    %v608 = vrot.slane %v603, %v607
    %v615 = vcombine.high %v22, %v22
    %v617 = vunpack.c.l.s4 1966171168
    %v618 = vunpack.c.0.s8 %v617
    %v619 = vlaneseq
    %v620 = vshrl.u32 %v619, 7
    %v621 = vsub.s32 %v618, %v620
    %v622 = vrot.slane %v22, %v621
    %v624 = vunpack.c.l.s4 1966171168
    %v625 = vunpack.c.0.s8 %v624
    %v626 = vlaneseq
    %v627 = vshrl.u32 %v626, 7
    %v628 = vsub.s32 %v625, %v627
    %v629 = vrot.slane %v615, %v628
    %v630 = vcombine.high %v622, %v622
    %v631 = vcombine.high %v629, %v629
    %v633 = vunpack.c.l.s4 1966171168
    %v634 = vunpack.c.0.s8 %v633
    %v635 = vlaneseq
    %v636 = vshrl.u32 %v635, 7
    %v637 = vsub.s32 %v634, %v636
    %v638 = vrot.slane %v622, %v637
    %v640 = vunpack.c.l.s4 1966171168
    %v641 = vunpack.c.0.s8 %v640
    %v642 = vlaneseq
    %v643 = vshrl.u32 %v642, 7
    %v644 = vsub.s32 %v641, %v643
    %v645 = vrot.slane %v629, %v644
    %v647 = vunpack.c.l.s4 1966171168
    %v648 = vunpack.c.0.s8 %v647
    %v649 = vlaneseq
    %v650 = vshrl.u32 %v649, 7
    %v651 = vsub.s32 %v648, %v650
    %v652 = vrot.slane %v630, %v651
    %v654 = vunpack.c.l.s4 1966171168
    %v655 = vunpack.c.0.s8 %v654
    %v656 = vlaneseq
    %v657 = vshrl.u32 %v656, 7
    %v658 = vsub.s32 %v655, %v657
    %v659 = vrot.slane %v631, %v658
    %v660 = vcombine.high %v638, %v638
    %v661 = vcombine.high %v645, %v645
    %v662 = vcombine.high %v652, %v652
    %v663 = vcombine.high %v659, %v659
    %v664 = vcombine.high %v23, %v23
    %v666 = vunpack.c.l.s4 1966171168
    %v667 = vunpack.c.0.s8 %v666
    %v668 = vlaneseq
    %v669 = vshrl.u32 %v668, 7
    %v670 = vsub.s32 %v667, %v669
    %v671 = vrot.slane %v23, %v670
    %v673 = vunpack.c.l.s4 1966171168
    %v674 = vunpack.c.0.s8 %v673
    %v675 = vlaneseq
    %v676 = vshrl.u32 %v675, 7
    %v677 = vsub.s32 %v674, %v676
    %v678 = vrot.slane %v664, %v677
    %v679 = vcombine.high %v671, %v671
    %v680 = vcombine.high %v678, %v678
    %v682 = vunpack.c.l.s4 1966171168
    %v683 = vunpack.c.0.s8 %v682
    %v684 = vlaneseq
    %v685 = vshrl.u32 %v684, 7
    %v686 = vsub.s32 %v683, %v685
    %v687 = vrot.slane %v671, %v686
    %v689 = vunpack.c.l.s4 1966171168
    %v690 = vunpack.c.0.s8 %v689
    %v691 = vlaneseq
    %v692 = vshrl.u32 %v691, 7
    %v693 = vsub.s32 %v690, %v692
    %v694 = vrot.slane %v678, %v693
    %v696 = vunpack.c.l.s4 1966171168
    %v697 = vunpack.c.0.s8 %v696
    %v698 = vlaneseq
    %v699 = vshrl.u32 %v698, 7
    %v700 = vsub.s32 %v697, %v699
    %v701 = vrot.slane %v679, %v700
    %v703 = vunpack.c.l.s4 1966171168
    %v704 = vunpack.c.0.s8 %v703
    %v705 = vlaneseq
    %v706 = vshrl.u32 %v705, 7
    %v707 = vsub.s32 %v704, %v706
    %v708 = vrot.slane %v680, %v707
    %v709 = vcombine.high %v687, %v687
    %v710 = vcombine.high %v694, %v694
    %v711 = vcombine.high %v701, %v701
    %v712 = vcombine.high %v708, %v708
    %v713 = vcombine.high %v24, %v24
    %v715 = vunpack.c.l.s4 1966171168
    %v716 = vunpack.c.0.s8 %v715
    %v717 = vlaneseq
    %v718 = vshrl.u32 %v717, 7
    %v719 = vsub.s32 %v716, %v718
    %v720 = vrot.slane %v24, %v719
    %v722 = vunpack.c.l.s4 1966171168
    %v723 = vunpack.c.0.s8 %v722
    %v724 = vlaneseq
    %v725 = vshrl.u32 %v724, 7
    %v726 = vsub.s32 %v723, %v725
    %v727 = vrot.slane %v713, %v726
    %v728 = vcombine.high %v720, %v720
    %v729 = vcombine.high %v727, %v727
    %v731 = vunpack.c.l.s4 1966171168
    %v732 = vunpack.c.0.s8 %v731
    %v733 = vlaneseq
    %v734 = vshrl.u32 %v733, 7
    %v735 = vsub.s32 %v732, %v734
    %v736 = vrot.slane %v720, %v735
    %v738 = vunpack.c.l.s4 1966171168
    %v739 = vunpack.c.0.s8 %v738
    %v740 = vlaneseq
    %v741 = vshrl.u32 %v740, 7
    %v742 = vsub.s32 %v739, %v741
    %v743 = vrot.slane %v727, %v742
    %v745 = vunpack.c.l.s4 1966171168
    %v746 = vunpack.c.0.s8 %v745
    %v747 = vlaneseq
    %v748 = vshrl.u32 %v747, 7
    %v749 = vsub.s32 %v746, %v748
    %v750 = vrot.slane %v728, %v749
    %v752 = vunpack.c.l.s4 1966171168
    %v753 = vunpack.c.0.s8 %v752
    %v754 = vlaneseq
    %v755 = vshrl.u32 %v754, 7
    %v756 = vsub.s32 %v753, %v755
    %v757 = vrot.slane %v729, %v756
    %v758 = vcombine.high %v736, %v736
    %v759 = vcombine.high %v743, %v743
    %v760 = vcombine.high %v750, %v750
    %v761 = vcombine.high %v757, %v757
    %v762 = vcombine.high %v25, %v25
    %v764 = vunpack.c.l.s4 1966171168
    %v765 = vunpack.c.0.s8 %v764
    %v766 = vlaneseq
    %v767 = vshrl.u32 %v766, 7
    %v768 = vsub.s32 %v765, %v767
    %v769 = vrot.slane %v25, %v768
    %v771 = vunpack.c.l.s4 1966171168
    %v772 = vunpack.c.0.s8 %v771
    %v773 = vlaneseq
    %v774 = vshrl.u32 %v773, 7
    %v775 = vsub.s32 %v772, %v774
    %v776 = vrot.slane %v762, %v775
    %v777 = vcombine.high %v769, %v769
    %v778 = vcombine.high %v776, %v776
    %v780 = vunpack.c.l.s4 1966171168
    %v781 = vunpack.c.0.s8 %v780
    %v782 = vlaneseq
    %v783 = vshrl.u32 %v782, 7
    %v784 = vsub.s32 %v781, %v783
    %v785 = vrot.slane %v769, %v784
    %v787 = vunpack.c.l.s4 1966171168
    %v788 = vunpack.c.0.s8 %v787
    %v789 = vlaneseq
    %v790 = vshrl.u32 %v789, 7
    %v791 = vsub.s32 %v788, %v790
    %v792 = vrot.slane %v776, %v791
    %v794 = vunpack.c.l.s4 1966171168
    %v795 = vunpack.c.0.s8 %v794
    %v796 = vlaneseq
    %v797 = vshrl.u32 %v796, 7
    %v798 = vsub.s32 %v795, %v797
    %v799 = vrot.slane %v777, %v798
    %v801 = vunpack.c.l.s4 1966171168
    %v802 = vunpack.c.0.s8 %v801
    %v803 = vlaneseq
    %v804 = vshrl.u32 %v803, 7
    %v805 = vsub.s32 %v802, %v804
    %v806 = vrot.slane %v778, %v805
    %v807 = vcombine.high %v785, %v785
    %v808 = vcombine.high %v792, %v792
    %v809 = vcombine.high %v799, %v799
    %v810 = vcombine.high %v806, %v806
    %v812 = vunpack.c.l.s4 1966171168
    %v813 = vunpack.c.0.s8 %v812
    %v814 = vlaneseq
    %v815 = vshrl.u32 %v814, 7
    %v816 = vsub.s32 %v813, %v815
    %v817 = vrot.slane %v26, %v816
    %v818 = vcombine.high %v817, %v817
    %v820 = vunpack.c.l.s4 1966171168
    %v821 = vunpack.c.0.s8 %v820
    %v822 = vlaneseq
    %v823 = vshrl.u32 %v822, 7
    %v824 = vsub.s32 %v821, %v823
    %v825 = vrot.slane %v817, %v824
    %v827 = vunpack.c.l.s4 1966171168
    %v828 = vunpack.c.0.s8 %v827
    %v829 = vlaneseq
    %v830 = vshrl.u32 %v829, 7
    %v831 = vsub.s32 %v828, %v830
    %v832 = vrot.slane %v818, %v831
    %v833 = vcombine.high %v825, %v825
    %v834 = vcombine.high %v832, %v832
    %v1447 = vunpack.c.l.b16 %v27
    %v1448 = vunpack.c.l.b16 %v28
    %v1449 = vunpack.c.l.b16 %v29
    %v1450 = vunpack.c.l.b16 %v30
    %v1451 = vunpack.c.l.b16 %v31
    %v1452 = vunpack.c.l.b16 %v32
    %v1453 = vunpack.c.l.b16 %v33
    %v1454 = vunpack.c.l.b16 %v34
    %v1455 = vunpack.c.l.b16 %v35
    %v1456 = vunpack.c.l.b16 %v36
    %v1457 = vunpack.c.l.b16 %v37
    %v1458 = vunpack.c.l.b16 %v38
    %v1459 = vunpack.c.l.b16 %v39
    %v1460 = vunpack.c.l.b16 %v40
    %v1461 = vunpack.c.l.b16 %v41
    %v1462 = vunpack.c.l.b16 %v42
    %v1463 = vunpack.c.l.b16 %v43
    %v1464 = vunpack.c.l.b16 %v44
    %v1465 = vunpack.c.l.b16 %v45
    %v1466 = vunpack.c.l.b16 %v46
    %v1467 = vunpack.c.l.b16 %v47
    %v1468 = vunpack.c.l.b16 %v48
    %v1469 = vunpack.c.l.b16 %v49
    %v1470 = vunpack.c.l.b16 %v50
    %v1471 = vunpack.c.l.b16 %v51
    %v1472 = vunpack.c.l.b16 %v52
    %v1473 = vunpack.c.l.b16 %v53
    %v1474 = vunpack.c.l.b16 %v54
    %v1475 = vunpack.c.l.b16 %v55
    %v1476 = vunpack.c.l.b16 %v56
    %v1477 = vunpack.c.l.b16 %v57
    %v1478 = vunpack.c.l.b16 %v58
    %v1479 = vunpack.c.l.b16 %v59
    %v1480 = vunpack.c.l.b16 %v60
    %v1481 = vunpack.c.l.b16 %v61
    %v1482 = vunpack.c.l.b16 %v62
    %v1483 = vunpack.c.l.b16 %v63
    %v1484 = vunpack.c.l.b16 %v64
    %v1485 = vunpack.c.l.b16 %v65
    %v1486 = vunpack.c.l.b16 %v66
    %v1487 = vunpack.c.l.b16 %v67
    %v1488 = vunpack.c.l.b16 %v68
    %v1489 = vunpack.c.l.b16 %v69
    %v1490 = vunpack.c.l.b16 %v70
    %v1491 = vunpack.c.l.b16 %v71
    %v1492 = vunpack.c.l.b16 %v72
    %v1493 = vunpack.c.l.b16 %v73
    %v1494 = vunpack.c.l.b16 %v74
    %v1495 = vunpack.c.l.b16 %v75
    %v1496 = vunpack.c.l.b16 %v76
    %v1497 = vunpack.c.l.b16 %v77
    %v1498 = vunpack.c.l.b16 %v78
    %v1499 = vunpack.c.l.b16 %v79
    %v1500 = vunpack.c.l.b16 %v80
    %v1501 = vunpack.c.l.b16 %v81
    %v1502 = vunpack.c.l.b16 %v82
    %v1503 = vunpack.c.l.b16 %v83
    %v1504 = vunpack.c.l.b16 %v84
    %v1505 = vunpack.c.l.b16 %v85
    %v1506 = vunpack.c.l.b16 %v86
    %v1507 = vunpack.c.l.b16 %v87
    %v1508 = vunpack.c.l.b16 %v88
    %v1509 = vunpack.c.l.b16 %v89
    %v1510 = vunpack.c.l.b16 %v90
    %v1511 = vunpack.c.l.b16 %v91
    %v1512 = vunpack.c.l.b16 %v92
    %v1513 = vunpack.c.l.b16 %v93
    %v1514 = vunpack.c.l.b16 %v94
    %v1515 = vunpack.c.l.b16 %v95
    %v1516 = vunpack.c.l.b16 %v96
    %v1517 = vunpack.c.l.b16 %v97
    %v1518 = vunpack.c.l.b16 %v98
    %v1519 = vunpack.c.l.b16 %v99
    %v1520 = vunpack.c.l.b16 %v100
    %v1521 = vunpack.c.l.b16 %v101
    %v1522 = vunpack.c.l.b16 %v102
    %v1523 = vunpack.c.l.b16 %v103
    %v1524 = vunpack.c.l.b16 %v104
    %v1525 = vunpack.c.l.b16 %v105
    %v1526 = vunpack.c.l.b16 %v106
    %v1527 = vunpack.c.l.b16 %v107
    %v1528 = vunpack.c.l.b16 %v108
    %v1529 = vunpack.c.l.b16 %v109
    %v1530 = vunpack.c.l.b16 %v110
    %v1531 = vunpack.c.l.b16 %v111
    %v1532 = vunpack.c.l.b16 %v112
    %v1533 = vunpack.c.l.b16 %v113
    %v1534 = vunpack.c.l.b16 %v114
    %v1535 = vunpack.c.l.b16 %v115
    %v1536 = vunpack.c.l.b16 %v116
    %v1537 = vunpack.c.l.b16 %v117
    %v1538 = vunpack.c.l.b16 %v118
    %v1539 = vunpack.c.l.b16 %v119
    %v1540 = vunpack.c.l.b16 %v120
    %v1541 = vunpack.c.l.b16 %v121
    %v1542 = vunpack.c.l.b16 %v122
    %v1543 = vunpack.c.l.b16 %v123
    %v1544 = vunpack.c.l.b16 %v124
    %v1545 = vunpack.c.l.b16 %v125
    %v1546 = vunpack.c.l.b16 %v126
    %v1547 = vunpack.c.l.b16 %v127
    %v1548 = vunpack.c.l.b16 %v128
    %v1549 = vunpack.c.l.b16 %v129
    %v1550 = vunpack.c.l.b16 %v130
    %v1551 = vunpack.c.l.b16 %v131
    %v1552 = vunpack.c.l.b16 %v132
    %v1553 = vunpack.c.l.b16 %v133
    %v1554 = vunpack.c.l.b16 %v134
    %v1555 = vunpack.c.l.b16 %v135
    %v1556 = vunpack.c.l.b16 %v136
    %v1557 = vunpack.c.l.b16 %v137
    %v1558 = vunpack.c.l.b16 %v138
    %v1559 = vunpack.c.l.b16 %v139
    %v1560 = vunpack.c.l.b16 %v140
    %v1561 = vunpack.c.l.b16 %v141
    %v1562 = vunpack.c.l.b16 %v142
    %v1563 = vunpack.c.l.b16 %v143
    %v1564 = vunpack.c.l.b16 %v144
    %v1565 = vunpack.c.l.b16 %v145
    %v1566 = vunpack.c.l.b16 %v146
    %v1567 = vunpack.c.l.b16 %v147
    %v1568 = vunpack.c.l.b16 %v148
    %v1569 = vunpack.c.l.b16 %v149
    %v1570 = vunpack.c.l.b16 %v150
    %v1571 = vunpack.c.l.b16 %v151
    %v1572 = vunpack.c.l.b16 %v152
    %v1573 = vunpack.c.l.b16 %v153
    %v1574 = vunpack.c.l.b16 %v154
    %v1575 = vunpack.c.l.b16 %v155
    %v1576 = vunpack.c.l.b16 %v156
    %v1577 = vunpack.c.l.b16 %v157
    %v1578 = vunpack.c.l.b16 %v158
    %v1579 = vunpack.c.l.b16 %v159
    %v1580 = vunpack.c.l.b16 %v160
    %v1581 = vunpack.c.l.b16 %v161
    %v1582 = vunpack.c.l.b16 %v162
    %v1583 = vunpack.c.l.b16 %v163
    %v1584 = vunpack.c.l.b16 %v164
    %v1585 = vunpack.c.l.b16 %v165
    %v1586 = vunpack.c.l.b16 %v166
    %v1587 = vunpack.c.l.b16 %v167
    %v1588 = vunpack.c.l.b16 %v168
    %v1589 = vunpack.c.l.b16 %v169
    %v1590 = vunpack.c.l.b16 %v170
    %v1591 = vunpack.c.l.b16 %v171
    %v1592 = vunpack.c.l.b16 %v172
    %v1593 = vunpack.c.l.b16 %v173
    %v1594 = vunpack.c.l.b16 %v174
    %v1595 = vunpack.c.l.b16 %v175
    %v1596 = vunpack.c.l.b16 %v176
    %v1597 = vunpack.c.l.b16 %v177
    %v1598 = vunpack.c.l.b16 %v178
    %v1599 = vunpack.c.l.b16 %v179
    %v1600 = vunpack.c.l.b16 %v180
    %v1601 = vunpack.c.l.b16 %v181
    %v1602 = vunpack.c.l.b16 %v182
    %v1603 = vunpack.c.l.b16 %v183
    %v1604 = vunpack.c.l.b16 %v184
    %v1605 = vunpack.c.l.b16 %v185
    %v1606 = vunpack.c.l.b16 %v186
    %v1607 = vunpack.c.l.b16 %v187
    %v1608 = vunpack.c.l.b16 %v188
    %v1609 = vunpack.c.l.b16 %v189
    %v1610 = vunpack.c.l.b16 %v190
    %v1611 = vunpack.c.l.b16 %v191
    %v1612 = vunpack.c.l.b16 %v192
    %v1613 = vunpack.c.l.b16 %v193
    %v1614 = vunpack.c.l.b16 %v194
    %v1615 = vunpack.c.l.b16 %v195
    %v1616 = vunpack.c.l.b16 %v196
    %v1617 = vunpack.c.l.b16 %v197
    %v1618 = vunpack.c.l.b16 %v198
    %v1619 = vunpack.c.l.b16 %v199
    %v1620 = vunpack.c.l.b16 %v200
    %v1621 = vunpack.c.l.b16 %v201
    %v1622 = vunpack.c.l.b16 %v202
    %v1623 = vunpack.c.l.b16 %v203
    %v1624 = vunpack.c.l.b16 %v204
    %v1625 = vunpack.c.l.b16 %v205
    %v1626 = vunpack.c.l.b16 %v206
    %v1627 = vunpack.c.l.b16 %v207
    %v1628 = vunpack.c.l.b16 %v208
    %v1629 = vunpack.c.l.b16 %v209
    %v1630 = vunpack.c.l.b16 %v210
    %v1631 = vunpack.c.l.b16 %v211
    %v1632 = vunpack.c.l.b16 %v212
    %v1633 = vunpack.c.l.b16 %v213
    %v1634 = vunpack.c.l.b16 %v214
    %v1635 = vunpack.c.l.b16 %v215
    %v1636 = vunpack.c.l.b16 %v216
    %v1637 = vunpack.c.l.b16 %v217
    %v1638 = vunpack.c.l.b16 %v218
    %v1639 = vunpack.c.l.b16 %v219
    %v1640 = vunpack.c.l.b16 %v220
    %v1641 = vunpack.c.l.b16 %v221
    %v1642 = vunpack.c.l.b16 %v222
    %v1643 = vunpack.c.l.b16 %v223
    %v1644 = vunpack.c.l.b16 %v224
    %v1645 = vunpack.c.l.b16 %v225
    %v1646 = vunpack.c.l.b16 %v226
    %v1647 = vunpack.c.l.b16 %v227
    %v1648 = vunpack.c.l.b16 %v228
    %v1649 = vunpack.c.l.b16 %v229
    %v1650 = vunpack.c.l.b16 %v230
    %v1651 = vunpack.c.l.b16 %v231
    %v1652 = vunpack.c.l.b16 %v232
    %v1653 = vunpack.c.l.b16 %v233
    %v1654 = vunpack.c.l.b16 %v234
    %v1655 = vunpack.c.l.b16 %v235
    %v1656 = vunpack.c.l.b16 %v236
    %v1657 = vunpack.c.l.b16 %v237
    %v1658 = vunpack.c.l.b16 %v238
    %v1659 = vunpack.c.l.b16 %v239
    %v1660 = vunpack.c.l.b16 %v240
    %v1661 = vunpack.c.l.b16 %v241
    %v1662 = vunpack.c.l.b16 %v242
    %v1663 = vunpack.c.l.b16 %v243
    %v1664 = vunpack.c.l.b16 %v244
    %v1665 = vunpack.c.l.b16 %v245
    %v1666 = vunpack.c.l.b16 %v246
    %v1667 = vunpack.c.l.b16 %v247
    %v1668 = vunpack.c.l.b16 %v248
    %v1669 = vunpack.c.l.b16 %v249
    %v1670 = vunpack.c.l.b16 %v250
    %v1671 = vunpack.c.l.b16 %v251
    %v1672 = vunpack.c.l.b16 %v252
    %v1673 = vunpack.c.l.b16 %v253
    %v1674 = vunpack.c.l.b16 %v254
    %v1675 = vunpack.c.l.b16 %v255
    %v1676 = vunpack.c.l.b16 %v256
    %v1677 = vunpack.c.l.b16 %v257
    %v1678 = vunpack.c.l.b16 %v258
    %v1679 = vunpack.c.l.b16 %v259
    %v1680 = vunpack.c.l.b16 %v260
    %v1681 = vunpack.c.l.b16 %v261
    %v1682 = vunpack.c.l.b16 %v262
    %v1683 = vunpack.c.l.b16 %v263
    %v1684 = vunpack.c.l.b16 %v264
    %v1685 = vunpack.c.l.b16 %v265
    %v1686 = vunpack.c.l.b16 %v266
    %v1687 = vunpack.c.l.b16 %v267
    %v1688 = vunpack.c.l.b16 %v268
    %v1689 = vunpack.c.l.b16 %v269
    %v1690 = vunpack.c.l.b16 %v270
    %v1691 = vunpack.c.l.b16 %v271
    %v1692 = vunpack.c.l.b16 %v272
    %v1693 = vunpack.c.l.b16 %v273
    %v1694 = vunpack.c.l.b16 %v274
    %v1695 = vunpack.c.l.b16 %v275
    %v1696 = vunpack.c.l.b16 %v276
    %v1697 = vunpack.c.l.b16 %v277
    %v1698 = vunpack.c.l.b16 %v278
    %v1699 = vunpack.c.l.b16 %v279
    %v1700 = vunpack.c.l.b16 %v280
    %v1701 = vunpack.c.l.b16 %v281
    %v1702 = vunpack.c.l.b16 %v282
    %v1703 = vunpack.c.l.b16 %v283
    %v1704 = vunpack.c.l.b16 %v284
    %v1705 = vunpack.c.l.b16 %v285
    %v1706 = vunpack.c.l.b16 %v286
    %v1707 = vunpack.c.l.b16 %v287
    %v1708 = vunpack.c.l.b16 %v288
    %v1709 = vunpack.c.l.b16 %v289
    %v1710 = vunpack.c.l.b16 %v290
    %v1711 = vunpack.c.l.b16 %v291
    %v1712 = vunpack.c.l.b16 %v292
    %v1713 = vunpack.c.l.b16 %v293
    %v1714 = vunpack.c.l.b16 %v294
    %v1715 = vunpack.c.l.b16 %v295
    %v1716 = vunpack.c.l.b16 %v296
    %v1717 = vunpack.c.l.b16 %v297
    %v1718 = vunpack.c.l.b16 %v298
    %v1719 = vunpack.c.l.b16 %v299
    %v1720 = vunpack.c.l.b16 %v300
    %v1721 = vunpack.c.l.b16 %v301
    %v1722 = vunpack.c.l.b16 %v302
    %v1723 = vunpack.c.l.b16 %v303
    %v1724 = vunpack.c.l.b16 %v304
    %v1725 = vunpack.c.l.b16 %v305
    %v1726 = vunpack.c.l.b16 %v306
    %v1727 = vunpack.c.l.b16 %v307
    %v1728 = vunpack.c.l.b16 %v308
    %v1729 = vunpack.c.l.b16 %v309
    %v1730 = vunpack.c.l.b16 %v310
    %v1731 = vunpack.c.l.b16 %v311
    %v1732 = vunpack.c.l.b16 %v312
    %v1733 = vunpack.c.l.b16 %v313
    %v1734 = vunpack.c.l.b16 %v314
    %v1735 = vunpack.c.l.b16 %v315
    %v1736 = vunpack.c.l.b16 %v316
    %v1737 = vunpack.c.l.b16 %v317
    %v1738 = vunpack.c.l.b16 %v318
    %v1739 = vunpack.c.l.b16 %v319
    %v1740 = vunpack.c.l.b16 %v320
    %v1741 = vunpack.c.l.b16 %v321
    %v1742 = vunpack.c.l.b16 %v322
    %v1743 = vunpack.c.l.b16 %v323
    %v1744 = vunpack.c.l.b16 %v324
    %v1745 = vunpack.c.l.b16 %v325
    %v1746 = vunpack.c.l.b16 %v326
    %v1747 = vunpack.c.l.b16 %v327
    %v1748 = vunpack.c.l.b16 %v328
    %v1749 = vunpack.c.l.b16 %v329
    %v1750 = vunpack.c.l.b16 %v330
    %v1751 = vunpack.c.l.b16 %v331
    %v1752 = vunpack.c.l.b16 %v332
    %v1753 = vunpack.c.l.b16 %v333
    %v1754 = vunpack.c.l.b16 %v334
    %v1755 = vunpack.c.l.b16 %v335
    %v1756 = vunpack.c.l.b16 %v336
    %v1757 = vunpack.c.l.b16 %v337
    %v1758 = vunpack.c.l.b16 %v338
    %v1759 = vunpack.c.l.b16 %v339
    %v1760 = vunpack.c.l.b16 %v340
    %v1761 = vunpack.c.l.b16 %v341
    %v1762 = vunpack.c.l.b16 %v342
    %v1763 = vunpack.c.l.b16 %v343
    %v1764 = vunpack.c.l.b16 %v344
    %v1765 = vunpack.c.l.b16 %v345
    %v1766 = vunpack.c.l.b16 %v346
    %v1767 = vunpack.c.l.b16 %v347
    %v1768 = vunpack.c.l.b16 %v348
    %v1769 = vunpack.c.l.b16 %v349
    %v1770 = vunpack.c.l.b16 %v350
    %v1771 = vunpack.c.l.b16 %v351
    %v1772 = vunpack.c.l.b16 %v352
    %v1773 = vunpack.c.l.b16 %v353
    %v1774 = vunpack.c.l.b16 %v354
    %v1775 = vunpack.c.l.b16 %v355
    %v1776 = vunpack.c.l.b16 %v356
    %v1777 = vunpack.c.l.b16 %v357
    %v1778 = vunpack.c.l.b16 %v358
    %v1779 = vunpack.c.l.b16 %v359
    %v1780 = vunpack.c.l.b16 %v360
    %v1781 = vunpack.c.l.b16 %v361
    %v1782 = vunpack.c.l.b16 %v362
    %v1783 = vunpack.c.l.b16 %v363
    %v1784 = vunpack.c.l.b16 %v364
    %v1785 = vunpack.c.l.b16 %v365
    %v1786 = vunpack.c.l.b16 %v366
    %v1787 = vunpack.c.l.b16 %v367
    %v1788 = vunpack.c.l.b16 %v368
    %v1789 = vunpack.c.l.b16 %v369
    %v1790 = vunpack.c.l.b16 %v370
    %v1791 = vunpack.c.l.b16 %v371
    %v1792 = vunpack.c.l.b16 %v372
    %v1793 = vunpack.c.l.b16 %v373
    %v1794 = vunpack.c.l.b16 %v374
    %v1795 = vunpack.c.l.b16 %v375
    %v1796 = vunpack.c.l.b16 %v376
    %v1797 = vunpack.c.l.b16 %v377
    %v1798 = vunpack.c.l.b16 %v378
    %v1799 = vunpack.c.l.b16 %v379
    %v1800 = vunpack.c.l.b16 %v380
    %v1801 = vunpack.c.l.b16 %v381
    %v1802 = vunpack.c.l.b16 %v382
    %v1803 = vunpack.c.l.b16 %v383
    %v1804 = vunpack.c.l.b16 %v384
    %v1805 = vunpack.c.l.b16 %v385
    %v1806 = vunpack.c.l.b16 %v386
    %v1807 = vunpack.c.l.b16 %v387
    %v1808 = vunpack.c.l.b16 %v388
    %v1809 = vunpack.c.l.b16 %v389
    %v1810 = vunpack.c.l.b16 %v390
    %v1811 = vunpack.c.l.b16 %v391
    %v1812 = vunpack.c.l.b16 %v392
    %v1813 = vunpack.c.l.b16 %v393
    %v1814 = vunpack.c.l.b16 %v394
    %v1815 = vunpack.c.l.b16 %v395
    %v1816 = vunpack.c.l.b16 %v396
    %v1817 = vunpack.c.l.b16 %v397
    %v1818 = vunpack.c.l.b16 %v398
    %v1819 = vunpack.c.l.b16 %v399
    %v1820 = vunpack.c.l.b16 %v400
    %v1821 = vunpack.c.l.b16 %v401
    %v1822 = vunpack.c.l.b16 %v402
    %v1823 = vunpack.c.l.b16 %v403
    %v1824 = vunpack.c.l.b16 %v404
    %v1825 = vunpack.c.l.b16 %v405
    %v1826 = vunpack.c.l.b16 %v406
    %v1827 = vunpack.c.l.b16 %v407
    %v1828 = vunpack.c.l.b16 %v408
    %v1829 = vunpack.c.l.b16 %v409
    %v1830 = vunpack.c.l.b16 %v410
    %v1831 = vunpack.c.l.b16 %v411
    %v1832 = vunpack.c.l.b16 %v412
    %v1833 = vunpack.c.l.b16 %v413
    %v1834 = vunpack.c.l.b16 %v414
    %v1835 = vunpack.c.l.b16 %v415
    %v1836 = vunpack.c.l.b16 %v416
    %v1837 = vunpack.c.l.b16 %v417
    %v1838 = vunpack.c.l.b16 %v418
    %v1839 = vunpack.c.l.b16 %v419
    %v1840 = vunpack.c.l.b16 %v420
    %v1841 = vunpack.c.l.b16 %v421
    %v1842 = vunpack.c.l.b16 %v422
    %v1843 = vunpack.c.l.b16 %v423
    %v1844 = vunpack.c.l.b16 %v424
    %v1845 = vunpack.c.l.b16 %v425
    %v1846 = vunpack.c.l.b16 %v426
    %v1847 = vunpack.c.l.b16 %v427
    %v1848 = vunpack.c.l.b16 %v428
    %v1849 = vunpack.c.l.b16 %v429
    %v1850 = vunpack.c.l.b16 %v430
    %v1851 = vunpack.c.l.b16 %v431
    %v1852 = vunpack.c.l.b16 %v432
    %v1853 = vunpack.c.l.b16 %v433
    %v1854 = vunpack.c.l.b16 %v434
    %v1855 = vunpack.c.l.b16 %v435
    %v1856 = vunpack.c.l.b16 %v436
    %v1857 = vunpack.c.l.b16 %v437
    %v1858 = vunpack.c.l.b16 %v438
    %v1859 = vunpack.c.l.b16 %v439
    %v1860 = vunpack.c.l.b16 %v440
    %v1861 = vunpack.c.l.b16 %v441
    %v1862 = vunpack.c.l.b16 %v442
    %v1863 = vunpack.c.l.b16 %v443
    %v1864 = vunpack.c.l.b16 %v444
    %v1865 = vunpack.c.l.b16 %v445
    %v1866 = vunpack.c.l.b16 %v446
    %v1867 = vunpack.c.l.b16 %v447
    %v1868 = vunpack.c.l.b16 %v448
    %v1869 = vunpack.c.l.b16 %v449
    %v1870 = vunpack.c.l.b16 %v450
    %v1871 = vunpack.c.l.b16 %v451
    %v1872 = vunpack.c.l.b16 %v452
    %v1873 = vunpack.c.l.b16 %v453
    %v1874 = vunpack.c.l.b16 %v454
    %v1875 = vunpack.c.l.b16 %v455
    %v1876 = vunpack.c.l.b16 %v456
    %v1877 = vunpack.c.l.b16 %v457
    %v1878 = vunpack.c.l.b16 %v458
    %v1879 = vunpack.c.l.b16 %v459
    %v1880 = vunpack.c.l.b16 %v460
    %v1881 = vunpack.c.l.b16 %v461
    %v1882 = vunpack.c.l.b16 %v462
    %v1883 = vunpack.c.l.b16 %v463
    %v1884 = vunpack.c.l.b16 %v464
    %v1885 = vunpack.c.l.b16 %v465
    %v1886 = vunpack.c.l.b16 %v466
    %v1887 = vunpack.c.l.b16 %v467
    %v1888 = vunpack.c.l.b16 %v468
    %v1889 = vunpack.c.l.b16 %v469
    %v1890 = vunpack.c.l.b16 %v470
    %v1891 = vunpack.c.l.b16 %v471
    %v1892 = vunpack.c.l.b16 %v472
    %v1893 = vunpack.c.l.b16 %v473
    %v1894 = vunpack.c.l.b16 %v474
    %v1895 = vunpack.c.l.b16 %v475
    %v1896 = vunpack.c.l.b16 %v476
    %v1897 = vunpack.c.l.b16 %v477
    %v1898 = vunpack.c.l.b16 %v478
    %v1899 = vunpack.c.l.b16 %v479
    %v1900 = vunpack.c.l.b16 %v480
    %v1901 = vunpack.c.l.b16 %v481
    %v1902 = vunpack.c.l.b16 %v482
    %v1903 = vunpack.c.l.b16 %v483
    %v1904 = vunpack.c.l.b16 %v484
    %v1905 = vunpack.c.l.b16 %v485
    %v1906 = vunpack.c.l.b16 %v486
    %v1907 = vunpack.c.l.b16 %v487
    %v1908 = vunpack.c.l.b16 %v488
    %v1909 = vunpack.c.l.b16 %v489
    %v1910 = vunpack.c.l.b16 %v490
    %v1911 = vunpack.c.l.b16 %v491
    %v1912 = vunpack.c.l.b16 %v492
    %v1913 = vunpack.c.l.b16 %v493
    %v1914 = vunpack.c.l.b16 %v494
    %v1915 = vunpack.c.l.b16 %v495
    %v1916 = vunpack.c.l.b16 %v496
    %v1917 = vunpack.c.l.b16 %v497
    %v1918 = vunpack.c.l.b16 %v498
    %v1919 = vunpack.c.l.b16 %v499
    %v1920 = vunpack.c.l.b16 %v500
    %v1921 = vunpack.c.l.b16 %v501
    %v1922 = vunpack.c.l.b16 %v502
    %v1923 = vunpack.c.l.b16 %v503
    %v1924 = vunpack.c.l.b16 %v504
    %v1925 = vunpack.c.l.b16 %v505
    %v1926 = vunpack.c.l.b16 %v506
    %v1927 = vunpack.c.l.b16 %v507
    %v1928 = vunpack.c.l.b16 %v508
    %v1929 = vunpack.c.l.b16 %v509
    %v1930 = vunpack.c.l.b16 %v510
    %v1931 = vunpack.c.l.b16 %v511
    %v1932 = vunpack.c.l.b16 %v512
    %v1933 = vunpack.c.l.b16 %v513
    %v1934 = vunpack.c.l.b16 %v514
    %v1935 = vunpack.c.l.b16 %v515
    %v1936 = vunpack.c.l.b16 %v516
    %v1937 = vunpack.c.l.b16 %v517
    %v1938 = vunpack.c.l.b16 %v518
    %v1939 = vunpack.c.l.b16 %v519
    %v1940 = vunpack.c.l.b16 %v520
    %v1941 = vunpack.c.l.b16 %v521
    %v1942 = vunpack.c.l.b16 %v522
    %v1943 = vunpack.c.l.b16 %v523
    %v1944 = vunpack.c.l.b16 %v524
    %v1945 = vunpack.c.l.b16 %v525
    %v1946 = vunpack.c.l.b16 %v526
    %v1947 = vunpack.c.l.b16 %v527
    %v1948 = vunpack.c.l.b16 %v528
    %v1949 = vunpack.c.l.b16 %v529
    %v1950 = vunpack.c.l.b16 %v530
    %v1951 = vunpack.c.l.b16 %v531
    %v1952 = vunpack.c.l.b16 %v532
    %v1953 = vunpack.c.l.b16 %v533
    %v1954 = vunpack.c.l.b16 %v534
    %v1955 = vunpack.c.l.b16 %v535
    %v1956 = vunpack.c.l.b16 %v536
    %v1957 = vunpack.c.l.b16 %v537
    %v1958 = vunpack.c.l.b16 %v538
    %v1959 = vunpack.c.l.b16 %v539
    %v1960 = vunpack.c.l.b16 %v540
    %v1961 = vunpack.c.l.b16 %v541
    %v1962 = vunpack.c.l.b16 %v542
    %v1963 = vunpack.c.l.b16 %v543
    %v1964 = vunpack.c.l.b16 %v544
    %v1965 = vunpack.c.l.b16 %v545
    %v1966 = vunpack.c.l.b16 %v546
    %v1967 = vunpack.c.l.b16 %v547
    %v1968 = vunpack.c.l.b16 %v548
    %v1969 = vunpack.c.l.b16 %v549
    %v1970 = vunpack.c.l.b16 %v550
    %v1971 = vunpack.c.l.b16 %v551
    %v1972 = vunpack.c.l.b16 %v552
    %v1973 = vunpack.c.l.b16 %v553
    %v1974 = vunpack.c.l.b16 %v554
    %v1975 = vunpack.c.l.b16 %v555
    %v1976 = vunpack.c.l.b16 %v556
    %v1977 = vunpack.c.l.b16 %v557
    %v1978 = vunpack.c.l.b16 %v558
    %v1979 = vunpack.c.l.b16 %v559
    %v1980 = vunpack.c.l.b16 %v560
    %v1981 = vunpack.c.l.b16 %v561
    %v1982 = vunpack.c.l.b16 %v562
    %v1983 = vunpack.c.l.b16 %v563
    %v1984 = vunpack.c.l.b16 %v564
    %v1985 = vunpack.c.l.b16 %v565
    %v1986 = vunpack.c.l.b16 %v566
    %v1987 = vunpack.c.l.b16 %v567
    %v1988 = vunpack.c.l.b16 %v568
    %v1989 = vunpack.c.l.b16 %v569
    %v1990 = vunpack.c.l.b16 %v570
    %v1991 = vunpack.c.l.b16 %v571
    %v1992 = vunpack.c.l.b16 %v572
    %v1993 = vunpack.c.l.b16 %v573
    %v1994 = vunpack.c.l.b16 %v574
    %v1995 = vunpack.c.l.b16 %v575
    %v1996 = vunpack.c.l.b16 %v576
    %v1997 = vunpack.c.l.b16 %v577
    %v1998 = vunpack.c.l.b16 %v578
    %v1999 = vunpack.c.l.b16 %v579
    %v2000 = vunpack.c.l.b16 %v580
    %v2001 = vunpack.c.l.b16 %v581
    %v2002 = vunpack.c.l.b16 %v582
    %v2003 = vunpack.c.l.b16 %v583
    %v2004 = vunpack.c.l.b16 %v584
    %v2005 = vunpack.c.l.b16 %v585
    %v2006 = vunpack.c.l.b16 %v586
    %v2007 = vunpack.c.l.b16 %v587
    %v2008 = vunpack.c.l.b16 %v588
    %v2009 = vunpack.c.l.b16 %v589
    %v2010 = vunpack.c.l.b16 %v590
    %v2011 = vunpack.c.l.b16 %v591
    %v2012 = vunpack.c.l.b16 %v592
    %v2013 = vunpack.c.l.b16 %v593
    %v2014 = vunpack.c.l.b16 %v594
    %v2015 = vunpack.c.l.b16 %v595
    %v2016 = vunpack.c.l.b16 %v596
    %v2017 = vunpack.c.l.b16 %v597
    %v2018 = vunpack.c.l.b16 %v598
    %v2019 = vunpack.c.l.b16 %v599
    %v2020 = vunpack.c.l.b16 %v600
    %v2021 = vunpack.c.l.b16 %v601
    %v2022 = vunpack.c.l.b16 %v602
    %v2023 = vpack.c.b16 %v1448, %v1447
    %v2024 = vpack.c.b16 %v1450, %v1449
    %v2025 = vpack.c.b16 %v1452, %v1451
    %v2026 = vpack.c.b16 %v1454, %v1453
    %v2027 = vpack.c.b16 %v1456, %v1455
    %v2028 = vpack.c.b16 %v1458, %v1457
    %v2029 = vpack.c.b16 %v1460, %v1459
    %v2030 = vpack.c.b16 %v1462, %v1461
    %v2031 = vpack.c.b16 %v1464, %v1463
    %v2032 = vpack.c.b16 %v1466, %v1465
    %v2033 = vpack.c.b16 %v1468, %v1467
    %v2034 = vpack.c.b16 %v1470, %v1469
    %v2035 = vpack.c.b16 %v1472, %v1471
    %v2036 = vpack.c.b16 %v1474, %v1473
    %v2037 = vpack.c.b16 %v1476, %v1475
    %v2038 = vpack.c.b16 %v1478, %v1477
    %v2039 = vpack.c.b16 %v1480, %v1479
    %v2040 = vpack.c.b16 %v1482, %v1481
    %v2041 = vpack.c.b16 %v1484, %v1483
    %v2042 = vpack.c.b16 %v1486, %v1485
    %v2043 = vpack.c.b16 %v1488, %v1487
    %v2044 = vpack.c.b16 %v1490, %v1489
    %v2045 = vpack.c.b16 %v1492, %v1491
    %v2046 = vpack.c.b16 %v1494, %v1493
    %v2047 = vpack.c.b16 %v1496, %v1495
    %v2048 = vpack.c.b16 %v1498, %v1497
    %v2049 = vpack.c.b16 %v1500, %v1499
    %v2050 = vpack.c.b16 %v1502, %v1501
    %v2051 = vpack.c.b16 %v1504, %v1503
    %v2052 = vpack.c.b16 %v1506, %v1505
    %v2053 = vpack.c.b16 %v1508, %v1507
    %v2054 = vpack.c.b16 %v1510, %v1509
    %v2055 = vpack.c.b16 %v1512, %v1511
    %v2056 = vpack.c.b16 %v1514, %v1513
    %v2057 = vpack.c.b16 %v1516, %v1515
    %v2058 = vpack.c.b16 %v1518, %v1517
    %v2059 = vpack.c.b16 %v1520, %v1519
    %v2060 = vpack.c.b16 %v1522, %v1521
    %v2061 = vpack.c.b16 %v1524, %v1523
    %v2062 = vpack.c.b16 %v1526, %v1525
    %v2063 = vpack.c.b16 %v1528, %v1527
    %v2064 = vpack.c.b16 %v1530, %v1529
    %v2065 = vpack.c.b16 %v1532, %v1531
    %v2066 = vpack.c.b16 %v1534, %v1533
    %v2067 = vpack.c.b16 %v1536, %v1535
    %v2068 = vpack.c.b16 %v1538, %v1537
    %v2069 = vpack.c.b16 %v1540, %v1539
    %v2070 = vpack.c.b16 %v1542, %v1541
    %v2071 = vpack.c.b16 %v1544, %v1543
    %v2072 = vpack.c.b16 %v1546, %v1545
    %v2073 = vpack.c.b16 %v1548, %v1547
    %v2074 = vpack.c.b16 %v1550, %v1549
    %v2075 = vpack.c.b16 %v1552, %v1551
    %v2076 = vpack.c.b16 %v1554, %v1553
    %v2077 = vpack.c.b16 %v1556, %v1555
    %v2078 = vpack.c.b16 %v1558, %v1557
    %v2079 = vpack.c.b16 %v1560, %v1559
    %v2080 = vpack.c.b16 %v1562, %v1561
    %v2081 = vpack.c.b16 %v1564, %v1563
    %v2082 = vpack.c.b16 %v1566, %v1565
    %v2083 = vpack.c.b16 %v1568, %v1567
    %v2084 = vpack.c.b16 %v1570, %v1569
    %v2085 = vpack.c.b16 %v1572, %v1571
    %v2086 = vpack.c.b16 %v1574, %v1573
    %v2087 = vpack.c.b16 %v1576, %v1575
    %v2088 = vpack.c.b16 %v1578, %v1577
    %v2089 = vpack.c.b16 %v1580, %v1579
    %v2090 = vpack.c.b16 %v1582, %v1581
    %v2091 = vpack.c.b16 %v1584, %v1583
    %v2092 = vpack.c.b16 %v1586, %v1585
    %v2093 = vpack.c.b16 %v1588, %v1587
    %v2094 = vpack.c.b16 %v1590, %v1589
    %v2095 = vpack.c.b16 %v1592, %v1591
    %v2096 = vpack.c.b16 %v1594, %v1593
    %v2097 = vpack.c.b16 %v1596, %v1595
    %v2098 = vpack.c.b16 %v1598, %v1597
    %v2099 = vpack.c.b16 %v1600, %v1599
    %v2100 = vpack.c.b16 %v1602, %v1601
    %v2101 = vpack.c.b16 %v1604, %v1603
    %v2102 = vpack.c.b16 %v1606, %v1605
    %v2103 = vpack.c.b16 %v1608, %v1607
    %v2104 = vpack.c.b16 %v1610, %v1609
    %v2105 = vpack.c.b16 %v1612, %v1611
    %v2106 = vpack.c.b16 %v1614, %v1613
    %v2107 = vpack.c.b16 %v1616, %v1615
    %v2108 = vpack.c.b16 %v1618, %v1617
    %v2109 = vpack.c.b16 %v1620, %v1619
    %v2110 = vpack.c.b16 %v1622, %v1621
    %v2111 = vpack.c.b16 %v1624, %v1623
    %v2112 = vpack.c.b16 %v1626, %v1625
    %v2113 = vpack.c.b16 %v1628, %v1627
    %v2114 = vpack.c.b16 %v1630, %v1629
    %v2115 = vpack.c.b16 %v1632, %v1631
    %v2116 = vpack.c.b16 %v1634, %v1633
    %v2117 = vpack.c.b16 %v1636, %v1635
    %v2118 = vpack.c.b16 %v1638, %v1637
    %v2119 = vpack.c.b16 %v1640, %v1639
    %v2120 = vpack.c.b16 %v1642, %v1641
    %v2121 = vpack.c.b16 %v1644, %v1643
    %v2122 = vpack.c.b16 %v1646, %v1645
    %v2123 = vpack.c.b16 %v1648, %v1647
    %v2124 = vpack.c.b16 %v1650, %v1649
    %v2125 = vpack.c.b16 %v1652, %v1651
    %v2126 = vpack.c.b16 %v1654, %v1653
    %v2127 = vpack.c.b16 %v1656, %v1655
    %v2128 = vpack.c.b16 %v1658, %v1657
    %v2129 = vpack.c.b16 %v1660, %v1659
    %v2130 = vpack.c.b16 %v1662, %v1661
    %v2131 = vpack.c.b16 %v1664, %v1663
    %v2132 = vpack.c.b16 %v1666, %v1665
    %v2133 = vpack.c.b16 %v1668, %v1667
    %v2134 = vpack.c.b16 %v1670, %v1669
    %v2135 = vpack.c.b16 %v1672, %v1671
    %v2136 = vpack.c.b16 %v1674, %v1673
    %v2137 = vpack.c.b16 %v1676, %v1675
    %v2138 = vpack.c.b16 %v1678, %v1677
    %v2139 = vpack.c.b16 %v1680, %v1679
    %v2140 = vpack.c.b16 %v1682, %v1681
    %v2141 = vpack.c.b16 %v1684, %v1683
    %v2142 = vpack.c.b16 %v1686, %v1685
    %v2143 = vpack.c.b16 %v1688, %v1687
    %v2144 = vpack.c.b16 %v1690, %v1689
    %v2145 = vpack.c.b16 %v1692, %v1691
    %v2146 = vpack.c.b16 %v1694, %v1693
    %v2147 = vpack.c.b16 %v1696, %v1695
    %v2148 = vpack.c.b16 %v1698, %v1697
    %v2149 = vpack.c.b16 %v1700, %v1699
    %v2150 = vpack.c.b16 %v1702, %v1701
    %v2151 = vpack.c.b16 %v1704, %v1703
    %v2152 = vpack.c.b16 %v1706, %v1705
    %v2153 = vpack.c.b16 %v1708, %v1707
    %v2154 = vpack.c.b16 %v1710, %v1709
    %v2155 = vpack.c.b16 %v1712, %v1711
    %v2156 = vpack.c.b16 %v1714, %v1713
    %v2157 = vpack.c.b16 %v1716, %v1715
    %v2158 = vpack.c.b16 %v1718, %v1717
    %v2159 = vpack.c.b16 %v1720, %v1719
    %v2160 = vpack.c.b16 %v1722, %v1721
    %v2161 = vpack.c.b16 %v1724, %v1723
    %v2162 = vpack.c.b16 %v1726, %v1725
    %v2163 = vpack.c.b16 %v1728, %v1727
    %v2164 = vpack.c.b16 %v1730, %v1729
    %v2165 = vpack.c.b16 %v1732, %v1731
    %v2166 = vpack.c.b16 %v1734, %v1733
    %v2167 = vpack.c.b16 %v1736, %v1735
    %v2168 = vpack.c.b16 %v1738, %v1737
    %v2169 = vpack.c.b16 %v1740, %v1739
    %v2170 = vpack.c.b16 %v1742, %v1741
    %v2171 = vpack.c.b16 %v1744, %v1743
    %v2172 = vpack.c.b16 %v1746, %v1745
    %v2173 = vpack.c.b16 %v1748, %v1747
    %v2174 = vpack.c.b16 %v1750, %v1749
    %v2175 = vpack.c.b16 %v1752, %v1751
    %v2176 = vpack.c.b16 %v1754, %v1753
    %v2177 = vpack.c.b16 %v1756, %v1755
    %v2178 = vpack.c.b16 %v1758, %v1757
    %v2179 = vpack.c.b16 %v1760, %v1759
    %v2180 = vpack.c.b16 %v1762, %v1761
    %v2181 = vpack.c.b16 %v1764, %v1763
    %v2182 = vpack.c.b16 %v1766, %v1765
    %v2183 = vpack.c.b16 %v1768, %v1767
    %v2184 = vpack.c.b16 %v1770, %v1769
    %v2185 = vpack.c.b16 %v1772, %v1771
    %v2186 = vpack.c.b16 %v1774, %v1773
    %v2187 = vpack.c.b16 %v1776, %v1775
    %v2188 = vpack.c.b16 %v1778, %v1777
    %v2189 = vpack.c.b16 %v1780, %v1779
    %v2190 = vpack.c.b16 %v1782, %v1781
    %v2191 = vpack.c.b16 %v1784, %v1783
    %v2192 = vpack.c.b16 %v1786, %v1785
    %v2193 = vpack.c.b16 %v1788, %v1787
    %v2194 = vpack.c.b16 %v1790, %v1789
    %v2195 = vpack.c.b16 %v1792, %v1791
    %v2196 = vpack.c.b16 %v1794, %v1793
    %v2197 = vpack.c.b16 %v1796, %v1795
    %v2198 = vpack.c.b16 %v1798, %v1797
    %v2199 = vpack.c.b16 %v1800, %v1799
    %v2200 = vpack.c.b16 %v1802, %v1801
    %v2201 = vpack.c.b16 %v1804, %v1803
    %v2202 = vpack.c.b16 %v1806, %v1805
    %v2203 = vpack.c.b16 %v1808, %v1807
    %v2204 = vpack.c.b16 %v1810, %v1809
    %v2205 = vpack.c.b16 %v1812, %v1811
    %v2206 = vpack.c.b16 %v1814, %v1813
    %v2207 = vpack.c.b16 %v1816, %v1815
    %v2208 = vpack.c.b16 %v1818, %v1817
    %v2209 = vpack.c.b16 %v1820, %v1819
    %v2210 = vpack.c.b16 %v1822, %v1821
    %v2211 = vpack.c.b16 %v1824, %v1823
    %v2212 = vpack.c.b16 %v1826, %v1825
    %v2213 = vpack.c.b16 %v1828, %v1827
    %v2214 = vpack.c.b16 %v1830, %v1829
    %v2215 = vpack.c.b16 %v1832, %v1831
    %v2216 = vpack.c.b16 %v1834, %v1833
    %v2217 = vpack.c.b16 %v1836, %v1835
    %v2218 = vpack.c.b16 %v1838, %v1837
    %v2219 = vpack.c.b16 %v1840, %v1839
    %v2220 = vpack.c.b16 %v1842, %v1841
    %v2221 = vpack.c.b16 %v1844, %v1843
    %v2222 = vpack.c.b16 %v1846, %v1845
    %v2223 = vpack.c.b16 %v1848, %v1847
    %v2224 = vpack.c.b16 %v1850, %v1849
    %v2225 = vpack.c.b16 %v1852, %v1851
    %v2226 = vpack.c.b16 %v1854, %v1853
    %v2227 = vpack.c.b16 %v1856, %v1855
    %v2228 = vpack.c.b16 %v1858, %v1857
    %v2229 = vpack.c.b16 %v1860, %v1859
    %v2230 = vpack.c.b16 %v1862, %v1861
    %v2231 = vpack.c.b16 %v1864, %v1863
    %v2232 = vpack.c.b16 %v1866, %v1865
    %v2233 = vpack.c.b16 %v1868, %v1867
    %v2234 = vpack.c.b16 %v1870, %v1869
    %v2235 = vpack.c.b16 %v1872, %v1871
    %v2236 = vpack.c.b16 %v1874, %v1873
    %v2237 = vpack.c.b16 %v1876, %v1875
    %v2238 = vpack.c.b16 %v1878, %v1877
    %v2239 = vpack.c.b16 %v1880, %v1879
    %v2240 = vpack.c.b16 %v1882, %v1881
    %v2241 = vpack.c.b16 %v1884, %v1883
    %v2242 = vpack.c.b16 %v1886, %v1885
    %v2243 = vpack.c.b16 %v1888, %v1887
    %v2244 = vpack.c.b16 %v1890, %v1889
    %v2245 = vpack.c.b16 %v1892, %v1891
    %v2246 = vpack.c.b16 %v1894, %v1893
    %v2247 = vpack.c.b16 %v1896, %v1895
    %v2248 = vpack.c.b16 %v1898, %v1897
    %v2249 = vpack.c.b16 %v1900, %v1899
    %v2250 = vpack.c.b16 %v1902, %v1901
    %v2251 = vpack.c.b16 %v1904, %v1903
    %v2252 = vpack.c.b16 %v1906, %v1905
    %v2253 = vpack.c.b16 %v1908, %v1907
    %v2254 = vpack.c.b16 %v1910, %v1909
    %v2255 = vpack.c.b16 %v1912, %v1911
    %v2256 = vpack.c.b16 %v1914, %v1913
    %v2257 = vpack.c.b16 %v1916, %v1915
    %v2258 = vpack.c.b16 %v1918, %v1917
    %v2259 = vpack.c.b16 %v1920, %v1919
    %v2260 = vpack.c.b16 %v1922, %v1921
    %v2261 = vpack.c.b16 %v1924, %v1923
    %v2262 = vpack.c.b16 %v1926, %v1925
    %v2263 = vpack.c.b16 %v1928, %v1927
    %v2264 = vpack.c.b16 %v1930, %v1929
    %v2265 = vpack.c.b16 %v1932, %v1931
    %v2266 = vpack.c.b16 %v1934, %v1933
    %v2267 = vpack.c.b16 %v1936, %v1935
    %v2268 = vpack.c.b16 %v1938, %v1937
    %v2269 = vpack.c.b16 %v1940, %v1939
    %v2270 = vpack.c.b16 %v1942, %v1941
    %v2271 = vpack.c.b16 %v1944, %v1943
    %v2272 = vpack.c.b16 %v1946, %v1945
    %v2273 = vpack.c.b16 %v1948, %v1947
    %v2274 = vpack.c.b16 %v1950, %v1949
    %v2275 = vpack.c.b16 %v1952, %v1951
    %v2276 = vpack.c.b16 %v1954, %v1953
    %v2277 = vpack.c.b16 %v1956, %v1955
    %v2278 = vpack.c.b16 %v1958, %v1957
    %v2279 = vpack.c.b16 %v1960, %v1959
    %v2280 = vpack.c.b16 %v1962, %v1961
    %v2281 = vpack.c.b16 %v1964, %v1963
    %v2282 = vpack.c.b16 %v1966, %v1965
    %v2283 = vpack.c.b16 %v1968, %v1967
    %v2284 = vpack.c.b16 %v1970, %v1969
    %v2285 = vpack.c.b16 %v1972, %v1971
    %v2286 = vpack.c.b16 %v1974, %v1973
    %v2287 = vpack.c.b16 %v1976, %v1975
    %v2288 = vpack.c.b16 %v1978, %v1977
    %v2289 = vpack.c.b16 %v1980, %v1979
    %v2290 = vpack.c.b16 %v1982, %v1981
    %v2291 = vpack.c.b16 %v1984, %v1983
    %v2292 = vpack.c.b16 %v1986, %v1985
    %v2293 = vpack.c.b16 %v1988, %v1987
    %v2294 = vpack.c.b16 %v1990, %v1989
    %v2295 = vpack.c.b16 %v1992, %v1991
    %v2296 = vpack.c.b16 %v1994, %v1993
    %v2297 = vpack.c.b16 %v1996, %v1995
    %v2298 = vpack.c.b16 %v1998, %v1997
    %v2299 = vpack.c.b16 %v2000, %v1999
    %v2300 = vpack.c.b16 %v2002, %v2001
    %v2301 = vpack.c.b16 %v2004, %v2003
    %v2302 = vpack.c.b16 %v2006, %v2005
    %v2303 = vpack.c.b16 %v2008, %v2007
    %v2304 = vpack.c.b16 %v2010, %v2009
    %v2305 = vpack.c.b16 %v2012, %v2011
    %v2306 = vpack.c.b16 %v2014, %v2013
    %v2307 = vpack.c.b16 %v2016, %v2015
    %v2308 = vpack.c.b16 %v2018, %v2017
    %v2309 = vpack.c.b16 %v2020, %v2019
    %v2310 = vpack.c.b16 %v2022, %v2021
    %2599 = vmatprep.subr.bf16.mxu0 0
    %2600 = vmatpush1.bf16.msra.mxu0 %v2023
    %2601 = vmatprep.subr.bf16.mxu0 0
    %2602 = vmatpush1.bf16.msra.mxu0 %v2024
    %2603 = vmatprep.subr.bf16.mxu0 0
    %2604 = vmatpush1.bf16.msra.mxu0 %v2025
    %2605 = vmatprep.subr.bf16.mxu0 0
    %2606 = vmatpush1.bf16.msra.mxu0 %v2026
    %2607 = vmatprep.subr.bf16.mxu0 0
    %2608 = vmatpush1.bf16.msra.mxu0 %v2027
    %2609 = vmatprep.subr.bf16.mxu0 0
    %2610 = vmatpush1.bf16.msra.mxu0 %v2028
    %2611 = vmatprep.subr.bf16.mxu0 0
    %2612 = vmatpush1.bf16.msra.mxu0 %v2029
    %2613 = vmatprep.subr.bf16.mxu0 0
    %2614 = vmatpush1.bf16.msra.mxu0 %v2030
    %2615 = vmatprep.subr.bf16.mxu0 0
    %2616 = vmatpush1.bf16.msra.mxu0 %v2031
    %2617 = vmatprep.subr.bf16.mxu0 0
    %2618 = vmatpush1.bf16.msra.mxu0 %v2032
    %2619 = vmatprep.subr.bf16.mxu0 0
    %2620 = vmatpush1.bf16.msra.mxu0 %v2033
    %2621 = vmatprep.subr.bf16.mxu0 0
    %2622 = vmatpush1.bf16.msra.mxu0 %v2034
    %2623 = vmatprep.subr.bf16.mxu0 0
    %2624 = vmatpush1.bf16.msra.mxu0 %v2035
    %2625 = vmatprep.subr.bf16.mxu0 0
    %2626 = vmatpush1.bf16.msra.mxu0 %v2036
    %2627 = vmatprep.subr.bf16.mxu0 0
    %2628 = vmatpush1.bf16.msra.mxu0 %v2037
    %2629 = vmatprep.subr.bf16.mxu0 0
    %2630 = vmatpush1.bf16.msra.mxu0 %v2038
    %2631 = vmatprep.mubr.bf16.mxu0 %v652
    %2632 = vmatmul.mubr.bf16.gmra.mrb[0].mxu0 %v638
    %v2633 = vpop.f32.mrb[0].mxu0
    %v2634 = vadd.f32 %v608, %v2633
    %v2635 = vpop.f32.mrb[0].mxu0
    %v2636 = vpop.f32.mrb[0].mxu0
    %v2637 = vpop.f32.mrb[0].mxu0
    %2638 = vdwg.mxu0
    %2639 = vmatprep.subr.bf16.mxu0 0
    %2640 = vmatpush1.bf16.msra.mxu0 %v2039
    %2641 = vmatprep.subr.bf16.mxu0 0
    %2642 = vmatpush1.bf16.msra.mxu0 %v2040
    %2643 = vmatprep.subr.bf16.mxu0 0
    %2644 = vmatpush1.bf16.msra.mxu0 %v2041
    %2645 = vmatprep.subr.bf16.mxu0 0
    %2646 = vmatpush1.bf16.msra.mxu0 %v2042
    %2647 = vmatprep.subr.bf16.mxu0 0
    %2648 = vmatpush1.bf16.msra.mxu0 %v2043
    %2649 = vmatprep.subr.bf16.mxu0 0
    %2650 = vmatpush1.bf16.msra.mxu0 %v2044
    %2651 = vmatprep.subr.bf16.mxu0 0
    %2652 = vmatpush1.bf16.msra.mxu0 %v2045
    %2653 = vmatprep.subr.bf16.mxu0 0
    %2654 = vmatpush1.bf16.msra.mxu0 %v2046
    %2655 = vmatprep.subr.bf16.mxu0 0
    %2656 = vmatpush1.bf16.msra.mxu0 %v2047
    %2657 = vmatprep.subr.bf16.mxu0 0
    %2658 = vmatpush1.bf16.msra.mxu0 %v2048
    %2659 = vmatprep.subr.bf16.mxu0 0
    %2660 = vmatpush1.bf16.msra.mxu0 %v2049
    %2661 = vmatprep.subr.bf16.mxu0 0
    %2662 = vmatpush1.bf16.msra.mxu0 %v2050
    %2663 = vmatprep.subr.bf16.mxu0 0
    %2664 = vmatpush1.bf16.msra.mxu0 %v2051
    %2665 = vmatprep.subr.bf16.mxu0 0
    %2666 = vmatpush1.bf16.msra.mxu0 %v2052
    %2667 = vmatprep.subr.bf16.mxu0 0
    %2668 = vmatpush1.bf16.msra.mxu0 %v2053
    %2669 = vmatprep.subr.bf16.mxu0 0
    %2670 = vmatpush1.bf16.msra.mxu0 %v2054
    %2671 = vmatprep.mubr.bf16.mxu0 %v662
    %2672 = vmatmul.mubr.bf16.gmra.mrb[0].mxu0 %v660
    %v2673 = vpop.f32.mrb[0].mxu0
    %v2674 = vadd.f32 %v2634, %v2673
    %v2675 = vpop.f32.mrb[0].mxu0
    %v2676 = vpop.f32.mrb[0].mxu0
    %v2677 = vpop.f32.mrb[0].mxu0
    %2678 = vdwg.mxu0
    %2679 = vmatprep.subr.bf16.mxu0 0
    %2680 = vmatpush1.bf16.msra.mxu0 %v2055
    %2681 = vmatprep.subr.bf16.mxu0 0
    %2682 = vmatpush1.bf16.msra.mxu0 %v2056
    %2683 = vmatprep.subr.bf16.mxu0 0
    %2684 = vmatpush1.bf16.msra.mxu0 %v2057
    %2685 = vmatprep.subr.bf16.mxu0 0
    %2686 = vmatpush1.bf16.msra.mxu0 %v2058
    %2687 = vmatprep.subr.bf16.mxu0 0
    %2688 = vmatpush1.bf16.msra.mxu0 %v2059
    %2689 = vmatprep.subr.bf16.mxu0 0
    %2690 = vmatpush1.bf16.msra.mxu0 %v2060
    %2691 = vmatprep.subr.bf16.mxu0 0
    %2692 = vmatpush1.bf16.msra.mxu0 %v2061
    %2693 = vmatprep.subr.bf16.mxu0 0
    %2694 = vmatpush1.bf16.msra.mxu0 %v2062
    %2695 = vmatprep.subr.bf16.mxu0 0
    %2696 = vmatpush1.bf16.msra.mxu0 %v2063
    %2697 = vmatprep.subr.bf16.mxu0 0
    %2698 = vmatpush1.bf16.msra.mxu0 %v2064
    %2699 = vmatprep.subr.bf16.mxu0 0
    %2700 = vmatpush1.bf16.msra.mxu0 %v2065
    %2701 = vmatprep.subr.bf16.mxu0 0
    %2702 = vmatpush1.bf16.msra.mxu0 %v2066
    %2703 = vmatprep.subr.bf16.mxu0 0
    %2704 = vmatpush1.bf16.msra.mxu0 %v2067
    %2705 = vmatprep.subr.bf16.mxu0 0
    %2706 = vmatpush1.bf16.msra.mxu0 %v2068
    %2707 = vmatprep.subr.bf16.mxu0 0
    %2708 = vmatpush1.bf16.msra.mxu0 %v2069
    %2709 = vmatprep.subr.bf16.mxu0 0
    %2710 = vmatpush1.bf16.msra.mxu0 %v2070
    %2711 = vmatprep.mubr.bf16.mxu0 %v659
    %2712 = vmatmul.mubr.bf16.gmra.mrb[0].mxu0 %v645
    %v2713 = vpop.f32.mrb[0].mxu0
    %v2714 = vadd.f32 %v2674, %v2713
    %v2715 = vpop.f32.mrb[0].mxu0
    %v2716 = vpop.f32.mrb[0].mxu0
    %v2717 = vpop.f32.mrb[0].mxu0
    %2718 = vdwg.mxu0
    %2719 = vmatprep.subr.bf16.mxu0 0
    %2720 = vmatpush1.bf16.msra.mxu0 %v2071
    %2721 = vmatprep.subr.bf16.mxu0 0
    %2722 = vmatpush1.bf16.msra.mxu0 %v2072
    %2723 = vmatprep.subr.bf16.mxu0 0
    %2724 = vmatpush1.bf16.msra.mxu0 %v2073
    %2725 = vmatprep.subr.bf16.mxu0 0
    %2726 = vmatpush1.bf16.msra.mxu0 %v2074
    %2727 = vmatprep.subr.bf16.mxu0 0
    %2728 = vmatpush1.bf16.msra.mxu0 %v2075
    %2729 = vmatprep.subr.bf16.mxu0 0
    %2730 = vmatpush1.bf16.msra.mxu0 %v2076
    %2731 = vmatprep.subr.bf16.mxu0 0
    %2732 = vmatpush1.bf16.msra.mxu0 %v2077
    %2733 = vmatprep.subr.bf16.mxu0 0
    %2734 = vmatpush1.bf16.msra.mxu0 %v2078
    %2735 = vmatprep.subr.bf16.mxu0 0
    %2736 = vmatpush1.bf16.msra.mxu0 %v2079
    %2737 = vmatprep.subr.bf16.mxu0 0
    %2738 = vmatpush1.bf16.msra.mxu0 %v2080
    %2739 = vmatprep.subr.bf16.mxu0 0
    %2740 = vmatpush1.bf16.msra.mxu0 %v2081
    %2741 = vmatprep.subr.bf16.mxu0 0
    %2742 = vmatpush1.bf16.msra.mxu0 %v2082
    %2743 = vmatprep.subr.bf16.mxu0 0
    %2744 = vmatpush1.bf16.msra.mxu0 %v2083
    %2745 = vmatprep.subr.bf16.mxu0 0
    %2746 = vmatpush1.bf16.msra.mxu0 %v2084
    %2747 = vmatprep.subr.bf16.mxu0 0
    %2748 = vmatpush1.bf16.msra.mxu0 %v2085
    %2749 = vmatprep.subr.bf16.mxu0 0
    %2750 = vmatpush1.bf16.msra.mxu0 %v2086
    %2751 = vmatprep.mubr.bf16.mxu0 %v663
    %2752 = vmatmul.mubr.bf16.gmra.mrb[0].mxu0 %v661
    %v2753 = vpop.f32.mrb[0].mxu0
    %v2754 = vadd.f32 %v2714, %v2753
    %v2755 = vpop.f32.mrb[0].mxu0
    %v2756 = vpop.f32.mrb[0].mxu0
    %v2757 = vpop.f32.mrb[0].mxu0
    %2758 = vdwg.mxu0
    %2759 = vmatprep.subr.bf16.mxu0 0
    %2760 = vmatpush1.bf16.msra.mxu0 %v2087
    %2761 = vmatprep.subr.bf16.mxu0 0
    %2762 = vmatpush1.bf16.msra.mxu0 %v2088
    %2763 = vmatprep.subr.bf16.mxu0 0
    %2764 = vmatpush1.bf16.msra.mxu0 %v2089
    %2765 = vmatprep.subr.bf16.mxu0 0
    %2766 = vmatpush1.bf16.msra.mxu0 %v2090
    %2767 = vmatprep.subr.bf16.mxu0 0
    %2768 = vmatpush1.bf16.msra.mxu0 %v2091
    %2769 = vmatprep.subr.bf16.mxu0 0
    %2770 = vmatpush1.bf16.msra.mxu0 %v2092
    %2771 = vmatprep.subr.bf16.mxu0 0
    %2772 = vmatpush1.bf16.msra.mxu0 %v2093
    %2773 = vmatprep.subr.bf16.mxu0 0
    %2774 = vmatpush1.bf16.msra.mxu0 %v2094
    %2775 = vmatprep.subr.bf16.mxu0 0
    %2776 = vmatpush1.bf16.msra.mxu0 %v2095
    %2777 = vmatprep.subr.bf16.mxu0 0
    %2778 = vmatpush1.bf16.msra.mxu0 %v2096
    %2779 = vmatprep.subr.bf16.mxu0 0
    %2780 = vmatpush1.bf16.msra.mxu0 %v2097
    %2781 = vmatprep.subr.bf16.mxu0 0
    %2782 = vmatpush1.bf16.msra.mxu0 %v2098
    %2783 = vmatprep.subr.bf16.mxu0 0
    %2784 = vmatpush1.bf16.msra.mxu0 %v2099
    %2785 = vmatprep.subr.bf16.mxu0 0
    %2786 = vmatpush1.bf16.msra.mxu0 %v2100
    %2787 = vmatprep.subr.bf16.mxu0 0
    %2788 = vmatpush1.bf16.msra.mxu0 %v2101
    %2789 = vmatprep.subr.bf16.mxu0 0
    %2790 = vmatpush1.bf16.msra.mxu0 %v2102
    %2791 = vmatprep.mubr.bf16.mxu0 %v701
    %2792 = vmatmul.mubr.bf16.gmra.mrb[0].mxu0 %v687
    %v2793 = vpop.f32.mrb[0].mxu0
    %v2794 = vadd.f32 %v2754, %v2793
    %v2795 = vpop.f32.mrb[0].mxu0
    %v2796 = vpop.f32.mrb[0].mxu0
    %v2797 = vpop.f32.mrb[0].mxu0
    %2798 = vdwg.mxu0
    %2799 = vmatprep.subr.bf16.mxu0 0
    %2800 = vmatpush1.bf16.msra.mxu0 %v2103
    %2801 = vmatprep.subr.bf16.mxu0 0
    %2802 = vmatpush1.bf16.msra.mxu0 %v2104
    %2803 = vmatprep.subr.bf16.mxu0 0
    %2804 = vmatpush1.bf16.msra.mxu0 %v2105
    %2805 = vmatprep.subr.bf16.mxu0 0
    %2806 = vmatpush1.bf16.msra.mxu0 %v2106
    %2807 = vmatprep.subr.bf16.mxu0 0
    %2808 = vmatpush1.bf16.msra.mxu0 %v2107
    %2809 = vmatprep.subr.bf16.mxu0 0
    %2810 = vmatpush1.bf16.msra.mxu0 %v2108
    %2811 = vmatprep.subr.bf16.mxu0 0
    %2812 = vmatpush1.bf16.msra.mxu0 %v2109
    %2813 = vmatprep.subr.bf16.mxu0 0
    %2814 = vmatpush1.bf16.msra.mxu0 %v2110
    %2815 = vmatprep.subr.bf16.mxu0 0
    %2816 = vmatpush1.bf16.msra.mxu0 %v2111
    %2817 = vmatprep.subr.bf16.mxu0 0
    %2818 = vmatpush1.bf16.msra.mxu0 %v2112
    %2819 = vmatprep.subr.bf16.mxu0 0
    %2820 = vmatpush1.bf16.msra.mxu0 %v2113
    %2821 = vmatprep.subr.bf16.mxu0 0
    %2822 = vmatpush1.bf16.msra.mxu0 %v2114
    %2823 = vmatprep.subr.bf16.mxu0 0
    %2824 = vmatpush1.bf16.msra.mxu0 %v2115
    %2825 = vmatprep.subr.bf16.mxu0 0
    %2826 = vmatpush1.bf16.msra.mxu0 %v2116
    %2827 = vmatprep.subr.bf16.mxu0 0
    %2828 = vmatpush1.bf16.msra.mxu0 %v2117
    %2829 = vmatprep.subr.bf16.mxu0 0
    %2830 = vmatpush1.bf16.msra.mxu0 %v2118
    %2831 = vmatprep.mubr.bf16.mxu0 %v711
    %2832 = vmatmul.mubr.bf16.gmra.mrb[0].mxu0 %v709
    %v2833 = vpop.f32.mrb[0].mxu0
    %v2834 = vadd.f32 %v2794, %v2833
    %v2835 = vpop.f32.mrb[0].mxu0
    %v2836 = vpop.f32.mrb[0].mxu0
    %v2837 = vpop.f32.mrb[0].mxu0
    %2838 = vdwg.mxu0
    %2839 = vmatprep.subr.bf16.mxu0 0
    %2840 = vmatpush1.bf16.msra.mxu0 %v2119
    %2841 = vmatprep.subr.bf16.mxu0 0
    %2842 = vmatpush1.bf16.msra.mxu0 %v2120
    %2843 = vmatprep.subr.bf16.mxu0 0
    %2844 = vmatpush1.bf16.msra.mxu0 %v2121
    %2845 = vmatprep.subr.bf16.mxu0 0
    %2846 = vmatpush1.bf16.msra.mxu0 %v2122
    %2847 = vmatprep.subr.bf16.mxu0 0
    %2848 = vmatpush1.bf16.msra.mxu0 %v2123
    %2849 = vmatprep.subr.bf16.mxu0 0
    %2850 = vmatpush1.bf16.msra.mxu0 %v2124
    %2851 = vmatprep.subr.bf16.mxu0 0
    %2852 = vmatpush1.bf16.msra.mxu0 %v2125
    %2853 = vmatprep.subr.bf16.mxu0 0
    %2854 = vmatpush1.bf16.msra.mxu0 %v2126
    %2855 = vmatprep.subr.bf16.mxu0 0
    %2856 = vmatpush1.bf16.msra.mxu0 %v2127
    %2857 = vmatprep.subr.bf16.mxu0 0
    %2858 = vmatpush1.bf16.msra.mxu0 %v2128
    %2859 = vmatprep.subr.bf16.mxu0 0
    %2860 = vmatpush1.bf16.msra.mxu0 %v2129
    %2861 = vmatprep.subr.bf16.mxu0 0
    %2862 = vmatpush1.bf16.msra.mxu0 %v2130
    %2863 = vmatprep.subr.bf16.mxu0 0
    %2864 = vmatpush1.bf16.msra.mxu0 %v2131
    %2865 = vmatprep.subr.bf16.mxu0 0
    %2866 = vmatpush1.bf16.msra.mxu0 %v2132
    %2867 = vmatprep.subr.bf16.mxu0 0
    %2868 = vmatpush1.bf16.msra.mxu0 %v2133
    %2869 = vmatprep.subr.bf16.mxu0 0
    %2870 = vmatpush1.bf16.msra.mxu0 %v2134
    %2871 = vmatprep.mubr.bf16.mxu0 %v708
    %2872 = vmatmul.mubr.bf16.gmra.mrb[0].mxu0 %v694
    %v2873 = vpop.f32.mrb[0].mxu0
    %v2874 = vadd.f32 %v2834, %v2873
    %v2875 = vpop.f32.mrb[0].mxu0
    %v2876 = vpop.f32.mrb[0].mxu0
    %v2877 = vpop.f32.mrb[0].mxu0
    %2878 = vdwg.mxu0
    %2879 = vmatprep.subr.bf16.mxu0 0
    %2880 = vmatpush1.bf16.msra.mxu0 %v2135
    %2881 = vmatprep.subr.bf16.mxu0 0
    %2882 = vmatpush1.bf16.msra.mxu0 %v2136
    %2883 = vmatprep.subr.bf16.mxu0 0
    %2884 = vmatpush1.bf16.msra.mxu0 %v2137
    %2885 = vmatprep.subr.bf16.mxu0 0
    %2886 = vmatpush1.bf16.msra.mxu0 %v2138
    %2887 = vmatprep.subr.bf16.mxu0 0
    %2888 = vmatpush1.bf16.msra.mxu0 %v2139
    %2889 = vmatprep.subr.bf16.mxu0 0
    %2890 = vmatpush1.bf16.msra.mxu0 %v2140
    %2891 = vmatprep.subr.bf16.mxu0 0
    %2892 = vmatpush1.bf16.msra.mxu0 %v2141
    %2893 = vmatprep.subr.bf16.mxu0 0
    %2894 = vmatpush1.bf16.msra.mxu0 %v2142
    %2895 = vmatprep.subr.bf16.mxu0 0
    %2896 = vmatpush1.bf16.msra.mxu0 %v2143
    %2897 = vmatprep.subr.bf16.mxu0 0
    %2898 = vmatpush1.bf16.msra.mxu0 %v2144
    %2899 = vmatprep.subr.bf16.mxu0 0
    %2900 = vmatpush1.bf16.msra.mxu0 %v2145
    %2901 = vmatprep.subr.bf16.mxu0 0
    %2902 = vmatpush1.bf16.msra.mxu0 %v2146
    %2903 = vmatprep.subr.bf16.mxu0 0
    %2904 = vmatpush1.bf16.msra.mxu0 %v2147
    %2905 = vmatprep.subr.bf16.mxu0 0
    %2906 = vmatpush1.bf16.msra.mxu0 %v2148
    %2907 = vmatprep.subr.bf16.mxu0 0
    %2908 = vmatpush1.bf16.msra.mxu0 %v2149
    %2909 = vmatprep.subr.bf16.mxu0 0
    %2910 = vmatpush1.bf16.msra.mxu0 %v2150
    %2911 = vmatprep.mubr.bf16.mxu0 %v712
    %2912 = vmatmul.mubr.bf16.gmra.mrb[0].mxu0 %v710
    %v2913 = vpop.f32.mrb[0].mxu0
    %v2914 = vadd.f32 %v2874, %v2913
    %v2915 = vpop.f32.mrb[0].mxu0
    %v2916 = vpop.f32.mrb[0].mxu0
    %v2917 = vpop.f32.mrb[0].mxu0
    %2918 = vdwg.mxu0
    %2919 = vmatprep.subr.bf16.mxu0 0
    %2920 = vmatpush1.bf16.msra.mxu0 %v2151
    %2921 = vmatprep.subr.bf16.mxu0 0
    %2922 = vmatpush1.bf16.msra.mxu0 %v2152
    %2923 = vmatprep.subr.bf16.mxu0 0
    %2924 = vmatpush1.bf16.msra.mxu0 %v2153
    %2925 = vmatprep.subr.bf16.mxu0 0
    %2926 = vmatpush1.bf16.msra.mxu0 %v2154
    %2927 = vmatprep.subr.bf16.mxu0 0
    %2928 = vmatpush1.bf16.msra.mxu0 %v2155
    %2929 = vmatprep.subr.bf16.mxu0 0
    %2930 = vmatpush1.bf16.msra.mxu0 %v2156
    %2931 = vmatprep.subr.bf16.mxu0 0
    %2932 = vmatpush1.bf16.msra.mxu0 %v2157
    %2933 = vmatprep.subr.bf16.mxu0 0
    %2934 = vmatpush1.bf16.msra.mxu0 %v2158
    %2935 = vmatprep.subr.bf16.mxu0 0
    %2936 = vmatpush1.bf16.msra.mxu0 %v2159
    %2937 = vmatprep.subr.bf16.mxu0 0
    %2938 = vmatpush1.bf16.msra.mxu0 %v2160
    %2939 = vmatprep.subr.bf16.mxu0 0
    %2940 = vmatpush1.bf16.msra.mxu0 %v2161
    %2941 = vmatprep.subr.bf16.mxu0 0
    %2942 = vmatpush1.bf16.msra.mxu0 %v2162
    %2943 = vmatprep.subr.bf16.mxu0 0
    %2944 = vmatpush1.bf16.msra.mxu0 %v2163
    %2945 = vmatprep.subr.bf16.mxu0 0
    %2946 = vmatpush1.bf16.msra.mxu0 %v2164
    %2947 = vmatprep.subr.bf16.mxu0 0
    %2948 = vmatpush1.bf16.msra.mxu0 %v2165
    %2949 = vmatprep.subr.bf16.mxu0 0
    %2950 = vmatpush1.bf16.msra.mxu0 %v2166
    %2951 = vmatprep.mubr.bf16.mxu0 %v750
    %2952 = vmatmul.mubr.bf16.gmra.mrb[0].mxu0 %v736
    %v2953 = vpop.f32.mrb[0].mxu0
    %v2954 = vadd.f32 %v2914, %v2953
    %v2955 = vpop.f32.mrb[0].mxu0
    %v2956 = vpop.f32.mrb[0].mxu0
    %v2957 = vpop.f32.mrb[0].mxu0
    %2958 = vdwg.mxu0
    %2959 = vmatprep.subr.bf16.mxu0 0
    %2960 = vmatpush1.bf16.msra.mxu0 %v2167
    %2961 = vmatprep.subr.bf16.mxu0 0
    %2962 = vmatpush1.bf16.msra.mxu0 %v2168
    %2963 = vmatprep.subr.bf16.mxu0 0
    %2964 = vmatpush1.bf16.msra.mxu0 %v2169
    %2965 = vmatprep.subr.bf16.mxu0 0
    %2966 = vmatpush1.bf16.msra.mxu0 %v2170
    %2967 = vmatprep.subr.bf16.mxu0 0
    %2968 = vmatpush1.bf16.msra.mxu0 %v2171
    %2969 = vmatprep.subr.bf16.mxu0 0
    %2970 = vmatpush1.bf16.msra.mxu0 %v2172
    %2971 = vmatprep.subr.bf16.mxu0 0
    %2972 = vmatpush1.bf16.msra.mxu0 %v2173
    %2973 = vmatprep.subr.bf16.mxu0 0
    %2974 = vmatpush1.bf16.msra.mxu0 %v2174
    %2975 = vmatprep.subr.bf16.mxu0 0
    %2976 = vmatpush1.bf16.msra.mxu0 %v2175
    %2977 = vmatprep.subr.bf16.mxu0 0
    %2978 = vmatpush1.bf16.msra.mxu0 %v2176
    %2979 = vmatprep.subr.bf16.mxu0 0
    %2980 = vmatpush1.bf16.msra.mxu0 %v2177
    %2981 = vmatprep.subr.bf16.mxu0 0
    %2982 = vmatpush1.bf16.msra.mxu0 %v2178
    %2983 = vmatprep.subr.bf16.mxu0 0
    %2984 = vmatpush1.bf16.msra.mxu0 %v2179
    %2985 = vmatprep.subr.bf16.mxu0 0
    %2986 = vmatpush1.bf16.msra.mxu0 %v2180
    %2987 = vmatprep.subr.bf16.mxu0 0
    %2988 = vmatpush1.bf16.msra.mxu0 %v2181
    %2989 = vmatprep.subr.bf16.mxu0 0
    %2990 = vmatpush1.bf16.msra.mxu0 %v2182
    %2991 = vmatprep.mubr.bf16.mxu0 %v760
    %2992 = vmatmul.mubr.bf16.gmra.mrb[0].mxu0 %v758
    %v2993 = vpop.f32.mrb[0].mxu0
    %v2994 = vadd.f32 %v2954, %v2993
    %v2995 = vpop.f32.mrb[0].mxu0
    %v2996 = vpop.f32.mrb[0].mxu0
    %v2997 = vpop.f32.mrb[0].mxu0
    %2998 = vdwg.mxu0
    %2999 = vmatprep.subr.bf16.mxu0 0
    %3000 = vmatpush1.bf16.msra.mxu0 %v2183
    %3001 = vmatprep.subr.bf16.mxu0 0
    %3002 = vmatpush1.bf16.msra.mxu0 %v2184
    %3003 = vmatprep.subr.bf16.mxu0 0
    %3004 = vmatpush1.bf16.msra.mxu0 %v2185
    %3005 = vmatprep.subr.bf16.mxu0 0
    %3006 = vmatpush1.bf16.msra.mxu0 %v2186
    %3007 = vmatprep.subr.bf16.mxu0 0
    %3008 = vmatpush1.bf16.msra.mxu0 %v2187
    %3009 = vmatprep.subr.bf16.mxu0 0
    %3010 = vmatpush1.bf16.msra.mxu0 %v2188
    %3011 = vmatprep.subr.bf16.mxu0 0
    %3012 = vmatpush1.bf16.msra.mxu0 %v2189
    %3013 = vmatprep.subr.bf16.mxu0 0
    %3014 = vmatpush1.bf16.msra.mxu0 %v2190
    %3015 = vmatprep.subr.bf16.mxu0 0
    %3016 = vmatpush1.bf16.msra.mxu0 %v2191
    %3017 = vmatprep.subr.bf16.mxu0 0
    %3018 = vmatpush1.bf16.msra.mxu0 %v2192
    %3019 = vmatprep.subr.bf16.mxu0 0
    %3020 = vmatpush1.bf16.msra.mxu0 %v2193
    %3021 = vmatprep.subr.bf16.mxu0 0
    %3022 = vmatpush1.bf16.msra.mxu0 %v2194
    %3023 = vmatprep.subr.bf16.mxu0 0
    %3024 = vmatpush1.bf16.msra.mxu0 %v2195
    %3025 = vmatprep.subr.bf16.mxu0 0
    %3026 = vmatpush1.bf16.msra.mxu0 %v2196
    %3027 = vmatprep.subr.bf16.mxu0 0
    %3028 = vmatpush1.bf16.msra.mxu0 %v2197
    %3029 = vmatprep.subr.bf16.mxu0 0
    %3030 = vmatpush1.bf16.msra.mxu0 %v2198
    %3031 = vmatprep.mubr.bf16.mxu0 %v757
    %3032 = vmatmul.mubr.bf16.gmra.mrb[0].mxu0 %v743
    %v3033 = vpop.f32.mrb[0].mxu0
    %v3034 = vadd.f32 %v2994, %v3033
    %v3035 = vpop.f32.mrb[0].mxu0
    %v3036 = vpop.f32.mrb[0].mxu0
    %v3037 = vpop.f32.mrb[0].mxu0
    %3038 = vdwg.mxu0
    %3039 = vmatprep.subr.bf16.mxu0 0
    %3040 = vmatpush1.bf16.msra.mxu0 %v2199
    %3041 = vmatprep.subr.bf16.mxu0 0
    %3042 = vmatpush1.bf16.msra.mxu0 %v2200
    %3043 = vmatprep.subr.bf16.mxu0 0
    %3044 = vmatpush1.bf16.msra.mxu0 %v2201
    %3045 = vmatprep.subr.bf16.mxu0 0
    %3046 = vmatpush1.bf16.msra.mxu0 %v2202
    %3047 = vmatprep.subr.bf16.mxu0 0
    %3048 = vmatpush1.bf16.msra.mxu0 %v2203
    %3049 = vmatprep.subr.bf16.mxu0 0
    %3050 = vmatpush1.bf16.msra.mxu0 %v2204
    %3051 = vmatprep.subr.bf16.mxu0 0
    %3052 = vmatpush1.bf16.msra.mxu0 %v2205
    %3053 = vmatprep.subr.bf16.mxu0 0
    %3054 = vmatpush1.bf16.msra.mxu0 %v2206
    %3055 = vmatprep.subr.bf16.mxu0 0
    %3056 = vmatpush1.bf16.msra.mxu0 %v2207
    %3057 = vmatprep.subr.bf16.mxu0 0
    %3058 = vmatpush1.bf16.msra.mxu0 %v2208
    %3059 = vmatprep.subr.bf16.mxu0 0
    %3060 = vmatpush1.bf16.msra.mxu0 %v2209
    %3061 = vmatprep.subr.bf16.mxu0 0
    %3062 = vmatpush1.bf16.msra.mxu0 %v2210
    %3063 = vmatprep.subr.bf16.mxu0 0
    %3064 = vmatpush1.bf16.msra.mxu0 %v2211
    %3065 = vmatprep.subr.bf16.mxu0 0
    %3066 = vmatpush1.bf16.msra.mxu0 %v2212
    %3067 = vmatprep.subr.bf16.mxu0 0
    %3068 = vmatpush1.bf16.msra.mxu0 %v2213
    %3069 = vmatprep.subr.bf16.mxu0 0
    %3070 = vmatpush1.bf16.msra.mxu0 %v2214
    %3071 = vmatprep.mubr.bf16.mxu0 %v761
    %3072 = vmatmul.mubr.bf16.gmra.mrb[0].mxu0 %v759
    %v3073 = vpop.f32.mrb[0].mxu0
    %v3074 = vadd.f32 %v3034, %v3073
    %v3075 = vpop.f32.mrb[0].mxu0
    %v3076 = vpop.f32.mrb[0].mxu0
    %v3077 = vpop.f32.mrb[0].mxu0
    %3078 = vdwg.mxu0
    %3079 = vmatprep.subr.bf16.mxu0 0
    %3080 = vmatpush1.bf16.msra.mxu0 %v2215
    %3081 = vmatprep.subr.bf16.mxu0 0
    %3082 = vmatpush1.bf16.msra.mxu0 %v2216
    %3083 = vmatprep.subr.bf16.mxu0 0
    %3084 = vmatpush1.bf16.msra.mxu0 %v2217
    %3085 = vmatprep.subr.bf16.mxu0 0
    %3086 = vmatpush1.bf16.msra.mxu0 %v2218
    %3087 = vmatprep.subr.bf16.mxu0 0
    %3088 = vmatpush1.bf16.msra.mxu0 %v2219
    %3089 = vmatprep.subr.bf16.mxu0 0
    %3090 = vmatpush1.bf16.msra.mxu0 %v2220
    %3091 = vmatprep.subr.bf16.mxu0 0
    %3092 = vmatpush1.bf16.msra.mxu0 %v2221
    %3093 = vmatprep.subr.bf16.mxu0 0
    %3094 = vmatpush1.bf16.msra.mxu0 %v2222
    %3095 = vmatprep.subr.bf16.mxu0 0
    %3096 = vmatpush1.bf16.msra.mxu0 %v2223
    %3097 = vmatprep.subr.bf16.mxu0 0
    %3098 = vmatpush1.bf16.msra.mxu0 %v2224
    %3099 = vmatprep.subr.bf16.mxu0 0
    %3100 = vmatpush1.bf16.msra.mxu0 %v2225
    %3101 = vmatprep.subr.bf16.mxu0 0
    %3102 = vmatpush1.bf16.msra.mxu0 %v2226
    %3103 = vmatprep.subr.bf16.mxu0 0
    %3104 = vmatpush1.bf16.msra.mxu0 %v2227
    %3105 = vmatprep.subr.bf16.mxu0 0
    %3106 = vmatpush1.bf16.msra.mxu0 %v2228
    %3107 = vmatprep.subr.bf16.mxu0 0
    %3108 = vmatpush1.bf16.msra.mxu0 %v2229
    %3109 = vmatprep.subr.bf16.mxu0 0
    %3110 = vmatpush1.bf16.msra.mxu0 %v2230
    %3111 = vmatprep.mubr.bf16.mxu0 %v799
    %3112 = vmatmul.mubr.bf16.gmra.mrb[0].mxu0 %v785
    %v3113 = vpop.f32.mrb[0].mxu0
    %v3114 = vadd.f32 %v3074, %v3113
    %v3115 = vpop.f32.mrb[0].mxu0
    %v3116 = vpop.f32.mrb[0].mxu0
    %v3117 = vpop.f32.mrb[0].mxu0
    %3118 = vdwg.mxu0
    %3119 = vmatprep.subr.bf16.mxu0 0
    %3120 = vmatpush1.bf16.msra.mxu0 %v2231
    %3121 = vmatprep.subr.bf16.mxu0 0
    %3122 = vmatpush1.bf16.msra.mxu0 %v2232
    %3123 = vmatprep.subr.bf16.mxu0 0
    %3124 = vmatpush1.bf16.msra.mxu0 %v2233
    %3125 = vmatprep.subr.bf16.mxu0 0
    %3126 = vmatpush1.bf16.msra.mxu0 %v2234
    %3127 = vmatprep.subr.bf16.mxu0 0
    %3128 = vmatpush1.bf16.msra.mxu0 %v2235
    %3129 = vmatprep.subr.bf16.mxu0 0
    %3130 = vmatpush1.bf16.msra.mxu0 %v2236
    %3131 = vmatprep.subr.bf16.mxu0 0
    %3132 = vmatpush1.bf16.msra.mxu0 %v2237
    %3133 = vmatprep.subr.bf16.mxu0 0
    %3134 = vmatpush1.bf16.msra.mxu0 %v2238
    %3135 = vmatprep.subr.bf16.mxu0 0
    %3136 = vmatpush1.bf16.msra.mxu0 %v2239
    %3137 = vmatprep.subr.bf16.mxu0 0
    %3138 = vmatpush1.bf16.msra.mxu0 %v2240
    %3139 = vmatprep.subr.bf16.mxu0 0
    %3140 = vmatpush1.bf16.msra.mxu0 %v2241
    %3141 = vmatprep.subr.bf16.mxu0 0
    %3142 = vmatpush1.bf16.msra.mxu0 %v2242
    %3143 = vmatprep.subr.bf16.mxu0 0
    %3144 = vmatpush1.bf16.msra.mxu0 %v2243
    %3145 = vmatprep.subr.bf16.mxu0 0
    %3146 = vmatpush1.bf16.msra.mxu0 %v2244
    %3147 = vmatprep.subr.bf16.mxu0 0
    %3148 = vmatpush1.bf16.msra.mxu0 %v2245
    %3149 = vmatprep.subr.bf16.mxu0 0
    %3150 = vmatpush1.bf16.msra.mxu0 %v2246
    %3151 = vmatprep.mubr.bf16.mxu0 %v809
    %3152 = vmatmul.mubr.bf16.gmra.mrb[0].mxu0 %v807
    %v3153 = vpop.f32.mrb[0].mxu0
    %v3154 = vadd.f32 %v3114, %v3153
    %v3155 = vpop.f32.mrb[0].mxu0
    %v3156 = vpop.f32.mrb[0].mxu0
    %v3157 = vpop.f32.mrb[0].mxu0
    %3158 = vdwg.mxu0
    %3159 = vmatprep.subr.bf16.mxu0 0
    %3160 = vmatpush1.bf16.msra.mxu0 %v2247
    %3161 = vmatprep.subr.bf16.mxu0 0
    %3162 = vmatpush1.bf16.msra.mxu0 %v2248
    %3163 = vmatprep.subr.bf16.mxu0 0
    %3164 = vmatpush1.bf16.msra.mxu0 %v2249
    %3165 = vmatprep.subr.bf16.mxu0 0
    %3166 = vmatpush1.bf16.msra.mxu0 %v2250
    %3167 = vmatprep.subr.bf16.mxu0 0
    %3168 = vmatpush1.bf16.msra.mxu0 %v2251
    %3169 = vmatprep.subr.bf16.mxu0 0
    %3170 = vmatpush1.bf16.msra.mxu0 %v2252
    %3171 = vmatprep.subr.bf16.mxu0 0
    %3172 = vmatpush1.bf16.msra.mxu0 %v2253
    %3173 = vmatprep.subr.bf16.mxu0 0
    %3174 = vmatpush1.bf16.msra.mxu0 %v2254
    %3175 = vmatprep.subr.bf16.mxu0 0
    %3176 = vmatpush1.bf16.msra.mxu0 %v2255
    %3177 = vmatprep.subr.bf16.mxu0 0
    %3178 = vmatpush1.bf16.msra.mxu0 %v2256
    %3179 = vmatprep.subr.bf16.mxu0 0
    %3180 = vmatpush1.bf16.msra.mxu0 %v2257
    %3181 = vmatprep.subr.bf16.mxu0 0
    %3182 = vmatpush1.bf16.msra.mxu0 %v2258
    %3183 = vmatprep.subr.bf16.mxu0 0
    %3184 = vmatpush1.bf16.msra.mxu0 %v2259
    %3185 = vmatprep.subr.bf16.mxu0 0
    %3186 = vmatpush1.bf16.msra.mxu0 %v2260
    %3187 = vmatprep.subr.bf16.mxu0 0
    %3188 = vmatpush1.bf16.msra.mxu0 %v2261
    %3189 = vmatprep.subr.bf16.mxu0 0
    %3190 = vmatpush1.bf16.msra.mxu0 %v2262
    %3191 = vmatprep.mubr.bf16.mxu0 %v806
    %3192 = vmatmul.mubr.bf16.gmra.mrb[0].mxu0 %v792
    %v3193 = vpop.f32.mrb[0].mxu0
    %v3194 = vadd.f32 %v3154, %v3193
    %v3195 = vpop.f32.mrb[0].mxu0
    %v3196 = vpop.f32.mrb[0].mxu0
    %v3197 = vpop.f32.mrb[0].mxu0
    %3198 = vdwg.mxu0
    %3199 = vmatprep.subr.bf16.mxu0 0
    %3200 = vmatpush1.bf16.msra.mxu0 %v2263
    %3201 = vmatprep.subr.bf16.mxu0 0
    %3202 = vmatpush1.bf16.msra.mxu0 %v2264
    %3203 = vmatprep.subr.bf16.mxu0 0
    %3204 = vmatpush1.bf16.msra.mxu0 %v2265
    %3205 = vmatprep.subr.bf16.mxu0 0
    %3206 = vmatpush1.bf16.msra.mxu0 %v2266
    %3207 = vmatprep.subr.bf16.mxu0 0
    %3208 = vmatpush1.bf16.msra.mxu0 %v2267
    %3209 = vmatprep.subr.bf16.mxu0 0
    %3210 = vmatpush1.bf16.msra.mxu0 %v2268
    %3211 = vmatprep.subr.bf16.mxu0 0
    %3212 = vmatpush1.bf16.msra.mxu0 %v2269
    %3213 = vmatprep.subr.bf16.mxu0 0
    %3214 = vmatpush1.bf16.msra.mxu0 %v2270
    %3215 = vmatprep.subr.bf16.mxu0 0
    %3216 = vmatpush1.bf16.msra.mxu0 %v2271
    %3217 = vmatprep.subr.bf16.mxu0 0
    %3218 = vmatpush1.bf16.msra.mxu0 %v2272
    %3219 = vmatprep.subr.bf16.mxu0 0
    %3220 = vmatpush1.bf16.msra.mxu0 %v2273
    %3221 = vmatprep.subr.bf16.mxu0 0
    %3222 = vmatpush1.bf16.msra.mxu0 %v2274
    %3223 = vmatprep.subr.bf16.mxu0 0
    %3224 = vmatpush1.bf16.msra.mxu0 %v2275
    %3225 = vmatprep.subr.bf16.mxu0 0
    %3226 = vmatpush1.bf16.msra.mxu0 %v2276
    %3227 = vmatprep.subr.bf16.mxu0 0
    %3228 = vmatpush1.bf16.msra.mxu0 %v2277
    %3229 = vmatprep.subr.bf16.mxu0 0
    %3230 = vmatpush1.bf16.msra.mxu0 %v2278
    %3231 = vmatprep.mubr.bf16.mxu0 %v810
    %3232 = vmatmul.mubr.bf16.gmra.mrb[0].mxu0 %v808
    %v3233 = vpop.f32.mrb[0].mxu0
    %v3234 = vadd.f32 %v3194, %v3233
    %v3235 = vpop.f32.mrb[0].mxu0
    %v3236 = vpop.f32.mrb[0].mxu0
    %v3237 = vpop.f32.mrb[0].mxu0
    %3238 = vdwg.mxu0
    %3239 = vmatprep.subr.bf16.mxu0 0
    %3240 = vmatpush1.bf16.msra.mxu0 %v2279
    %3241 = vmatprep.subr.bf16.mxu0 0
    %3242 = vmatpush1.bf16.msra.mxu0 %v2280
    %3243 = vmatprep.subr.bf16.mxu0 0
    %3244 = vmatpush1.bf16.msra.mxu0 %v2281
    %3245 = vmatprep.subr.bf16.mxu0 0
    %3246 = vmatpush1.bf16.msra.mxu0 %v2282
    %3247 = vmatprep.subr.bf16.mxu0 0
    %3248 = vmatpush1.bf16.msra.mxu0 %v2283
    %3249 = vmatprep.subr.bf16.mxu0 0
    %3250 = vmatpush1.bf16.msra.mxu0 %v2284
    %3251 = vmatprep.subr.bf16.mxu0 0
    %3252 = vmatpush1.bf16.msra.mxu0 %v2285
    %3253 = vmatprep.subr.bf16.mxu0 0
    %3254 = vmatpush1.bf16.msra.mxu0 %v2286
    %3255 = vmatprep.subr.bf16.mxu0 0
    %3256 = vmatpush1.bf16.msra.mxu0 %v2287
    %3257 = vmatprep.subr.bf16.mxu0 0
    %3258 = vmatpush1.bf16.msra.mxu0 %v2288
    %3259 = vmatprep.subr.bf16.mxu0 0
    %3260 = vmatpush1.bf16.msra.mxu0 %v2289
    %3261 = vmatprep.subr.bf16.mxu0 0
    %3262 = vmatpush1.bf16.msra.mxu0 %v2290
    %3263 = vmatprep.subr.bf16.mxu0 0
    %3264 = vmatpush1.bf16.msra.mxu0 %v2291
    %3265 = vmatprep.subr.bf16.mxu0 0
    %3266 = vmatpush1.bf16.msra.mxu0 %v2292
    %3267 = vmatprep.subr.bf16.mxu0 0
    %3268 = vmatpush1.bf16.msra.mxu0 %v2293
    %3269 = vmatprep.subr.bf16.mxu0 0
    %3270 = vmatpush1.bf16.msra.mxu0 %v2294
    %3271 = vmatprep.mubr.bf16.mxu0 %v832
    %3272 = vmatmul.mubr.bf16.gmra.mrb[0].mxu0 %v825
    %v3273 = vpop.f32.mrb[0].mxu0
    %v3274 = vadd.f32 %v3234, %v3273
    %v3275 = vpop.f32.mrb[0].mxu0
    %v3276 = vpop.f32.mrb[0].mxu0
    %v3277 = vpop.f32.mrb[0].mxu0
    %3278 = vdwg.mxu0
    %3279 = vmatprep.subr.bf16.mxu0 0
    %3280 = vmatpush1.bf16.msra.mxu0 %v2295
    %3281 = vmatprep.subr.bf16.mxu0 0
    %3282 = vmatpush1.bf16.msra.mxu0 %v2296
    %3283 = vmatprep.subr.bf16.mxu0 0
    %3284 = vmatpush1.bf16.msra.mxu0 %v2297
    %3285 = vmatprep.subr.bf16.mxu0 0
    %3286 = vmatpush1.bf16.msra.mxu0 %v2298
    %3287 = vmatprep.subr.bf16.mxu0 0
    %3288 = vmatpush1.bf16.msra.mxu0 %v2299
    %3289 = vmatprep.subr.bf16.mxu0 0
    %3290 = vmatpush1.bf16.msra.mxu0 %v2300
    %3291 = vmatprep.subr.bf16.mxu0 0
    %3292 = vmatpush1.bf16.msra.mxu0 %v2301
    %3293 = vmatprep.subr.bf16.mxu0 0
    %3294 = vmatpush1.bf16.msra.mxu0 %v2302
    %3295 = vmatprep.subr.bf16.mxu0 0
    %3296 = vmatpush1.bf16.msra.mxu0 %v2303
    %3297 = vmatprep.subr.bf16.mxu0 0
    %3298 = vmatpush1.bf16.msra.mxu0 %v2304
    %3299 = vmatprep.subr.bf16.mxu0 0
    %3300 = vmatpush1.bf16.msra.mxu0 %v2305
    %3301 = vmatprep.subr.bf16.mxu0 0
    %3302 = vmatpush1.bf16.msra.mxu0 %v2306
    %3303 = vmatprep.subr.bf16.mxu0 0
    %3304 = vmatpush1.bf16.msra.mxu0 %v2307
    %3305 = vmatprep.subr.bf16.mxu0 0
    %3306 = vmatpush1.bf16.msra.mxu0 %v2308
    %3307 = vmatprep.subr.bf16.mxu0 0
    %3308 = vmatpush1.bf16.msra.mxu0 %v2309
    %3309 = vmatprep.subr.bf16.mxu0 0
    %3310 = vmatpush1.bf16.msra.mxu0 %v2310
    %3311 = vmatprep.mubr.bf16.mxu0 %v834
    %3312 = vmatmul.mubr.bf16.gmra.mrb[0].mxu0 %v833
    %v3313 = vpop.f32.mrb[0].mxu0
    %v3314 = vadd.f32 %v3274, %v3313
    %v3315 = vpop.f32.mrb[0].mxu0
    %v3316 = vpop.f32.mrb[0].mxu0
    %v3317 = vpop.f32.mrb[0].mxu0
    %3318 = vdwg.mxu0
    %v3319 = vmax.f32 %v3314, 0.0
    %v3320 = vpack.c.bf16 %v3319, %v3319
    %v3321 = vld [vmem:[%s3] sm:$0xf]
    %v3322 = vld [vmem:[%s3 + $0x4] sm:$0xf]
    %v3323 = vld [vmem:[%s3 + $0x8] sm:$0xf]
    %v3324 = vld [vmem:[%s3 + $0xc] sm:$0xf]
    %v3325 = vld [vmem:[%s3 + $0x10] sm:$0xf]
    %v3326 = vld [vmem:[%s3 + $0x14] sm:$0xf]
    %v3327 = vld [vmem:[%s3 + $0x18] sm:$0xf]
    %v3328 = vld [vmem:[%s3 + $0x1c] sm:$0xf]
    %v3329 = vld [vmem:[%s4] sm:$0x1]
    %v3331 = vlaneseq
    %v3332 = vshrl.u32 %v3331, 7
    %v3333 = vsub.s32 0, %v3332
    %v3334 = vrot.slane %v3329, %v3333
    %v3344 = vunpack.c.l.b16 %v3321
    %v3345 = vunpack.c.l.b16 %v3322
    %v3346 = vunpack.c.l.b16 %v3323
    %v3347 = vunpack.c.l.b16 %v3324
    %v3348 = vunpack.c.l.b16 %v3325
    %v3349 = vunpack.c.l.b16 %v3326
    %v3350 = vunpack.c.l.b16 %v3327
    %v3351 = vunpack.c.l.b16 %v3328
    %v3352 = vpack.c.b16 %v3345, %v3344
    %v3353 = vpack.c.b16 %v3347, %v3346
    %v3354 = vpack.c.b16 %v3349, %v3348
    %v3355 = vpack.c.b16 %v3351, %v3350
    %vm3360 = vcmask 523264
    %v3362 = vsel %vm3360, %v3320, 0
    %3364 = vmatprep.subr.bf16.mxu0 0
    %3365 = vmatpush1.bf16.msra.mxu0 %v3352
    %3366 = vmatprep.subr.bf16.mxu0 0
    %3367 = vmatpush1.bf16.msra.mxu0 %v3353
    %3368 = vmatprep.subr.bf16.mxu0 0
    %3369 = vmatpush1.bf16.msra.mxu0 %v3354
    %3370 = vmatprep.subr.bf16.mxu0 0
    %3371 = vmatpush1.bf16.msra.mxu0 %v3355
    %3372 = vmatprep.subr.bf16.mxu0 0
    %3373 = vmatpush1.bf16.msra.mxu0 0
    %3374 = vmatprep.subr.bf16.mxu0 0
    %3375 = vmatpush1.bf16.msra.mxu0 0
    %3376 = vmatprep.subr.bf16.mxu0 0
    %3377 = vmatpush1.bf16.msra.mxu0 0
    %3378 = vmatprep.subr.bf16.mxu0 0
    %3379 = vmatpush1.bf16.msra.mxu0 0
    %3380 = vmatprep.subr.bf16.mxu0 0
    %3381 = vmatpush1.bf16.msra.mxu0 0
    %3382 = vmatprep.subr.bf16.mxu0 0
    %3383 = vmatpush1.bf16.msra.mxu0 0
    %3384 = vmatprep.subr.bf16.mxu0 0
    %3385 = vmatpush1.bf16.msra.mxu0 0
    %3386 = vmatprep.subr.bf16.mxu0 0
    %3387 = vmatpush1.bf16.msra.mxu0 0
    %3388 = vmatprep.subr.bf16.mxu0 0
    %3389 = vmatpush1.bf16.msra.mxu0 0
    %3390 = vmatprep.subr.bf16.mxu0 0
    %3391 = vmatpush1.bf16.msra.mxu0 0
    %3392 = vmatprep.subr.bf16.mxu0 0
    %3393 = vmatpush1.bf16.msra.mxu0 0
    %3394 = vmatprep.subr.bf16.mxu0 0
    %3395 = vmatpush1.bf16.msra.mxu0 0
    %3396 = vmatprep.mubr.bf16.mxu0 0
    %3397 = vmatmul.mubr.bf16.gmra.mrb[0].mxu0 %v3362
    %v3398 = vpop.f32.mrb[0].mxu0
    %v3399 = vadd.f32 %v3334, %v3398
    %v3400 = vpop.f32.mrb[0].mxu0
    %v3401 = vpop.f32.mrb[0].mxu0
    %v3402 = vpop.f32.mrb[0].mxu0
    %3403 = vdwg.mxu0
    %vm3404 = vcmask 9216
    %3405 = vst.msk [vmem:[#allocation2] sm:$0x3] %vm3404, %v3399
    // Predicated region
    $region22: #{module1_forward.9} parent=1 // pred_check
      _
    $region23: #{module1_forward.9} parent=1 // pred_check_branch
      %3407 = sbr.rel (0) target = $region25
    $region24: #{module1_forward.9} parent=1 // pred_region
      %s3409 = ssub.s32 32, 32
      %3410 = vsyncadd [#allocation3], %s3409
      %s3412 = sshll.u32 [#allocation2], 4
      %s3413 = int_to_ptr.vmem [resolvable:$true] %s3412
      %3415 = dma.vmem_to_hbm [thread:$0]  %s3413, 32, %s5, [#allocation3]
    $region25: #{module1_forward.9} parent=1 // pred_fallthru
      _
    // Predicated region
    $region26: #{module1_forward.9} parent=1 // pred_check
      _
    $region27: #{module1_forward.9} parent=1 // pred_check_branch
      %3417 = sbr.rel (0) target = $region29
    $region28: #{module1_forward.9} parent=1 // pred_region
      %3418 = dma.done [#allocation3], 32
    $region29: #{module1_forward.9} parent=1 // pred_fallthru
      _
    %3419 = vsyncpa [#allocation3], 1

</llo_original>
